<compile_context>
chip_gen: v7x
topology: tpu7x:2x2x1
jax: 0.10.0
libtpu: 0.0.40
codegen_flags: <defaults>
</compile_context>

<pallas_src>
import jax
import jax.numpy as jnp
from jax import lax
from jax.experimental import pallas as pl
from jax.experimental.pallas import tpu as pltpu


# ---------------------------------------------------------------------------
# Kernel A: fused conv tower (conv3x3 -> bias -> ReLU -> 2x2 maxpool, x3)
# ---------------------------------------------------------------------------

def _tower_kernel(patch_ref, w1_ref, b1_ref, w2_ref, b2_ref, w3_ref, b3_ref,
                  feat_ref, p2_ref, p3_ref, t2_ref, t3_ref):
    f32 = jnp.float32
    bf16 = jnp.bfloat16

    # Zero only the pad-border strips of the dx-folded buffers (interior is fully
    # rewritten every image).  Done per grid step (cheap) so it is also correct when
    # the batch grid is split across TensorCores.
    p2_ref[0] = jnp.zeros((36, 96), f32)
    p2_ref[33] = jnp.zeros((36, 96), f32)
    p2_ref[1:33, 2:3, 0:32] = jnp.zeros((32, 1, 32), f32)      # left pad of dx=0 block
    p2_ref[1:33, 33:34, 64:96] = jnp.zeros((32, 1, 32), f32)   # right pad of dx=2 block
    p3_ref[0] = jnp.zeros((20, 192), f32)
    p3_ref[17] = jnp.zeros((20, 192), f32)
    p3_ref[1:17, 2:3, 0:64] = jnp.zeros((16, 1, 64), f32)
    p3_ref[1:17, 17:18, 128:192] = jnp.zeros((16, 1, 64), f32)

    # ---- layer 1: pixel-pair-packed conv1, one (256,64)@(64,64) matmul per chunk ----
    w1 = w1_ref[...]                           # (64, 64) bf16 block-diagonal
    b1 = b1_ref[...]                           # (1, 64) f32  (bias tiled twice)

    def l1_chunk(ci, carry):                   # chunk = 8 image rows = 256 packed rows
        m0 = pl.multiple_of(ci * 256, 256)
        lhs = patch_ref[pl.ds(m0, 256), :]                              # (256,64) bf16
        acc = jnp.dot(lhs, w1, preferred_element_type=f32)              # (256,64) f32
        y = jnp.maximum(acc + b1, 0.0)
        wp = jnp.maximum(y[:, 0:32], y[:, 32:64])      # W-pool: free lane-block max
        hp = wp.reshape(4, 2, 32, 32)
        pooled = jnp.maximum(hp[:, 0], hp[:, 1])       # H-pool: free leading split
        r0 = 1 + ci * 4                                # pooled rows 4*ci .. 4*ci+3
        p2_ref[pl.ds(r0, 4), 3:35, 0:32] = pooled      # dx = 0 lane block
        p2_ref[pl.ds(r0, 4), 2:34, 32:64] = pooled     # dx = 1
        p2_ref[pl.ds(r0, 4), 1:33, 64:96] = pooled     # dx = 2
        return carry

    lax.fori_loop(0, 8, l1_chunk, 0)

    # ---- layer 2: dx-folded conv2, 3 x (128,96)@(96,64) per 4-row chunk ----
    b2 = b2_ref[...]

    def l2_chunk(ci, carry):
        h0 = ci * 4
        acc = jnp.zeros((128, 64), f32)
        for dy in range(3):
            lhs = p2_ref[pl.ds(h0 + dy, 4), 2:34, :].reshape(128, 96).astype(bf16)
            acc = acc + jnp.dot(lhs, w2_ref[dy], preferred_element_type=f32)
        y = jnp.maximum(acc + b2, 0.0).reshape(2, 2, 32, 64)
        t2_ref[...] = jnp.maximum(y[:, 0], y[:, 1])                     # H-pool (2,32,64)
        pooled = jnp.maximum(t2_ref[:, pl.ds(0, 16, stride=2), :],
                             t2_ref[:, pl.ds(1, 16, stride=2), :])      # W-pool (2,16,64)
        r0 = 1 + ci * 2
        p3_ref[pl.ds(r0, 2), 3:19, 0:64] = pooled
        p3_ref[pl.ds(r0, 2), 2:18, 64:128] = pooled
        p3_ref[pl.ds(r0, 2), 1:17, 128:192] = pooled
        return carry

    lax.fori_loop(0, 8, l2_chunk, 0)

    # ---- layer 3: dx-folded conv3, 3 x (128,192)@(192,128) per 8-row chunk ----
    b3 = b3_ref[...]
    for ci in range(2):                       # short static loop, static feat offsets
        acc = jnp.zeros((128, 128), f32)
        for dy in range(3):
            lhs = p3_ref[8 * ci + dy:8 * ci + dy + 8, 2:18, :].reshape(128, 192).astype(bf16)
            acc = acc + jnp.dot(lhs, w3_ref[dy], preferred_element_type=f32)
        y = jnp.maximum(acc + b3, 0.0).reshape(4, 2, 16, 128)
        t3_ref[...] = jnp.maximum(y[:, 0], y[:, 1])                     # H-pool (4,16,128)
        pooled = jnp.maximum(t3_ref[:, pl.ds(0, 8, stride=2), :],
                             t3_ref[:, pl.ds(1, 8, stride=2), :])       # W-pool (4,8,128)
        # feature row = h*8 + w, lane = channel  -> lane-dense output slab
        feat_ref[32 * ci:32 * ci + 32, :] = pooled.reshape(32, 128).astype(feat_ref.dtype)


def pallas_conv_tower(patches, c1w, c1b, c2w, c2b, c3w, c3b):
    B = patches.shape[0]
    flops = 2 * B * (2048 * 64 * 64 + 3 * 1024 * 96 * 64 + 3 * 256 * 192 * 128)
    bytes_accessed = (B * (2048 * 64 * 2 + 64 * 128 * 2)
                      + 2 * (64 * 64 + 3 * 96 * 64 + 3 * 192 * 128)
                      + 4 * (64 + 64 + 128))
    return pl.pallas_call(
        _tower_kernel,
        out_shape=jax.ShapeDtypeStruct((B, 64, 128), jnp.bfloat16),
        grid=(B,),
        in_specs=[
            pl.BlockSpec((None, 2048, 64), lambda b: (b, 0, 0)),   # packed im2col patches
            pl.BlockSpec((64, 64), lambda b: (0, 0)),              # conv1 block-diag weight
            pl.BlockSpec((1, 64), lambda b: (0, 0)),
            pl.BlockSpec((3, 96, 64), lambda b: (0, 0, 0)),        # conv2 dx-folded weight
            pl.BlockSpec((1, 64), lambda b: (0, 0)),
            pl.BlockSpec((3, 192, 128), lambda b: (0, 0, 0)),      # conv3 dx-folded weight
            pl.BlockSpec((1, 128), lambda b: (0, 0)),
        ],
        out_specs=pl.BlockSpec((None, 64, 128), lambda b: (b, 0, 0)),
        scratch_shapes=[
            pltpu.VMEM((34, 36, 96), jnp.float32),    # dx-folded padded input of conv2
            pltpu.VMEM((18, 20, 192), jnp.float32),   # dx-folded padded input of conv3
            pltpu.VMEM((2, 32, 64), jnp.float32),     # per-chunk H-pooled temp, conv2
            pltpu.VMEM((4, 16, 128), jnp.float32),    # per-chunk H-pooled temp, conv3
        ],
        compiler_params=pltpu.CompilerParams(
            dimension_semantics=("parallel",),        # batch across TCs on v7x
            vmem_limit_bytes=32 * 1024 * 1024,        # usage ~3 MiB, safe on 64 MiB v7x
        ),
        cost_estimate=pl.CostEstimate(flops=flops, transcendentals=0,
                                      bytes_accessed=bytes_accessed),
    )(patches, c1w, c1b, c2w, c2b, c3w, c3b)


# ---------------------------------------------------------------------------
# Kernel B: fused head (fc1 -> ReLU -> (dropout) -> fc2)
# ---------------------------------------------------------------------------

def _head_kernel(f_ref, w1_ref, b1_ref, w2_ref, b2_ref, o_ref):
    h = jnp.dot(f_ref[...], w1_ref[...], preferred_element_type=jnp.float32)
    h = jnp.maximum(h + b1_ref[...], 0.0)
    # TODO(synk): Dropout(0.3) is identity at inference; train-mode mask/scaling not implemented.
    o = jnp.dot(h, w2_ref[...], preferred_element_type=jnp.float32) + b2_ref[...]
    o_ref[...] = o.astype(o_ref.dtype)


def pallas_head(feat, f1w, f1b, f2w, f2b):
    B, K = feat.shape
    flops = 2 * B * (K * 128 + 128 * 2)
    bytes_accessed = B * (K * 2 + 2 * 4) + K * 128 * 2 + 128 * 4 + 128 * 2 * 4 + 2 * 4
    return pl.pallas_call(
        _head_kernel,
        out_shape=jax.ShapeDtypeStruct((B, 2), jnp.float32),
        grid=(1,),
        in_specs=[
            pl.BlockSpec((B, K), lambda i: (0, 0)),
            pl.BlockSpec((K, 128), lambda i: (0, 0)),
            pl.BlockSpec((1, 128), lambda i: (0, 0)),
            pl.BlockSpec((128, 2), lambda i: (0, 0)),
            pl.BlockSpec((1, 2), lambda i: (0, 0)),
        ],
        out_specs=pl.BlockSpec((B, 2), lambda i: (0, 0)),
        compiler_params=pltpu.CompilerParams(
            dimension_semantics=("arbitrary",),
            vmem_limit_bytes=32 * 1024 * 1024,
        ),
        cost_estimate=pl.CostEstimate(flops=flops, transcendentals=0,
                                      bytes_accessed=bytes_accessed),
    )(feat, f1w, f1b, f2w, f2b)


# ---------------------------------------------------------------------------
# Parameter prep (one-time, offline) + forward
# ---------------------------------------------------------------------------

def init_params(key):
    """Deterministic synthetic params, PyTorch layouts/shapes from __init__."""
    ks = jax.random.split(key, 10)

    def u(k, shape, fan_in):
        bound = 1.0 / (fan_in ** 0.5)
        return jax.random.uniform(k, shape, jnp.float32, -bound, bound)

    return {
        "conv1_w": u(ks[0], (32, 3, 3, 3), 3 * 9),
        "conv1_b": u(ks[1], (32,), 3 * 9),
        "conv2_w": u(ks[2], (64, 32, 3, 3), 32 * 9),
        "conv2_b": u(ks[3], (64,), 32 * 9),
        "conv3_w": u(ks[4], (128, 64, 3, 3), 64 * 9),
        "conv3_b": u(ks[5], (128,), 64 * 9),
        "fc1_w": u(ks[6], (128, 128 * 8 * 8), 128 * 8 * 8),
        "fc1_b": u(ks[7], (128,), 128 * 8 * 8),
        "fc2_w": u(ks[8], (2, 128), 128),
        "fc2_b": u(ks[9], (2,), 128),
    }


def prepare_params(p):
    """One-time layout prep for the folded-K kernels."""
    def tap_fold(w):          # (Cout, Cin, 3, 3) -> (3, 3*Cin, Cout): [dy][dx*Cin + c][o]
        cout, cin = w.shape[0], w.shape[1]
        return jnp.transpose(w, (2, 3, 1, 0)).reshape(3, 3 * cin, cout).astype(jnp.bfloat16)

    # conv1: (27, 32) tap matrix, duplicated on a (64, 64) block diagonal so one LHS row
    # carries two adjacent pixels (pixel-pair packing; lanes = p*32 + k).
    w27 = jnp.transpose(p["conv1_w"], (2, 3, 1, 0)).reshape(27, 32)
    w1blk = jnp.zeros((64, 64), jnp.float32)
    w1blk = w1blk.at[0:27, 0:32].set(w27).at[32:59, 32:64].set(w27)

    # fc1 expects NCHW-flatten input (c*64 + h*8 + w); the kernel produces
    # (h*8 + w)*128 + c.  Permute the weight rows once offline.
    w1 = p["fc1_w"].reshape(128, 128, 8, 8)                              # (out, c, h, w)
    w1 = jnp.transpose(w1, (2, 3, 1, 0)).reshape(8 * 8 * 128, 128)       # rows in (h, w, c)

    return {
        "c1w": w1blk.astype(jnp.bfloat16),
        "c1b": jnp.concatenate([p["conv1_b"], p["conv1_b"]]).reshape(1, 64).astype(jnp.float32),
        "c2w": tap_fold(p["conv2_w"]), "c2b": p["conv2_b"].reshape(1, 64).astype(jnp.float32),
        "c3w": tap_fold(p["conv3_w"]), "c3b": p["conv3_b"].reshape(1, 128).astype(jnp.float32),
        "f1w": w1.astype(jnp.bfloat16),
        "f1b": p["fc1_b"].reshape(1, 128).astype(jnp.float32),
        "f2w": p["fc2_w"].T.astype(jnp.float32),                         # (128, 2)
        "f2b": p["fc2_b"].reshape(1, 2).astype(jnp.float32),
    }


def enhanced_cnn_forward(x_nchw, q):
    """Forward pass matching EnhancedCNN (inference semantics)."""
    B = x_nchw.shape[0]
    x = jnp.transpose(x_nchw, (0, 2, 3, 1)).astype(jnp.float32)          # NCHW -> NHWC
    # Layer-1 im2col + pixel-pair packing (tiny XLA data prep, ~260 KB/image bf16):
    # patch row g = h*32 + w//2, lanes = (w % 2)*32 + tap,  tap = dy*9 + dx*3 + c.
    xp = jnp.pad(x, ((0, 0), (1, 1), (1, 1), (0, 0)))
    taps = jnp.stack([xp[:, dy:dy + 64, dx:dx + 64, :]
                      for dy in range(3) for dx in range(3)], axis=3)    # (B,64,64,9,3)
    taps = taps.reshape(B, 64, 64, 27)
    taps = jnp.pad(taps, ((0, 0), (0, 0), (0, 0), (0, 5)))               # K 27 -> 32
    patches = taps.reshape(B, 64, 32, 2, 32).reshape(B, 2048, 64).astype(jnp.bfloat16)

    feat = pallas_conv_tower(patches, q["c1w"], q["c1b"], q["c2w"], q["c2b"],
                             q["c3w"], q["c3b"])
    feat = feat.reshape(B, 8 * 8 * 128)                                  # contiguous reshape
    return pallas_head(feat, q["f1w"], q["f1b"], q["f2w"], q["f2b"])


# Pure-JAX reference (PyTorch semantics, original f32 params) for correctness checking.
def ref_forward(x_nchw, p):
    def conv(x, w, b):
        y = jax.lax.conv_general_dilated(
            x, w, window_strides=(1, 1), padding=((1, 1), (1, 1)),
            dimension_numbers=("NCHW", "OIHW", "NCHW"))
        return jax.nn.relu(y + b[None, :, None, None])

    def pool(x):
        return jax.lax.reduce_window(
            x, -jnp.inf, jax.lax.max, (1, 1, 2, 2), (1, 1, 2, 2), "VALID")

    x = pool(conv(x_nchw, p["conv1_w"], p["conv1_b"]))
    x = pool(conv(x, p["conv2_w"], p["conv2_b"]))
    x = pool(conv(x, p["conv3_w"], p["conv3_b"]))
    x = x.reshape(x.shape[0], -1)
    x = jax.nn.relu(x @ p["fc1_w"].T + p["fc1_b"])
    return x @ p["fc2_w"].T + p["fc2_b"]


if __name__ == "__main__":
    key = jax.random.PRNGKey(0)
    k_x, k_p = jax.random.split(key)
    # fc1 = Linear(128*8*8, ...) with three 2x2 pools forces 64x64 spatial input.
    x = jax.random.normal(k_x, (2, 3, 64, 64), dtype=jnp.float32)
    params = init_params(k_p)
    prepped = prepare_params(params)

    fwd = jax.jit(enhanced_cnn_forward)
    out = jax.block_until_ready(fwd(x, prepped))
    assert out.shape == (2, 2), out.shape

    ref = jax.block_until_ready(jax.jit(ref_forward)(x, params))
    max_err = float(jnp.max(jnp.abs(out - ref)))
    # bf16 MXU path with f32 accumulation -> bf16-level tolerance.
    assert max_err < 3e-2, f"mismatch vs reference: {max_err}"

    print("KERNEL_OK")
</pallas_src>

<mosaic_0001>
module attributes {stable_mosaic.version = 11 : i64} {
  func.func @_tower_kernel(%arg0: i32, %arg1: memref<1x2048x64xbf16, #tpu.memory_space<vmem>>, %arg2: memref<64x64xbf16, #tpu.memory_space<vmem>>, %arg3: memref<1x64xf32, #tpu.memory_space<vmem>>, %arg4: memref<3x96x64xbf16, #tpu.memory_space<vmem>>, %arg5: memref<1x64xf32, #tpu.memory_space<vmem>>, %arg6: memref<3x192x128xbf16, #tpu.memory_space<vmem>>, %arg7: memref<1x128xf32, #tpu.memory_space<vmem>>, %arg8: memref<1x64x128xbf16, #tpu.memory_space<vmem>>, %arg9: memref<34x36x96xf32, #tpu.memory_space<vmem>>, %arg10: memref<18x20x192xf32, #tpu.memory_space<vmem>>, %arg11: memref<2x32x64xf32, #tpu.memory_space<vmem>>, %arg12: memref<4x16x128xf32, #tpu.memory_space<vmem>>) attributes {dimension_semantics = [#tpu.dimension_semantics<parallel>], iteration_bounds = array<i64: 2>, scalar_prefetch = 0 : i64, scratch_operands = 4 : i64, tpu.core_type = #tpu.core_type<tc>, window_params = [{transform_indices = @transform_0, window_bounds = array<i64: 1, 2048, 64>}, {pipeline_mode = #tpu.pipeline_mode<synchronous>, transform_indices = @transform_1, window_bounds = array<i64: 64, 64>}, {pipeline_mode = #tpu.pipeline_mode<synchronous>, transform_indices = @transform_2, window_bounds = array<i64: 1, 64>}, {pipeline_mode = #tpu.pipeline_mode<synchronous>, transform_indices = @transform_3, window_bounds = array<i64: 3, 96, 64>}, {pipeline_mode = #tpu.pipeline_mode<synchronous>, transform_indices = @transform_4, window_bounds = array<i64: 1, 64>}, {pipeline_mode = #tpu.pipeline_mode<synchronous>, transform_indices = @transform_5, window_bounds = array<i64: 3, 192, 128>}, {pipeline_mode = #tpu.pipeline_mode<synchronous>, transform_indices = @transform_6, window_bounds = array<i64: 1, 128>}, {transform_indices = @transform_7, window_bounds = array<i64: 1, 64, 128>}]} {
    %cst = arith.constant 0.000000e+00 : f32
    %0 = vector.broadcast %cst : f32 to vector<36x96xf32>
    %c0 = arith.constant 0 : index
    %c0_0 = arith.constant 0 : index
    %c0_1 = arith.constant 0 : index
    %1 = vector.load %arg9[%c0, %c0_0, %c0_1] : memref<34x36x96xf32, #tpu.memory_space<vmem>>, vector<1x36x96xf32>
    %2 = vector.shape_cast %1 : vector<1x36x96xf32> to vector<36x96xf32>
    %3 = vector.shape_cast %0 : vector<36x96xf32> to vector<1x36x96xf32>
    tpu.vector_store %arg9[%c0, %c0_0, %c0_1], %3 {strides = array<i32>} : memref<34x36x96xf32, #tpu.memory_space<vmem>>, vector<1x36x96xf32>,
    %cst_2 = arith.constant 0.000000e+00 : f32
    %4 = vector.broadcast %cst_2 : f32 to vector<36x96xf32>
    %c33 = arith.constant 33 : index
    %c0_3 = arith.constant 0 : index
    %c0_4 = arith.constant 0 : index
    %5 = vector.load %arg9[%c33, %c0_3, %c0_4] : memref<34x36x96xf32, #tpu.memory_space<vmem>>, vector<1x36x96xf32>
    %6 = vector.shape_cast %5 : vector<1x36x96xf32> to vector<36x96xf32>
    %7 = vector.shape_cast %4 : vector<36x96xf32> to vector<1x36x96xf32>
    tpu.vector_store %arg9[%c33, %c0_3, %c0_4], %7 {strides = array<i32>} : memref<34x36x96xf32, #tpu.memory_space<vmem>>, vector<1x36x96xf32>,
    %cst_5 = arith.constant 0.000000e+00 : f32
    %8 = vector.broadcast %cst_5 : f32 to vector<32x1x32xf32>
    %c1 = arith.constant 1 : index
    %c2 = arith.constant 2 : index
    %c0_6 = arith.constant 0 : index
    %9 = vector.load %arg9[%c1, %c2, %c0_6] : memref<34x36x96xf32, #tpu.memory_space<vmem>>, vector<32x1x32xf32>
    tpu.vector_store %arg9[%c1, %c2, %c0_6], %8 {strides = array<i32>} : memref<34x36x96xf32, #tpu.memory_space<vmem>>, vector<32x1x32xf32>,
    %cst_7 = arith.constant 0.000000e+00 : f32
    %10 = vector.broadcast %cst_7 : f32 to vector<32x1x32xf32>
    %c1_8 = arith.constant 1 : index
    %c33_9 = arith.constant 33 : index
    %c64 = arith.constant 64 : index
    %11 = vector.load %arg9[%c1_8, %c33_9, %c64] : memref<34x36x96xf32, #tpu.memory_space<vmem>>, vector<32x1x32xf32>
    tpu.vector_store %arg9[%c1_8, %c33_9, %c64], %10 {strides = array<i32>} : memref<34x36x96xf32, #tpu.memory_space<vmem>>, vector<32x1x32xf32>,
    %cst_10 = arith.constant 0.000000e+00 : f32
    %12 = vector.broadcast %cst_10 : f32 to vector<20x192xf32>
    %c0_11 = arith.constant 0 : index
    %c0_12 = arith.constant 0 : index
    %c0_13 = arith.constant 0 : index
    %13 = vector.load %arg10[%c0_11, %c0_12, %c0_13] : memref<18x20x192xf32, #tpu.memory_space<vmem>>, vector<1x20x192xf32>
    %14 = vector.shape_cast %13 : vector<1x20x192xf32> to vector<20x192xf32>
    %15 = vector.shape_cast %12 : vector<20x192xf32> to vector<1x20x192xf32>
    tpu.vector_store %arg10[%c0_11, %c0_12, %c0_13], %15 {strides = array<i32>} : memref<18x20x192xf32, #tpu.memory_space<vmem>>, vector<1x20x192xf32>,
    %cst_14 = arith.constant 0.000000e+00 : f32
    %16 = vector.broadcast %cst_14 : f32 to vector<20x192xf32>
    %c17 = arith.constant 17 : index
    %c0_15 = arith.constant 0 : index
    %c0_16 = arith.constant 0 : index
    %17 = vector.load %arg10[%c17, %c0_15, %c0_16] : memref<18x20x192xf32, #tpu.memory_space<vmem>>, vector<1x20x192xf32>
    %18 = vector.shape_cast %17 : vector<1x20x192xf32> to vector<20x192xf32>
    %19 = vector.shape_cast %16 : vector<20x192xf32> to vector<1x20x192xf32>
    tpu.vector_store %arg10[%c17, %c0_15, %c0_16], %19 {strides = array<i32>} : memref<18x20x192xf32, #tpu.memory_space<vmem>>, vector<1x20x192xf32>,
    %cst_17 = arith.constant 0.000000e+00 : f32
    %20 = vector.broadcast %cst_17 : f32 to vector<16x1x64xf32>
    %c1_18 = arith.constant 1 : index
    %c2_19 = arith.constant 2 : index
    %c0_20 = arith.constant 0 : index
    %21 = vector.load %arg10[%c1_18, %c2_19, %c0_20] : memref<18x20x192xf32, #tpu.memory_space<vmem>>, vector<16x1x64xf32>
    tpu.vector_store %arg10[%c1_18, %c2_19, %c0_20], %20 {strides = array<i32>} : memref<18x20x192xf32, #tpu.memory_space<vmem>>, vector<16x1x64xf32>,
    %cst_21 = arith.constant 0.000000e+00 : f32
    %22 = vector.broadcast %cst_21 : f32 to vector<16x1x64xf32>
    %c1_22 = arith.constant 1 : index
    %c17_23 = arith.constant 17 : index
    %c128 = arith.constant 128 : index
    %23 = vector.load %arg10[%c1_22, %c17_23, %c128] : memref<18x20x192xf32, #tpu.memory_space<vmem>>, vector<16x1x64xf32>
    tpu.vector_store %arg10[%c1_22, %c17_23, %c128], %22 {strides = array<i32>} : memref<18x20x192xf32, #tpu.memory_space<vmem>>, vector<16x1x64xf32>,
    %c0_24 = arith.constant 0 : index
    %c0_25 = arith.constant 0 : index
    %24 = vector.load %arg2[%c0_24, %c0_25] : memref<64x64xbf16, #tpu.memory_space<vmem>>, vector<64x64xbf16>
    %c0_26 = arith.constant 0 : index
    %c0_27 = arith.constant 0 : index
    %25 = vector.load %arg3[%c0_26, %c0_27] : memref<1x64xf32, #tpu.memory_space<vmem>>, vector<1x64xf32>
    %c0_i32 = arith.constant 0 : i32
    %c8_i32 = arith.constant 8 : i32
    %26 = arith.addi %c0_i32, %c8_i32 : i32
    %c1_i32 = arith.constant 1 : i32
    scf.for %arg13 = %c0_i32 to %26 step %c1_i32  : i32 {
      %c256_i32 = arith.constant 256 : i32
      %112 = arith.muli %arg13, %c256_i32 : i32
      %113 = tpu.assume_multiple %112, 256 : i32
      %c0_103 = arith.constant 0 : index
      %114 = arith.index_cast %113 : i32 to index
      %c0_104 = arith.constant 0 : index
      %115 = vector.load %arg1[%c0_103, %114, %c0_104] : memref<1x2048x64xbf16, #tpu.memory_space<vmem>>, vector<1x256x64xbf16>
      %116 = vector.shape_cast %115 : vector<1x256x64xbf16> to vector<256x64xbf16>
      %cst_105 = arith.constant dense<0.000000e+00> : vector<256x64xf32>
      %117 = tpu.matmul %116, %24, %cst_105 {dimension_numbers = #tpu.dot_dimension_numbers<[1], [0], [0], [1], [0, 0, 1, 1], [], []>} : vector<256x64xbf16>, vector<64x64xbf16>, vector<256x64xf32> -> vector<256x64xf32>
      %118 = vector.broadcast %25 : vector<1x64xf32> to vector<256x64xf32>
      %119 = arith.addf %117, %118 : vector<256x64xf32>
      %cst_106 = arith.constant 0.000000e+00 : f32
      %120 = vector.broadcast %cst_106 : f32 to vector<256x64xf32>
      %121 = arith.maximumf %119, %120 : vector<256x64xf32>
      %122 = vector.extract_strided_slice %121 {offsets = [0, 0], sizes = [256, 32], strides = [1, 1]} : vector<256x64xf32> to vector<256x32xf32>
      %123 = vector.extract_strided_slice %121 {offsets = [0, 32], sizes = [256, 32], strides = [1, 1]} : vector<256x64xf32> to vector<256x32xf32>
      %124 = arith.maximumf %122, %123 : vector<256x32xf32>
      %125 = vector.shape_cast %124 : vector<256x32xf32> to vector<4x2x32x32xf32>
      %126 = vector.extract_strided_slice %125 {offsets = [0, 0, 0, 0], sizes = [4, 1, 32, 32], strides = [1, 1, 1, 1]} : vector<4x2x32x32xf32> to vector<4x1x32x32xf32>
      %127 = vector.shape_cast %126 : vector<4x1x32x32xf32> to vector<4x32x32xf32>
      %128 = vector.extract_strided_slice %125 {offsets = [0, 1, 0, 0], sizes = [4, 1, 32, 32], strides = [1, 1, 1, 1]} : vector<4x2x32x32xf32> to vector<4x1x32x32xf32>
      %129 = vector.shape_cast %128 : vector<4x1x32x32xf32> to vector<4x32x32xf32>
      %130 = arith.maximumf %127, %129 : vector<4x32x32xf32>
      %c4_i32 = arith.constant 4 : i32
      %131 = arith.muli %arg13, %c4_i32 : i32
      %c1_i32_107 = arith.constant 1 : i32
      %132 = arith.addi %c1_i32_107, %131 : i32
      %133 = arith.index_cast %132 : i32 to index
      %c3 = arith.constant 3 : index
      %c0_108 = arith.constant 0 : index
      %134 = vector.load %arg9[%133, %c3, %c0_108] : memref<34x36x96xf32, #tpu.memory_space<vmem>>, vector<4x32x32xf32>
      tpu.vector_store %arg9[%133, %c3, %c0_108], %130 {strides = array<i32>} : memref<34x36x96xf32, #tpu.memory_space<vmem>>, vector<4x32x32xf32>,
      %135 = arith.index_cast %132 : i32 to index
      %c2_109 = arith.constant 2 : index
      %c32_110 = arith.constant 32 : index
      %136 = vector.load %arg9[%135, %c2_109, %c32_110] : memref<34x36x96xf32, #tpu.memory_space<vmem>>, vector<4x32x32xf32>
      tpu.vector_store %arg9[%135, %c2_109, %c32_110], %130 {strides = array<i32>} : memref<34x36x96xf32, #tpu.memory_space<vmem>>, vector<4x32x32xf32>,
      %137 = arith.index_cast %132 : i32 to index
      %c1_111 = arith.constant 1 : index
      %c64_112 = arith.constant 64 : index
      %138 = vector.load %arg9[%137, %c1_111, %c64_112] : memref<34x36x96xf32, #tpu.memory_space<vmem>>, vector<4x32x32xf32>
      tpu.vector_store %arg9[%137, %c1_111, %c64_112], %130 {strides = array<i32>} : memref<34x36x96xf32, #tpu.memory_space<vmem>>, vector<4x32x32xf32>,
    }
    %c8_i32_28 = arith.constant 8 : i32
    %c0_29 = arith.constant 0 : index
    %c0_30 = arith.constant 0 : index
    %27 = vector.load %arg5[%c0_29, %c0_30] : memref<1x64xf32, #tpu.memory_space<vmem>>, vector<1x64xf32>
    %c0_i32_31 = arith.constant 0 : i32
    %c8_i32_32 = arith.constant 8 : i32
    %28 = arith.addi %c0_i32_31, %c8_i32_32 : i32
    %c1_i32_33 = arith.constant 1 : i32
    scf.for %arg13 = %c0_i32_31 to %28 step %c1_i32_33  : i32 {
      %c4_i32 = arith.constant 4 : i32
      %112 = arith.muli %arg13, %c4_i32 : i32
      %cst_103 = arith.constant 0.000000e+00 : f32
      %113 = vector.broadcast %cst_103 : f32 to vector<128x64xf32>
      %c0_i32_104 = arith.constant 0 : i32
      %114 = arith.addi %112, %c0_i32_104 : i32
      %115 = arith.index_cast %114 : i32 to index
      %c2_105 = arith.constant 2 : index
      %c0_106 = arith.constant 0 : index
      %116 = vector.load %arg9[%115, %c2_105, %c0_106] : memref<34x36x96xf32, #tpu.memory_space<vmem>>, vector<4x32x96xf32>
      %117 = vector.shape_cast %116 : vector<4x32x96xf32> to vector<128x96xf32>
      %118 = arith.truncf %117 : vector<128x96xf32> to vector<128x96xbf16>
      %c0_107 = arith.constant 0 : index
      %c0_108 = arith.constant 0 : index
      %c0_109 = arith.constant 0 : index
      %119 = vector.load %arg4[%c0_107, %c0_108, %c0_109] : memref<3x96x64xbf16, #tpu.memory_space<vmem>>, vector<1x96x64xbf16>
      %120 = vector.shape_cast %119 : vector<1x96x64xbf16> to vector<96x64xbf16>
      %cst_110 = arith.constant dense<0.000000e+00> : vector<128x64xf32>
      %121 = tpu.matmul %118, %120, %cst_110 {dimension_numbers = #tpu.dot_dimension_numbers<[1], [0], [0], [1], [0, 0, 1, 1], [], []>} : vector<128x96xbf16>, vector<96x64xbf16>, vector<128x64xf32> -> vector<128x64xf32>
      %122 = arith.addf %113, %121 : vector<128x64xf32>
      %c1_i32_111 = arith.constant 1 : i32
      %123 = arith.addi %112, %c1_i32_111 : i32
      %124 = arith.index_cast %123 : i32 to index
      %c2_112 = arith.constant 2 : index
      %c0_113 = arith.constant 0 : index
      %125 = vector.load %arg9[%124, %c2_112, %c0_113] : memref<34x36x96xf32, #tpu.memory_space<vmem>>, vector<4x32x96xf32>
      %126 = vector.shape_cast %125 : vector<4x32x96xf32> to vector<128x96xf32>
      %127 = arith.truncf %126 : vector<128x96xf32> to vector<128x96xbf16>
      %c1_114 = arith.constant 1 : index
      %c0_115 = arith.constant 0 : index
      %c0_116 = arith.constant 0 : index
      %128 = vector.load %arg4[%c1_114, %c0_115, %c0_116] : memref<3x96x64xbf16, #tpu.memory_space<vmem>>, vector<1x96x64xbf16>
      %129 = vector.shape_cast %128 : vector<1x96x64xbf16> to vector<96x64xbf16>
      %cst_117 = arith.constant dense<0.000000e+00> : vector<128x64xf32>
      %130 = tpu.matmul %127, %129, %cst_117 {dimension_numbers = #tpu.dot_dimension_numbers<[1], [0], [0], [1], [0, 0, 1, 1], [], []>} : vector<128x96xbf16>, vector<96x64xbf16>, vector<128x64xf32> -> vector<128x64xf32>
      %131 = arith.addf %122, %130 : vector<128x64xf32>
      %c2_i32 = arith.constant 2 : i32
      %132 = arith.addi %112, %c2_i32 : i32
      %133 = arith.index_cast %132 : i32 to index
      %c2_118 = arith.constant 2 : index
      %c0_119 = arith.constant 0 : index
      %134 = vector.load %arg9[%133, %c2_118, %c0_119] : memref<34x36x96xf32, #tpu.memory_space<vmem>>, vector<4x32x96xf32>
      %135 = vector.shape_cast %134 : vector<4x32x96xf32> to vector<128x96xf32>
      %136 = arith.truncf %135 : vector<128x96xf32> to vector<128x96xbf16>
      %c2_120 = arith.constant 2 : index
      %c0_121 = arith.constant 0 : index
      %c0_122 = arith.constant 0 : index
      %137 = vector.load %arg4[%c2_120, %c0_121, %c0_122] : memref<3x96x64xbf16, #tpu.memory_space<vmem>>, vector<1x96x64xbf16>
      %138 = vector.shape_cast %137 : vector<1x96x64xbf16> to vector<96x64xbf16>
      %cst_123 = arith.constant dense<0.000000e+00> : vector<128x64xf32>
      %139 = tpu.matmul %136, %138, %cst_123 {dimension_numbers = #tpu.dot_dimension_numbers<[1], [0], [0], [1], [0, 0, 1, 1], [], []>} : vector<128x96xbf16>, vector<96x64xbf16>, vector<128x64xf32> -> vector<128x64xf32>
      %140 = arith.addf %131, %139 : vector<128x64xf32>
      %141 = vector.broadcast %27 : vector<1x64xf32> to vector<128x64xf32>
      %142 = arith.addf %140, %141 : vector<128x64xf32>
      %cst_124 = arith.constant 0.000000e+00 : f32
      %143 = vector.broadcast %cst_124 : f32 to vector<128x64xf32>
      %144 = arith.maximumf %142, %143 : vector<128x64xf32>
      %145 = vector.shape_cast %144 : vector<128x64xf32> to vector<2x2x32x64xf32>
      %146 = vector.extract_strided_slice %145 {offsets = [0, 0, 0, 0], sizes = [2, 1, 32, 64], strides = [1, 1, 1, 1]} : vector<2x2x32x64xf32> to vector<2x1x32x64xf32>
      %147 = vector.shape_cast %146 : vector<2x1x32x64xf32> to vector<2x32x64xf32>
      %148 = vector.extract_strided_slice %145 {offsets = [0, 1, 0, 0], sizes = [2, 1, 32, 64], strides = [1, 1, 1, 1]} : vector<2x2x32x64xf32> to vector<2x1x32x64xf32>
      %149 = vector.shape_cast %148 : vector<2x1x32x64xf32> to vector<2x32x64xf32>
      %150 = arith.maximumf %147, %149 : vector<2x32x64xf32>
      %c0_125 = arith.constant 0 : index
      %c0_126 = arith.constant 0 : index
      %c0_127 = arith.constant 0 : index
      %151 = vector.load %arg11[%c0_125, %c0_126, %c0_127] : memref<2x32x64xf32, #tpu.memory_space<vmem>>, vector<2x32x64xf32>
      tpu.vector_store %arg11[%c0_125, %c0_126, %c0_127], %150 {strides = array<i32>} : memref<2x32x64xf32, #tpu.memory_space<vmem>>, vector<2x32x64xf32>,
      %c0_128 = arith.constant 0 : index
      %c0_129 = arith.constant 0 : index
      %c0_130 = arith.constant 0 : index
      %152 = tpu.strided_load %arg11[%c0_128, %c0_129, %c0_130] {strides = array<i32: 1, 2, 1>} : memref<2x32x64xf32, #tpu.memory_space<vmem>>, vector<2x16x64xf32>
      %c0_131 = arith.constant 0 : index
      %c1_132 = arith.constant 1 : index
      %c0_133 = arith.constant 0 : index
      %153 = tpu.strided_load %arg11[%c0_131, %c1_132, %c0_133] {strides = array<i32: 1, 2, 1>} : memref<2x32x64xf32, #tpu.memory_space<vmem>>, vector<2x16x64xf32>
      %154 = arith.maximumf %152, %153 : vector<2x16x64xf32>
      %c2_i32_134 = arith.constant 2 : i32
      %155 = arith.muli %arg13, %c2_i32_134 : i32
      %c1_i32_135 = arith.constant 1 : i32
      %156 = arith.addi %c1_i32_135, %155 : i32
      %157 = arith.index_cast %156 : i32 to index
      %c3 = arith.constant 3 : index
      %c0_136 = arith.constant 0 : index
      %158 = vector.load %arg10[%157, %c3, %c0_136] : memref<18x20x192xf32, #tpu.memory_space<vmem>>, vector<2x16x64xf32>
      tpu.vector_store %arg10[%157, %c3, %c0_136], %154 {strides = array<i32>} : memref<18x20x192xf32, #tpu.memory_space<vmem>>, vector<2x16x64xf32>,
      %159 = arith.index_cast %156 : i32 to index
      %c2_137 = arith.constant 2 : index
      %c64_138 = arith.constant 64 : index
      %160 = vector.load %arg10[%159, %c2_137, %c64_138] : memref<18x20x192xf32, #tpu.memory_space<vmem>>, vector<2x16x64xf32>
      tpu.vector_store %arg10[%159, %c2_137, %c64_138], %154 {strides = array<i32>} : memref<18x20x192xf32, #tpu.memory_space<vmem>>, vector<2x16x64xf32>,
      %161 = arith.index_cast %156 : i32 to index
      %c1_139 = arith.constant 1 : index
      %c128_140 = arith.constant 128 : index
      %162 = vector.load %arg10[%161, %c1_139, %c128_140] : memref<18x20x192xf32, #tpu.memory_space<vmem>>, vector<2x16x64xf32>
      tpu.vector_store %arg10[%161, %c1_139, %c128_140], %154 {strides = array<i32>} : memref<18x20x192xf32, #tpu.memory_space<vmem>>, vector<2x16x64xf32>,
    }
    %c8_i32_34 = arith.constant 8 : i32
    %c0_35 = arith.constant 0 : index
    %c0_36 = arith.constant 0 : index
    %29 = vector.load %arg7[%c0_35, %c0_36] : memref<1x128xf32, #tpu.memory_space<vmem>>, vector<1x128xf32>
    %cst_37 = arith.constant 0.000000e+00 : f32
    %30 = vector.broadcast %cst_37 : f32 to vector<128x128xf32>
    %c0_38 = arith.constant 0 : index
    %c2_39 = arith.constant 2 : index
    %c0_40 = arith.constant 0 : index
    %31 = vector.load %arg10[%c0_38, %c2_39, %c0_40] : memref<18x20x192xf32, #tpu.memory_space<vmem>>, vector<8x16x192xf32>
    %32 = vector.shape_cast %31 : vector<8x16x192xf32> to vector<128x192xf32>
    %33 = arith.truncf %32 : vector<128x192xf32> to vector<128x192xbf16>
    %c0_41 = arith.constant 0 : index
    %c0_42 = arith.constant 0 : index
    %c0_43 = arith.constant 0 : index
    %34 = vector.load %arg6[%c0_41, %c0_42, %c0_43] : memref<3x192x128xbf16, #tpu.memory_space<vmem>>, vector<1x192x128xbf16>
    %35 = vector.shape_cast %34 : vector<1x192x128xbf16> to vector<192x128xbf16>
    %cst_44 = arith.constant dense<0.000000e+00> : vector<128x128xf32>
    %36 = tpu.matmul %33, %35, %cst_44 {dimension_numbers = #tpu.dot_dimension_numbers<[1], [0], [0], [1], [0, 0, 1, 1], [], []>} : vector<128x192xbf16>, vector<192x128xbf16>, vector<128x128xf32> -> vector<128x128xf32>
    %37 = arith.addf %30, %36 : vector<128x128xf32>
    %c1_45 = arith.constant 1 : index
    %c2_46 = arith.constant 2 : index
    %c0_47 = arith.constant 0 : index
    %38 = vector.load %arg10[%c1_45, %c2_46, %c0_47] : memref<18x20x192xf32, #tpu.memory_space<vmem>>, vector<8x16x192xf32>
    %39 = vector.shape_cast %38 : vector<8x16x192xf32> to vector<128x192xf32>
    %40 = arith.truncf %39 : vector<128x192xf32> to vector<128x192xbf16>
    %c1_48 = arith.constant 1 : index
    %c0_49 = arith.constant 0 : index
    %c0_50 = arith.constant 0 : index
    %41 = vector.load %arg6[%c1_48, %c0_49, %c0_50] : memref<3x192x128xbf16, #tpu.memory_space<vmem>>, vector<1x192x128xbf16>
    %42 = vector.shape_cast %41 : vector<1x192x128xbf16> to vector<192x128xbf16>
    %cst_51 = arith.constant dense<0.000000e+00> : vector<128x128xf32>
    %43 = tpu.matmul %40, %42, %cst_51 {dimension_numbers = #tpu.dot_dimension_numbers<[1], [0], [0], [1], [0, 0, 1, 1], [], []>} : vector<128x192xbf16>, vector<192x128xbf16>, vector<128x128xf32> -> vector<128x128xf32>
    %44 = arith.addf %37, %43 : vector<128x128xf32>
    %c2_52 = arith.constant 2 : index
    %c2_53 = arith.constant 2 : index
    %c0_54 = arith.constant 0 : index
    %45 = vector.load %arg10[%c2_52, %c2_53, %c0_54] : memref<18x20x192xf32, #tpu.memory_space<vmem>>, vector<8x16x192xf32>
    %46 = vector.shape_cast %45 : vector<8x16x192xf32> to vector<128x192xf32>
    %47 = arith.truncf %46 : vector<128x192xf32> to vector<128x192xbf16>
    %c2_55 = arith.constant 2 : index
    %c0_56 = arith.constant 0 : index
    %c0_57 = arith.constant 0 : index
    %48 = vector.load %arg6[%c2_55, %c0_56, %c0_57] : memref<3x192x128xbf16, #tpu.memory_space<vmem>>, vector<1x192x128xbf16>
    %49 = vector.shape_cast %48 : vector<1x192x128xbf16> to vector<192x128xbf16>
    %cst_58 = arith.constant dense<0.000000e+00> : vector<128x128xf32>
    %50 = tpu.matmul %47, %49, %cst_58 {dimension_numbers = #tpu.dot_dimension_numbers<[1], [0], [0], [1], [0, 0, 1, 1], [], []>} : vector<128x192xbf16>, vector<192x128xbf16>, vector<128x128xf32> -> vector<128x128xf32>
    %51 = arith.addf %44, %50 : vector<128x128xf32>
    %52 = vector.broadcast %29 : vector<1x128xf32> to vector<128x128xf32>
    %53 = arith.addf %51, %52 : vector<128x128xf32>
    %cst_59 = arith.constant 0.000000e+00 : f32
    %54 = vector.broadcast %cst_59 : f32 to vector<128x128xf32>
    %55 = arith.maximumf %53, %54 : vector<128x128xf32>
    %56 = vector.shape_cast %55 : vector<128x128xf32> to vector<4x2x16x128xf32>
    %57 = vector.extract_strided_slice %56 {offsets = [0, 0, 0, 0], sizes = [4, 1, 16, 128], strides = [1, 1, 1, 1]} : vector<4x2x16x128xf32> to vector<4x1x16x128xf32>
    %58 = vector.shape_cast %57 : vector<4x1x16x128xf32> to vector<4x16x128xf32>
    %59 = vector.extract_strided_slice %56 {offsets = [0, 1, 0, 0], sizes = [4, 1, 16, 128], strides = [1, 1, 1, 1]} : vector<4x2x16x128xf32> to vector<4x1x16x128xf32>
    %60 = vector.shape_cast %59 : vector<4x1x16x128xf32> to vector<4x16x128xf32>
    %61 = arith.maximumf %58, %60 : vector<4x16x128xf32>
    %c0_60 = arith.constant 0 : index
    %c0_61 = arith.constant 0 : index
    %c0_62 = arith.constant 0 : index
    %62 = vector.load %arg12[%c0_60, %c0_61, %c0_62] : memref<4x16x128xf32, #tpu.memory_space<vmem>>, vector<4x16x128xf32>
    tpu.vector_store %arg12[%c0_60, %c0_61, %c0_62], %61 {strides = array<i32>} : memref<4x16x128xf32, #tpu.memory_space<vmem>>, vector<4x16x128xf32>,
    %c0_63 = arith.constant 0 : index
    %c0_64 = arith.constant 0 : index
    %c0_65 = arith.constant 0 : index
    %63 = tpu.strided_load %arg12[%c0_63, %c0_64, %c0_65] {strides = array<i32: 1, 2, 1>} : memref<4x16x128xf32, #tpu.memory_space<vmem>>, vector<4x8x128xf32>
    %c0_66 = arith.constant 0 : index
    %c1_67 = arith.constant 1 : index
    %c0_68 = arith.constant 0 : index
    %64 = tpu.strided_load %arg12[%c0_66, %c1_67, %c0_68] {strides = array<i32: 1, 2, 1>} : memref<4x16x128xf32, #tpu.memory_space<vmem>>, vector<4x8x128xf32>
    %65 = arith.maximumf %63, %64 : vector<4x8x128xf32>
    %66 = vector.shape_cast %65 : vector<4x8x128xf32> to vector<32x128xf32>
    %67 = arith.truncf %66 : vector<32x128xf32> to vector<32x128xbf16>
    %c0_69 = arith.constant 0 : index
    %c0_70 = arith.constant 0 : index
    %c0_71 = arith.constant 0 : index
    %68 = vector.load %arg8[%c0_69, %c0_70, %c0_71] : memref<1x64x128xbf16, #tpu.memory_space<vmem>>, vector<1x32x128xbf16>
    %69 = vector.shape_cast %68 : vector<1x32x128xbf16> to vector<32x128xbf16>
    %70 = vector.shape_cast %67 : vector<32x128xbf16> to vector<1x32x128xbf16>
    tpu.vector_store %arg8[%c0_69, %c0_70, %c0_71], %70 {strides = array<i32>} : memref<1x64x128xbf16, #tpu.memory_space<vmem>>, vector<1x32x128xbf16>,
    %cst_72 = arith.constant 0.000000e+00 : f32
    %71 = vector.broadcast %cst_72 : f32 to vector<128x128xf32>
    %c8 = arith.constant 8 : index
    %c2_73 = arith.constant 2 : index
    %c0_74 = arith.constant 0 : index
    %72 = vector.load %arg10[%c8, %c2_73, %c0_74] : memref<18x20x192xf32, #tpu.memory_space<vmem>>, vector<8x16x192xf32>
    %73 = vector.shape_cast %72 : vector<8x16x192xf32> to vector<128x192xf32>
    %74 = arith.truncf %73 : vector<128x192xf32> to vector<128x192xbf16>
    %c0_75 = arith.constant 0 : index
    %c0_76 = arith.constant 0 : index
    %c0_77 = arith.constant 0 : index
    %75 = vector.load %arg6[%c0_75, %c0_76, %c0_77] : memref<3x192x128xbf16, #tpu.memory_space<vmem>>, vector<1x192x128xbf16>
    %76 = vector.shape_cast %75 : vector<1x192x128xbf16> to vector<192x128xbf16>
    %cst_78 = arith.constant dense<0.000000e+00> : vector<128x128xf32>
    %77 = tpu.matmul %74, %76, %cst_78 {dimension_numbers = #tpu.dot_dimension_numbers<[1], [0], [0], [1], [0, 0, 1, 1], [], []>} : vector<128x192xbf16>, vector<192x128xbf16>, vector<128x128xf32> -> vector<128x128xf32>
    %78 = arith.addf %71, %77 : vector<128x128xf32>
    %c9 = arith.constant 9 : index
    %c2_79 = arith.constant 2 : index
    %c0_80 = arith.constant 0 : index
    %79 = vector.load %arg10[%c9, %c2_79, %c0_80] : memref<18x20x192xf32, #tpu.memory_space<vmem>>, vector<8x16x192xf32>
    %80 = vector.shape_cast %79 : vector<8x16x192xf32> to vector<128x192xf32>
    %81 = arith.truncf %80 : vector<128x192xf32> to vector<128x192xbf16>
    %c1_81 = arith.constant 1 : index
    %c0_82 = arith.constant 0 : index
    %c0_83 = arith.constant 0 : index
    %82 = vector.load %arg6[%c1_81, %c0_82, %c0_83] : memref<3x192x128xbf16, #tpu.memory_space<vmem>>, vector<1x192x128xbf16>
    %83 = vector.shape_cast %82 : vector<1x192x128xbf16> to vector<192x128xbf16>
    %cst_84 = arith.constant dense<0.000000e+00> : vector<128x128xf32>
    %84 = tpu.matmul %81, %83, %cst_84 {dimension_numbers = #tpu.dot_dimension_numbers<[1], [0], [0], [1], [0, 0, 1, 1], [], []>} : vector<128x192xbf16>, vector<192x128xbf16>, vector<128x128xf32> -> vector<128x128xf32>
    %85 = arith.addf %78, %84 : vector<128x128xf32>
    %c10 = arith.constant 10 : index
    %c2_85 = arith.constant 2 : index
    %c0_86 = arith.constant 0 : index
    %86 = vector.load %arg10[%c10, %c2_85, %c0_86] : memref<18x20x192xf32, #tpu.memory_space<vmem>>, vector<8x16x192xf32>
    %87 = vector.shape_cast %86 : vector<8x16x192xf32> to vector<128x192xf32>
    %88 = arith.truncf %87 : vector<128x192xf32> to vector<128x192xbf16>
    %c2_87 = arith.constant 2 : index
    %c0_88 = arith.constant 0 : index
    %c0_89 = arith.constant 0 : index
    %89 = vector.load %arg6[%c2_87, %c0_88, %c0_89] : memref<3x192x128xbf16, #tpu.memory_space<vmem>>, vector<1x192x128xbf16>
    %90 = vector.shape_cast %89 : vector<1x192x128xbf16> to vector<192x128xbf16>
    %cst_90 = arith.constant dense<0.000000e+00> : vector<128x128xf32>
    %91 = tpu.matmul %88, %90, %cst_90 {dimension_numbers = #tpu.dot_dimension_numbers<[1], [0], [0], [1], [0, 0, 1, 1], [], []>} : vector<128x192xbf16>, vector<192x128xbf16>, vector<128x128xf32> -> vector<128x128xf32>
    %92 = arith.addf %85, %91 : vector<128x128xf32>
    %93 = vector.broadcast %29 : vector<1x128xf32> to vector<128x128xf32>
    %94 = arith.addf %92, %93 : vector<128x128xf32>
    %cst_91 = arith.constant 0.000000e+00 : f32
    %95 = vector.broadcast %cst_91 : f32 to vector<128x128xf32>
    %96 = arith.maximumf %94, %95 : vector<128x128xf32>
    %97 = vector.shape_cast %96 : vector<128x128xf32> to vector<4x2x16x128xf32>
    %98 = vector.extract_strided_slice %97 {offsets = [0, 0, 0, 0], sizes = [4, 1, 16, 128], strides = [1, 1, 1, 1]} : vector<4x2x16x128xf32> to vector<4x1x16x128xf32>
    %99 = vector.shape_cast %98 : vector<4x1x16x128xf32> to vector<4x16x128xf32>
    %100 = vector.extract_strided_slice %97 {offsets = [0, 1, 0, 0], sizes = [4, 1, 16, 128], strides = [1, 1, 1, 1]} : vector<4x2x16x128xf32> to vector<4x1x16x128xf32>
    %101 = vector.shape_cast %100 : vector<4x1x16x128xf32> to vector<4x16x128xf32>
    %102 = arith.maximumf %99, %101 : vector<4x16x128xf32>
    %c0_92 = arith.constant 0 : index
    %c0_93 = arith.constant 0 : index
    %c0_94 = arith.constant 0 : index
    %103 = vector.load %arg12[%c0_92, %c0_93, %c0_94] : memref<4x16x128xf32, #tpu.memory_space<vmem>>, vector<4x16x128xf32>
    tpu.vector_store %arg12[%c0_92, %c0_93, %c0_94], %102 {strides = array<i32>} : memref<4x16x128xf32, #tpu.memory_space<vmem>>, vector<4x16x128xf32>,
    %c0_95 = arith.constant 0 : index
    %c0_96 = arith.constant 0 : index
    %c0_97 = arith.constant 0 : index
    %104 = tpu.strided_load %arg12[%c0_95, %c0_96, %c0_97] {strides = array<i32: 1, 2, 1>} : memref<4x16x128xf32, #tpu.memory_space<vmem>>, vector<4x8x128xf32>
    %c0_98 = arith.constant 0 : index
    %c1_99 = arith.constant 1 : index
    %c0_100 = arith.constant 0 : index
    %105 = tpu.strided_load %arg12[%c0_98, %c1_99, %c0_100] {strides = array<i32: 1, 2, 1>} : memref<4x16x128xf32, #tpu.memory_space<vmem>>, vector<4x8x128xf32>
    %106 = arith.maximumf %104, %105 : vector<4x8x128xf32>
    %107 = vector.shape_cast %106 : vector<4x8x128xf32> to vector<32x128xf32>
    %108 = arith.truncf %107 : vector<32x128xf32> to vector<32x128xbf16>
    %c0_101 = arith.constant 0 : index
    %c32 = arith.constant 32 : index
    %c0_102 = arith.constant 0 : index
    %109 = vector.load %arg8[%c0_101, %c32, %c0_102] : memref<1x64x128xbf16, #tpu.memory_space<vmem>>, vector<1x32x128xbf16>
    %110 = vector.shape_cast %109 : vector<1x32x128xbf16> to vector<32x128xbf16>
    %111 = vector.shape_cast %108 : vector<32x128xbf16> to vector<1x32x128xbf16>
    tpu.vector_store %arg8[%c0_101, %c32, %c0_102], %111 {strides = array<i32>} : memref<1x64x128xbf16, #tpu.memory_space<vmem>>, vector<1x32x128xbf16>,
    return
  }
  func.func @transform_0(%arg0: i32) -> (i32, i32, i32) {
    %c0_i32 = arith.constant 0 : i32
    %c0_i32_0 = arith.constant 0 : i32
    %c0_i32_1 = arith.constant 0 : i32
    return %arg0, %c0_i32, %c0_i32_0 : i32, i32, i32
  }
  func.func @transform_1(%arg0: i32) -> (i32, i32) {
    %c0_i32 = arith.constant 0 : i32
    %c0_i32_0 = arith.constant 0 : i32
    %c0_i32_1 = arith.constant 0 : i32
    return %c0_i32, %c0_i32_0 : i32, i32
  }
  func.func @transform_2(%arg0: i32) -> (i32, i32) {
    %c0_i32 = arith.constant 0 : i32
    %c0_i32_0 = arith.constant 0 : i32
    %c0_i32_1 = arith.constant 0 : i32
    return %c0_i32, %c0_i32_0 : i32, i32
  }
  func.func @transform_3(%arg0: i32) -> (i32, i32, i32) {
    %c0_i32 = arith.constant 0 : i32
    %c0_i32_0 = arith.constant 0 : i32
    %c0_i32_1 = arith.constant 0 : i32
    %c0_i32_2 = arith.constant 0 : i32
    return %c0_i32, %c0_i32_0, %c0_i32_1 : i32, i32, i32
  }
  func.func @transform_4(%arg0: i32) -> (i32, i32) {
    %c0_i32 = arith.constant 0 : i32
    %c0_i32_0 = arith.constant 0 : i32
    %c0_i32_1 = arith.constant 0 : i32
    return %c0_i32, %c0_i32_0 : i32, i32
  }
  func.func @transform_5(%arg0: i32) -> (i32, i32, i32) {
    %c0_i32 = arith.constant 0 : i32
    %c0_i32_0 = arith.constant 0 : i32
    %c0_i32_1 = arith.constant 0 : i32
    %c0_i32_2 = arith.constant 0 : i32
    return %c0_i32, %c0_i32_0, %c0_i32_1 : i32, i32, i32
  }
  func.func @transform_6(%arg0: i32) -> (i32, i32) {
    %c0_i32 = arith.constant 0 : i32
    %c0_i32_0 = arith.constant 0 : i32
    %c0_i32_1 = arith.constant 0 : i32
    return %c0_i32, %c0_i32_0 : i32, i32
  }
  func.func @transform_7(%arg0: i32) -> (i32, i32, i32) {
    %c0_i32 = arith.constant 0 : i32
    %c0_i32_0 = arith.constant 0 : i32
    %c0_i32_1 = arith.constant 0 : i32
    return %arg0, %c0_i32, %c0_i32_0 : i32, i32, i32
  }
}

module attributes {stable_mosaic.version = 11 : i64} {
  func.func @_head_kernel(%arg0: i32, %arg1: memref<2x8192xbf16, #tpu.memory_space<vmem>>, %arg2: memref<8192x128xbf16, #tpu.memory_space<vmem>>, %arg3: memref<1x128xf32, #tpu.memory_space<vmem>>, %arg4: memref<128x2xf32, #tpu.memory_space<vmem>>, %arg5: memref<1x2xf32, #tpu.memory_space<vmem>>, %arg6: memref<2x2xf32, #tpu.memory_space<vmem>>) attributes {dimension_semantics = [#tpu.dimension_semantics<arbitrary>], iteration_bounds = array<i64: 1>, scalar_prefetch = 0 : i64, scratch_operands = 0 : i64, tpu.core_type = #tpu.core_type<tc>, window_params = [{pipeline_mode = #tpu.pipeline_mode<synchronous>, transform_indices = @transform_0, window_bounds = array<i64: 2, 8192>}, {pipeline_mode = #tpu.pipeline_mode<synchronous>, transform_indices = @transform_1, window_bounds = array<i64: 8192, 128>}, {pipeline_mode = #tpu.pipeline_mode<synchronous>, transform_indices = @transform_2, window_bounds = array<i64: 1, 128>}, {pipeline_mode = #tpu.pipeline_mode<synchronous>, transform_indices = @transform_3, window_bounds = array<i64: 128, 2>}, {pipeline_mode = #tpu.pipeline_mode<synchronous>, transform_indices = @transform_4, window_bounds = array<i64: 1, 2>}, {pipeline_mode = #tpu.pipeline_mode<synchronous>, transform_indices = @transform_5, window_bounds = array<i64: 2, 2>}]} {
    %c0 = arith.constant 0 : index
    %c0_0 = arith.constant 0 : index
    %0 = vector.load %arg1[%c0, %c0_0] : memref<2x8192xbf16, #tpu.memory_space<vmem>>, vector<2x8192xbf16>
    %c0_1 = arith.constant 0 : index
    %c0_2 = arith.constant 0 : index
    %1 = vector.load %arg2[%c0_1, %c0_2] : memref<8192x128xbf16, #tpu.memory_space<vmem>>, vector<8192x128xbf16>
    %cst = arith.constant dense<0.000000e+00> : vector<2x128xf32>
    %2 = tpu.matmul %0, %1, %cst {dimension_numbers = #tpu.dot_dimension_numbers<[1], [0], [0], [1], [0, 0, 1, 1], [], []>} : vector<2x8192xbf16>, vector<8192x128xbf16>, vector<2x128xf32> -> vector<2x128xf32>
    %c0_3 = arith.constant 0 : index
    %c0_4 = arith.constant 0 : index
    %3 = vector.load %arg3[%c0_3, %c0_4] : memref<1x128xf32, #tpu.memory_space<vmem>>, vector<1x128xf32>
    %4 = vector.broadcast %3 : vector<1x128xf32> to vector<2x128xf32>
    %5 = arith.addf %2, %4 : vector<2x128xf32>
    %cst_5 = arith.constant 0.000000e+00 : f32
    %6 = vector.broadcast %cst_5 : f32 to vector<2x128xf32>
    %7 = arith.maximumf %5, %6 : vector<2x128xf32>
    %c0_6 = arith.constant 0 : index
    %c0_7 = arith.constant 0 : index
    %8 = vector.load %arg4[%c0_6, %c0_7] : memref<128x2xf32, #tpu.memory_space<vmem>>, vector<128x2xf32>
    %cst_8 = arith.constant dense<0.000000e+00> : vector<2x2xf32>
    %9 = tpu.matmul %7, %8, %cst_8 {dimension_numbers = #tpu.dot_dimension_numbers<[1], [0], [0], [1], [0, 0, 1, 1], [], []>} : vector<2x128xf32>, vector<128x2xf32>, vector<2x2xf32> -> vector<2x2xf32>
    %c0_9 = arith.constant 0 : index
    %c0_10 = arith.constant 0 : index
    %10 = vector.load %arg5[%c0_9, %c0_10] : memref<1x2xf32, #tpu.memory_space<vmem>>, vector<1x2xf32>
    %11 = vector.broadcast %10 : vector<1x2xf32> to vector<2x2xf32>
    %12 = arith.addf %9, %11 : vector<2x2xf32>
    %c0_11 = arith.constant 0 : index
    %c0_12 = arith.constant 0 : index
    %13 = vector.load %arg6[%c0_11, %c0_12] : memref<2x2xf32, #tpu.memory_space<vmem>>, vector<2x2xf32>
    tpu.vector_store %arg6[%c0_11, %c0_12], %12 {strides = array<i32>} : memref<2x2xf32, #tpu.memory_space<vmem>>, vector<2x2xf32>,
    return
  }
  func.func @transform_0(%arg0: i32) -> (i32, i32) {
    %c0_i32 = arith.constant 0 : i32
    %c0_i32_0 = arith.constant 0 : i32
    %c0_i32_1 = arith.constant 0 : i32
    return %c0_i32, %c0_i32_0 : i32, i32
  }
  func.func @transform_1(%arg0: i32) -> (i32, i32) {
    %c0_i32 = arith.constant 0 : i32
    %c0_i32_0 = arith.constant 0 : i32
    %c0_i32_1 = arith.constant 0 : i32
    return %c0_i32, %c0_i32_0 : i32, i32
  }
  func.func @transform_2(%arg0: i32) -> (i32, i32) {
    %c0_i32 = arith.constant 0 : i32
    %c0_i32_0 = arith.constant 0 : i32
    %c0_i32_1 = arith.constant 0 : i32
    return %c0_i32, %c0_i32_0 : i32, i32
  }
  func.func @transform_3(%arg0: i32) -> (i32, i32) {
    %c0_i32 = arith.constant 0 : i32
    %c0_i32_0 = arith.constant 0 : i32
    %c0_i32_1 = arith.constant 0 : i32
    return %c0_i32, %c0_i32_0 : i32, i32
  }
  func.func @transform_4(%arg0: i32) -> (i32, i32) {
    %c0_i32 = arith.constant 0 : i32
    %c0_i32_0 = arith.constant 0 : i32
    %c0_i32_1 = arith.constant 0 : i32
    return %c0_i32, %c0_i32_0 : i32, i32
  }
  func.func @transform_5(%arg0: i32) -> (i32, i32) {
    %c0_i32 = arith.constant 0 : i32
    %c0_i32_0 = arith.constant 0 : i32
    %c0_i32_1 = arith.constant 0 : i32
    return %c0_i32, %c0_i32_0 : i32, i32
  }
}

</mosaic_0001>

<llo_original>
// kernel: enhanced_cnn_forward.2
$region0: #{enhanced_cnn_forward.2}
  #allocation0 [shape = 'u32[]', space=smem, size = 0x4, offset = 0x4, fixed_abs, tag = 'smem constant byte address 0x4 - core index']
  #allocation1 [shape = 'u32[144,128]{1,0:T(1,128)}', space=vmem, size = 0x12000, scoped, tag = 'internal scratch']
  #allocation2 [shape = 'f32[34,36,96]{2,1,0:T(8,128)}', space=vmem, size = 0xaa000, scoped, tag = 'scratch operand']
  #allocation3 [shape = 'f32[18,20,192]{2,1,0:T(8,128)}', space=vmem, size = 0x6c000, scoped, tag = 'scratch operand']
  #allocation4 [shape = 'f32[2,32,64]{2,1,0:T(8,128)}', space=vmem, size = 0x8000, scoped, tag = 'scratch operand']
  #allocation5 [shape = 'f32[4,16,128]{2,1,0:T(8,128)}', space=vmem, size = 0x8000, scoped, tag = 'scratch operand']
  %s0 = inlined_call_operand.vmem [shape: bf16[2,2048,64], index: 0, kind: input, shape index: {}]
  %s1 = inlined_call_operand.vmem [shape: bf16[64,64], index: 1, kind: input, shape index: {}]
  %s2 = inlined_call_operand.vmem [shape: f32[1,64], index: 2, kind: input, shape index: {}]
  %s3 = inlined_call_operand.vmem [shape: bf16[3,96,64], index: 3, kind: input, shape index: {}]
  %s4 = inlined_call_operand.vmem [shape: f32[1,64], index: 4, kind: input, shape index: {}]
  %s5 = inlined_call_operand.vmem [shape: bf16[3,192,128], index: 5, kind: input, shape index: {}]
  %s6 = inlined_call_operand.vmem [shape: f32[1,128], index: 6, kind: input, shape index: {}]
  %s7 = inlined_call_operand.vmem [shape: bf16[2,64,128], index: 7, kind: output, shape index: {}]
  %s8 = sld [smem:[#allocation0]]
  $region75: #{enhanced_cnn_forward.2} parent=0
    _
  %s10 = ssub.s32 1, %s8
  %s11 = scalar_select 0, %s10, %s8
  loop: start=0, step=1, limit=4
  $region2: #{enhanced_cnn_forward.2} parent=0 // loop_pre_header
    _
  $region3: #{enhanced_cnn_forward.2} parent=0 // loop_header
    %s13 = sphi 0, %s17
    %p14 = scmp.ge.s32.totalorder %s13, 4
    %s23 = sphi 0, %s25
    %s26 = sphi 0, %s23
    %s27 = sphi 0, %s26
    %s43 = sphi 0, %s27
    %s47 = sphi 0, %s47
    %s49 = sphi 0, %s47
    %s50 = sphi 0, %s49
    %s64 = sphi 0, %s50
    %s68 = sphi 0, %s68
    %s70 = sphi 0, %s68
    %s71 = sphi 0, %s70
    %s85 = sphi 0, %s71
    %s89 = sphi 0, %s89
    %s91 = sphi 0, %s89
    %s92 = sphi 0, %s91
    %s106 = sphi 0, %s92
    %s110 = sphi 0, %s110
    %s112 = sphi 0, %s110
    %s113 = sphi 0, %s112
    %s127 = sphi 0, %s113
    %s131 = sphi 0, %s131
    %s133 = sphi 0, %s131
    %s134 = sphi 0, %s133
    %s148 = sphi 0, %s134
    %s152 = sphi 0, %s152
    %s154 = sphi 0, %s152
    %s155 = sphi 0, %s154
    %s169 = sphi 0, %s155
    %s175 = sphi 0, %s177
    %s178 = sphi 0, %s175
    %s179 = sphi 0, %s178
    %s195 = sphi 0, %s179
  $region4: #{enhanced_cnn_forward.2} parent=0 // loop_header_branch
    %16 = sbr.rel (%p14) target = $region8
  $region5: #{enhanced_cnn_forward.2} parent=0 // loop_body
    %s18 = ssub.s32 %s13, 1
    %s19 = ssub.s32 %s13, 2
    %s20 = sadd.s32 %s13, 1
    %s21 = ssub.s32 %s13, %s20
    %p22 = scmp.eq.s32.totalorder %s21, 0
    %s24 = sadd.s32 %s23, 1
    %s25 = scalar_select %p22, %s23, %s24
    %p28 = pneg %p22
    %p29 = scmp.eq.s32.totalorder %s13, 1
    %p30 = por %p28, %p29
    %p31 = scmp.ne.s32.totalorder %s23, %s26
    %p32 = scmp.eq.s32.totalorder %s13, 0
    %p33 = por %p31, %p32
    %p34 = scmp.ne.s32.totalorder %s23, %s26
    %p35 = scmp.eq.s32.totalorder %s18, 1
    %p36 = por %p34, %p35
    %p37 = scmp.ne.s32.totalorder %s26, %s27
    %p38 = scmp.eq.s32.totalorder %s18, 0
    %p39 = por %p37, %p38
    %p40 = scmp.ne.s32.totalorder %s26, %s27
    %p41 = scmp.eq.s32.totalorder %s19, 1
    %p42 = por %p40, %p41
    %p44 = scmp.ne.s32.totalorder %s27, %s43
    %p45 = scmp.eq.s32.totalorder %s19, 0
    %p46 = por %p44, %p45
    %s48 = sadd.s32 %s47, 1
    %p51 = scmp.eq.s32.totalorder %s13, 1
    %p52 = scmp.ne.s32.totalorder %s47, %s49
    %p53 = scmp.eq.s32.totalorder %s13, 0
    %p54 = por %p52, %p53
    %p55 = scmp.ne.s32.totalorder %s47, %s49
    %p56 = scmp.eq.s32.totalorder %s18, 1
    %p57 = por %p55, %p56
    %p58 = scmp.ne.s32.totalorder %s49, %s50
    %p59 = scmp.eq.s32.totalorder %s18, 0
    %p60 = por %p58, %p59
    %p61 = scmp.ne.s32.totalorder %s49, %s50
    %p62 = scmp.eq.s32.totalorder %s19, 1
    %p63 = por %p61, %p62
    %p65 = scmp.ne.s32.totalorder %s50, %s64
    %p66 = scmp.eq.s32.totalorder %s19, 0
    %p67 = por %p65, %p66
    %s69 = sadd.s32 %s68, 1
    %p72 = scmp.eq.s32.totalorder %s13, 1
    %p73 = scmp.ne.s32.totalorder %s68, %s70
    %p74 = scmp.eq.s32.totalorder %s13, 0
    %p75 = por %p73, %p74
    %p76 = scmp.ne.s32.totalorder %s68, %s70
    %p77 = scmp.eq.s32.totalorder %s18, 1
    %p78 = por %p76, %p77
    %p79 = scmp.ne.s32.totalorder %s70, %s71
    %p80 = scmp.eq.s32.totalorder %s18, 0
    %p81 = por %p79, %p80
    %p82 = scmp.ne.s32.totalorder %s70, %s71
    %p83 = scmp.eq.s32.totalorder %s19, 1
    %p84 = por %p82, %p83
    %p86 = scmp.ne.s32.totalorder %s71, %s85
    %p87 = scmp.eq.s32.totalorder %s19, 0
    %p88 = por %p86, %p87
    %s90 = sadd.s32 %s89, 1
    %p93 = scmp.eq.s32.totalorder %s13, 1
    %p94 = scmp.ne.s32.totalorder %s89, %s91
    %p95 = scmp.eq.s32.totalorder %s13, 0
    %p96 = por %p94, %p95
    %p97 = scmp.ne.s32.totalorder %s89, %s91
    %p98 = scmp.eq.s32.totalorder %s18, 1
    %p99 = por %p97, %p98
    %p100 = scmp.ne.s32.totalorder %s91, %s92
    %p101 = scmp.eq.s32.totalorder %s18, 0
    %p102 = por %p100, %p101
    %p103 = scmp.ne.s32.totalorder %s91, %s92
    %p104 = scmp.eq.s32.totalorder %s19, 1
    %p105 = por %p103, %p104
    %p107 = scmp.ne.s32.totalorder %s92, %s106
    %p108 = scmp.eq.s32.totalorder %s19, 0
    %p109 = por %p107, %p108
    %s111 = sadd.s32 %s110, 1
    %p114 = scmp.eq.s32.totalorder %s13, 1
    %p115 = scmp.ne.s32.totalorder %s110, %s112
    %p116 = scmp.eq.s32.totalorder %s13, 0
    %p117 = por %p115, %p116
    %p118 = scmp.ne.s32.totalorder %s110, %s112
    %p119 = scmp.eq.s32.totalorder %s18, 1
    %p120 = por %p118, %p119
    %p121 = scmp.ne.s32.totalorder %s112, %s113
    %p122 = scmp.eq.s32.totalorder %s18, 0
    %p123 = por %p121, %p122
    %p124 = scmp.ne.s32.totalorder %s112, %s113
    %p125 = scmp.eq.s32.totalorder %s19, 1
    %p126 = por %p124, %p125
    %p128 = scmp.ne.s32.totalorder %s113, %s127
    %p129 = scmp.eq.s32.totalorder %s19, 0
    %p130 = por %p128, %p129
    %s132 = sadd.s32 %s131, 1
    %p135 = scmp.eq.s32.totalorder %s13, 1
    %p136 = scmp.ne.s32.totalorder %s131, %s133
    %p137 = scmp.eq.s32.totalorder %s13, 0
    %p138 = por %p136, %p137
    %p139 = scmp.ne.s32.totalorder %s131, %s133
    %p140 = scmp.eq.s32.totalorder %s18, 1
    %p141 = por %p139, %p140
    %p142 = scmp.ne.s32.totalorder %s133, %s134
    %p143 = scmp.eq.s32.totalorder %s18, 0
    %p144 = por %p142, %p143
    %p145 = scmp.ne.s32.totalorder %s133, %s134
    %p146 = scmp.eq.s32.totalorder %s19, 1
    %p147 = por %p145, %p146
    %p149 = scmp.ne.s32.totalorder %s134, %s148
    %p150 = scmp.eq.s32.totalorder %s19, 0
    %p151 = por %p149, %p150
    %s153 = sadd.s32 %s152, 1
    %p156 = scmp.eq.s32.totalorder %s13, 1
    %p157 = scmp.ne.s32.totalorder %s152, %s154
    %p158 = scmp.eq.s32.totalorder %s13, 0
    %p159 = por %p157, %p158
    %p160 = scmp.ne.s32.totalorder %s152, %s154
    %p161 = scmp.eq.s32.totalorder %s18, 1
    %p162 = por %p160, %p161
    %p163 = scmp.ne.s32.totalorder %s154, %s155
    %p164 = scmp.eq.s32.totalorder %s18, 0
    %p165 = por %p163, %p164
    %p166 = scmp.ne.s32.totalorder %s154, %s155
    %p167 = scmp.eq.s32.totalorder %s19, 1
    %p168 = por %p166, %p167
    %p170 = scmp.ne.s32.totalorder %s155, %s169
    %p171 = scmp.eq.s32.totalorder %s19, 0
    %p172 = por %p170, %p171
    %s173 = ssub.s32 %s13, %s20
    %p174 = scmp.eq.s32.totalorder %s173, 0
    %s176 = sadd.s32 %s175, 1
    %s177 = scalar_select %p174, %s175, %s176
    %p180 = pneg %p174
    %p181 = scmp.eq.s32.totalorder %s13, 1
    %p182 = por %p180, %p181
    %p183 = scmp.ne.s32.totalorder %s175, %s178
    %p184 = scmp.eq.s32.totalorder %s13, 0
    %p185 = por %p183, %p184
    %p186 = scmp.ne.s32.totalorder %s175, %s178
    %p187 = scmp.eq.s32.totalorder %s18, 1
    %p188 = por %p186, %p187
    %p189 = scmp.ne.s32.totalorder %s178, %s179
    %p190 = scmp.eq.s32.totalorder %s18, 0
    %p191 = por %p189, %p190
    %p192 = scmp.ne.s32.totalorder %s178, %s179
    %p193 = scmp.eq.s32.totalorder %s19, 1
    %p194 = por %p192, %p193
    %p196 = scmp.ne.s32.totalorder %s179, %s195
    %p197 = scmp.eq.s32.totalorder %s19, 0
    %p198 = por %p196, %p197
    %p199 = scmp.le.s32.totalorder 1, %s13
    %p200 = scmp.lt.s32.totalorder %s13, 3
    %p201 = pnand %p199, %p200
    %p202 = pneg %p201
    // Predicated region
    $region9: #{enhanced_cnn_forward.2} parent=5 // pred_check
      _
    $region10: #{enhanced_cnn_forward.2} parent=5 // pred_check_branch
      %204 = sbr.rel (%p201) target = $region12
    $region11: #{enhanced_cnn_forward.2} parent=5 // pred_region
      %s205 = ssub.s32 %s13, 1
      // Predicated region
      $region13: #{enhanced_cnn_forward.2} parent=11 // pred_check
        %p206 = pneg %p60
      $region14: #{enhanced_cnn_forward.2} parent=11 // pred_check_branch
        %208 = sbr.rel (%p206) target = $region16
      $region15: #{enhanced_cnn_forward.2} parent=11 // pred_region
        _
      $region16: #{enhanced_cnn_forward.2} parent=11 // pred_fallthru
        _
      // Predicated region
      $region17: #{enhanced_cnn_forward.2} parent=11 // pred_check
        %p209 = pneg %p81
      $region18: #{enhanced_cnn_forward.2} parent=11 // pred_check_branch
        %211 = sbr.rel (%p209) target = $region20
      $region19: #{enhanced_cnn_forward.2} parent=11 // pred_region
        _
      $region20: #{enhanced_cnn_forward.2} parent=11 // pred_fallthru
        _
      // Predicated region
      $region21: #{enhanced_cnn_forward.2} parent=11 // pred_check
        %p212 = pneg %p102
      $region22: #{enhanced_cnn_forward.2} parent=11 // pred_check_branch
        %214 = sbr.rel (%p212) target = $region24
      $region23: #{enhanced_cnn_forward.2} parent=11 // pred_region
        _
      $region24: #{enhanced_cnn_forward.2} parent=11 // pred_fallthru
        _
      // Predicated region
      $region25: #{enhanced_cnn_forward.2} parent=11 // pred_check
        %p215 = pneg %p123
      $region26: #{enhanced_cnn_forward.2} parent=11 // pred_check_branch
        %217 = sbr.rel (%p215) target = $region28
      $region27: #{enhanced_cnn_forward.2} parent=11 // pred_region
        _
      $region28: #{enhanced_cnn_forward.2} parent=11 // pred_fallthru
        _
      // Predicated region
      $region29: #{enhanced_cnn_forward.2} parent=11 // pred_check
        %p218 = pneg %p144
      $region30: #{enhanced_cnn_forward.2} parent=11 // pred_check_branch
        %220 = sbr.rel (%p218) target = $region32
      $region31: #{enhanced_cnn_forward.2} parent=11 // pred_region
        _
      $region32: #{enhanced_cnn_forward.2} parent=11 // pred_fallthru
        _
      // Predicated region
      $region33: #{enhanced_cnn_forward.2} parent=11 // pred_check
        %p221 = pneg %p165
      $region34: #{enhanced_cnn_forward.2} parent=11 // pred_check_branch
        %223 = sbr.rel (%p221) target = $region36
      $region35: #{enhanced_cnn_forward.2} parent=11 // pred_region
        _
      $region36: #{enhanced_cnn_forward.2} parent=11 // pred_fallthru
        _
    $region12: #{enhanced_cnn_forward.2} parent=5 // pred_fallthru
      _
    %p224 = scmp.lt.s32.totalorder %s13, 2
    // Predicated region
    $region37: #{enhanced_cnn_forward.2} parent=5 // pred_check
      %p225 = pneg %p224
    $region38: #{enhanced_cnn_forward.2} parent=5 // pred_check_branch
      %227 = sbr.rel (%p225) target = $region40
    $region39: #{enhanced_cnn_forward.2} parent=5 // pred_region
      // Predicated region
      $region41: #{enhanced_cnn_forward.2} parent=39 // pred_check
        %p228 = pneg %p33
      $region42: #{enhanced_cnn_forward.2} parent=39 // pred_check_branch
        %230 = sbr.rel (%p228) target = $region44
      $region43: #{enhanced_cnn_forward.2} parent=39 // pred_region
        %p231 = scmp.lt.s32.totalorder %s13, 1
        %s232 = scalar_select %p231, %s13, 1
        %s233 = smul.addr %s232, 256
        %s234 = smul.addr %s233, 4
        %s235 = scalar_lea.vmem %s0, %s234
      $region44: #{enhanced_cnn_forward.2} parent=39 // pred_fallthru
        _
    $region40: #{enhanced_cnn_forward.2} parent=5 // pred_fallthru
      _
    %p236 = scmp.le.s32.totalorder 1, %s13
    %p237 = scmp.lt.s32.totalorder %s13, 3
    %p238 = pnand %p236, %p237
    %p239 = pneg %p238
    // Predicated region
    $region45: #{enhanced_cnn_forward.2} parent=5 // pred_check
      _
    $region46: #{enhanced_cnn_forward.2} parent=5 // pred_check_branch
      %241 = sbr.rel (%p238) target = $region48
    $region47: #{enhanced_cnn_forward.2} parent=5 // pred_region
      %s242 = ssub.s32 %s13, 1
      %p243 = scmp.lt.s32.totalorder %s18, 1
      %s244 = scalar_select %p243, %s18, 1
      %s245 = smul.addr %s244, 256
      %s246 = smul.addr %s245, 4
      %s247 = scalar_lea.vmem %s0, %s246
      %p248 = pneg %p39
      %p249 = pneg %p36
      %p250 = pneg %p60
      %p251 = pneg %p57
      %p252 = pneg %p81
      %p253 = pneg %p78
      %p254 = pneg %p102
      %p255 = pneg %p99
      %p256 = pneg %p123
      %p257 = pneg %p120
      %p258 = pneg %p144
      %p259 = pneg %p141
      %p260 = pneg %p165
      %p261 = pneg %p162
      %p262 = pneg %p191
      %p263 = pneg %p188
      %p264 = scmp.lt.s32.totalorder %s18, 1
      %s265 = scalar_select %p264, %s18, 1
      %s266 = smul.addr %s265, 8
      %s267 = smul.addr %s266, 4
      %s268 = scalar_lea.vmem %s7, %s267
      %p269 = scmp.lt.s32.totalorder %s18, 1
      %s270 = scalar_select %p269, %s18, 1
      %s271 = smul.addr %s270, 256
      %s272 = smul.addr %s271, 4
      %s273 = scalar_lea.vmem %s0, %s272
      %p274 = scmp.lt.s32.totalorder %s18, 1
      %s275 = scalar_select %p274, %s18, 1
      %s276 = smul.addr %s275, 8
      %s277 = smul.addr %s276, 4
      %s278 = scalar_lea.vmem %s7, %s277
      %vm280 = vcmask 785408
      %281 = vst.msk [vmem:[#allocation2] sm:$0xff] %vm280, 0.0
      %282 = vst.msk [vmem:[#allocation2 + $0x8] sm:$0xff] %vm280, 0.0
      %283 = vst.msk [vmem:[#allocation2 + $0x10] sm:$0xff] %vm280, 0.0
      %284 = vst.msk [vmem:[#allocation2 + $0x18] sm:$0xff] %vm280, 0.0
      %vm285 = vcmask 781312
      %286 = vst.msk [vmem:[#allocation2 + $0x20] sm:$0xf] %vm285, 0.0
      %s287 = scalar_lea.vmem [#allocation2], 1320
      %288 = vst.msk [vmem:[%s287] sm:$0xff] %vm280, 0.0
      %289 = vst.msk [vmem:[%s287 + $0x8] sm:$0xff] %vm280, 0.0
      %290 = vst.msk [vmem:[%s287 + $0x10] sm:$0xff] %vm280, 0.0
      %291 = vst.msk [vmem:[%s287 + $0x18] sm:$0xff] %vm280, 0.0
      %292 = vst.msk [vmem:[%s287 + $0x20] sm:$0xf] %vm285, 0.0
      %s293 = scalar_lea.vmem [#allocation2], 40
      %vm294 = vcmask 253952
      %295 = vst.msk [vmem:[%s293 + $0x2] sm:$0x1] %vm294, 0.0
      %296 = vst.msk [vmem:[%s293 + $0x2a] sm:$0x1] %vm294, 0.0
      %297 = vst.msk [vmem:[%s293 + $0x52] sm:$0x1] %vm294, 0.0
      %298 = vst.msk [vmem:[%s293 + $0x7a] sm:$0x1] %vm294, 0.0
      %299 = vst.msk [vmem:[%s293 + $0xa2] sm:$0x1] %vm294, 0.0
      %300 = vst.msk [vmem:[%s293 + $0xca] sm:$0x1] %vm294, 0.0
      %301 = vst.msk [vmem:[%s293 + $0xf2] sm:$0x1] %vm294, 0.0
      %302 = vst.msk [vmem:[%s293 + $0x11a] sm:$0x1] %vm294, 0.0
      %303 = vst.msk [vmem:[%s293 + $0x142] sm:$0x1] %vm294, 0.0
      %304 = vst.msk [vmem:[%s293 + $0x16a] sm:$0x1] %vm294, 0.0
      %305 = vst.msk [vmem:[%s293 + $0x192] sm:$0x1] %vm294, 0.0
      %306 = vst.msk [vmem:[%s293 + $0x1ba] sm:$0x1] %vm294, 0.0
      %307 = vst.msk [vmem:[%s293 + $0x1e2] sm:$0x1] %vm294, 0.0
      %308 = vst.msk [vmem:[%s293 + $0x20a] sm:$0x1] %vm294, 0.0
      %309 = vst.msk [vmem:[%s293 + $0x232] sm:$0x1] %vm294, 0.0
      %310 = vst.msk [vmem:[%s293 + $0x25a] sm:$0x1] %vm294, 0.0
      %311 = vst.msk [vmem:[%s293 + $0x282] sm:$0x1] %vm294, 0.0
      %312 = vst.msk [vmem:[%s293 + $0x2aa] sm:$0x1] %vm294, 0.0
      %313 = vst.msk [vmem:[%s293 + $0x2d2] sm:$0x1] %vm294, 0.0
      %314 = vst.msk [vmem:[%s293 + $0x2fa] sm:$0x1] %vm294, 0.0
      %315 = vst.msk [vmem:[%s293 + $0x322] sm:$0x1] %vm294, 0.0
      %316 = vst.msk [vmem:[%s293 + $0x34a] sm:$0x1] %vm294, 0.0
      %317 = vst.msk [vmem:[%s293 + $0x372] sm:$0x1] %vm294, 0.0
      %318 = vst.msk [vmem:[%s293 + $0x39a] sm:$0x1] %vm294, 0.0
      %319 = vst.msk [vmem:[%s293 + $0x3c2] sm:$0x1] %vm294, 0.0
      %320 = vst.msk [vmem:[%s293 + $0x3ea] sm:$0x1] %vm294, 0.0
      %321 = vst.msk [vmem:[%s293 + $0x412] sm:$0x1] %vm294, 0.0
      %322 = vst.msk [vmem:[%s293 + $0x43a] sm:$0x1] %vm294, 0.0
      %323 = vst.msk [vmem:[%s293 + $0x462] sm:$0x1] %vm294, 0.0
      %324 = vst.msk [vmem:[%s293 + $0x48a] sm:$0x1] %vm294, 0.0
      %325 = vst.msk [vmem:[%s293 + $0x4b2] sm:$0x1] %vm294, 0.0
      %326 = vst.msk [vmem:[%s293 + $0x4da] sm:$0x1] %vm294, 0.0
      %vm327 = vcmask 778752
      %328 = vst.msk [vmem:[%s293 + $0x21] sm:$0x1] %vm327, 0.0
      %329 = vst.msk [vmem:[%s293 + $0x49] sm:$0x1] %vm327, 0.0
      %330 = vst.msk [vmem:[%s293 + $0x71] sm:$0x1] %vm327, 0.0
      %331 = vst.msk [vmem:[%s293 + $0x99] sm:$0x1] %vm327, 0.0
      %332 = vst.msk [vmem:[%s293 + $0xc1] sm:$0x1] %vm327, 0.0
      %333 = vst.msk [vmem:[%s293 + $0xe9] sm:$0x1] %vm327, 0.0
      %334 = vst.msk [vmem:[%s293 + $0x111] sm:$0x1] %vm327, 0.0
      %335 = vst.msk [vmem:[%s293 + $0x139] sm:$0x1] %vm327, 0.0
      %336 = vst.msk [vmem:[%s293 + $0x161] sm:$0x1] %vm327, 0.0
      %337 = vst.msk [vmem:[%s293 + $0x189] sm:$0x1] %vm327, 0.0
      %338 = vst.msk [vmem:[%s293 + $0x1b1] sm:$0x1] %vm327, 0.0
      %339 = vst.msk [vmem:[%s293 + $0x1d9] sm:$0x1] %vm327, 0.0
      %340 = vst.msk [vmem:[%s293 + $0x201] sm:$0x1] %vm327, 0.0
      %341 = vst.msk [vmem:[%s293 + $0x229] sm:$0x1] %vm327, 0.0
      %342 = vst.msk [vmem:[%s293 + $0x251] sm:$0x1] %vm327, 0.0
      %343 = vst.msk [vmem:[%s293 + $0x279] sm:$0x1] %vm327, 0.0
      %344 = vst.msk [vmem:[%s293 + $0x2a1] sm:$0x1] %vm327, 0.0
      %345 = vst.msk [vmem:[%s293 + $0x2c9] sm:$0x1] %vm327, 0.0
      %346 = vst.msk [vmem:[%s293 + $0x2f1] sm:$0x1] %vm327, 0.0
      %347 = vst.msk [vmem:[%s293 + $0x319] sm:$0x1] %vm327, 0.0
      %348 = vst.msk [vmem:[%s293 + $0x341] sm:$0x1] %vm327, 0.0
      %349 = vst.msk [vmem:[%s293 + $0x369] sm:$0x1] %vm327, 0.0
      %350 = vst.msk [vmem:[%s293 + $0x391] sm:$0x1] %vm327, 0.0
      %351 = vst.msk [vmem:[%s293 + $0x3b9] sm:$0x1] %vm327, 0.0
      %352 = vst.msk [vmem:[%s293 + $0x3e1] sm:$0x1] %vm327, 0.0
      %353 = vst.msk [vmem:[%s293 + $0x409] sm:$0x1] %vm327, 0.0
      %354 = vst.msk [vmem:[%s293 + $0x431] sm:$0x1] %vm327, 0.0
      %355 = vst.msk [vmem:[%s293 + $0x459] sm:$0x1] %vm327, 0.0
      %356 = vst.msk [vmem:[%s293 + $0x481] sm:$0x1] %vm327, 0.0
      %357 = vst.msk [vmem:[%s293 + $0x4a9] sm:$0x1] %vm327, 0.0
      %358 = vst.msk [vmem:[%s293 + $0x4d1] sm:$0x1] %vm327, 0.0
      %359 = vst.msk [vmem:[%s293 + $0x4f9] sm:$0x1] %vm327, 0.0
      %360 = vst [vmem:[#allocation3] sm:$0xff] 0.0
      %vm361 = vcmask 523264
      %362 = vst.msk [vmem:[#allocation3 + $0x8] sm:$0xff] %vm361, 0.0
      %363 = vst [vmem:[#allocation3 + $0x10] sm:$0xff] 0.0
      %364 = vst.msk [vmem:[#allocation3 + $0x18] sm:$0xff] %vm361, 0.0
      %365 = vst [vmem:[#allocation3 + $0x20] sm:$0xf] 0.0
      %vm366 = vcmask 519168
      %367 = vst.msk [vmem:[#allocation3 + $0x28] sm:$0xf] %vm366, 0.0
      %s368 = scalar_lea.vmem [#allocation3], 816
      %369 = vst [vmem:[%s368] sm:$0xff] 0.0
      %370 = vst.msk [vmem:[%s368 + $0x8] sm:$0xff] %vm361, 0.0
      %371 = vst [vmem:[%s368 + $0x10] sm:$0xff] 0.0
      %372 = vst.msk [vmem:[%s368 + $0x18] sm:$0xff] %vm361, 0.0
      %373 = vst [vmem:[%s368 + $0x20] sm:$0xf] 0.0
      %374 = vst.msk [vmem:[%s368 + $0x28] sm:$0xf] %vm366, 0.0
      %s375 = scalar_lea.vmem [#allocation3], 48
      %vm376 = vcmask 516096
      %377 = vst.msk [vmem:[%s375 + $0x2] sm:$0x1] %vm376, 0.0
      %378 = vst.msk [vmem:[%s375 + $0x32] sm:$0x1] %vm376, 0.0
      %379 = vst.msk [vmem:[%s375 + $0x62] sm:$0x1] %vm376, 0.0
      %380 = vst.msk [vmem:[%s375 + $0x92] sm:$0x1] %vm376, 0.0
      %381 = vst.msk [vmem:[%s375 + $0xc2] sm:$0x1] %vm376, 0.0
      %382 = vst.msk [vmem:[%s375 + $0xf2] sm:$0x1] %vm376, 0.0
      %383 = vst.msk [vmem:[%s375 + $0x122] sm:$0x1] %vm376, 0.0
      %384 = vst.msk [vmem:[%s375 + $0x152] sm:$0x1] %vm376, 0.0
      %385 = vst.msk [vmem:[%s375 + $0x182] sm:$0x1] %vm376, 0.0
      %386 = vst.msk [vmem:[%s375 + $0x1b2] sm:$0x1] %vm376, 0.0
      %387 = vst.msk [vmem:[%s375 + $0x1e2] sm:$0x1] %vm376, 0.0
      %388 = vst.msk [vmem:[%s375 + $0x212] sm:$0x1] %vm376, 0.0
      %389 = vst.msk [vmem:[%s375 + $0x242] sm:$0x1] %vm376, 0.0
      %390 = vst.msk [vmem:[%s375 + $0x272] sm:$0x1] %vm376, 0.0
      %391 = vst.msk [vmem:[%s375 + $0x2a2] sm:$0x1] %vm376, 0.0
      %392 = vst.msk [vmem:[%s375 + $0x2d2] sm:$0x1] %vm376, 0.0
      %393 = vst.msk [vmem:[%s375 + $0x29] sm:$0x1] %vm376, 0.0
      %394 = vst.msk [vmem:[%s375 + $0x59] sm:$0x1] %vm376, 0.0
      %395 = vst.msk [vmem:[%s375 + $0x89] sm:$0x1] %vm376, 0.0
      %396 = vst.msk [vmem:[%s375 + $0xb9] sm:$0x1] %vm376, 0.0
      %397 = vst.msk [vmem:[%s375 + $0xe9] sm:$0x1] %vm376, 0.0
      %398 = vst.msk [vmem:[%s375 + $0x119] sm:$0x1] %vm376, 0.0
      %399 = vst.msk [vmem:[%s375 + $0x149] sm:$0x1] %vm376, 0.0
      %400 = vst.msk [vmem:[%s375 + $0x179] sm:$0x1] %vm376, 0.0
      %401 = vst.msk [vmem:[%s375 + $0x1a9] sm:$0x1] %vm376, 0.0
      %402 = vst.msk [vmem:[%s375 + $0x1d9] sm:$0x1] %vm376, 0.0
      %403 = vst.msk [vmem:[%s375 + $0x209] sm:$0x1] %vm376, 0.0
      %404 = vst.msk [vmem:[%s375 + $0x239] sm:$0x1] %vm376, 0.0
      %405 = vst.msk [vmem:[%s375 + $0x269] sm:$0x1] %vm376, 0.0
      %406 = vst.msk [vmem:[%s375 + $0x299] sm:$0x1] %vm376, 0.0
      %407 = vst.msk [vmem:[%s375 + $0x2c9] sm:$0x1] %vm376, 0.0
      %408 = vst.msk [vmem:[%s375 + $0x2f9] sm:$0x1] %vm376, 0.0
      %v409 = vld [vmem:[%s1] sm:$0xf]
      %v410 = vld [vmem:[%s1 + $0x4] sm:$0xf]
      %v411 = vld [vmem:[%s1 + $0x8] sm:$0xf]
      %v412 = vld [vmem:[%s1 + $0xc] sm:$0xf]
      %v413 = vld [vmem:[%s1 + $0x10] sm:$0xf]
      %v414 = vld [vmem:[%s1 + $0x14] sm:$0xf]
      %v415 = vld [vmem:[%s1 + $0x18] sm:$0xf]
      %v416 = vld [vmem:[%s1 + $0x1c] sm:$0xf]
      %v417 = vld [vmem:[%s2] sm:$0x1]
      loop: start=0, step=1, limit=8
      $region49: #{enhanced_cnn_forward.2} parent=47 // loop_pre_header
        _
      $region50: #{enhanced_cnn_forward.2} parent=47 // loop_header
        %s419 = sphi 0, %s423
        %p420 = scmp.ge.s32.totalorder %s419, 8
      $region51: #{enhanced_cnn_forward.2} parent=47 // loop_header_branch
        %422 = sbr.rel (%p420) target = $region55
      $region52: #{enhanced_cnn_forward.2} parent=47 // loop_body
        %s424 = smul.u32 %s419, 256
        %s425 = sshra.s32 %s424, 3
        %s426 = sand.u32 %s424, 7
        %s427 = smul.addr %s425, 4
        %s428 = scalar_lea.vmem %s273, %s427
        %v429 = vld [vmem:[%s428] sm:$0xf]
        %v430 = vld [vmem:[%s428 + $0x4] sm:$0xf]
        %v431 = vld [vmem:[%s428 + $0x8] sm:$0xf]
        %v432 = vld [vmem:[%s428 + $0xc] sm:$0xf]
        %v433 = vld [vmem:[%s428 + $0x10] sm:$0xf]
        %v434 = vld [vmem:[%s428 + $0x14] sm:$0xf]
        %v435 = vld [vmem:[%s428 + $0x18] sm:$0xf]
        %v436 = vld [vmem:[%s428 + $0x1c] sm:$0xf]
        %v437 = vld [vmem:[%s428 + $0x20] sm:$0xf]
        %v438 = vld [vmem:[%s428 + $0x24] sm:$0xf]
        %v439 = vld [vmem:[%s428 + $0x28] sm:$0xf]
        %v440 = vld [vmem:[%s428 + $0x2c] sm:$0xf]
        %v441 = vld [vmem:[%s428 + $0x30] sm:$0xf]
        %v442 = vld [vmem:[%s428 + $0x34] sm:$0xf]
        %v443 = vld [vmem:[%s428 + $0x38] sm:$0xf]
        %v444 = vld [vmem:[%s428 + $0x3c] sm:$0xf]
        %v445 = vld [vmem:[%s428 + $0x40] sm:$0xf]
        %v446 = vld [vmem:[%s428 + $0x44] sm:$0xf]
        %v447 = vld [vmem:[%s428 + $0x48] sm:$0xf]
        %v448 = vld [vmem:[%s428 + $0x4c] sm:$0xf]
        %v449 = vld [vmem:[%s428 + $0x50] sm:$0xf]
        %v450 = vld [vmem:[%s428 + $0x54] sm:$0xf]
        %v451 = vld [vmem:[%s428 + $0x58] sm:$0xf]
        %v452 = vld [vmem:[%s428 + $0x5c] sm:$0xf]
        %v453 = vld [vmem:[%s428 + $0x60] sm:$0xf]
        %v454 = vld [vmem:[%s428 + $0x64] sm:$0xf]
        %v455 = vld [vmem:[%s428 + $0x68] sm:$0xf]
        %v456 = vld [vmem:[%s428 + $0x6c] sm:$0xf]
        %v457 = vld [vmem:[%s428 + $0x70] sm:$0xf]
        %v458 = vld [vmem:[%s428 + $0x74] sm:$0xf]
        %v459 = vld [vmem:[%s428 + $0x78] sm:$0xf]
        %v460 = vld [vmem:[%s428 + $0x7c] sm:$0xf]
        %v462 = vlaneseq
        %v463 = vshrl.u32 %v462, 7
        %v464 = vsub.s32 0, %v463
        %v465 = vrot.slane %v417, %v464
        %v499 = vunpack.c.l.b16 %v429
        %v500 = vunpack.c.l.b16 %v430
        %v501 = vunpack.c.l.b16 %v431
        %v502 = vunpack.c.l.b16 %v432
        %v503 = vunpack.c.l.b16 %v433
        %v504 = vunpack.c.l.b16 %v434
        %v505 = vunpack.c.l.b16 %v435
        %v506 = vunpack.c.l.b16 %v436
        %v507 = vunpack.c.l.b16 %v437
        %v508 = vunpack.c.l.b16 %v438
        %v509 = vunpack.c.l.b16 %v439
        %v510 = vunpack.c.l.b16 %v440
        %v511 = vunpack.c.l.b16 %v441
        %v512 = vunpack.c.l.b16 %v442
        %v513 = vunpack.c.l.b16 %v443
        %v514 = vunpack.c.l.b16 %v444
        %v515 = vunpack.c.l.b16 %v445
        %v516 = vunpack.c.l.b16 %v446
        %v517 = vunpack.c.l.b16 %v447
        %v518 = vunpack.c.l.b16 %v448
        %v519 = vunpack.c.l.b16 %v449
        %v520 = vunpack.c.l.b16 %v450
        %v521 = vunpack.c.l.b16 %v451
        %v522 = vunpack.c.l.b16 %v452
        %v523 = vunpack.c.l.b16 %v453
        %v524 = vunpack.c.l.b16 %v454
        %v525 = vunpack.c.l.b16 %v455
        %v526 = vunpack.c.l.b16 %v456
        %v527 = vunpack.c.l.b16 %v457
        %v528 = vunpack.c.l.b16 %v458
        %v529 = vunpack.c.l.b16 %v459
        %v530 = vunpack.c.l.b16 %v460
        %v531 = vpack.c.b16 %v500, %v499
        %v532 = vpack.c.b16 %v502, %v501
        %v533 = vpack.c.b16 %v504, %v503
        %v534 = vpack.c.b16 %v506, %v505
        %v535 = vpack.c.b16 %v508, %v507
        %v536 = vpack.c.b16 %v510, %v509
        %v537 = vpack.c.b16 %v512, %v511
        %v538 = vpack.c.b16 %v514, %v513
        %v539 = vpack.c.b16 %v516, %v515
        %v540 = vpack.c.b16 %v518, %v517
        %v541 = vpack.c.b16 %v520, %v519
        %v542 = vpack.c.b16 %v522, %v521
        %v543 = vpack.c.b16 %v524, %v523
        %v544 = vpack.c.b16 %v526, %v525
        %v545 = vpack.c.b16 %v528, %v527
        %v546 = vpack.c.b16 %v530, %v529
        %v555 = vunpack.c.l.b16 %v409
        %v556 = vunpack.c.l.b16 %v410
        %v557 = vunpack.c.l.b16 %v411
        %v558 = vunpack.c.l.b16 %v412
        %v559 = vunpack.c.l.b16 %v413
        %v560 = vunpack.c.l.b16 %v414
        %v561 = vunpack.c.l.b16 %v415
        %v562 = vunpack.c.l.b16 %v416
        %v563 = vpack.c.b16 %v556, %v555
        %v564 = vpack.c.b16 %v558, %v557
        %v565 = vpack.c.b16 %v560, %v559
        %v566 = vpack.c.b16 %v562, %v561
        %v572 = vsel %vm361, %v531, 0
        %v575 = vsel %vm361, %v532, 0
        %v578 = vsel %vm361, %v533, 0
        %v581 = vsel %vm361, %v534, 0
        %v584 = vsel %vm361, %v535, 0
        %v587 = vsel %vm361, %v536, 0
        %v590 = vsel %vm361, %v537, 0
        %v593 = vsel %vm361, %v538, 0
        %v596 = vsel %vm361, %v539, 0
        %v599 = vsel %vm361, %v540, 0
        %v602 = vsel %vm361, %v541, 0
        %v605 = vsel %vm361, %v542, 0
        %v608 = vsel %vm361, %v543, 0
        %v611 = vsel %vm361, %v544, 0
        %v614 = vsel %vm361, %v545, 0
        %v617 = vsel %vm361, %v546, 0
        %619 = vmatprep.subr.bf16.mxu0 0
        %620 = vmatpush1.bf16.msra.mxu0 %v563
        %621 = vmatprep.subr.bf16.mxu0 0
        %622 = vmatpush1.bf16.msra.mxu0 %v564
        %623 = vmatprep.subr.bf16.mxu0 0
        %624 = vmatpush1.bf16.msra.mxu0 %v565
        %625 = vmatprep.subr.bf16.mxu0 0
        %626 = vmatpush1.bf16.msra.mxu0 %v566
        %627 = vmatprep.subr.bf16.mxu0 0
        %628 = vmatpush1.bf16.msra.mxu0 0
        %629 = vmatprep.subr.bf16.mxu0 0
        %630 = vmatpush1.bf16.msra.mxu0 0
        %631 = vmatprep.subr.bf16.mxu0 0
        %632 = vmatpush1.bf16.msra.mxu0 0
        %633 = vmatprep.subr.bf16.mxu0 0
        %634 = vmatpush1.bf16.msra.mxu0 0
        %635 = vmatprep.subr.bf16.mxu0 0
        %636 = vmatpush1.bf16.msra.mxu0 0
        %637 = vmatprep.subr.bf16.mxu0 0
        %638 = vmatpush1.bf16.msra.mxu0 0
        %639 = vmatprep.subr.bf16.mxu0 0
        %640 = vmatpush1.bf16.msra.mxu0 0
        %641 = vmatprep.subr.bf16.mxu0 0
        %642 = vmatpush1.bf16.msra.mxu0 0
        %643 = vmatprep.subr.bf16.mxu0 0
        %644 = vmatpush1.bf16.msra.mxu0 0
        %645 = vmatprep.subr.bf16.mxu0 0
        %646 = vmatpush1.bf16.msra.mxu0 0
        %647 = vmatprep.subr.bf16.mxu0 0
        %648 = vmatpush1.bf16.msra.mxu0 0
        %649 = vmatprep.subr.bf16.mxu0 0
        %650 = vmatpush1.bf16.msra.mxu0 0
        %651 = vmatprep.mubr.bf16.mxu0 0
        %652 = vmatmul.mubr.bf16.gmra.mrb[0].mxu0 %v572
        %v653 = vpop.f32.mrb[0].mxu0
        %v654 = vadd.f32 %v465, %v653
        %v655 = vpop.f32.mrb[0].mxu0
        %v656 = vpop.f32.mrb[0].mxu0
        %v657 = vadd.f32 %v465, %v656
        %v658 = vpop.f32.mrb[0].mxu0
        %659 = vmatprep.mubr.bf16.mxu0 0
        %660 = vmatmul.mubr.bf16.gmra.mrb[0].mxu0 %v575
        %v661 = vpop.f32.mrb[0].mxu0
        %v662 = vadd.f32 %v465, %v661
        %v663 = vpop.f32.mrb[0].mxu0
        %v664 = vpop.f32.mrb[0].mxu0
        %v665 = vadd.f32 %v465, %v664
        %v666 = vpop.f32.mrb[0].mxu0
        %667 = vmatprep.mubr.bf16.mxu0 0
        %668 = vmatmul.mubr.bf16.gmra.mrb[0].mxu0 %v578
        %v669 = vpop.f32.mrb[0].mxu0
        %v670 = vadd.f32 %v465, %v669
        %v671 = vpop.f32.mrb[0].mxu0
        %v672 = vpop.f32.mrb[0].mxu0
        %v673 = vadd.f32 %v465, %v672
        %v674 = vpop.f32.mrb[0].mxu0
        %675 = vmatprep.mubr.bf16.mxu0 0
        %676 = vmatmul.mubr.bf16.gmra.mrb[0].mxu0 %v581
        %v677 = vpop.f32.mrb[0].mxu0
        %v678 = vadd.f32 %v465, %v677
        %v679 = vpop.f32.mrb[0].mxu0
        %v680 = vpop.f32.mrb[0].mxu0
        %v681 = vadd.f32 %v465, %v680
        %v682 = vpop.f32.mrb[0].mxu0
        %683 = vmatprep.mubr.bf16.mxu0 0
        %684 = vmatmul.mubr.bf16.gmra.mrb[0].mxu0 %v584
        %v685 = vpop.f32.mrb[0].mxu0
        %v686 = vadd.f32 %v465, %v685
        %v687 = vpop.f32.mrb[0].mxu0
        %v688 = vpop.f32.mrb[0].mxu0
        %v689 = vadd.f32 %v465, %v688
        %v690 = vpop.f32.mrb[0].mxu0
        %691 = vmatprep.mubr.bf16.mxu0 0
        %692 = vmatmul.mubr.bf16.gmra.mrb[0].mxu0 %v587
        %v693 = vpop.f32.mrb[0].mxu0
        %v694 = vadd.f32 %v465, %v693
        %v695 = vpop.f32.mrb[0].mxu0
        %v696 = vpop.f32.mrb[0].mxu0
        %v697 = vadd.f32 %v465, %v696
        %v698 = vpop.f32.mrb[0].mxu0
        %699 = vmatprep.mubr.bf16.mxu0 0
        %700 = vmatmul.mubr.bf16.gmra.mrb[0].mxu0 %v590
        %v701 = vpop.f32.mrb[0].mxu0
        %v702 = vadd.f32 %v465, %v701
        %v703 = vpop.f32.mrb[0].mxu0
        %v704 = vpop.f32.mrb[0].mxu0
        %v705 = vadd.f32 %v465, %v704
        %v706 = vpop.f32.mrb[0].mxu0
        %707 = vmatprep.mubr.bf16.mxu0 0
        %708 = vmatmul.mubr.bf16.gmra.mrb[0].mxu0 %v593
        %v709 = vpop.f32.mrb[0].mxu0
        %v710 = vadd.f32 %v465, %v709
        %v711 = vpop.f32.mrb[0].mxu0
        %v712 = vpop.f32.mrb[0].mxu0
        %v713 = vadd.f32 %v465, %v712
        %v714 = vpop.f32.mrb[0].mxu0
        %715 = vmatprep.mubr.bf16.mxu0 0
        %716 = vmatmul.mubr.bf16.gmra.mrb[0].mxu0 %v596
        %v717 = vpop.f32.mrb[0].mxu0
        %v718 = vadd.f32 %v465, %v717
        %v719 = vpop.f32.mrb[0].mxu0
        %v720 = vpop.f32.mrb[0].mxu0
        %v721 = vadd.f32 %v465, %v720
        %v722 = vpop.f32.mrb[0].mxu0
        %723 = vmatprep.mubr.bf16.mxu0 0
        %724 = vmatmul.mubr.bf16.gmra.mrb[0].mxu0 %v599
        %v725 = vpop.f32.mrb[0].mxu0
        %v726 = vadd.f32 %v465, %v725
        %v727 = vpop.f32.mrb[0].mxu0
        %v728 = vpop.f32.mrb[0].mxu0
        %v729 = vadd.f32 %v465, %v728
        %v730 = vpop.f32.mrb[0].mxu0
        %731 = vmatprep.mubr.bf16.mxu0 0
        %732 = vmatmul.mubr.bf16.gmra.mrb[0].mxu0 %v602
        %v733 = vpop.f32.mrb[0].mxu0
        %v734 = vadd.f32 %v465, %v733
        %v735 = vpop.f32.mrb[0].mxu0
        %v736 = vpop.f32.mrb[0].mxu0
        %v737 = vadd.f32 %v465, %v736
        %v738 = vpop.f32.mrb[0].mxu0
        %739 = vmatprep.mubr.bf16.mxu0 0
        %740 = vmatmul.mubr.bf16.gmra.mrb[0].mxu0 %v605
        %v741 = vpop.f32.mrb[0].mxu0
        %v742 = vadd.f32 %v465, %v741
        %v743 = vpop.f32.mrb[0].mxu0
        %v744 = vpop.f32.mrb[0].mxu0
        %v745 = vadd.f32 %v465, %v744
        %v746 = vpop.f32.mrb[0].mxu0
        %747 = vmatprep.mubr.bf16.mxu0 0
        %748 = vmatmul.mubr.bf16.gmra.mrb[0].mxu0 %v608
        %v749 = vpop.f32.mrb[0].mxu0
        %v750 = vadd.f32 %v465, %v749
        %v751 = vpop.f32.mrb[0].mxu0
        %v752 = vpop.f32.mrb[0].mxu0
        %v753 = vadd.f32 %v465, %v752
        %v754 = vpop.f32.mrb[0].mxu0
        %755 = vmatprep.mubr.bf16.mxu0 0
        %756 = vmatmul.mubr.bf16.gmra.mrb[0].mxu0 %v611
        %v757 = vpop.f32.mrb[0].mxu0
        %v758 = vadd.f32 %v465, %v757
        %v759 = vpop.f32.mrb[0].mxu0
        %v760 = vpop.f32.mrb[0].mxu0
        %v761 = vadd.f32 %v465, %v760
        %v762 = vpop.f32.mrb[0].mxu0
        %763 = vmatprep.mubr.bf16.mxu0 0
        %764 = vmatmul.mubr.bf16.gmra.mrb[0].mxu0 %v614
        %v765 = vpop.f32.mrb[0].mxu0
        %v766 = vadd.f32 %v465, %v765
        %v767 = vpop.f32.mrb[0].mxu0
        %v768 = vpop.f32.mrb[0].mxu0
        %v769 = vadd.f32 %v465, %v768
        %v770 = vpop.f32.mrb[0].mxu0
        %771 = vmatprep.mubr.bf16.mxu0 0
        %772 = vmatmul.mubr.bf16.gmra.mrb[0].mxu0 %v617
        %v773 = vpop.f32.mrb[0].mxu0
        %v774 = vadd.f32 %v465, %v773
        %v775 = vpop.f32.mrb[0].mxu0
        %v776 = vpop.f32.mrb[0].mxu0
        %v777 = vadd.f32 %v465, %v776
        %v778 = vpop.f32.mrb[0].mxu0
        %779 = vdwg.mxu0
        %v780 = vmax.f32 %v654, 0.0
        %v781 = vmax.f32 %v657, 0.0
        %v782 = vmax.f32 %v662, 0.0
        %v783 = vmax.f32 %v665, 0.0
        %v784 = vmax.f32 %v670, 0.0
        %v785 = vmax.f32 %v673, 0.0
        %v786 = vmax.f32 %v678, 0.0
        %v787 = vmax.f32 %v681, 0.0
        %v788 = vmax.f32 %v686, 0.0
        %v789 = vmax.f32 %v689, 0.0
        %v790 = vmax.f32 %v694, 0.0
        %v791 = vmax.f32 %v697, 0.0
        %v792 = vmax.f32 %v702, 0.0
        %v793 = vmax.f32 %v705, 0.0
        %v794 = vmax.f32 %v710, 0.0
        %v795 = vmax.f32 %v713, 0.0
        %v796 = vmax.f32 %v718, 0.0
        %v797 = vmax.f32 %v721, 0.0
        %v798 = vmax.f32 %v726, 0.0
        %v799 = vmax.f32 %v729, 0.0
        %v800 = vmax.f32 %v734, 0.0
        %v801 = vmax.f32 %v737, 0.0
        %v802 = vmax.f32 %v742, 0.0
        %v803 = vmax.f32 %v745, 0.0
        %v804 = vmax.f32 %v750, 0.0
        %v805 = vmax.f32 %v753, 0.0
        %v806 = vmax.f32 %v758, 0.0
        %v807 = vmax.f32 %v761, 0.0
        %v808 = vmax.f32 %v766, 0.0
        %v809 = vmax.f32 %v769, 0.0
        %v810 = vmax.f32 %v774, 0.0
        %v811 = vmax.f32 %v777, 0.0
        %844 = vrot.lane.b32.xlu0 %v780, 96
        %v845 = vpop.permute.xlu0 %844
        %846 = vrot.lane.b32.xlu0 %v781, 96
        %v847 = vpop.permute.xlu0 %846
        %848 = vrot.lane.b32.xlu0 %v782, 96
        %v849 = vpop.permute.xlu0 %848
        %850 = vrot.lane.b32.xlu0 %v783, 96
        %v851 = vpop.permute.xlu0 %850
        %852 = vrot.lane.b32.xlu0 %v784, 96
        %v853 = vpop.permute.xlu0 %852
        %854 = vrot.lane.b32.xlu0 %v785, 96
        %v855 = vpop.permute.xlu0 %854
        %856 = vrot.lane.b32.xlu0 %v786, 96
        %v857 = vpop.permute.xlu0 %856
        %858 = vrot.lane.b32.xlu0 %v787, 96
        %v859 = vpop.permute.xlu0 %858
        %860 = vrot.lane.b32.xlu0 %v788, 96
        %v861 = vpop.permute.xlu0 %860
        %862 = vrot.lane.b32.xlu0 %v789, 96
        %v863 = vpop.permute.xlu0 %862
        %864 = vrot.lane.b32.xlu0 %v790, 96
        %v865 = vpop.permute.xlu0 %864
        %866 = vrot.lane.b32.xlu0 %v791, 96
        %v867 = vpop.permute.xlu0 %866
        %868 = vrot.lane.b32.xlu0 %v792, 96
        %v869 = vpop.permute.xlu0 %868
        %870 = vrot.lane.b32.xlu0 %v793, 96
        %v871 = vpop.permute.xlu0 %870
        %872 = vrot.lane.b32.xlu0 %v794, 96
        %v873 = vpop.permute.xlu0 %872
        %874 = vrot.lane.b32.xlu0 %v795, 96
        %v875 = vpop.permute.xlu0 %874
        %876 = vrot.lane.b32.xlu0 %v796, 96
        %v877 = vpop.permute.xlu0 %876
        %878 = vrot.lane.b32.xlu0 %v797, 96
        %v879 = vpop.permute.xlu0 %878
        %880 = vrot.lane.b32.xlu0 %v798, 96
        %v881 = vpop.permute.xlu0 %880
        %882 = vrot.lane.b32.xlu0 %v799, 96
        %v883 = vpop.permute.xlu0 %882
        %884 = vrot.lane.b32.xlu0 %v800, 96
        %v885 = vpop.permute.xlu0 %884
        %886 = vrot.lane.b32.xlu0 %v801, 96
        %v887 = vpop.permute.xlu0 %886
        %888 = vrot.lane.b32.xlu0 %v802, 96
        %v889 = vpop.permute.xlu0 %888
        %890 = vrot.lane.b32.xlu0 %v803, 96
        %v891 = vpop.permute.xlu0 %890
        %892 = vrot.lane.b32.xlu0 %v804, 96
        %v893 = vpop.permute.xlu0 %892
        %894 = vrot.lane.b32.xlu0 %v805, 96
        %v895 = vpop.permute.xlu0 %894
        %896 = vrot.lane.b32.xlu0 %v806, 96
        %v897 = vpop.permute.xlu0 %896
        %898 = vrot.lane.b32.xlu0 %v807, 96
        %v899 = vpop.permute.xlu0 %898
        %900 = vrot.lane.b32.xlu0 %v808, 96
        %v901 = vpop.permute.xlu0 %900
        %902 = vrot.lane.b32.xlu0 %v809, 96
        %v903 = vpop.permute.xlu0 %902
        %904 = vrot.lane.b32.xlu0 %v810, 96
        %v905 = vpop.permute.xlu0 %904
        %906 = vrot.lane.b32.xlu0 %v811, 96
        %v907 = vpop.permute.xlu0 %906
        %v940 = vmax.f32 %v780, %v845
        %v941 = vmax.f32 %v781, %v847
        %v942 = vmax.f32 %v782, %v849
        %v943 = vmax.f32 %v783, %v851
        %v944 = vmax.f32 %v784, %v853
        %v945 = vmax.f32 %v785, %v855
        %v946 = vmax.f32 %v786, %v857
        %v947 = vmax.f32 %v787, %v859
        %v948 = vmax.f32 %v788, %v861
        %v949 = vmax.f32 %v789, %v863
        %v950 = vmax.f32 %v790, %v865
        %v951 = vmax.f32 %v791, %v867
        %v952 = vmax.f32 %v792, %v869
        %v953 = vmax.f32 %v793, %v871
        %v954 = vmax.f32 %v794, %v873
        %v955 = vmax.f32 %v795, %v875
        %v956 = vmax.f32 %v796, %v877
        %v957 = vmax.f32 %v797, %v879
        %v958 = vmax.f32 %v798, %v881
        %v959 = vmax.f32 %v799, %v883
        %v960 = vmax.f32 %v800, %v885
        %v961 = vmax.f32 %v801, %v887
        %v962 = vmax.f32 %v802, %v889
        %v963 = vmax.f32 %v803, %v891
        %v964 = vmax.f32 %v804, %v893
        %v965 = vmax.f32 %v805, %v895
        %v966 = vmax.f32 %v806, %v897
        %v967 = vmax.f32 %v807, %v899
        %v968 = vmax.f32 %v808, %v901
        %v969 = vmax.f32 %v809, %v903
        %v970 = vmax.f32 %v810, %v905
        %v971 = vmax.f32 %v811, %v907
        %v972 = vmax.f32 %v940, %v944
        %v973 = vmax.f32 %v941, %v945
        %v974 = vmax.f32 %v942, %v946
        %v975 = vmax.f32 %v943, %v947
        %v976 = vmax.f32 %v948, %v952
        %v977 = vmax.f32 %v949, %v953
        %v978 = vmax.f32 %v950, %v954
        %v979 = vmax.f32 %v951, %v955
        %v980 = vmax.f32 %v956, %v960
        %v981 = vmax.f32 %v957, %v961
        %v982 = vmax.f32 %v958, %v962
        %v983 = vmax.f32 %v959, %v963
        %v984 = vmax.f32 %v964, %v968
        %v985 = vmax.f32 %v965, %v969
        %v986 = vmax.f32 %v966, %v970
        %v987 = vmax.f32 %v967, %v971
        %s988 = smul.u32 %s419, 4
        %s989 = sadd.s32 %s988, 1
        %s990 = smul.u32 %s989, 40
        %s991 = scalar_lea.vmem [#allocation2], %s990
        %vm992 = vcmask 261120
        %993 = vst.msk [vmem:[%s991 + $0x3] sm:$0xff] %vm992, %v972
        %994 = vst.msk [vmem:[%s991 + $0xb] sm:$0xff] %vm992, %v973
        %995 = vst.msk [vmem:[%s991 + $0x13] sm:$0xff] %vm992, %v974
        %996 = vst.msk [vmem:[%s991 + $0x1b] sm:$0xff] %vm992, %v975
        %997 = vst.msk [vmem:[%s991 + $0x2b] sm:$0xff] %vm992, %v976
        %998 = vst.msk [vmem:[%s991 + $0x33] sm:$0xff] %vm992, %v977
        %999 = vst.msk [vmem:[%s991 + $0x3b] sm:$0xff] %vm992, %v978
        %1000 = vst.msk [vmem:[%s991 + $0x43] sm:$0xff] %vm992, %v979
        %1001 = vst.msk [vmem:[%s991 + $0x53] sm:$0xff] %vm992, %v980
        %1002 = vst.msk [vmem:[%s991 + $0x5b] sm:$0xff] %vm992, %v981
        %1003 = vst.msk [vmem:[%s991 + $0x63] sm:$0xff] %vm992, %v982
        %1004 = vst.msk [vmem:[%s991 + $0x6b] sm:$0xff] %vm992, %v983
        %1005 = vst.msk [vmem:[%s991 + $0x7b] sm:$0xff] %vm992, %v984
        %1006 = vst.msk [vmem:[%s991 + $0x83] sm:$0xff] %vm992, %v985
        %1007 = vst.msk [vmem:[%s991 + $0x8b] sm:$0xff] %vm992, %v986
        %1008 = vst.msk [vmem:[%s991 + $0x93] sm:$0xff] %vm992, %v987
        %1025 = vrot.lane.b32.xlu0 %v972, 32
        %v1026 = vpop.permute.xlu0 %1025
        %1027 = vrot.lane.b32.xlu0 %v973, 32
        %v1028 = vpop.permute.xlu0 %1027
        %1029 = vrot.lane.b32.xlu0 %v974, 32
        %v1030 = vpop.permute.xlu0 %1029
        %1031 = vrot.lane.b32.xlu0 %v975, 32
        %v1032 = vpop.permute.xlu0 %1031
        %1033 = vrot.lane.b32.xlu0 %v976, 32
        %v1034 = vpop.permute.xlu0 %1033
        %1035 = vrot.lane.b32.xlu0 %v977, 32
        %v1036 = vpop.permute.xlu0 %1035
        %1037 = vrot.lane.b32.xlu0 %v978, 32
        %v1038 = vpop.permute.xlu0 %1037
        %1039 = vrot.lane.b32.xlu0 %v979, 32
        %v1040 = vpop.permute.xlu0 %1039
        %1041 = vrot.lane.b32.xlu0 %v980, 32
        %v1042 = vpop.permute.xlu0 %1041
        %1043 = vrot.lane.b32.xlu0 %v981, 32
        %v1044 = vpop.permute.xlu0 %1043
        %1045 = vrot.lane.b32.xlu0 %v982, 32
        %v1046 = vpop.permute.xlu0 %1045
        %1047 = vrot.lane.b32.xlu0 %v983, 32
        %v1048 = vpop.permute.xlu0 %1047
        %1049 = vrot.lane.b32.xlu0 %v984, 32
        %v1050 = vpop.permute.xlu0 %1049
        %1051 = vrot.lane.b32.xlu0 %v985, 32
        %v1052 = vpop.permute.xlu0 %1051
        %1053 = vrot.lane.b32.xlu0 %v986, 32
        %v1054 = vpop.permute.xlu0 %1053
        %1055 = vrot.lane.b32.xlu0 %v987, 32
        %v1056 = vpop.permute.xlu0 %1055
        %vm1073 = vcmask 523520
        %1074 = vst.msk [vmem:[%s991 + $0x2] sm:$0xff] %vm1073, %v1026
        %1075 = vst.msk [vmem:[%s991 + $0xa] sm:$0xff] %vm1073, %v1028
        %1076 = vst.msk [vmem:[%s991 + $0x12] sm:$0xff] %vm1073, %v1030
        %1077 = vst.msk [vmem:[%s991 + $0x1a] sm:$0xff] %vm1073, %v1032
        %1078 = vst.msk [vmem:[%s991 + $0x2a] sm:$0xff] %vm1073, %v1034
        %1079 = vst.msk [vmem:[%s991 + $0x32] sm:$0xff] %vm1073, %v1036
        %1080 = vst.msk [vmem:[%s991 + $0x3a] sm:$0xff] %vm1073, %v1038
        %1081 = vst.msk [vmem:[%s991 + $0x42] sm:$0xff] %vm1073, %v1040
        %1082 = vst.msk [vmem:[%s991 + $0x52] sm:$0xff] %vm1073, %v1042
        %1083 = vst.msk [vmem:[%s991 + $0x5a] sm:$0xff] %vm1073, %v1044
        %1084 = vst.msk [vmem:[%s991 + $0x62] sm:$0xff] %vm1073, %v1046
        %1085 = vst.msk [vmem:[%s991 + $0x6a] sm:$0xff] %vm1073, %v1048
        %1086 = vst.msk [vmem:[%s991 + $0x7a] sm:$0xff] %vm1073, %v1050
        %1087 = vst.msk [vmem:[%s991 + $0x82] sm:$0xff] %vm1073, %v1052
        %1088 = vst.msk [vmem:[%s991 + $0x8a] sm:$0xff] %vm1073, %v1054
        %1089 = vst.msk [vmem:[%s991 + $0x92] sm:$0xff] %vm1073, %v1056
        %1090 = vrot.lane.b32.xlu0 %v972, 64
        %v1091 = vpop.permute.xlu0 %1090
        %1092 = vrot.lane.b32.xlu0 %v973, 64
        %v1093 = vpop.permute.xlu0 %1092
        %1094 = vrot.lane.b32.xlu0 %v974, 64
        %v1095 = vpop.permute.xlu0 %1094
        %1096 = vrot.lane.b32.xlu0 %v975, 64
        %v1097 = vpop.permute.xlu0 %1096
        %1098 = vrot.lane.b32.xlu0 %v976, 64
        %v1099 = vpop.permute.xlu0 %1098
        %1100 = vrot.lane.b32.xlu0 %v977, 64
        %v1101 = vpop.permute.xlu0 %1100
        %1102 = vrot.lane.b32.xlu0 %v978, 64
        %v1103 = vpop.permute.xlu0 %1102
        %1104 = vrot.lane.b32.xlu0 %v979, 64
        %v1105 = vpop.permute.xlu0 %1104
        %1106 = vrot.lane.b32.xlu0 %v980, 64
        %v1107 = vpop.permute.xlu0 %1106
        %1108 = vrot.lane.b32.xlu0 %v981, 64
        %v1109 = vpop.permute.xlu0 %1108
        %1110 = vrot.lane.b32.xlu0 %v982, 64
        %v1111 = vpop.permute.xlu0 %1110
        %1112 = vrot.lane.b32.xlu0 %v983, 64
        %v1113 = vpop.permute.xlu0 %1112
        %1114 = vrot.lane.b32.xlu0 %v984, 64
        %v1115 = vpop.permute.xlu0 %1114
        %1116 = vrot.lane.b32.xlu0 %v985, 64
        %v1117 = vpop.permute.xlu0 %1116
        %1118 = vrot.lane.b32.xlu0 %v986, 64
        %v1119 = vpop.permute.xlu0 %1118
        %1120 = vrot.lane.b32.xlu0 %v987, 64
        %v1121 = vpop.permute.xlu0 %1120
        %vm1138 = vcmask 785920
        %1139 = vst.msk [vmem:[%s991 + $0x1] sm:$0xff] %vm1138, %v1091
        %1140 = vst.msk [vmem:[%s991 + $0x9] sm:$0xff] %vm1138, %v1093
        %1141 = vst.msk [vmem:[%s991 + $0x11] sm:$0xff] %vm1138, %v1095
        %1142 = vst.msk [vmem:[%s991 + $0x19] sm:$0xff] %vm1138, %v1097
        %1143 = vst.msk [vmem:[%s991 + $0x29] sm:$0xff] %vm1138, %v1099
        %1144 = vst.msk [vmem:[%s991 + $0x31] sm:$0xff] %vm1138, %v1101
        %1145 = vst.msk [vmem:[%s991 + $0x39] sm:$0xff] %vm1138, %v1103
        %1146 = vst.msk [vmem:[%s991 + $0x41] sm:$0xff] %vm1138, %v1105
        %1147 = vst.msk [vmem:[%s991 + $0x51] sm:$0xff] %vm1138, %v1107
        %1148 = vst.msk [vmem:[%s991 + $0x59] sm:$0xff] %vm1138, %v1109
        %1149 = vst.msk [vmem:[%s991 + $0x61] sm:$0xff] %vm1138, %v1111
        %1150 = vst.msk [vmem:[%s991 + $0x69] sm:$0xff] %vm1138, %v1113
        %1151 = vst.msk [vmem:[%s991 + $0x79] sm:$0xff] %vm1138, %v1115
        %1152 = vst.msk [vmem:[%s991 + $0x81] sm:$0xff] %vm1138, %v1117
        %1153 = vst.msk [vmem:[%s991 + $0x89] sm:$0xff] %vm1138, %v1119
        %1154 = vst.msk [vmem:[%s991 + $0x91] sm:$0xff] %vm1138, %v1121
      $region53: #{enhanced_cnn_forward.2} parent=47 // loop_footer
        %s423 = sadd.s32 1, %s419
      $region54: #{enhanced_cnn_forward.2} parent=47 // loop_footer_branch
        %418 = sbr.rel target = $region50
      $region55: #{enhanced_cnn_forward.2} parent=47 // loop_exit
        _
      %v1155 = vld [vmem:[%s4] sm:$0x1]
      loop: start=0, step=1, limit=8
      $region56: #{enhanced_cnn_forward.2} parent=47 // loop_pre_header
        _
      $region57: #{enhanced_cnn_forward.2} parent=47 // loop_header
        %s1157 = sphi 0, %s1161
        %p1158 = scmp.ge.s32.totalorder %s1157, 8
      $region58: #{enhanced_cnn_forward.2} parent=47 // loop_header_branch
        %1160 = sbr.rel (%p1158) target = $region62
      $region59: #{enhanced_cnn_forward.2} parent=47 // loop_body
        %s1162 = smul.u32 %s1157, 4
        %s1163 = smul.u32 %s1162, 40
        %s1164 = scalar_lea.vmem [#allocation2], %s1163
        %v1165 = vld [vmem:[%s1164 + $0x2] sm:$0xff]
        %v1166 = vld [vmem:[%s1164 + $0xa] sm:$0xff]
        %v1167 = vld [vmem:[%s1164 + $0x12] sm:$0xff]
        %v1168 = vld [vmem:[%s1164 + $0x1a] sm:$0xff]
        %v1169 = vld [vmem:[%s1164 + $0x2a] sm:$0xff]
        %v1170 = vld [vmem:[%s1164 + $0x32] sm:$0xff]
        %v1171 = vld [vmem:[%s1164 + $0x3a] sm:$0xff]
        %v1172 = vld [vmem:[%s1164 + $0x42] sm:$0xff]
        %v1173 = vld [vmem:[%s1164 + $0x52] sm:$0xff]
        %v1174 = vld [vmem:[%s1164 + $0x5a] sm:$0xff]
        %v1175 = vld [vmem:[%s1164 + $0x62] sm:$0xff]
        %v1176 = vld [vmem:[%s1164 + $0x6a] sm:$0xff]
        %v1177 = vld [vmem:[%s1164 + $0x7a] sm:$0xff]
        %v1178 = vld [vmem:[%s1164 + $0x82] sm:$0xff]
        %v1179 = vld [vmem:[%s1164 + $0x8a] sm:$0xff]
        %v1180 = vld [vmem:[%s1164 + $0x92] sm:$0xff]
        %v1181 = vpack.c.bf16 %v1166, %v1165
        %v1182 = vpack.c.bf16 %v1168, %v1167
        %v1183 = vpack.c.bf16 %v1170, %v1169
        %v1184 = vpack.c.bf16 %v1172, %v1171
        %v1185 = vpack.c.bf16 %v1174, %v1173
        %v1186 = vpack.c.bf16 %v1176, %v1175
        %v1187 = vpack.c.bf16 %v1178, %v1177
        %v1188 = vpack.c.bf16 %v1180, %v1179
        %v1189 = vld [vmem:[%s3] sm:$0xf]
        %v1190 = vld [vmem:[%s3 + $0x4] sm:$0xf]
        %v1191 = vld [vmem:[%s3 + $0x8] sm:$0xf]
        %v1192 = vld [vmem:[%s3 + $0xc] sm:$0xf]
        %v1193 = vld [vmem:[%s3 + $0x10] sm:$0xf]
        %v1194 = vld [vmem:[%s3 + $0x14] sm:$0xf]
        %v1195 = vld [vmem:[%s3 + $0x18] sm:$0xf]
        %v1196 = vld [vmem:[%s3 + $0x1c] sm:$0xf]
        %v1197 = vld [vmem:[%s3 + $0x20] sm:$0xf]
        %v1198 = vld [vmem:[%s3 + $0x24] sm:$0xf]
        %v1199 = vld [vmem:[%s3 + $0x28] sm:$0xf]
        %v1200 = vld [vmem:[%s3 + $0x2c] sm:$0xf]
        %s1201 = sadd.s32 %s1162, 1
        %s1202 = smul.u32 %s1201, 40
        %s1203 = scalar_lea.vmem [#allocation2], %s1202
        %v1204 = vld [vmem:[%s1203 + $0x2] sm:$0xff]
        %v1205 = vld [vmem:[%s1203 + $0xa] sm:$0xff]
        %v1206 = vld [vmem:[%s1203 + $0x12] sm:$0xff]
        %v1207 = vld [vmem:[%s1203 + $0x1a] sm:$0xff]
        %v1208 = vld [vmem:[%s1203 + $0x2a] sm:$0xff]
        %v1209 = vld [vmem:[%s1203 + $0x32] sm:$0xff]
        %v1210 = vld [vmem:[%s1203 + $0x3a] sm:$0xff]
        %v1211 = vld [vmem:[%s1203 + $0x42] sm:$0xff]
        %v1212 = vld [vmem:[%s1203 + $0x52] sm:$0xff]
        %v1213 = vld [vmem:[%s1203 + $0x5a] sm:$0xff]
        %v1214 = vld [vmem:[%s1203 + $0x62] sm:$0xff]
        %v1215 = vld [vmem:[%s1203 + $0x6a] sm:$0xff]
        %v1216 = vld [vmem:[%s1203 + $0x7a] sm:$0xff]
        %v1217 = vld [vmem:[%s1203 + $0x82] sm:$0xff]
        %v1218 = vld [vmem:[%s1203 + $0x8a] sm:$0xff]
        %v1219 = vld [vmem:[%s1203 + $0x92] sm:$0xff]
        %v1220 = vpack.c.bf16 %v1205, %v1204
        %v1221 = vpack.c.bf16 %v1207, %v1206
        %v1222 = vpack.c.bf16 %v1209, %v1208
        %v1223 = vpack.c.bf16 %v1211, %v1210
        %v1224 = vpack.c.bf16 %v1213, %v1212
        %v1225 = vpack.c.bf16 %v1215, %v1214
        %v1226 = vpack.c.bf16 %v1217, %v1216
        %v1227 = vpack.c.bf16 %v1219, %v1218
        %s1228 = scalar_lea.vmem %s3, 48
        %v1229 = vld [vmem:[%s1228] sm:$0xf]
        %v1230 = vld [vmem:[%s1228 + $0x4] sm:$0xf]
        %v1231 = vld [vmem:[%s1228 + $0x8] sm:$0xf]
        %v1232 = vld [vmem:[%s1228 + $0xc] sm:$0xf]
        %v1233 = vld [vmem:[%s1228 + $0x10] sm:$0xf]
        %v1234 = vld [vmem:[%s1228 + $0x14] sm:$0xf]
        %v1235 = vld [vmem:[%s1228 + $0x18] sm:$0xf]
        %v1236 = vld [vmem:[%s1228 + $0x1c] sm:$0xf]
        %v1237 = vld [vmem:[%s1228 + $0x20] sm:$0xf]
        %v1238 = vld [vmem:[%s1228 + $0x24] sm:$0xf]
        %v1239 = vld [vmem:[%s1228 + $0x28] sm:$0xf]
        %v1240 = vld [vmem:[%s1228 + $0x2c] sm:$0xf]
        %v1253 = vunpack.c.l.b16 %v1229
        %v1254 = vunpack.c.l.b16 %v1230
        %v1255 = vunpack.c.l.b16 %v1231
        %v1256 = vunpack.c.l.b16 %v1232
        %v1257 = vunpack.c.l.b16 %v1233
        %v1258 = vunpack.c.l.b16 %v1234
        %v1259 = vunpack.c.l.b16 %v1235
        %v1260 = vunpack.c.l.b16 %v1236
        %v1261 = vunpack.c.l.b16 %v1237
        %v1262 = vunpack.c.l.b16 %v1238
        %v1263 = vunpack.c.l.b16 %v1239
        %v1264 = vunpack.c.l.b16 %v1240
        %v1265 = vpack.c.b16 %v1254, %v1253
        %v1266 = vpack.c.b16 %v1256, %v1255
        %v1267 = vpack.c.b16 %v1258, %v1257
        %v1268 = vpack.c.b16 %v1260, %v1259
        %v1269 = vpack.c.b16 %v1262, %v1261
        %v1270 = vpack.c.b16 %v1264, %v1263
        %v1278 = vsel %vm280, %v1220, 0
        %v1281 = vsel %vm280, %v1221, 0
        %v1284 = vsel %vm280, %v1222, 0
        %v1287 = vsel %vm280, %v1223, 0
        %v1290 = vsel %vm280, %v1224, 0
        %v1293 = vsel %vm280, %v1225, 0
        %v1296 = vsel %vm280, %v1226, 0
        %v1299 = vsel %vm280, %v1227, 0
        %1301 = vmatprep.subr.bf16.mxu0 0
        %1302 = vmatpush1.bf16.msra.mxu0 %v1265
        %1303 = vmatprep.subr.bf16.mxu0 0
        %1304 = vmatpush1.bf16.msra.mxu0 %v1266
        %1305 = vmatprep.subr.bf16.mxu0 0
        %1306 = vmatpush1.bf16.msra.mxu0 %v1267
        %1307 = vmatprep.subr.bf16.mxu0 0
        %1308 = vmatpush1.bf16.msra.mxu0 %v1268
        %1309 = vmatprep.subr.bf16.mxu0 0
        %1310 = vmatpush1.bf16.msra.mxu0 %v1269
        %1311 = vmatprep.subr.bf16.mxu0 0
        %1312 = vmatpush1.bf16.msra.mxu0 %v1270
        %1313 = vmatprep.subr.bf16.mxu0 0
        %1314 = vmatpush1.bf16.msra.mxu0 0
        %1315 = vmatprep.subr.bf16.mxu0 0
        %1316 = vmatpush1.bf16.msra.mxu0 0
        %1317 = vmatprep.subr.bf16.mxu0 0
        %1318 = vmatpush1.bf16.msra.mxu0 0
        %1319 = vmatprep.subr.bf16.mxu0 0
        %1320 = vmatpush1.bf16.msra.mxu0 0
        %1321 = vmatprep.subr.bf16.mxu0 0
        %1322 = vmatpush1.bf16.msra.mxu0 0
        %1323 = vmatprep.subr.bf16.mxu0 0
        %1324 = vmatpush1.bf16.msra.mxu0 0
        %1325 = vmatprep.subr.bf16.mxu0 0
        %1326 = vmatpush1.bf16.msra.mxu0 0
        %1327 = vmatprep.subr.bf16.mxu0 0
        %1328 = vmatpush1.bf16.msra.mxu0 0
        %1329 = vmatprep.subr.bf16.mxu0 0
        %1330 = vmatpush1.bf16.msra.mxu0 0
        %1331 = vmatprep.subr.bf16.mxu0 0
        %1332 = vmatpush1.bf16.msra.mxu0 0
        %1333 = vmatprep.mubr.bf16.mxu0 0
        %1334 = vmatmul.mubr.bf16.gmra.mrb[0].mxu0 %v1278
        %v1335 = vpop.f32.mrb[0].mxu0
        %v1336 = vadd.f32 0.0, %v1335
        %v1337 = vpop.f32.mrb[0].mxu0
        %v1338 = vpop.f32.mrb[0].mxu0
        %v1339 = vadd.f32 0.0, %v1338
        %v1340 = vpop.f32.mrb[0].mxu0
        %1341 = vmatprep.mubr.bf16.mxu0 0
        %1342 = vmatmul.mubr.bf16.gmra.mrb[0].mxu0 %v1281
        %v1343 = vpop.f32.mrb[0].mxu0
        %v1344 = vadd.f32 0.0, %v1343
        %v1345 = vpop.f32.mrb[0].mxu0
        %v1346 = vpop.f32.mrb[0].mxu0
        %v1347 = vadd.f32 0.0, %v1346
        %v1348 = vpop.f32.mrb[0].mxu0
        %1349 = vmatprep.mubr.bf16.mxu0 0
        %1350 = vmatmul.mubr.bf16.gmra.mrb[0].mxu0 %v1284
        %v1351 = vpop.f32.mrb[0].mxu0
        %v1352 = vadd.f32 0.0, %v1351
        %v1353 = vpop.f32.mrb[0].mxu0
        %v1354 = vpop.f32.mrb[0].mxu0
        %v1355 = vadd.f32 0.0, %v1354
        %v1356 = vpop.f32.mrb[0].mxu0
        %1357 = vmatprep.mubr.bf16.mxu0 0
        %1358 = vmatmul.mubr.bf16.gmra.mrb[0].mxu0 %v1287
        %v1359 = vpop.f32.mrb[0].mxu0
        %v1360 = vadd.f32 0.0, %v1359
        %v1361 = vpop.f32.mrb[0].mxu0
        %v1362 = vpop.f32.mrb[0].mxu0
        %v1363 = vadd.f32 0.0, %v1362
        %v1364 = vpop.f32.mrb[0].mxu0
        %1365 = vmatprep.mubr.bf16.mxu0 0
        %1366 = vmatmul.mubr.bf16.gmra.mrb[0].mxu0 %v1290
        %v1367 = vpop.f32.mrb[0].mxu0
        %v1368 = vadd.f32 0.0, %v1367
        %v1369 = vpop.f32.mrb[0].mxu0
        %v1370 = vpop.f32.mrb[0].mxu0
        %v1371 = vadd.f32 0.0, %v1370
        %v1372 = vpop.f32.mrb[0].mxu0
        %1373 = vmatprep.mubr.bf16.mxu0 0
        %1374 = vmatmul.mubr.bf16.gmra.mrb[0].mxu0 %v1293
        %v1375 = vpop.f32.mrb[0].mxu0
        %v1376 = vadd.f32 0.0, %v1375
        %v1377 = vpop.f32.mrb[0].mxu0
        %v1378 = vpop.f32.mrb[0].mxu0
        %v1379 = vadd.f32 0.0, %v1378
        %v1380 = vpop.f32.mrb[0].mxu0
        %1381 = vmatprep.mubr.bf16.mxu0 0
        %1382 = vmatmul.mubr.bf16.gmra.mrb[0].mxu0 %v1296
        %v1383 = vpop.f32.mrb[0].mxu0
        %v1384 = vadd.f32 0.0, %v1383
        %v1385 = vpop.f32.mrb[0].mxu0
        %v1386 = vpop.f32.mrb[0].mxu0
        %v1387 = vadd.f32 0.0, %v1386
        %v1388 = vpop.f32.mrb[0].mxu0
        %1389 = vmatprep.mubr.bf16.mxu0 0
        %1390 = vmatmul.mubr.bf16.gmra.mrb[0].mxu0 %v1299
        %v1391 = vpop.f32.mrb[0].mxu0
        %v1392 = vadd.f32 0.0, %v1391
        %v1393 = vpop.f32.mrb[0].mxu0
        %v1394 = vpop.f32.mrb[0].mxu0
        %v1395 = vadd.f32 0.0, %v1394
        %v1396 = vpop.f32.mrb[0].mxu0
        %1397 = vdwg.mxu0
        %v1410 = vunpack.c.l.b16 %v1189
        %v1411 = vunpack.c.l.b16 %v1190
        %v1412 = vunpack.c.l.b16 %v1191
        %v1413 = vunpack.c.l.b16 %v1192
        %v1414 = vunpack.c.l.b16 %v1193
        %v1415 = vunpack.c.l.b16 %v1194
        %v1416 = vunpack.c.l.b16 %v1195
        %v1417 = vunpack.c.l.b16 %v1196
        %v1418 = vunpack.c.l.b16 %v1197
        %v1419 = vunpack.c.l.b16 %v1198
        %v1420 = vunpack.c.l.b16 %v1199
        %v1421 = vunpack.c.l.b16 %v1200
        %v1422 = vpack.c.b16 %v1411, %v1410
        %v1423 = vpack.c.b16 %v1413, %v1412
        %v1424 = vpack.c.b16 %v1415, %v1414
        %v1425 = vpack.c.b16 %v1417, %v1416
        %v1426 = vpack.c.b16 %v1419, %v1418
        %v1427 = vpack.c.b16 %v1421, %v1420
        %v1435 = vsel %vm280, %v1181, 0
        %v1438 = vsel %vm280, %v1182, 0
        %v1441 = vsel %vm280, %v1183, 0
        %v1444 = vsel %vm280, %v1184, 0
        %v1447 = vsel %vm280, %v1185, 0
        %v1450 = vsel %vm280, %v1186, 0
        %v1453 = vsel %vm280, %v1187, 0
        %v1456 = vsel %vm280, %v1188, 0
        %1458 = vmatprep.subr.bf16.mxu0 0
        %1459 = vmatpush1.bf16.msra.mxu0 %v1422
        %1460 = vmatprep.subr.bf16.mxu0 0
        %1461 = vmatpush1.bf16.msra.mxu0 %v1423
        %1462 = vmatprep.subr.bf16.mxu0 0
        %1463 = vmatpush1.bf16.msra.mxu0 %v1424
        %1464 = vmatprep.subr.bf16.mxu0 0
        %1465 = vmatpush1.bf16.msra.mxu0 %v1425
        %1466 = vmatprep.subr.bf16.mxu0 0
        %1467 = vmatpush1.bf16.msra.mxu0 %v1426
        %1468 = vmatprep.subr.bf16.mxu0 0
        %1469 = vmatpush1.bf16.msra.mxu0 %v1427
        %1470 = vmatprep.subr.bf16.mxu0 0
        %1471 = vmatpush1.bf16.msra.mxu0 0
        %1472 = vmatprep.subr.bf16.mxu0 0
        %1473 = vmatpush1.bf16.msra.mxu0 0
        %1474 = vmatprep.subr.bf16.mxu0 0
        %1475 = vmatpush1.bf16.msra.mxu0 0
        %1476 = vmatprep.subr.bf16.mxu0 0
        %1477 = vmatpush1.bf16.msra.mxu0 0
        %1478 = vmatprep.subr.bf16.mxu0 0
        %1479 = vmatpush1.bf16.msra.mxu0 0
        %1480 = vmatprep.subr.bf16.mxu0 0
        %1481 = vmatpush1.bf16.msra.mxu0 0
        %1482 = vmatprep.subr.bf16.mxu0 0
        %1483 = vmatpush1.bf16.msra.mxu0 0
        %1484 = vmatprep.subr.bf16.mxu0 0
        %1485 = vmatpush1.bf16.msra.mxu0 0
        %1486 = vmatprep.subr.bf16.mxu0 0
        %1487 = vmatpush1.bf16.msra.mxu0 0
        %1488 = vmatprep.subr.bf16.mxu0 0
        %1489 = vmatpush1.bf16.msra.mxu0 0
        %1490 = vmatprep.mubr.bf16.mxu0 0
        %1491 = vmatmul.mubr.bf16.gmra.mrb[0].mxu0 %v1435
        %v1492 = vpop.f32.mrb[0].mxu0
        %v1493 = vadd.f32 %v1336, %v1492
        %v1494 = vpop.f32.mrb[0].mxu0
        %v1495 = vpop.f32.mrb[0].mxu0
        %v1496 = vadd.f32 %v1339, %v1495
        %v1497 = vpop.f32.mrb[0].mxu0
        %1498 = vmatprep.mubr.bf16.mxu0 0
        %1499 = vmatmul.mubr.bf16.gmra.mrb[0].mxu0 %v1438
        %v1500 = vpop.f32.mrb[0].mxu0
        %v1501 = vadd.f32 %v1344, %v1500
        %v1502 = vpop.f32.mrb[0].mxu0
        %v1503 = vpop.f32.mrb[0].mxu0
        %v1504 = vadd.f32 %v1347, %v1503
        %v1505 = vpop.f32.mrb[0].mxu0
        %1506 = vmatprep.mubr.bf16.mxu0 0
        %1507 = vmatmul.mubr.bf16.gmra.mrb[0].mxu0 %v1441
        %v1508 = vpop.f32.mrb[0].mxu0
        %v1509 = vadd.f32 %v1352, %v1508
        %v1510 = vpop.f32.mrb[0].mxu0
        %v1511 = vpop.f32.mrb[0].mxu0
        %v1512 = vadd.f32 %v1355, %v1511
        %v1513 = vpop.f32.mrb[0].mxu0
        %1514 = vmatprep.mubr.bf16.mxu0 0
        %1515 = vmatmul.mubr.bf16.gmra.mrb[0].mxu0 %v1444
        %v1516 = vpop.f32.mrb[0].mxu0
        %v1517 = vadd.f32 %v1360, %v1516
        %v1518 = vpop.f32.mrb[0].mxu0
        %v1519 = vpop.f32.mrb[0].mxu0
        %v1520 = vadd.f32 %v1363, %v1519
        %v1521 = vpop.f32.mrb[0].mxu0
        %1522 = vmatprep.mubr.bf16.mxu0 0
        %1523 = vmatmul.mubr.bf16.gmra.mrb[0].mxu0 %v1447
        %v1524 = vpop.f32.mrb[0].mxu0
        %v1525 = vadd.f32 %v1368, %v1524
        %v1526 = vpop.f32.mrb[0].mxu0
        %v1527 = vpop.f32.mrb[0].mxu0
        %v1528 = vadd.f32 %v1371, %v1527
        %v1529 = vpop.f32.mrb[0].mxu0
        %1530 = vmatprep.mubr.bf16.mxu0 0
        %1531 = vmatmul.mubr.bf16.gmra.mrb[0].mxu0 %v1450
        %v1532 = vpop.f32.mrb[0].mxu0
        %v1533 = vadd.f32 %v1376, %v1532
        %v1534 = vpop.f32.mrb[0].mxu0
        %v1535 = vpop.f32.mrb[0].mxu0
        %v1536 = vadd.f32 %v1379, %v1535
        %v1537 = vpop.f32.mrb[0].mxu0
        %1538 = vmatprep.mubr.bf16.mxu0 0
        %1539 = vmatmul.mubr.bf16.gmra.mrb[0].mxu0 %v1453
        %v1540 = vpop.f32.mrb[0].mxu0
        %v1541 = vadd.f32 %v1384, %v1540
        %v1542 = vpop.f32.mrb[0].mxu0
        %v1543 = vpop.f32.mrb[0].mxu0
        %v1544 = vadd.f32 %v1387, %v1543
        %v1545 = vpop.f32.mrb[0].mxu0
        %1546 = vmatprep.mubr.bf16.mxu0 0
        %1547 = vmatmul.mubr.bf16.gmra.mrb[0].mxu0 %v1456
        %v1548 = vpop.f32.mrb[0].mxu0
        %v1549 = vadd.f32 %v1392, %v1548
        %v1550 = vpop.f32.mrb[0].mxu0
        %v1551 = vpop.f32.mrb[0].mxu0
        %v1552 = vadd.f32 %v1395, %v1551
        %v1553 = vpop.f32.mrb[0].mxu0
        %1554 = vdwg.mxu0
        %s1555 = sadd.s32 %s1162, 2
        %s1556 = smul.u32 %s1555, 40
        %s1557 = scalar_lea.vmem [#allocation2], %s1556
        %v1558 = vld [vmem:[%s1557 + $0x2] sm:$0xff]
        %v1559 = vld [vmem:[%s1557 + $0xa] sm:$0xff]
        %v1560 = vld [vmem:[%s1557 + $0x12] sm:$0xff]
        %v1561 = vld [vmem:[%s1557 + $0x1a] sm:$0xff]
        %v1562 = vld [vmem:[%s1557 + $0x2a] sm:$0xff]
        %v1563 = vld [vmem:[%s1557 + $0x32] sm:$0xff]
        %v1564 = vld [vmem:[%s1557 + $0x3a] sm:$0xff]
        %v1565 = vld [vmem:[%s1557 + $0x42] sm:$0xff]
        %v1566 = vld [vmem:[%s1557 + $0x52] sm:$0xff]
        %v1567 = vld [vmem:[%s1557 + $0x5a] sm:$0xff]
        %v1568 = vld [vmem:[%s1557 + $0x62] sm:$0xff]
        %v1569 = vld [vmem:[%s1557 + $0x6a] sm:$0xff]
        %v1570 = vld [vmem:[%s1557 + $0x7a] sm:$0xff]
        %v1571 = vld [vmem:[%s1557 + $0x82] sm:$0xff]
        %v1572 = vld [vmem:[%s1557 + $0x8a] sm:$0xff]
        %v1573 = vld [vmem:[%s1557 + $0x92] sm:$0xff]
        %v1574 = vpack.c.bf16 %v1559, %v1558
        %v1575 = vpack.c.bf16 %v1561, %v1560
        %v1576 = vpack.c.bf16 %v1563, %v1562
        %v1577 = vpack.c.bf16 %v1565, %v1564
        %v1578 = vpack.c.bf16 %v1567, %v1566
        %v1579 = vpack.c.bf16 %v1569, %v1568
        %v1580 = vpack.c.bf16 %v1571, %v1570
        %v1581 = vpack.c.bf16 %v1573, %v1572
        %s1582 = scalar_lea.vmem %s3, 96
        %v1583 = vld [vmem:[%s1582] sm:$0xf]
        %v1584 = vld [vmem:[%s1582 + $0x4] sm:$0xf]
        %v1585 = vld [vmem:[%s1582 + $0x8] sm:$0xf]
        %v1586 = vld [vmem:[%s1582 + $0xc] sm:$0xf]
        %v1587 = vld [vmem:[%s1582 + $0x10] sm:$0xf]
        %v1588 = vld [vmem:[%s1582 + $0x14] sm:$0xf]
        %v1589 = vld [vmem:[%s1582 + $0x18] sm:$0xf]
        %v1590 = vld [vmem:[%s1582 + $0x1c] sm:$0xf]
        %v1591 = vld [vmem:[%s1582 + $0x20] sm:$0xf]
        %v1592 = vld [vmem:[%s1582 + $0x24] sm:$0xf]
        %v1593 = vld [vmem:[%s1582 + $0x28] sm:$0xf]
        %v1594 = vld [vmem:[%s1582 + $0x2c] sm:$0xf]
        %v1607 = vunpack.c.l.b16 %v1583
        %v1608 = vunpack.c.l.b16 %v1584
        %v1609 = vunpack.c.l.b16 %v1585
        %v1610 = vunpack.c.l.b16 %v1586
        %v1611 = vunpack.c.l.b16 %v1587
        %v1612 = vunpack.c.l.b16 %v1588
        %v1613 = vunpack.c.l.b16 %v1589
        %v1614 = vunpack.c.l.b16 %v1590
        %v1615 = vunpack.c.l.b16 %v1591
        %v1616 = vunpack.c.l.b16 %v1592
        %v1617 = vunpack.c.l.b16 %v1593
        %v1618 = vunpack.c.l.b16 %v1594
        %v1619 = vpack.c.b16 %v1608, %v1607
        %v1620 = vpack.c.b16 %v1610, %v1609
        %v1621 = vpack.c.b16 %v1612, %v1611
        %v1622 = vpack.c.b16 %v1614, %v1613
        %v1623 = vpack.c.b16 %v1616, %v1615
        %v1624 = vpack.c.b16 %v1618, %v1617
        %v1632 = vsel %vm280, %v1574, 0
        %v1635 = vsel %vm280, %v1575, 0
        %v1638 = vsel %vm280, %v1576, 0
        %v1641 = vsel %vm280, %v1577, 0
        %v1644 = vsel %vm280, %v1578, 0
        %v1647 = vsel %vm280, %v1579, 0
        %v1650 = vsel %vm280, %v1580, 0
        %v1653 = vsel %vm280, %v1581, 0
        %1655 = vmatprep.subr.bf16.mxu0 0
        %1656 = vmatpush1.bf16.msra.mxu0 %v1619
        %1657 = vmatprep.subr.bf16.mxu0 0
        %1658 = vmatpush1.bf16.msra.mxu0 %v1620
        %1659 = vmatprep.subr.bf16.mxu0 0
        %1660 = vmatpush1.bf16.msra.mxu0 %v1621
        %1661 = vmatprep.subr.bf16.mxu0 0
        %1662 = vmatpush1.bf16.msra.mxu0 %v1622
        %1663 = vmatprep.subr.bf16.mxu0 0
        %1664 = vmatpush1.bf16.msra.mxu0 %v1623
        %1665 = vmatprep.subr.bf16.mxu0 0
        %1666 = vmatpush1.bf16.msra.mxu0 %v1624
        %1667 = vmatprep.subr.bf16.mxu0 0
        %1668 = vmatpush1.bf16.msra.mxu0 0
        %1669 = vmatprep.subr.bf16.mxu0 0
        %1670 = vmatpush1.bf16.msra.mxu0 0
        %1671 = vmatprep.subr.bf16.mxu0 0
        %1672 = vmatpush1.bf16.msra.mxu0 0
        %1673 = vmatprep.subr.bf16.mxu0 0
        %1674 = vmatpush1.bf16.msra.mxu0 0
        %1675 = vmatprep.subr.bf16.mxu0 0
        %1676 = vmatpush1.bf16.msra.mxu0 0
        %1677 = vmatprep.subr.bf16.mxu0 0
        %1678 = vmatpush1.bf16.msra.mxu0 0
        %1679 = vmatprep.subr.bf16.mxu0 0
        %1680 = vmatpush1.bf16.msra.mxu0 0
        %1681 = vmatprep.subr.bf16.mxu0 0
        %1682 = vmatpush1.bf16.msra.mxu0 0
        %1683 = vmatprep.subr.bf16.mxu0 0
        %1684 = vmatpush1.bf16.msra.mxu0 0
        %1685 = vmatprep.subr.bf16.mxu0 0
        %1686 = vmatpush1.bf16.msra.mxu0 0
        %1687 = vmatprep.mubr.bf16.mxu0 0
        %1688 = vmatmul.mubr.bf16.gmra.mrb[0].mxu0 %v1632
        %v1689 = vpop.f32.mrb[0].mxu0
        %v1690 = vadd.f32 0.0, %v1689
        %v1691 = vpop.f32.mrb[0].mxu0
        %v1692 = vpop.f32.mrb[0].mxu0
        %v1693 = vadd.f32 0.0, %v1692
        %v1694 = vpop.f32.mrb[0].mxu0
        %1695 = vmatprep.mubr.bf16.mxu0 0
        %1696 = vmatmul.mubr.bf16.gmra.mrb[0].mxu0 %v1635
        %v1697 = vpop.f32.mrb[0].mxu0
        %v1698 = vadd.f32 0.0, %v1697
        %v1699 = vpop.f32.mrb[0].mxu0
        %v1700 = vpop.f32.mrb[0].mxu0
        %v1701 = vadd.f32 0.0, %v1700
        %v1702 = vpop.f32.mrb[0].mxu0
        %1703 = vmatprep.mubr.bf16.mxu0 0
        %1704 = vmatmul.mubr.bf16.gmra.mrb[0].mxu0 %v1638
        %v1705 = vpop.f32.mrb[0].mxu0
        %v1706 = vadd.f32 0.0, %v1705
        %v1707 = vpop.f32.mrb[0].mxu0
        %v1708 = vpop.f32.mrb[0].mxu0
        %v1709 = vadd.f32 0.0, %v1708
        %v1710 = vpop.f32.mrb[0].mxu0
        %1711 = vmatprep.mubr.bf16.mxu0 0
        %1712 = vmatmul.mubr.bf16.gmra.mrb[0].mxu0 %v1641
        %v1713 = vpop.f32.mrb[0].mxu0
        %v1714 = vadd.f32 0.0, %v1713
        %v1715 = vpop.f32.mrb[0].mxu0
        %v1716 = vpop.f32.mrb[0].mxu0
        %v1717 = vadd.f32 0.0, %v1716
        %v1718 = vpop.f32.mrb[0].mxu0
        %1719 = vmatprep.mubr.bf16.mxu0 0
        %1720 = vmatmul.mubr.bf16.gmra.mrb[0].mxu0 %v1644
        %v1721 = vpop.f32.mrb[0].mxu0
        %v1722 = vadd.f32 0.0, %v1721
        %v1723 = vpop.f32.mrb[0].mxu0
        %v1724 = vpop.f32.mrb[0].mxu0
        %v1725 = vadd.f32 0.0, %v1724
        %v1726 = vpop.f32.mrb[0].mxu0
        %1727 = vmatprep.mubr.bf16.mxu0 0
        %1728 = vmatmul.mubr.bf16.gmra.mrb[0].mxu0 %v1647
        %v1729 = vpop.f32.mrb[0].mxu0
        %v1730 = vadd.f32 0.0, %v1729
        %v1731 = vpop.f32.mrb[0].mxu0
        %v1732 = vpop.f32.mrb[0].mxu0
        %v1733 = vadd.f32 0.0, %v1732
        %v1734 = vpop.f32.mrb[0].mxu0
        %1735 = vmatprep.mubr.bf16.mxu0 0
        %1736 = vmatmul.mubr.bf16.gmra.mrb[0].mxu0 %v1650
        %v1737 = vpop.f32.mrb[0].mxu0
        %v1738 = vadd.f32 0.0, %v1737
        %v1739 = vpop.f32.mrb[0].mxu0
        %v1740 = vpop.f32.mrb[0].mxu0
        %v1741 = vadd.f32 0.0, %v1740
        %v1742 = vpop.f32.mrb[0].mxu0
        %1743 = vmatprep.mubr.bf16.mxu0 0
        %1744 = vmatmul.mubr.bf16.gmra.mrb[0].mxu0 %v1653
        %v1745 = vpop.f32.mrb[0].mxu0
        %v1746 = vadd.f32 0.0, %v1745
        %v1747 = vpop.f32.mrb[0].mxu0
        %v1748 = vpop.f32.mrb[0].mxu0
        %v1749 = vadd.f32 0.0, %v1748
        %v1750 = vpop.f32.mrb[0].mxu0
        %1751 = vdwg.mxu0
        %v1752 = vadd.f32 %v1493, %v1690
        %v1753 = vadd.f32 %v1496, %v1693
        %v1754 = vadd.f32 %v1501, %v1698
        %v1755 = vadd.f32 %v1504, %v1701
        %v1756 = vadd.f32 %v1509, %v1706
        %v1757 = vadd.f32 %v1512, %v1709
        %v1758 = vadd.f32 %v1517, %v1714
        %v1759 = vadd.f32 %v1520, %v1717
        %v1760 = vadd.f32 %v1525, %v1722
        %v1761 = vadd.f32 %v1528, %v1725
        %v1762 = vadd.f32 %v1533, %v1730
        %v1763 = vadd.f32 %v1536, %v1733
        %v1764 = vadd.f32 %v1541, %v1738
        %v1765 = vadd.f32 %v1544, %v1741
        %v1766 = vadd.f32 %v1549, %v1746
        %v1767 = vadd.f32 %v1552, %v1749
        %v1769 = vlaneseq
        %v1770 = vshrl.u32 %v1769, 7
        %v1771 = vsub.s32 0, %v1770
        %v1772 = vrot.slane %v1155, %v1771
        %v1774 = vadd.f32 %v1752, %v1772
        %v1775 = vadd.f32 %v1753, %v1772
        %v1776 = vadd.f32 %v1754, %v1772
        %v1777 = vadd.f32 %v1755, %v1772
        %v1778 = vadd.f32 %v1756, %v1772
        %v1779 = vadd.f32 %v1757, %v1772
        %v1780 = vadd.f32 %v1758, %v1772
        %v1781 = vadd.f32 %v1759, %v1772
        %v1782 = vadd.f32 %v1760, %v1772
        %v1783 = vadd.f32 %v1761, %v1772
        %v1784 = vadd.f32 %v1762, %v1772
        %v1785 = vadd.f32 %v1763, %v1772
        %v1786 = vadd.f32 %v1764, %v1772
        %v1787 = vadd.f32 %v1765, %v1772
        %v1788 = vadd.f32 %v1766, %v1772
        %v1789 = vadd.f32 %v1767, %v1772
        %v1790 = vmax.f32 %v1774, 0.0
        %v1791 = vmax.f32 %v1775, 0.0
        %v1792 = vmax.f32 %v1776, 0.0
        %v1793 = vmax.f32 %v1777, 0.0
        %v1794 = vmax.f32 %v1778, 0.0
        %v1795 = vmax.f32 %v1779, 0.0
        %v1796 = vmax.f32 %v1780, 0.0
        %v1797 = vmax.f32 %v1781, 0.0
        %v1798 = vmax.f32 %v1782, 0.0
        %v1799 = vmax.f32 %v1783, 0.0
        %v1800 = vmax.f32 %v1784, 0.0
        %v1801 = vmax.f32 %v1785, 0.0
        %v1802 = vmax.f32 %v1786, 0.0
        %v1803 = vmax.f32 %v1787, 0.0
        %v1804 = vmax.f32 %v1788, 0.0
        %v1805 = vmax.f32 %v1789, 0.0
        %v1806 = vmax.f32 %v1790, %v1794
        %v1807 = vmax.f32 %v1791, %v1795
        %v1808 = vmax.f32 %v1792, %v1796
        %v1809 = vmax.f32 %v1793, %v1797
        %v1810 = vmax.f32 %v1798, %v1802
        %v1811 = vmax.f32 %v1799, %v1803
        %v1812 = vmax.f32 %v1800, %v1804
        %v1813 = vmax.f32 %v1801, %v1805
        %1814 = vst.msk [vmem:[#allocation4] sm:$0xff] %vm361, %v1806
        %1815 = vst.msk [vmem:[#allocation4 + $0x8] sm:$0xff] %vm361, %v1807
        %1816 = vst.msk [vmem:[#allocation4 + $0x10] sm:$0xff] %vm361, %v1808
        %1817 = vst.msk [vmem:[#allocation4 + $0x18] sm:$0xff] %vm361, %v1809
        %1818 = vst.msk [vmem:[#allocation4 + $0x20] sm:$0xff] %vm361, %v1810
        %1819 = vst.msk [vmem:[#allocation4 + $0x28] sm:$0xff] %vm361, %v1811
        %1820 = vst.msk [vmem:[#allocation4 + $0x30] sm:$0xff] %vm361, %v1812
        %1821 = vst.msk [vmem:[#allocation4 + $0x38] sm:$0xff] %vm361, %v1813
        %v1822 = vld [vmem:[#allocation4] ss:$2 sm:$0xff]
        %s1823 = scalar_lea.vmem [#allocation4], 16
        %v1824 = vld [vmem:[%s1823] ss:$2 sm:$0xff]
        %s1825 = scalar_lea.vmem [#allocation4], 32
        %v1826 = vld [vmem:[%s1825] ss:$2 sm:$0xff]
        %s1827 = scalar_lea.vmem [#allocation4], 48
        %v1828 = vld [vmem:[%s1827] ss:$2 sm:$0xff]
        %s1829 = scalar_lea.vmem [#allocation4], 1
        %v1830 = vld [vmem:[%s1829] ss:$2 sm:$0xff]
        %s1831 = scalar_lea.vmem [#allocation4], 17
        %v1832 = vld [vmem:[%s1831] ss:$2 sm:$0xff]
        %s1833 = scalar_lea.vmem [#allocation4], 33
        %v1834 = vld [vmem:[%s1833] ss:$2 sm:$0xff]
        %s1835 = scalar_lea.vmem [#allocation4], 49
        %v1836 = vld [vmem:[%s1835] ss:$2 sm:$0xff]
        %v1837 = vmax.f32 %v1822, %v1830
        %v1838 = vmax.f32 %v1824, %v1832
        %v1839 = vmax.f32 %v1826, %v1834
        %v1840 = vmax.f32 %v1828, %v1836
        %s1841 = smul.u32 %s1157, 2
        %s1842 = sadd.s32 %s1841, 1
        %vm1847 = vcmask 1042432
        %v1848 = vrot.slane %v1837, 5
        %v1849 = vrot.slane %v1838, 5
        %v1850 = vsel %vm1847, %v1848, %v1849
        %v1851 = vrot.slane %v1839, 5
        %v1852 = vrot.slane %v1840, 5
        %v1853 = vsel %vm1847, %v1851, %v1852
        %s1860 = smul.u32 %s1842, 6
        %s1861 = smul.addr %s1860, 8
        %s1862 = scalar_lea.vmem [#allocation3], %s1861
        %vm1863 = vcmask 523267
        %1864 = vst.msk [vmem:[%s1862] sm:$0xf8] %vm1863, %v1848
        %1865 = vst.msk [vmem:[%s1862 + $0x10] sm:$0xff] %vm361, %v1850
        %vm1866 = vcmask 518144
        %1867 = vst.msk [vmem:[%s1862 + $0x20] sm:$0x7] %vm1866, %v1849
        %1868 = vst.msk [vmem:[%s1862 + $0x30] sm:$0xf8] %vm1863, %v1851
        %1869 = vst.msk [vmem:[%s1862 + $0x40] sm:$0xff] %vm361, %v1853
        %1870 = vst.msk [vmem:[%s1862 + $0x50] sm:$0x7] %vm1866, %v1852
        %vm1871 = vcmask 1041408
        %v1872 = vrot.slane %v1837, 6
        %v1873 = vrot.slane %v1838, 6
        %v1874 = vsel %vm1871, %v1872, %v1873
        %v1875 = vrot.slane %v1839, 6
        %v1876 = vrot.slane %v1840, 6
        %v1877 = vsel %vm1871, %v1875, %v1876
        %1878 = vrot.lane.b32.xlu0 %v1872, 64
        %v1879 = vpop.permute.xlu0 %1878
        %1880 = vrot.lane.b32.xlu0 %v1874, 64
        %v1881 = vpop.permute.xlu0 %1880
        %1882 = vrot.lane.b32.xlu0 %v1873, 64
        %v1883 = vpop.permute.xlu0 %1882
        %1884 = vrot.lane.b32.xlu0 %v1875, 64
        %v1885 = vpop.permute.xlu0 %1884
        %1886 = vrot.lane.b32.xlu0 %v1877, 64
        %v1887 = vpop.permute.xlu0 %1886
        %1888 = vrot.lane.b32.xlu0 %v1876, 64
        %v1889 = vpop.permute.xlu0 %1888
        %vm1896 = vcmask 1048066
        %1897 = vst.msk [vmem:[%s1862] sm:$0xfc] %vm1896, %v1879
        %vm1898 = vcmask 1048064
        %1899 = vst.msk [vmem:[%s1862 + $0x10] sm:$0xff] %vm1898, %v1881
        %vm1900 = vcmask 1041920
        %1901 = vst.msk [vmem:[%s1862 + $0x20] sm:$0x3] %vm1900, %v1883
        %1902 = vst.msk [vmem:[%s1862 + $0x30] sm:$0xfc] %vm1896, %v1885
        %1903 = vst.msk [vmem:[%s1862 + $0x40] sm:$0xff] %vm1898, %v1887
        %1904 = vst.msk [vmem:[%s1862 + $0x50] sm:$0x3] %vm1900, %v1889
        %vm1905 = vcmask 1040384
        %v1906 = vrot.slane %v1837, 7
        %v1907 = vrot.slane %v1838, 7
        %v1908 = vsel %vm1905, %v1906, %v1907
        %v1909 = vrot.slane %v1839, 7
        %v1910 = vrot.slane %v1840, 7
        %v1911 = vsel %vm1905, %v1909, %v1910
        %vm1918 = vcmask 523265
        %1919 = vst.msk [vmem:[%s1862 + $0x8] sm:$0xfe] %vm1918, %v1906
        %1920 = vst.msk [vmem:[%s1862 + $0x18] sm:$0xff] %vm361, %v1908
        %1921 = vst.msk [vmem:[%s1862 + $0x28] sm:$0x1] %vm376, %v1907
        %1922 = vst.msk [vmem:[%s1862 + $0x38] sm:$0xfe] %vm1918, %v1909
        %1923 = vst.msk [vmem:[%s1862 + $0x48] sm:$0xff] %vm361, %v1911
        %1924 = vst.msk [vmem:[%s1862 + $0x58] sm:$0x1] %vm376, %v1910
      $region60: #{enhanced_cnn_forward.2} parent=47 // loop_footer
        %s1161 = sadd.s32 1, %s1157
      $region61: #{enhanced_cnn_forward.2} parent=47 // loop_footer_branch
        %1156 = sbr.rel target = $region57
      $region62: #{enhanced_cnn_forward.2} parent=47 // loop_exit
        _
      %v1925 = vld [vmem:[%s6] sm:$0x1]
      %v1926 = vld [vmem:[#allocation3] sm:$0xfc]
      %v1927 = vld [vmem:[#allocation3 + $0x8] sm:$0xfc]
      %v1928 = vld [vmem:[#allocation3 + $0x10] sm:$0xff]
      %v1929 = vld [vmem:[#allocation3 + $0x18] sm:$0xff]
      %v1930 = vld [vmem:[#allocation3 + $0x20] sm:$0x3]
      %v1931 = vld [vmem:[#allocation3 + $0x28] sm:$0x3]
      %v1932 = vld [vmem:[#allocation3 + $0x30] sm:$0xfc]
      %v1933 = vld [vmem:[#allocation3 + $0x38] sm:$0xfc]
      %v1934 = vld [vmem:[#allocation3 + $0x40] sm:$0xff]
      %v1935 = vld [vmem:[#allocation3 + $0x48] sm:$0xff]
      %v1936 = vld [vmem:[#allocation3 + $0x50] sm:$0x3]
      %v1937 = vld [vmem:[#allocation3 + $0x58] sm:$0x3]
      %v1938 = vld [vmem:[#allocation3 + $0x60] sm:$0xfc]
      %v1939 = vld [vmem:[#allocation3 + $0x68] sm:$0xfc]
      %v1940 = vld [vmem:[#allocation3 + $0x70] sm:$0xff]
      %v1941 = vld [vmem:[#allocation3 + $0x78] sm:$0xff]
      %v1942 = vld [vmem:[#allocation3 + $0x80] sm:$0x3]
      %v1943 = vld [vmem:[#allocation3 + $0x88] sm:$0x3]
      %v1944 = vld [vmem:[#allocation3 + $0x90] sm:$0xfc]
      %v1945 = vld [vmem:[#allocation3 + $0x98] sm:$0xfc]
      %v1946 = vld [vmem:[#allocation3 + $0xa0] sm:$0xff]
      %v1947 = vld [vmem:[#allocation3 + $0xa8] sm:$0xff]
      %v1948 = vld [vmem:[#allocation3 + $0xb0] sm:$0x3]
      %v1949 = vld [vmem:[#allocation3 + $0xb8] sm:$0x3]
      %v1950 = vld [vmem:[#allocation3 + $0xc0] sm:$0xfc]
      %v1951 = vld [vmem:[#allocation3 + $0xc8] sm:$0xfc]
      %v1952 = vld [vmem:[#allocation3 + $0xd0] sm:$0xff]
      %v1953 = vld [vmem:[#allocation3 + $0xd8] sm:$0xff]
      %v1954 = vld [vmem:[#allocation3 + $0xe0] sm:$0x3]
      %v1955 = vld [vmem:[#allocation3 + $0xe8] sm:$0x3]
      %v1956 = vld [vmem:[#allocation3 + $0xf0] sm:$0xfc]
      %v1957 = vld [vmem:[#allocation3 + $0xf8] sm:$0xfc]
      %v1958 = vld [vmem:[#allocation3 + $0x100] sm:$0xff]
      %v1959 = vld [vmem:[#allocation3 + $0x108] sm:$0xff]
      %v1960 = vld [vmem:[#allocation3 + $0x110] sm:$0x3]
      %v1961 = vld [vmem:[#allocation3 + $0x118] sm:$0x3]
      %v1962 = vld [vmem:[#allocation3 + $0x120] sm:$0xfc]
      %v1963 = vld [vmem:[#allocation3 + $0x128] sm:$0xfc]
      %v1964 = vld [vmem:[#allocation3 + $0x130] sm:$0xff]
      %v1965 = vld [vmem:[#allocation3 + $0x138] sm:$0xff]
      %v1966 = vld [vmem:[#allocation3 + $0x140] sm:$0x3]
      %v1967 = vld [vmem:[#allocation3 + $0x148] sm:$0x3]
      %v1968 = vld [vmem:[#allocation3 + $0x150] sm:$0xfc]
      %v1969 = vld [vmem:[#allocation3 + $0x158] sm:$0xfc]
      %v1970 = vld [vmem:[#allocation3 + $0x160] sm:$0xff]
      %v1971 = vld [vmem:[#allocation3 + $0x168] sm:$0xff]
      %v1972 = vld [vmem:[#allocation3 + $0x170] sm:$0x3]
      %v1973 = vld [vmem:[#allocation3 + $0x178] sm:$0x3]
      %vm2022 = vcmask 1045504
      %v2023 = vrot.slane %v1926, 2
      %v2024 = vrot.slane %v1928, 2
      %v2025 = vsel %vm2022, %v2023, %v2024
      %v2026 = vrot.slane %v1927, 2
      %v2027 = vrot.slane %v1929, 2
      %v2028 = vsel %vm2022, %v2026, %v2027
      %v2029 = vrot.slane %v1930, 2
      %v2030 = vsel %vm2022, %v2024, %v2029
      %v2031 = vrot.slane %v1931, 2
      %v2032 = vsel %vm2022, %v2027, %v2031
      %v2033 = vrot.slane %v1932, 2
      %v2034 = vrot.slane %v1934, 2
      %v2035 = vsel %vm2022, %v2033, %v2034
      %v2036 = vrot.slane %v1933, 2
      %v2037 = vrot.slane %v1935, 2
      %v2038 = vsel %vm2022, %v2036, %v2037
      %v2039 = vrot.slane %v1936, 2
      %v2040 = vsel %vm2022, %v2034, %v2039
      %v2041 = vrot.slane %v1937, 2
      %v2042 = vsel %vm2022, %v2037, %v2041
      %v2043 = vrot.slane %v1938, 2
      %v2044 = vrot.slane %v1940, 2
      %v2045 = vsel %vm2022, %v2043, %v2044
      %v2046 = vrot.slane %v1939, 2
      %v2047 = vrot.slane %v1941, 2
      %v2048 = vsel %vm2022, %v2046, %v2047
      %v2049 = vrot.slane %v1942, 2
      %v2050 = vsel %vm2022, %v2044, %v2049
      %v2051 = vrot.slane %v1943, 2
      %v2052 = vsel %vm2022, %v2047, %v2051
      %v2053 = vrot.slane %v1944, 2
      %v2054 = vrot.slane %v1946, 2
      %v2055 = vsel %vm2022, %v2053, %v2054
      %v2056 = vrot.slane %v1945, 2
      %v2057 = vrot.slane %v1947, 2
      %v2058 = vsel %vm2022, %v2056, %v2057
      %v2059 = vrot.slane %v1948, 2
      %v2060 = vsel %vm2022, %v2054, %v2059
      %v2061 = vrot.slane %v1949, 2
      %v2062 = vsel %vm2022, %v2057, %v2061
      %v2063 = vrot.slane %v1950, 2
      %v2064 = vrot.slane %v1952, 2
      %v2065 = vsel %vm2022, %v2063, %v2064
      %v2066 = vrot.slane %v1951, 2
      %v2067 = vrot.slane %v1953, 2
      %v2068 = vsel %vm2022, %v2066, %v2067
      %v2069 = vrot.slane %v1954, 2
      %v2070 = vsel %vm2022, %v2064, %v2069
      %v2071 = vrot.slane %v1955, 2
      %v2072 = vsel %vm2022, %v2067, %v2071
      %v2073 = vrot.slane %v1956, 2
      %v2074 = vrot.slane %v1958, 2
      %v2075 = vsel %vm2022, %v2073, %v2074
      %v2076 = vrot.slane %v1957, 2
      %v2077 = vrot.slane %v1959, 2
      %v2078 = vsel %vm2022, %v2076, %v2077
      %v2079 = vrot.slane %v1960, 2
      %v2080 = vsel %vm2022, %v2074, %v2079
      %v2081 = vrot.slane %v1961, 2
      %v2082 = vsel %vm2022, %v2077, %v2081
      %v2083 = vrot.slane %v1962, 2
      %v2084 = vrot.slane %v1964, 2
      %v2085 = vsel %vm2022, %v2083, %v2084
      %v2086 = vrot.slane %v1963, 2
      %v2087 = vrot.slane %v1965, 2
      %v2088 = vsel %vm2022, %v2086, %v2087
      %v2089 = vrot.slane %v1966, 2
      %v2090 = vsel %vm2022, %v2084, %v2089
      %v2091 = vrot.slane %v1967, 2
      %v2092 = vsel %vm2022, %v2087, %v2091
      %v2093 = vrot.slane %v1968, 2
      %v2094 = vrot.slane %v1970, 2
      %v2095 = vsel %vm2022, %v2093, %v2094
      %v2096 = vrot.slane %v1969, 2
      %v2097 = vrot.slane %v1971, 2
      %v2098 = vsel %vm2022, %v2096, %v2097
      %v2099 = vrot.slane %v1972, 2
      %v2100 = vsel %vm2022, %v2094, %v2099
      %v2101 = vrot.slane %v1973, 2
      %v2102 = vsel %vm2022, %v2097, %v2101
      %v2135 = vpack.c.bf16 %v2030, %v2025
      %v2136 = vpack.c.bf16 %v2032, %v2028
      %v2137 = vpack.c.bf16 %v2040, %v2035
      %v2138 = vpack.c.bf16 %v2042, %v2038
      %v2139 = vpack.c.bf16 %v2050, %v2045
      %v2140 = vpack.c.bf16 %v2052, %v2048
      %v2141 = vpack.c.bf16 %v2060, %v2055
      %v2142 = vpack.c.bf16 %v2062, %v2058
      %v2143 = vpack.c.bf16 %v2070, %v2065
      %v2144 = vpack.c.bf16 %v2072, %v2068
      %v2145 = vpack.c.bf16 %v2080, %v2075
      %v2146 = vpack.c.bf16 %v2082, %v2078
      %v2147 = vpack.c.bf16 %v2090, %v2085
      %v2148 = vpack.c.bf16 %v2092, %v2088
      %v2149 = vpack.c.bf16 %v2100, %v2095
      %v2150 = vpack.c.bf16 %v2102, %v2098
      %v2151 = vld [vmem:[%s5] sm:$0xf]
      %v2152 = vld [vmem:[%s5 + $0x4] sm:$0xf]
      %v2153 = vld [vmem:[%s5 + $0x8] sm:$0xf]
      %v2154 = vld [vmem:[%s5 + $0xc] sm:$0xf]
      %v2155 = vld [vmem:[%s5 + $0x10] sm:$0xf]
      %v2156 = vld [vmem:[%s5 + $0x14] sm:$0xf]
      %v2157 = vld [vmem:[%s5 + $0x18] sm:$0xf]
      %v2158 = vld [vmem:[%s5 + $0x1c] sm:$0xf]
      %v2159 = vld [vmem:[%s5 + $0x20] sm:$0xf]
      %v2160 = vld [vmem:[%s5 + $0x24] sm:$0xf]
      %v2161 = vld [vmem:[%s5 + $0x28] sm:$0xf]
      %v2162 = vld [vmem:[%s5 + $0x2c] sm:$0xf]
      %v2163 = vld [vmem:[%s5 + $0x30] sm:$0xf]
      %v2164 = vld [vmem:[%s5 + $0x34] sm:$0xf]
      %v2165 = vld [vmem:[%s5 + $0x38] sm:$0xf]
      %v2166 = vld [vmem:[%s5 + $0x3c] sm:$0xf]
      %v2167 = vld [vmem:[%s5 + $0x40] sm:$0xf]
      %v2168 = vld [vmem:[%s5 + $0x44] sm:$0xf]
      %v2169 = vld [vmem:[%s5 + $0x48] sm:$0xf]
      %v2170 = vld [vmem:[%s5 + $0x4c] sm:$0xf]
      %v2171 = vld [vmem:[%s5 + $0x50] sm:$0xf]
      %v2172 = vld [vmem:[%s5 + $0x54] sm:$0xf]
      %v2173 = vld [vmem:[%s5 + $0x58] sm:$0xf]
      %v2174 = vld [vmem:[%s5 + $0x5c] sm:$0xf]
      %v2175 = vld [vmem:[%s375] sm:$0xfc]
      %v2176 = vld [vmem:[%s375 + $0x8] sm:$0xfc]
      %v2177 = vld [vmem:[%s375 + $0x10] sm:$0xff]
      %v2178 = vld [vmem:[%s375 + $0x18] sm:$0xff]
      %v2179 = vld [vmem:[%s375 + $0x20] sm:$0x3]
      %v2180 = vld [vmem:[%s375 + $0x28] sm:$0x3]
      %v2181 = vld [vmem:[%s375 + $0x30] sm:$0xfc]
      %v2182 = vld [vmem:[%s375 + $0x38] sm:$0xfc]
      %v2183 = vld [vmem:[%s375 + $0x40] sm:$0xff]
      %v2184 = vld [vmem:[%s375 + $0x48] sm:$0xff]
      %v2185 = vld [vmem:[%s375 + $0x50] sm:$0x3]
      %v2186 = vld [vmem:[%s375 + $0x58] sm:$0x3]
      %v2187 = vld [vmem:[%s375 + $0x60] sm:$0xfc]
      %v2188 = vld [vmem:[%s375 + $0x68] sm:$0xfc]
      %v2189 = vld [vmem:[%s375 + $0x70] sm:$0xff]
      %v2190 = vld [vmem:[%s375 + $0x78] sm:$0xff]
      %v2191 = vld [vmem:[%s375 + $0x80] sm:$0x3]
      %v2192 = vld [vmem:[%s375 + $0x88] sm:$0x3]
      %v2193 = vld [vmem:[%s375 + $0x90] sm:$0xfc]
      %v2194 = vld [vmem:[%s375 + $0x98] sm:$0xfc]
      %v2195 = vld [vmem:[%s375 + $0xa0] sm:$0xff]
      %v2196 = vld [vmem:[%s375 + $0xa8] sm:$0xff]
      %v2197 = vld [vmem:[%s375 + $0xb0] sm:$0x3]
      %v2198 = vld [vmem:[%s375 + $0xb8] sm:$0x3]
      %v2199 = vld [vmem:[%s375 + $0xc0] sm:$0xfc]
      %v2200 = vld [vmem:[%s375 + $0xc8] sm:$0xfc]
      %v2201 = vld [vmem:[%s375 + $0xd0] sm:$0xff]
      %v2202 = vld [vmem:[%s375 + $0xd8] sm:$0xff]
      %v2203 = vld [vmem:[%s375 + $0xe0] sm:$0x3]
      %v2204 = vld [vmem:[%s375 + $0xe8] sm:$0x3]
      %v2205 = vld [vmem:[%s375 + $0xf0] sm:$0xfc]
      %v2206 = vld [vmem:[%s375 + $0xf8] sm:$0xfc]
      %v2207 = vld [vmem:[%s375 + $0x100] sm:$0xff]
      %v2208 = vld [vmem:[%s375 + $0x108] sm:$0xff]
      %v2209 = vld [vmem:[%s375 + $0x110] sm:$0x3]
      %v2210 = vld [vmem:[%s375 + $0x118] sm:$0x3]
      %v2211 = vld [vmem:[%s375 + $0x120] sm:$0xfc]
      %v2212 = vld [vmem:[%s375 + $0x128] sm:$0xfc]
      %v2213 = vld [vmem:[%s375 + $0x130] sm:$0xff]
      %v2214 = vld [vmem:[%s375 + $0x138] sm:$0xff]
      %v2215 = vld [vmem:[%s375 + $0x140] sm:$0x3]
      %v2216 = vld [vmem:[%s375 + $0x148] sm:$0x3]
      %v2217 = vld [vmem:[%s375 + $0x150] sm:$0xfc]
      %v2218 = vld [vmem:[%s375 + $0x158] sm:$0xfc]
      %v2219 = vld [vmem:[%s375 + $0x160] sm:$0xff]
      %v2220 = vld [vmem:[%s375 + $0x168] sm:$0xff]
      %v2221 = vld [vmem:[%s375 + $0x170] sm:$0x3]
      %v2222 = vld [vmem:[%s375 + $0x178] sm:$0x3]
      %v2271 = vrot.slane %v2175, 2
      %v2272 = vrot.slane %v2177, 2
      %v2273 = vsel %vm2022, %v2271, %v2272
      %v2274 = vrot.slane %v2176, 2
      %v2275 = vrot.slane %v2178, 2
      %v2276 = vsel %vm2022, %v2274, %v2275
      %v2277 = vrot.slane %v2179, 2
      %v2278 = vsel %vm2022, %v2272, %v2277
      %v2279 = vrot.slane %v2180, 2
      %v2280 = vsel %vm2022, %v2275, %v2279
      %v2281 = vrot.slane %v2181, 2
      %v2282 = vrot.slane %v2183, 2
      %v2283 = vsel %vm2022, %v2281, %v2282
      %v2284 = vrot.slane %v2182, 2
      %v2285 = vrot.slane %v2184, 2
      %v2286 = vsel %vm2022, %v2284, %v2285
      %v2287 = vrot.slane %v2185, 2
      %v2288 = vsel %vm2022, %v2282, %v2287
      %v2289 = vrot.slane %v2186, 2
      %v2290 = vsel %vm2022, %v2285, %v2289
      %v2291 = vrot.slane %v2187, 2
      %v2292 = vrot.slane %v2189, 2
      %v2293 = vsel %vm2022, %v2291, %v2292
      %v2294 = vrot.slane %v2188, 2
      %v2295 = vrot.slane %v2190, 2
      %v2296 = vsel %vm2022, %v2294, %v2295
      %v2297 = vrot.slane %v2191, 2
      %v2298 = vsel %vm2022, %v2292, %v2297
      %v2299 = vrot.slane %v2192, 2
      %v2300 = vsel %vm2022, %v2295, %v2299
      %v2301 = vrot.slane %v2193, 2
      %v2302 = vrot.slane %v2195, 2
      %v2303 = vsel %vm2022, %v2301, %v2302
      %v2304 = vrot.slane %v2194, 2
      %v2305 = vrot.slane %v2196, 2
      %v2306 = vsel %vm2022, %v2304, %v2305
      %v2307 = vrot.slane %v2197, 2
      %v2308 = vsel %vm2022, %v2302, %v2307
      %v2309 = vrot.slane %v2198, 2
      %v2310 = vsel %vm2022, %v2305, %v2309
      %v2311 = vrot.slane %v2199, 2
      %v2312 = vrot.slane %v2201, 2
      %v2313 = vsel %vm2022, %v2311, %v2312
      %v2314 = vrot.slane %v2200, 2
      %v2315 = vrot.slane %v2202, 2
      %v2316 = vsel %vm2022, %v2314, %v2315
      %v2317 = vrot.slane %v2203, 2
      %v2318 = vsel %vm2022, %v2312, %v2317
      %v2319 = vrot.slane %v2204, 2
      %v2320 = vsel %vm2022, %v2315, %v2319
      %v2321 = vrot.slane %v2205, 2
      %v2322 = vrot.slane %v2207, 2
      %v2323 = vsel %vm2022, %v2321, %v2322
      %v2324 = vrot.slane %v2206, 2
      %v2325 = vrot.slane %v2208, 2
      %v2326 = vsel %vm2022, %v2324, %v2325
      %v2327 = vrot.slane %v2209, 2
      %v2328 = vsel %vm2022, %v2322, %v2327
      %v2329 = vrot.slane %v2210, 2
      %v2330 = vsel %vm2022, %v2325, %v2329
      %v2331 = vrot.slane %v2211, 2
      %v2332 = vrot.slane %v2213, 2
      %v2333 = vsel %vm2022, %v2331, %v2332
      %v2334 = vrot.slane %v2212, 2
      %v2335 = vrot.slane %v2214, 2
      %v2336 = vsel %vm2022, %v2334, %v2335
      %v2337 = vrot.slane %v2215, 2
      %v2338 = vsel %vm2022, %v2332, %v2337
      %v2339 = vrot.slane %v2216, 2
      %v2340 = vsel %vm2022, %v2335, %v2339
      %v2341 = vrot.slane %v2217, 2
      %v2342 = vrot.slane %v2219, 2
      %v2343 = vsel %vm2022, %v2341, %v2342
      %v2344 = vrot.slane %v2218, 2
      %v2345 = vrot.slane %v2220, 2
      %v2346 = vsel %vm2022, %v2344, %v2345
      %v2347 = vrot.slane %v2221, 2
      %v2348 = vsel %vm2022, %v2342, %v2347
      %v2349 = vrot.slane %v2222, 2
      %v2350 = vsel %vm2022, %v2345, %v2349
      %v2383 = vpack.c.bf16 %v2278, %v2273
      %v2384 = vpack.c.bf16 %v2280, %v2276
      %v2385 = vpack.c.bf16 %v2288, %v2283
      %v2386 = vpack.c.bf16 %v2290, %v2286
      %v2387 = vpack.c.bf16 %v2298, %v2293
      %v2388 = vpack.c.bf16 %v2300, %v2296
      %v2389 = vpack.c.bf16 %v2308, %v2303
      %v2390 = vpack.c.bf16 %v2310, %v2306
      %v2391 = vpack.c.bf16 %v2318, %v2313
      %v2392 = vpack.c.bf16 %v2320, %v2316
      %v2393 = vpack.c.bf16 %v2328, %v2323
      %v2394 = vpack.c.bf16 %v2330, %v2326
      %v2395 = vpack.c.bf16 %v2338, %v2333
      %v2396 = vpack.c.bf16 %v2340, %v2336
      %v2397 = vpack.c.bf16 %v2348, %v2343
      %v2398 = vpack.c.bf16 %v2350, %v2346
      %s2399 = scalar_lea.vmem %s5, 96
      %v2400 = vld [vmem:[%s2399] sm:$0xf]
      %v2401 = vld [vmem:[%s2399 + $0x4] sm:$0xf]
      %v2402 = vld [vmem:[%s2399 + $0x8] sm:$0xf]
      %v2403 = vld [vmem:[%s2399 + $0xc] sm:$0xf]
      %v2404 = vld [vmem:[%s2399 + $0x10] sm:$0xf]
      %v2405 = vld [vmem:[%s2399 + $0x14] sm:$0xf]
      %v2406 = vld [vmem:[%s2399 + $0x18] sm:$0xf]
      %v2407 = vld [vmem:[%s2399 + $0x1c] sm:$0xf]
      %v2408 = vld [vmem:[%s2399 + $0x20] sm:$0xf]
      %v2409 = vld [vmem:[%s2399 + $0x24] sm:$0xf]
      %v2410 = vld [vmem:[%s2399 + $0x28] sm:$0xf]
      %v2411 = vld [vmem:[%s2399 + $0x2c] sm:$0xf]
      %v2412 = vld [vmem:[%s2399 + $0x30] sm:$0xf]
      %v2413 = vld [vmem:[%s2399 + $0x34] sm:$0xf]
      %v2414 = vld [vmem:[%s2399 + $0x38] sm:$0xf]
      %v2415 = vld [vmem:[%s2399 + $0x3c] sm:$0xf]
      %v2416 = vld [vmem:[%s2399 + $0x40] sm:$0xf]
      %v2417 = vld [vmem:[%s2399 + $0x44] sm:$0xf]
      %v2418 = vld [vmem:[%s2399 + $0x48] sm:$0xf]
      %v2419 = vld [vmem:[%s2399 + $0x4c] sm:$0xf]
      %v2420 = vld [vmem:[%s2399 + $0x50] sm:$0xf]
      %v2421 = vld [vmem:[%s2399 + $0x54] sm:$0xf]
      %v2422 = vld [vmem:[%s2399 + $0x58] sm:$0xf]
      %v2423 = vld [vmem:[%s2399 + $0x5c] sm:$0xf]
      %v2448 = vunpack.c.l.b16 %v2400
      %v2449 = vunpack.c.l.b16 %v2401
      %v2450 = vunpack.c.l.b16 %v2402
      %v2451 = vunpack.c.l.b16 %v2403
      %v2452 = vunpack.c.l.b16 %v2404
      %v2453 = vunpack.c.l.b16 %v2405
      %v2454 = vunpack.c.l.b16 %v2406
      %v2455 = vunpack.c.l.b16 %v2407
      %v2456 = vunpack.c.l.b16 %v2408
      %v2457 = vunpack.c.l.b16 %v2409
      %v2458 = vunpack.c.l.b16 %v2410
      %v2459 = vunpack.c.l.b16 %v2411
      %v2460 = vunpack.c.l.b16 %v2412
      %v2461 = vunpack.c.l.b16 %v2413
      %v2462 = vunpack.c.l.b16 %v2414
      %v2463 = vunpack.c.l.b16 %v2415
      %v2464 = vunpack.c.l.b16 %v2416
      %v2465 = vunpack.c.l.b16 %v2417
      %v2466 = vunpack.c.l.b16 %v2418
      %v2467 = vunpack.c.l.b16 %v2419
      %v2468 = vunpack.c.l.b16 %v2420
      %v2469 = vunpack.c.l.b16 %v2421
      %v2470 = vunpack.c.l.b16 %v2422
      %v2471 = vunpack.c.l.b16 %v2423
      %v2472 = vpack.c.b16 %v2449, %v2448
      %v2473 = vpack.c.b16 %v2451, %v2450
      %v2474 = vpack.c.b16 %v2453, %v2452
      %v2475 = vpack.c.b16 %v2455, %v2454
      %v2476 = vpack.c.b16 %v2457, %v2456
      %v2477 = vpack.c.b16 %v2459, %v2458
      %v2478 = vpack.c.b16 %v2461, %v2460
      %v2479 = vpack.c.b16 %v2463, %v2462
      %v2480 = vpack.c.b16 %v2465, %v2464
      %v2481 = vpack.c.b16 %v2467, %v2466
      %v2482 = vpack.c.b16 %v2469, %v2468
      %v2483 = vpack.c.b16 %v2471, %v2470
      %v2497 = vsel %vm361, %v2384, 0
      %v2500 = vsel %vm361, %v2386, 0
      %v2503 = vsel %vm361, %v2388, 0
      %v2506 = vsel %vm361, %v2390, 0
      %v2509 = vsel %vm361, %v2392, 0
      %v2512 = vsel %vm361, %v2394, 0
      %v2515 = vsel %vm361, %v2396, 0
      %v2518 = vsel %vm361, %v2398, 0
      %2520 = vmatprep.subr.bf16.mxu0 0
      %2521 = vmatpush1.bf16.msra.mxu0 %v2472
      %2522 = vmatprep.subr.bf16.mxu0 0
      %2523 = vmatpush1.bf16.msra.mxu0 %v2473
      %2524 = vmatprep.subr.bf16.mxu0 0
      %2525 = vmatpush1.bf16.msra.mxu0 %v2474
      %2526 = vmatprep.subr.bf16.mxu0 0
      %2527 = vmatpush1.bf16.msra.mxu0 %v2475
      %2528 = vmatprep.subr.bf16.mxu0 0
      %2529 = vmatpush1.bf16.msra.mxu0 %v2476
      %2530 = vmatprep.subr.bf16.mxu0 0
      %2531 = vmatpush1.bf16.msra.mxu0 %v2477
      %2532 = vmatprep.subr.bf16.mxu0 0
      %2533 = vmatpush1.bf16.msra.mxu0 %v2478
      %2534 = vmatprep.subr.bf16.mxu0 0
      %2535 = vmatpush1.bf16.msra.mxu0 %v2479
      %2536 = vmatprep.subr.bf16.mxu0 0
      %2537 = vmatpush1.bf16.msra.mxu0 %v2480
      %2538 = vmatprep.subr.bf16.mxu0 0
      %2539 = vmatpush1.bf16.msra.mxu0 %v2481
      %2540 = vmatprep.subr.bf16.mxu0 0
      %2541 = vmatpush1.bf16.msra.mxu0 %v2482
      %2542 = vmatprep.subr.bf16.mxu0 0
      %2543 = vmatpush1.bf16.msra.mxu0 %v2483
      %2544 = vmatprep.subr.bf16.mxu0 0
      %2545 = vmatpush1.bf16.msra.mxu0 0
      %2546 = vmatprep.subr.bf16.mxu0 0
      %2547 = vmatpush1.bf16.msra.mxu0 0
      %2548 = vmatprep.subr.bf16.mxu0 0
      %2549 = vmatpush1.bf16.msra.mxu0 0
      %2550 = vmatprep.subr.bf16.mxu0 0
      %2551 = vmatpush1.bf16.msra.mxu0 0
      %2552 = vmatprep.mubr.bf16.mxu0 %v2497
      %2553 = vmatmul.mubr.bf16.gmra.mrb[0].mxu0 %v2383
      %v2554 = vpop.f32.mrb[0].mxu0
      %v2555 = vadd.f32 0.0, %v2554
      %v2556 = vpop.f32.mrb[0].mxu0
      %v2557 = vpop.f32.mrb[0].mxu0
      %v2558 = vadd.f32 0.0, %v2557
      %v2559 = vpop.f32.mrb[0].mxu0
      %2560 = vmatprep.mubr.bf16.mxu0 %v2500
      %2561 = vmatmul.mubr.bf16.gmra.mrb[0].mxu0 %v2385
      %v2562 = vpop.f32.mrb[0].mxu0
      %v2563 = vadd.f32 0.0, %v2562
      %v2564 = vpop.f32.mrb[0].mxu0
      %v2565 = vpop.f32.mrb[0].mxu0
      %v2566 = vadd.f32 0.0, %v2565
      %v2567 = vpop.f32.mrb[0].mxu0
      %2568 = vmatprep.mubr.bf16.mxu0 %v2503
      %2569 = vmatmul.mubr.bf16.gmra.mrb[0].mxu0 %v2387
      %v2570 = vpop.f32.mrb[0].mxu0
      %v2571 = vadd.f32 0.0, %v2570
      %v2572 = vpop.f32.mrb[0].mxu0
      %v2573 = vpop.f32.mrb[0].mxu0
      %v2574 = vadd.f32 0.0, %v2573
      %v2575 = vpop.f32.mrb[0].mxu0
      %2576 = vmatprep.mubr.bf16.mxu0 %v2506
      %2577 = vmatmul.mubr.bf16.gmra.mrb[0].mxu0 %v2389
      %v2578 = vpop.f32.mrb[0].mxu0
      %v2579 = vadd.f32 0.0, %v2578
      %v2580 = vpop.f32.mrb[0].mxu0
      %v2581 = vpop.f32.mrb[0].mxu0
      %v2582 = vadd.f32 0.0, %v2581
      %v2583 = vpop.f32.mrb[0].mxu0
      %2584 = vmatprep.mubr.bf16.mxu0 %v2509
      %2585 = vmatmul.mubr.bf16.gmra.mrb[0].mxu0 %v2391
      %v2586 = vpop.f32.mrb[0].mxu0
      %v2587 = vadd.f32 0.0, %v2586
      %v2588 = vpop.f32.mrb[0].mxu0
      %v2589 = vpop.f32.mrb[0].mxu0
      %v2590 = vadd.f32 0.0, %v2589
      %v2591 = vpop.f32.mrb[0].mxu0
      %2592 = vmatprep.mubr.bf16.mxu0 %v2512
      %2593 = vmatmul.mubr.bf16.gmra.mrb[0].mxu0 %v2393
      %v2594 = vpop.f32.mrb[0].mxu0
      %v2595 = vadd.f32 0.0, %v2594
      %v2596 = vpop.f32.mrb[0].mxu0
      %v2597 = vpop.f32.mrb[0].mxu0
      %v2598 = vadd.f32 0.0, %v2597
      %v2599 = vpop.f32.mrb[0].mxu0
      %2600 = vmatprep.mubr.bf16.mxu0 %v2515
      %2601 = vmatmul.mubr.bf16.gmra.mrb[0].mxu0 %v2395
      %v2602 = vpop.f32.mrb[0].mxu0
      %v2603 = vadd.f32 0.0, %v2602
      %v2604 = vpop.f32.mrb[0].mxu0
      %v2605 = vpop.f32.mrb[0].mxu0
      %v2606 = vadd.f32 0.0, %v2605
      %v2607 = vpop.f32.mrb[0].mxu0
      %2608 = vmatprep.mubr.bf16.mxu0 %v2518
      %2609 = vmatmul.mubr.bf16.gmra.mrb[0].mxu0 %v2397
      %v2610 = vpop.f32.mrb[0].mxu0
      %v2611 = vadd.f32 0.0, %v2610
      %v2612 = vpop.f32.mrb[0].mxu0
      %v2613 = vpop.f32.mrb[0].mxu0
      %v2614 = vadd.f32 0.0, %v2613
      %v2615 = vpop.f32.mrb[0].mxu0
      %2616 = vdwg.mxu0
      %v2641 = vunpack.c.l.b16 %v2151
      %v2642 = vunpack.c.l.b16 %v2152
      %v2643 = vunpack.c.l.b16 %v2153
      %v2644 = vunpack.c.l.b16 %v2154
      %v2645 = vunpack.c.l.b16 %v2155
      %v2646 = vunpack.c.l.b16 %v2156
      %v2647 = vunpack.c.l.b16 %v2157
      %v2648 = vunpack.c.l.b16 %v2158
      %v2649 = vunpack.c.l.b16 %v2159
      %v2650 = vunpack.c.l.b16 %v2160
      %v2651 = vunpack.c.l.b16 %v2161
      %v2652 = vunpack.c.l.b16 %v2162
      %v2653 = vunpack.c.l.b16 %v2163
      %v2654 = vunpack.c.l.b16 %v2164
      %v2655 = vunpack.c.l.b16 %v2165
      %v2656 = vunpack.c.l.b16 %v2166
      %v2657 = vunpack.c.l.b16 %v2167
      %v2658 = vunpack.c.l.b16 %v2168
      %v2659 = vunpack.c.l.b16 %v2169
      %v2660 = vunpack.c.l.b16 %v2170
      %v2661 = vunpack.c.l.b16 %v2171
      %v2662 = vunpack.c.l.b16 %v2172
      %v2663 = vunpack.c.l.b16 %v2173
      %v2664 = vunpack.c.l.b16 %v2174
      %v2665 = vpack.c.b16 %v2642, %v2641
      %v2666 = vpack.c.b16 %v2644, %v2643
      %v2667 = vpack.c.b16 %v2646, %v2645
      %v2668 = vpack.c.b16 %v2648, %v2647
      %v2669 = vpack.c.b16 %v2650, %v2649
      %v2670 = vpack.c.b16 %v2652, %v2651
      %v2671 = vpack.c.b16 %v2654, %v2653
      %v2672 = vpack.c.b16 %v2656, %v2655
      %v2673 = vpack.c.b16 %v2658, %v2657
      %v2674 = vpack.c.b16 %v2660, %v2659
      %v2675 = vpack.c.b16 %v2662, %v2661
      %v2676 = vpack.c.b16 %v2664, %v2663
      %v2690 = vsel %vm361, %v2136, 0
      %v2693 = vsel %vm361, %v2138, 0
      %v2696 = vsel %vm361, %v2140, 0
      %v2699 = vsel %vm361, %v2142, 0
      %v2702 = vsel %vm361, %v2144, 0
      %v2705 = vsel %vm361, %v2146, 0
      %v2708 = vsel %vm361, %v2148, 0
      %v2711 = vsel %vm361, %v2150, 0
      %2713 = vmatprep.subr.bf16.mxu0 0
      %2714 = vmatpush1.bf16.msra.mxu0 %v2665
      %2715 = vmatprep.subr.bf16.mxu0 0
      %2716 = vmatpush1.bf16.msra.mxu0 %v2666
      %2717 = vmatprep.subr.bf16.mxu0 0
      %2718 = vmatpush1.bf16.msra.mxu0 %v2667
      %2719 = vmatprep.subr.bf16.mxu0 0
      %2720 = vmatpush1.bf16.msra.mxu0 %v2668
      %2721 = vmatprep.subr.bf16.mxu0 0
      %2722 = vmatpush1.bf16.msra.mxu0 %v2669
      %2723 = vmatprep.subr.bf16.mxu0 0
      %2724 = vmatpush1.bf16.msra.mxu0 %v2670
      %2725 = vmatprep.subr.bf16.mxu0 0
      %2726 = vmatpush1.bf16.msra.mxu0 %v2671
      %2727 = vmatprep.subr.bf16.mxu0 0
      %2728 = vmatpush1.bf16.msra.mxu0 %v2672
      %2729 = vmatprep.subr.bf16.mxu0 0
      %2730 = vmatpush1.bf16.msra.mxu0 %v2673
      %2731 = vmatprep.subr.bf16.mxu0 0
      %2732 = vmatpush1.bf16.msra.mxu0 %v2674
      %2733 = vmatprep.subr.bf16.mxu0 0
      %2734 = vmatpush1.bf16.msra.mxu0 %v2675
      %2735 = vmatprep.subr.bf16.mxu0 0
      %2736 = vmatpush1.bf16.msra.mxu0 %v2676
      %2737 = vmatprep.subr.bf16.mxu0 0
      %2738 = vmatpush1.bf16.msra.mxu0 0
      %2739 = vmatprep.subr.bf16.mxu0 0
      %2740 = vmatpush1.bf16.msra.mxu0 0
      %2741 = vmatprep.subr.bf16.mxu0 0
      %2742 = vmatpush1.bf16.msra.mxu0 0
      %2743 = vmatprep.subr.bf16.mxu0 0
      %2744 = vmatpush1.bf16.msra.mxu0 0
      %2745 = vmatprep.mubr.bf16.mxu0 %v2690
      %2746 = vmatmul.mubr.bf16.gmra.mrb[0].mxu0 %v2135
      %v2747 = vpop.f32.mrb[0].mxu0
      %v2748 = vadd.f32 %v2555, %v2747
      %v2749 = vpop.f32.mrb[0].mxu0
      %v2750 = vpop.f32.mrb[0].mxu0
      %v2751 = vadd.f32 %v2558, %v2750
      %v2752 = vpop.f32.mrb[0].mxu0
      %2753 = vmatprep.mubr.bf16.mxu0 %v2693
      %2754 = vmatmul.mubr.bf16.gmra.mrb[0].mxu0 %v2137
      %v2755 = vpop.f32.mrb[0].mxu0
      %v2756 = vadd.f32 %v2563, %v2755
      %v2757 = vpop.f32.mrb[0].mxu0
      %v2758 = vpop.f32.mrb[0].mxu0
      %v2759 = vadd.f32 %v2566, %v2758
      %v2760 = vpop.f32.mrb[0].mxu0
      %2761 = vmatprep.mubr.bf16.mxu0 %v2696
      %2762 = vmatmul.mubr.bf16.gmra.mrb[0].mxu0 %v2139
      %v2763 = vpop.f32.mrb[0].mxu0
      %v2764 = vadd.f32 %v2571, %v2763
      %v2765 = vpop.f32.mrb[0].mxu0
      %v2766 = vpop.f32.mrb[0].mxu0
      %v2767 = vadd.f32 %v2574, %v2766
      %v2768 = vpop.f32.mrb[0].mxu0
      %2769 = vmatprep.mubr.bf16.mxu0 %v2699
      %2770 = vmatmul.mubr.bf16.gmra.mrb[0].mxu0 %v2141
      %v2771 = vpop.f32.mrb[0].mxu0
      %v2772 = vadd.f32 %v2579, %v2771
      %v2773 = vpop.f32.mrb[0].mxu0
      %v2774 = vpop.f32.mrb[0].mxu0
      %v2775 = vadd.f32 %v2582, %v2774
      %v2776 = vpop.f32.mrb[0].mxu0
      %2777 = vmatprep.mubr.bf16.mxu0 %v2702
      %2778 = vmatmul.mubr.bf16.gmra.mrb[0].mxu0 %v2143
      %v2779 = vpop.f32.mrb[0].mxu0
      %v2780 = vadd.f32 %v2587, %v2779
      %v2781 = vpop.f32.mrb[0].mxu0
      %v2782 = vpop.f32.mrb[0].mxu0
      %v2783 = vadd.f32 %v2590, %v2782
      %v2784 = vpop.f32.mrb[0].mxu0
      %2785 = vmatprep.mubr.bf16.mxu0 %v2705
      %2786 = vmatmul.mubr.bf16.gmra.mrb[0].mxu0 %v2145
      %v2787 = vpop.f32.mrb[0].mxu0
      %v2788 = vadd.f32 %v2595, %v2787
      %v2789 = vpop.f32.mrb[0].mxu0
      %v2790 = vpop.f32.mrb[0].mxu0
      %v2791 = vadd.f32 %v2598, %v2790
      %v2792 = vpop.f32.mrb[0].mxu0
      %2793 = vmatprep.mubr.bf16.mxu0 %v2708
      %2794 = vmatmul.mubr.bf16.gmra.mrb[0].mxu0 %v2147
      %v2795 = vpop.f32.mrb[0].mxu0
      %v2796 = vadd.f32 %v2603, %v2795
      %v2797 = vpop.f32.mrb[0].mxu0
      %v2798 = vpop.f32.mrb[0].mxu0
      %v2799 = vadd.f32 %v2606, %v2798
      %v2800 = vpop.f32.mrb[0].mxu0
      %2801 = vmatprep.mubr.bf16.mxu0 %v2711
      %2802 = vmatmul.mubr.bf16.gmra.mrb[0].mxu0 %v2149
      %v2803 = vpop.f32.mrb[0].mxu0
      %v2804 = vadd.f32 %v2611, %v2803
      %v2805 = vpop.f32.mrb[0].mxu0
      %v2806 = vpop.f32.mrb[0].mxu0
      %v2807 = vadd.f32 %v2614, %v2806
      %v2808 = vpop.f32.mrb[0].mxu0
      %2809 = vdwg.mxu0
      %s2810 = scalar_lea.vmem [#allocation3], 96
      %v2811 = vld [vmem:[%s2810] sm:$0xfc]
      %v2812 = vld [vmem:[%s2810 + $0x8] sm:$0xfc]
      %v2813 = vld [vmem:[%s2810 + $0x10] sm:$0xff]
      %v2814 = vld [vmem:[%s2810 + $0x18] sm:$0xff]
      %v2815 = vld [vmem:[%s2810 + $0x20] sm:$0x3]
      %v2816 = vld [vmem:[%s2810 + $0x28] sm:$0x3]
      %v2817 = vld [vmem:[%s2810 + $0x30] sm:$0xfc]
      %v2818 = vld [vmem:[%s2810 + $0x38] sm:$0xfc]
      %v2819 = vld [vmem:[%s2810 + $0x40] sm:$0xff]
      %v2820 = vld [vmem:[%s2810 + $0x48] sm:$0xff]
      %v2821 = vld [vmem:[%s2810 + $0x50] sm:$0x3]
      %v2822 = vld [vmem:[%s2810 + $0x58] sm:$0x3]
      %v2823 = vld [vmem:[%s2810 + $0x60] sm:$0xfc]
      %v2824 = vld [vmem:[%s2810 + $0x68] sm:$0xfc]
      %v2825 = vld [vmem:[%s2810 + $0x70] sm:$0xff]
      %v2826 = vld [vmem:[%s2810 + $0x78] sm:$0xff]
      %v2827 = vld [vmem:[%s2810 + $0x80] sm:$0x3]
      %v2828 = vld [vmem:[%s2810 + $0x88] sm:$0x3]
      %v2829 = vld [vmem:[%s2810 + $0x90] sm:$0xfc]
      %v2830 = vld [vmem:[%s2810 + $0x98] sm:$0xfc]
      %v2831 = vld [vmem:[%s2810 + $0xa0] sm:$0xff]
      %v2832 = vld [vmem:[%s2810 + $0xa8] sm:$0xff]
      %v2833 = vld [vmem:[%s2810 + $0xb0] sm:$0x3]
      %v2834 = vld [vmem:[%s2810 + $0xb8] sm:$0x3]
      %v2835 = vld [vmem:[%s2810 + $0xc0] sm:$0xfc]
      %v2836 = vld [vmem:[%s2810 + $0xc8] sm:$0xfc]
      %v2837 = vld [vmem:[%s2810 + $0xd0] sm:$0xff]
      %v2838 = vld [vmem:[%s2810 + $0xd8] sm:$0xff]
      %v2839 = vld [vmem:[%s2810 + $0xe0] sm:$0x3]
      %v2840 = vld [vmem:[%s2810 + $0xe8] sm:$0x3]
      %v2841 = vld [vmem:[%s2810 + $0xf0] sm:$0xfc]
      %v2842 = vld [vmem:[%s2810 + $0xf8] sm:$0xfc]
      %v2843 = vld [vmem:[%s2810 + $0x100] sm:$0xff]
      %v2844 = vld [vmem:[%s2810 + $0x108] sm:$0xff]
      %v2845 = vld [vmem:[%s2810 + $0x110] sm:$0x3]
      %v2846 = vld [vmem:[%s2810 + $0x118] sm:$0x3]
      %v2847 = vld [vmem:[%s2810 + $0x120] sm:$0xfc]
      %v2848 = vld [vmem:[%s2810 + $0x128] sm:$0xfc]
      %v2849 = vld [vmem:[%s2810 + $0x130] sm:$0xff]
      %v2850 = vld [vmem:[%s2810 + $0x138] sm:$0xff]
      %v2851 = vld [vmem:[%s2810 + $0x140] sm:$0x3]
      %v2852 = vld [vmem:[%s2810 + $0x148] sm:$0x3]
      %v2853 = vld [vmem:[%s2810 + $0x150] sm:$0xfc]
      %v2854 = vld [vmem:[%s2810 + $0x158] sm:$0xfc]
      %v2855 = vld [vmem:[%s2810 + $0x160] sm:$0xff]
      %v2856 = vld [vmem:[%s2810 + $0x168] sm:$0xff]
      %v2857 = vld [vmem:[%s2810 + $0x170] sm:$0x3]
      %v2858 = vld [vmem:[%s2810 + $0x178] sm:$0x3]
      %v2907 = vrot.slane %v2811, 2
      %v2908 = vrot.slane %v2813, 2
      %v2909 = vsel %vm2022, %v2907, %v2908
      %v2910 = vrot.slane %v2812, 2
      %v2911 = vrot.slane %v2814, 2
      %v2912 = vsel %vm2022, %v2910, %v2911
      %v2913 = vrot.slane %v2815, 2
      %v2914 = vsel %vm2022, %v2908, %v2913
      %v2915 = vrot.slane %v2816, 2
      %v2916 = vsel %vm2022, %v2911, %v2915
      %v2917 = vrot.slane %v2817, 2
      %v2918 = vrot.slane %v2819, 2
      %v2919 = vsel %vm2022, %v2917, %v2918
      %v2920 = vrot.slane %v2818, 2
      %v2921 = vrot.slane %v2820, 2
      %v2922 = vsel %vm2022, %v2920, %v2921
      %v2923 = vrot.slane %v2821, 2
      %v2924 = vsel %vm2022, %v2918, %v2923
      %v2925 = vrot.slane %v2822, 2
      %v2926 = vsel %vm2022, %v2921, %v2925
      %v2927 = vrot.slane %v2823, 2
      %v2928 = vrot.slane %v2825, 2
      %v2929 = vsel %vm2022, %v2927, %v2928
      %v2930 = vrot.slane %v2824, 2
      %v2931 = vrot.slane %v2826, 2
      %v2932 = vsel %vm2022, %v2930, %v2931
      %v2933 = vrot.slane %v2827, 2
      %v2934 = vsel %vm2022, %v2928, %v2933
      %v2935 = vrot.slane %v2828, 2
      %v2936 = vsel %vm2022, %v2931, %v2935
      %v2937 = vrot.slane %v2829, 2
      %v2938 = vrot.slane %v2831, 2
      %v2939 = vsel %vm2022, %v2937, %v2938
      %v2940 = vrot.slane %v2830, 2
      %v2941 = vrot.slane %v2832, 2
      %v2942 = vsel %vm2022, %v2940, %v2941
      %v2943 = vrot.slane %v2833, 2
      %v2944 = vsel %vm2022, %v2938, %v2943
      %v2945 = vrot.slane %v2834, 2
      %v2946 = vsel %vm2022, %v2941, %v2945
      %v2947 = vrot.slane %v2835, 2
      %v2948 = vrot.slane %v2837, 2
      %v2949 = vsel %vm2022, %v2947, %v2948
      %v2950 = vrot.slane %v2836, 2
      %v2951 = vrot.slane %v2838, 2
      %v2952 = vsel %vm2022, %v2950, %v2951
      %v2953 = vrot.slane %v2839, 2
      %v2954 = vsel %vm2022, %v2948, %v2953
      %v2955 = vrot.slane %v2840, 2
      %v2956 = vsel %vm2022, %v2951, %v2955
      %v2957 = vrot.slane %v2841, 2
      %v2958 = vrot.slane %v2843, 2
      %v2959 = vsel %vm2022, %v2957, %v2958
      %v2960 = vrot.slane %v2842, 2
      %v2961 = vrot.slane %v2844, 2
      %v2962 = vsel %vm2022, %v2960, %v2961
      %v2963 = vrot.slane %v2845, 2
      %v2964 = vsel %vm2022, %v2958, %v2963
      %v2965 = vrot.slane %v2846, 2
      %v2966 = vsel %vm2022, %v2961, %v2965
      %v2967 = vrot.slane %v2847, 2
      %v2968 = vrot.slane %v2849, 2
      %v2969 = vsel %vm2022, %v2967, %v2968
      %v2970 = vrot.slane %v2848, 2
      %v2971 = vrot.slane %v2850, 2
      %v2972 = vsel %vm2022, %v2970, %v2971
      %v2973 = vrot.slane %v2851, 2
      %v2974 = vsel %vm2022, %v2968, %v2973
      %v2975 = vrot.slane %v2852, 2
      %v2976 = vsel %vm2022, %v2971, %v2975
      %v2977 = vrot.slane %v2853, 2
      %v2978 = vrot.slane %v2855, 2
      %v2979 = vsel %vm2022, %v2977, %v2978
      %v2980 = vrot.slane %v2854, 2
      %v2981 = vrot.slane %v2856, 2
      %v2982 = vsel %vm2022, %v2980, %v2981
      %v2983 = vrot.slane %v2857, 2
      %v2984 = vsel %vm2022, %v2978, %v2983
      %v2985 = vrot.slane %v2858, 2
      %v2986 = vsel %vm2022, %v2981, %v2985
      %v3019 = vpack.c.bf16 %v2914, %v2909
      %v3020 = vpack.c.bf16 %v2916, %v2912
      %v3021 = vpack.c.bf16 %v2924, %v2919
      %v3022 = vpack.c.bf16 %v2926, %v2922
      %v3023 = vpack.c.bf16 %v2934, %v2929
      %v3024 = vpack.c.bf16 %v2936, %v2932
      %v3025 = vpack.c.bf16 %v2944, %v2939
      %v3026 = vpack.c.bf16 %v2946, %v2942
      %v3027 = vpack.c.bf16 %v2954, %v2949
      %v3028 = vpack.c.bf16 %v2956, %v2952
      %v3029 = vpack.c.bf16 %v2964, %v2959
      %v3030 = vpack.c.bf16 %v2966, %v2962
      %v3031 = vpack.c.bf16 %v2974, %v2969
      %v3032 = vpack.c.bf16 %v2976, %v2972
      %v3033 = vpack.c.bf16 %v2984, %v2979
      %v3034 = vpack.c.bf16 %v2986, %v2982
      %s3035 = scalar_lea.vmem %s5, 192
      %v3036 = vld [vmem:[%s3035] sm:$0xf]
      %v3037 = vld [vmem:[%s3035 + $0x4] sm:$0xf]
      %v3038 = vld [vmem:[%s3035 + $0x8] sm:$0xf]
      %v3039 = vld [vmem:[%s3035 + $0xc] sm:$0xf]
      %v3040 = vld [vmem:[%s3035 + $0x10] sm:$0xf]
      %v3041 = vld [vmem:[%s3035 + $0x14] sm:$0xf]
      %v3042 = vld [vmem:[%s3035 + $0x18] sm:$0xf]
      %v3043 = vld [vmem:[%s3035 + $0x1c] sm:$0xf]
      %v3044 = vld [vmem:[%s3035 + $0x20] sm:$0xf]
      %v3045 = vld [vmem:[%s3035 + $0x24] sm:$0xf]
      %v3046 = vld [vmem:[%s3035 + $0x28] sm:$0xf]
      %v3047 = vld [vmem:[%s3035 + $0x2c] sm:$0xf]
      %v3048 = vld [vmem:[%s3035 + $0x30] sm:$0xf]
      %v3049 = vld [vmem:[%s3035 + $0x34] sm:$0xf]
      %v3050 = vld [vmem:[%s3035 + $0x38] sm:$0xf]
      %v3051 = vld [vmem:[%s3035 + $0x3c] sm:$0xf]
      %v3052 = vld [vmem:[%s3035 + $0x40] sm:$0xf]
      %v3053 = vld [vmem:[%s3035 + $0x44] sm:$0xf]
      %v3054 = vld [vmem:[%s3035 + $0x48] sm:$0xf]
      %v3055 = vld [vmem:[%s3035 + $0x4c] sm:$0xf]
      %v3056 = vld [vmem:[%s3035 + $0x50] sm:$0xf]
      %v3057 = vld [vmem:[%s3035 + $0x54] sm:$0xf]
      %v3058 = vld [vmem:[%s3035 + $0x58] sm:$0xf]
      %v3059 = vld [vmem:[%s3035 + $0x5c] sm:$0xf]
      %v3084 = vunpack.c.l.b16 %v3036
      %v3085 = vunpack.c.l.b16 %v3037
      %v3086 = vunpack.c.l.b16 %v3038
      %v3087 = vunpack.c.l.b16 %v3039
      %v3088 = vunpack.c.l.b16 %v3040
      %v3089 = vunpack.c.l.b16 %v3041
      %v3090 = vunpack.c.l.b16 %v3042
      %v3091 = vunpack.c.l.b16 %v3043
      %v3092 = vunpack.c.l.b16 %v3044
      %v3093 = vunpack.c.l.b16 %v3045
      %v3094 = vunpack.c.l.b16 %v3046
      %v3095 = vunpack.c.l.b16 %v3047
      %v3096 = vunpack.c.l.b16 %v3048
      %v3097 = vunpack.c.l.b16 %v3049
      %v3098 = vunpack.c.l.b16 %v3050
      %v3099 = vunpack.c.l.b16 %v3051
      %v3100 = vunpack.c.l.b16 %v3052
      %v3101 = vunpack.c.l.b16 %v3053
      %v3102 = vunpack.c.l.b16 %v3054
      %v3103 = vunpack.c.l.b16 %v3055
      %v3104 = vunpack.c.l.b16 %v3056
      %v3105 = vunpack.c.l.b16 %v3057
      %v3106 = vunpack.c.l.b16 %v3058
      %v3107 = vunpack.c.l.b16 %v3059
      %v3108 = vpack.c.b16 %v3085, %v3084
      %v3109 = vpack.c.b16 %v3087, %v3086
      %v3110 = vpack.c.b16 %v3089, %v3088
      %v3111 = vpack.c.b16 %v3091, %v3090
      %v3112 = vpack.c.b16 %v3093, %v3092
      %v3113 = vpack.c.b16 %v3095, %v3094
      %v3114 = vpack.c.b16 %v3097, %v3096
      %v3115 = vpack.c.b16 %v3099, %v3098
      %v3116 = vpack.c.b16 %v3101, %v3100
      %v3117 = vpack.c.b16 %v3103, %v3102
      %v3118 = vpack.c.b16 %v3105, %v3104
      %v3119 = vpack.c.b16 %v3107, %v3106
      %v3133 = vsel %vm361, %v3020, 0
      %v3136 = vsel %vm361, %v3022, 0
      %v3139 = vsel %vm361, %v3024, 0
      %v3142 = vsel %vm361, %v3026, 0
      %v3145 = vsel %vm361, %v3028, 0
      %v3148 = vsel %vm361, %v3030, 0
      %v3151 = vsel %vm361, %v3032, 0
      %v3154 = vsel %vm361, %v3034, 0
      %3156 = vmatprep.subr.bf16.mxu0 0
      %3157 = vmatpush1.bf16.msra.mxu0 %v3108
      %3158 = vmatprep.subr.bf16.mxu0 0
      %3159 = vmatpush1.bf16.msra.mxu0 %v3109
      %3160 = vmatprep.subr.bf16.mxu0 0
      %3161 = vmatpush1.bf16.msra.mxu0 %v3110
      %3162 = vmatprep.subr.bf16.mxu0 0
      %3163 = vmatpush1.bf16.msra.mxu0 %v3111
      %3164 = vmatprep.subr.bf16.mxu0 0
      %3165 = vmatpush1.bf16.msra.mxu0 %v3112
      %3166 = vmatprep.subr.bf16.mxu0 0
      %3167 = vmatpush1.bf16.msra.mxu0 %v3113
      %3168 = vmatprep.subr.bf16.mxu0 0
      %3169 = vmatpush1.bf16.msra.mxu0 %v3114
      %3170 = vmatprep.subr.bf16.mxu0 0
      %3171 = vmatpush1.bf16.msra.mxu0 %v3115
      %3172 = vmatprep.subr.bf16.mxu0 0
      %3173 = vmatpush1.bf16.msra.mxu0 %v3116
      %3174 = vmatprep.subr.bf16.mxu0 0
      %3175 = vmatpush1.bf16.msra.mxu0 %v3117
      %3176 = vmatprep.subr.bf16.mxu0 0
      %3177 = vmatpush1.bf16.msra.mxu0 %v3118
      %3178 = vmatprep.subr.bf16.mxu0 0
      %3179 = vmatpush1.bf16.msra.mxu0 %v3119
      %3180 = vmatprep.subr.bf16.mxu0 0
      %3181 = vmatpush1.bf16.msra.mxu0 0
      %3182 = vmatprep.subr.bf16.mxu0 0
      %3183 = vmatpush1.bf16.msra.mxu0 0
      %3184 = vmatprep.subr.bf16.mxu0 0
      %3185 = vmatpush1.bf16.msra.mxu0 0
      %3186 = vmatprep.subr.bf16.mxu0 0
      %3187 = vmatpush1.bf16.msra.mxu0 0
      %3188 = vmatprep.mubr.bf16.mxu0 %v3133
      %3189 = vmatmul.mubr.bf16.gmra.mrb[0].mxu0 %v3019
      %v3190 = vpop.f32.mrb[0].mxu0
      %v3191 = vadd.f32 0.0, %v3190
      %v3192 = vpop.f32.mrb[0].mxu0
      %v3193 = vpop.f32.mrb[0].mxu0
      %v3194 = vadd.f32 0.0, %v3193
      %v3195 = vpop.f32.mrb[0].mxu0
      %3196 = vmatprep.mubr.bf16.mxu0 %v3136
      %3197 = vmatmul.mubr.bf16.gmra.mrb[0].mxu0 %v3021
      %v3198 = vpop.f32.mrb[0].mxu0
      %v3199 = vadd.f32 0.0, %v3198
      %v3200 = vpop.f32.mrb[0].mxu0
      %v3201 = vpop.f32.mrb[0].mxu0
      %v3202 = vadd.f32 0.0, %v3201
      %v3203 = vpop.f32.mrb[0].mxu0
      %3204 = vmatprep.mubr.bf16.mxu0 %v3139
      %3205 = vmatmul.mubr.bf16.gmra.mrb[0].mxu0 %v3023
      %v3206 = vpop.f32.mrb[0].mxu0
      %v3207 = vadd.f32 0.0, %v3206
      %v3208 = vpop.f32.mrb[0].mxu0
      %v3209 = vpop.f32.mrb[0].mxu0
      %v3210 = vadd.f32 0.0, %v3209
      %v3211 = vpop.f32.mrb[0].mxu0
      %3212 = vmatprep.mubr.bf16.mxu0 %v3142
      %3213 = vmatmul.mubr.bf16.gmra.mrb[0].mxu0 %v3025
      %v3214 = vpop.f32.mrb[0].mxu0
      %v3215 = vadd.f32 0.0, %v3214
      %v3216 = vpop.f32.mrb[0].mxu0
      %v3217 = vpop.f32.mrb[0].mxu0
      %v3218 = vadd.f32 0.0, %v3217
      %v3219 = vpop.f32.mrb[0].mxu0
      %3220 = vmatprep.mubr.bf16.mxu0 %v3145
      %3221 = vmatmul.mubr.bf16.gmra.mrb[0].mxu0 %v3027
      %v3222 = vpop.f32.mrb[0].mxu0
      %v3223 = vadd.f32 0.0, %v3222
      %v3224 = vpop.f32.mrb[0].mxu0
      %v3225 = vpop.f32.mrb[0].mxu0
      %v3226 = vadd.f32 0.0, %v3225
      %v3227 = vpop.f32.mrb[0].mxu0
      %3228 = vmatprep.mubr.bf16.mxu0 %v3148
      %3229 = vmatmul.mubr.bf16.gmra.mrb[0].mxu0 %v3029
      %v3230 = vpop.f32.mrb[0].mxu0
      %v3231 = vadd.f32 0.0, %v3230
      %v3232 = vpop.f32.mrb[0].mxu0
      %v3233 = vpop.f32.mrb[0].mxu0
      %v3234 = vadd.f32 0.0, %v3233
      %v3235 = vpop.f32.mrb[0].mxu0
      %3236 = vmatprep.mubr.bf16.mxu0 %v3151
      %3237 = vmatmul.mubr.bf16.gmra.mrb[0].mxu0 %v3031
      %v3238 = vpop.f32.mrb[0].mxu0
      %v3239 = vadd.f32 0.0, %v3238
      %v3240 = vpop.f32.mrb[0].mxu0
      %v3241 = vpop.f32.mrb[0].mxu0
      %v3242 = vadd.f32 0.0, %v3241
      %v3243 = vpop.f32.mrb[0].mxu0
      %3244 = vmatprep.mubr.bf16.mxu0 %v3154
      %3245 = vmatmul.mubr.bf16.gmra.mrb[0].mxu0 %v3033
      %v3246 = vpop.f32.mrb[0].mxu0
      %v3247 = vadd.f32 0.0, %v3246
      %v3248 = vpop.f32.mrb[0].mxu0
      %v3249 = vpop.f32.mrb[0].mxu0
      %v3250 = vadd.f32 0.0, %v3249
      %v3251 = vpop.f32.mrb[0].mxu0
      %3252 = vdwg.mxu0
      %v3253 = vadd.f32 %v2748, %v3191
      %v3254 = vadd.f32 %v2751, %v3194
      %v3255 = vadd.f32 %v2756, %v3199
      %v3256 = vadd.f32 %v2759, %v3202
      %v3257 = vadd.f32 %v2764, %v3207
      %v3258 = vadd.f32 %v2767, %v3210
      %v3259 = vadd.f32 %v2772, %v3215
      %v3260 = vadd.f32 %v2775, %v3218
      %v3261 = vadd.f32 %v2780, %v3223
      %v3262 = vadd.f32 %v2783, %v3226
      %v3263 = vadd.f32 %v2788, %v3231
      %v3264 = vadd.f32 %v2791, %v3234
      %v3265 = vadd.f32 %v2796, %v3239
      %v3266 = vadd.f32 %v2799, %v3242
      %v3267 = vadd.f32 %v2804, %v3247
      %v3268 = vadd.f32 %v2807, %v3250
      %v3270 = vlaneseq
      %v3271 = vshrl.u32 %v3270, 7
      %v3272 = vsub.s32 0, %v3271
      %v3273 = vrot.slane %v1925, %v3272
      %v3275 = vadd.f32 %v3253, %v3273
      %v3276 = vadd.f32 %v3254, %v3273
      %v3277 = vadd.f32 %v3255, %v3273
      %v3278 = vadd.f32 %v3256, %v3273
      %v3279 = vadd.f32 %v3257, %v3273
      %v3280 = vadd.f32 %v3258, %v3273
      %v3281 = vadd.f32 %v3259, %v3273
      %v3282 = vadd.f32 %v3260, %v3273
      %v3283 = vadd.f32 %v3261, %v3273
      %v3284 = vadd.f32 %v3262, %v3273
      %v3285 = vadd.f32 %v3263, %v3273
      %v3286 = vadd.f32 %v3264, %v3273
      %v3287 = vadd.f32 %v3265, %v3273
      %v3288 = vadd.f32 %v3266, %v3273
      %v3289 = vadd.f32 %v3267, %v3273
      %v3290 = vadd.f32 %v3268, %v3273
      %v3291 = vmax.f32 %v3275, 0.0
      %v3292 = vmax.f32 %v3276, 0.0
      %v3293 = vmax.f32 %v3277, 0.0
      %v3294 = vmax.f32 %v3278, 0.0
      %v3295 = vmax.f32 %v3279, 0.0
      %v3296 = vmax.f32 %v3280, 0.0
      %v3297 = vmax.f32 %v3281, 0.0
      %v3298 = vmax.f32 %v3282, 0.0
      %v3299 = vmax.f32 %v3283, 0.0
      %v3300 = vmax.f32 %v3284, 0.0
      %v3301 = vmax.f32 %v3285, 0.0
      %v3302 = vmax.f32 %v3286, 0.0
      %v3303 = vmax.f32 %v3287, 0.0
      %v3304 = vmax.f32 %v3288, 0.0
      %v3305 = vmax.f32 %v3289, 0.0
      %v3306 = vmax.f32 %v3290, 0.0
      %v3307 = vmax.f32 %v3291, %v3293
      %v3308 = vmax.f32 %v3292, %v3294
      %v3309 = vmax.f32 %v3295, %v3297
      %v3310 = vmax.f32 %v3296, %v3298
      %v3311 = vmax.f32 %v3299, %v3301
      %v3312 = vmax.f32 %v3300, %v3302
      %v3313 = vmax.f32 %v3303, %v3305
      %v3314 = vmax.f32 %v3304, %v3306
      %3315 = vst [vmem:[#allocation5] sm:$0xff] %v3307
      %3316 = vst [vmem:[#allocation5 + $0x8] sm:$0xff] %v3308
      %3317 = vst [vmem:[#allocation5 + $0x10] sm:$0xff] %v3309
      %3318 = vst [vmem:[#allocation5 + $0x18] sm:$0xff] %v3310
      %3319 = vst [vmem:[#allocation5 + $0x20] sm:$0xff] %v3311
      %3320 = vst [vmem:[#allocation5 + $0x28] sm:$0xff] %v3312
      %3321 = vst [vmem:[#allocation5 + $0x30] sm:$0xff] %v3313
      %3322 = vst [vmem:[#allocation5 + $0x38] sm:$0xff] %v3314
      %v3323 = vld [vmem:[#allocation5] ss:$2 sm:$0xff]
      %s3324 = scalar_lea.vmem [#allocation5], 16
      %v3325 = vld [vmem:[%s3324] ss:$2 sm:$0xff]
      %s3326 = scalar_lea.vmem [#allocation5], 32
      %v3327 = vld [vmem:[%s3326] ss:$2 sm:$0xff]
      %s3328 = scalar_lea.vmem [#allocation5], 48
      %v3329 = vld [vmem:[%s3328] ss:$2 sm:$0xff]
      %s3330 = scalar_lea.vmem [#allocation5], 1
      %v3331 = vld [vmem:[%s3330] ss:$2 sm:$0xff]
      %s3332 = scalar_lea.vmem [#allocation5], 17
      %v3333 = vld [vmem:[%s3332] ss:$2 sm:$0xff]
      %s3334 = scalar_lea.vmem [#allocation5], 33
      %v3335 = vld [vmem:[%s3334] ss:$2 sm:$0xff]
      %s3336 = scalar_lea.vmem [#allocation5], 49
      %v3337 = vld [vmem:[%s3336] ss:$2 sm:$0xff]
      %v3338 = vmax.f32 %v3323, %v3331
      %v3339 = vmax.f32 %v3325, %v3333
      %v3340 = vmax.f32 %v3327, %v3335
      %v3341 = vmax.f32 %v3329, %v3337
      %v3342 = vpack.c.bf16 %v3339, %v3338
      %v3343 = vpack.c.bf16 %v3341, %v3340
      %v3346 = vunpack.c.l.b16 %v3342
      %v3347 = vunpack.c.h.b16 %v3342
      %v3348 = vunpack.c.l.b16 %v3343
      %v3349 = vunpack.c.h.b16 %v3343
      %v3350 = vpack.c.b16 %v3346, %v3346
      %v3351 = vpack.c.b16 %v3347, %v3347
      %v3352 = vpack.c.b16 %v3348, %v3348
      %v3353 = vpack.c.b16 %v3349, %v3349
      %3358 = vst [vmem:[%s278] sm:$0xf] %v3350
      %3359 = vst [vmem:[%s278 + $0x4] sm:$0xf] %v3351
      %3360 = vst [vmem:[%s278 + $0x8] sm:$0xf] %v3352
      %3361 = vst [vmem:[%s278 + $0xc] sm:$0xf] %v3353
      %s3362 = scalar_lea.vmem [#allocation3], 384
      %v3363 = vld [vmem:[%s3362] sm:$0xfc]
      %v3364 = vld [vmem:[%s3362 + $0x8] sm:$0xfc]
      %v3365 = vld [vmem:[%s3362 + $0x10] sm:$0xff]
      %v3366 = vld [vmem:[%s3362 + $0x18] sm:$0xff]
      %v3367 = vld [vmem:[%s3362 + $0x20] sm:$0x3]
      %v3368 = vld [vmem:[%s3362 + $0x28] sm:$0x3]
      %v3369 = vld [vmem:[%s3362 + $0x30] sm:$0xfc]
      %v3370 = vld [vmem:[%s3362 + $0x38] sm:$0xfc]
      %v3371 = vld [vmem:[%s3362 + $0x40] sm:$0xff]
      %v3372 = vld [vmem:[%s3362 + $0x48] sm:$0xff]
      %v3373 = vld [vmem:[%s3362 + $0x50] sm:$0x3]
      %v3374 = vld [vmem:[%s3362 + $0x58] sm:$0x3]
      %v3375 = vld [vmem:[%s3362 + $0x60] sm:$0xfc]
      %v3376 = vld [vmem:[%s3362 + $0x68] sm:$0xfc]
      %v3377 = vld [vmem:[%s3362 + $0x70] sm:$0xff]
      %v3378 = vld [vmem:[%s3362 + $0x78] sm:$0xff]
      %v3379 = vld [vmem:[%s3362 + $0x80] sm:$0x3]
      %v3380 = vld [vmem:[%s3362 + $0x88] sm:$0x3]
      %v3381 = vld [vmem:[%s3362 + $0x90] sm:$0xfc]
      %v3382 = vld [vmem:[%s3362 + $0x98] sm:$0xfc]
      %v3383 = vld [vmem:[%s3362 + $0xa0] sm:$0xff]
      %v3384 = vld [vmem:[%s3362 + $0xa8] sm:$0xff]
      %v3385 = vld [vmem:[%s3362 + $0xb0] sm:$0x3]
      %v3386 = vld [vmem:[%s3362 + $0xb8] sm:$0x3]
      %v3387 = vld [vmem:[%s3362 + $0xc0] sm:$0xfc]
      %v3388 = vld [vmem:[%s3362 + $0xc8] sm:$0xfc]
      %v3389 = vld [vmem:[%s3362 + $0xd0] sm:$0xff]
      %v3390 = vld [vmem:[%s3362 + $0xd8] sm:$0xff]
      %v3391 = vld [vmem:[%s3362 + $0xe0] sm:$0x3]
      %v3392 = vld [vmem:[%s3362 + $0xe8] sm:$0x3]
      %v3393 = vld [vmem:[%s3362 + $0xf0] sm:$0xfc]
      %v3394 = vld [vmem:[%s3362 + $0xf8] sm:$0xfc]
      %v3395 = vld [vmem:[%s3362 + $0x100] sm:$0xff]
      %v3396 = vld [vmem:[%s3362 + $0x108] sm:$0xff]
      %v3397 = vld [vmem:[%s3362 + $0x110] sm:$0x3]
      %v3398 = vld [vmem:[%s3362 + $0x118] sm:$0x3]
      %v3399 = vld [vmem:[%s3362 + $0x120] sm:$0xfc]
      %v3400 = vld [vmem:[%s3362 + $0x128] sm:$0xfc]
      %v3401 = vld [vmem:[%s3362 + $0x130] sm:$0xff]
      %v3402 = vld [vmem:[%s3362 + $0x138] sm:$0xff]
      %v3403 = vld [vmem:[%s3362 + $0x140] sm:$0x3]
      %v3404 = vld [vmem:[%s3362 + $0x148] sm:$0x3]
      %v3405 = vld [vmem:[%s3362 + $0x150] sm:$0xfc]
      %v3406 = vld [vmem:[%s3362 + $0x158] sm:$0xfc]
      %v3407 = vld [vmem:[%s3362 + $0x160] sm:$0xff]
      %v3408 = vld [vmem:[%s3362 + $0x168] sm:$0xff]
      %v3409 = vld [vmem:[%s3362 + $0x170] sm:$0x3]
      %v3410 = vld [vmem:[%s3362 + $0x178] sm:$0x3]
      %v3459 = vrot.slane %v3363, 2
      %v3460 = vrot.slane %v3365, 2
      %v3461 = vsel %vm2022, %v3459, %v3460
      %v3462 = vrot.slane %v3364, 2
      %v3463 = vrot.slane %v3366, 2
      %v3464 = vsel %vm2022, %v3462, %v3463
      %v3465 = vrot.slane %v3367, 2
      %v3466 = vsel %vm2022, %v3460, %v3465
      %v3467 = vrot.slane %v3368, 2
      %v3468 = vsel %vm2022, %v3463, %v3467
      %v3469 = vrot.slane %v3369, 2
      %v3470 = vrot.slane %v3371, 2
      %v3471 = vsel %vm2022, %v3469, %v3470
      %v3472 = vrot.slane %v3370, 2
      %v3473 = vrot.slane %v3372, 2
      %v3474 = vsel %vm2022, %v3472, %v3473
      %v3475 = vrot.slane %v3373, 2
      %v3476 = vsel %vm2022, %v3470, %v3475
      %v3477 = vrot.slane %v3374, 2
      %v3478 = vsel %vm2022, %v3473, %v3477
      %v3479 = vrot.slane %v3375, 2
      %v3480 = vrot.slane %v3377, 2
      %v3481 = vsel %vm2022, %v3479, %v3480
      %v3482 = vrot.slane %v3376, 2
      %v3483 = vrot.slane %v3378, 2
      %v3484 = vsel %vm2022, %v3482, %v3483
      %v3485 = vrot.slane %v3379, 2
      %v3486 = vsel %vm2022, %v3480, %v3485
      %v3487 = vrot.slane %v3380, 2
      %v3488 = vsel %vm2022, %v3483, %v3487
      %v3489 = vrot.slane %v3381, 2
      %v3490 = vrot.slane %v3383, 2
      %v3491 = vsel %vm2022, %v3489, %v3490
      %v3492 = vrot.slane %v3382, 2
      %v3493 = vrot.slane %v3384, 2
      %v3494 = vsel %vm2022, %v3492, %v3493
      %v3495 = vrot.slane %v3385, 2
      %v3496 = vsel %vm2022, %v3490, %v3495
      %v3497 = vrot.slane %v3386, 2
      %v3498 = vsel %vm2022, %v3493, %v3497
      %v3499 = vrot.slane %v3387, 2
      %v3500 = vrot.slane %v3389, 2
      %v3501 = vsel %vm2022, %v3499, %v3500
      %v3502 = vrot.slane %v3388, 2
      %v3503 = vrot.slane %v3390, 2
      %v3504 = vsel %vm2022, %v3502, %v3503
      %v3505 = vrot.slane %v3391, 2
      %v3506 = vsel %vm2022, %v3500, %v3505
      %v3507 = vrot.slane %v3392, 2
      %v3508 = vsel %vm2022, %v3503, %v3507
      %v3509 = vrot.slane %v3393, 2
      %v3510 = vrot.slane %v3395, 2
      %v3511 = vsel %vm2022, %v3509, %v3510
      %v3512 = vrot.slane %v3394, 2
      %v3513 = vrot.slane %v3396, 2
      %v3514 = vsel %vm2022, %v3512, %v3513
      %v3515 = vrot.slane %v3397, 2
      %v3516 = vsel %vm2022, %v3510, %v3515
      %v3517 = vrot.slane %v3398, 2
      %v3518 = vsel %vm2022, %v3513, %v3517
      %v3519 = vrot.slane %v3399, 2
      %v3520 = vrot.slane %v3401, 2
      %v3521 = vsel %vm2022, %v3519, %v3520
      %v3522 = vrot.slane %v3400, 2
      %v3523 = vrot.slane %v3402, 2
      %v3524 = vsel %vm2022, %v3522, %v3523
      %v3525 = vrot.slane %v3403, 2
      %v3526 = vsel %vm2022, %v3520, %v3525
      %v3527 = vrot.slane %v3404, 2
      %v3528 = vsel %vm2022, %v3523, %v3527
      %v3529 = vrot.slane %v3405, 2
      %v3530 = vrot.slane %v3407, 2
      %v3531 = vsel %vm2022, %v3529, %v3530
      %v3532 = vrot.slane %v3406, 2
      %v3533 = vrot.slane %v3408, 2
      %v3534 = vsel %vm2022, %v3532, %v3533
      %v3535 = vrot.slane %v3409, 2
      %v3536 = vsel %vm2022, %v3530, %v3535
      %v3537 = vrot.slane %v3410, 2
      %v3538 = vsel %vm2022, %v3533, %v3537
      %v3571 = vpack.c.bf16 %v3466, %v3461
      %v3572 = vpack.c.bf16 %v3468, %v3464
      %v3573 = vpack.c.bf16 %v3476, %v3471
      %v3574 = vpack.c.bf16 %v3478, %v3474
      %v3575 = vpack.c.bf16 %v3486, %v3481
      %v3576 = vpack.c.bf16 %v3488, %v3484
      %v3577 = vpack.c.bf16 %v3496, %v3491
      %v3578 = vpack.c.bf16 %v3498, %v3494
      %v3579 = vpack.c.bf16 %v3506, %v3501
      %v3580 = vpack.c.bf16 %v3508, %v3504
      %v3581 = vpack.c.bf16 %v3516, %v3511
      %v3582 = vpack.c.bf16 %v3518, %v3514
      %v3583 = vpack.c.bf16 %v3526, %v3521
      %v3584 = vpack.c.bf16 %v3528, %v3524
      %v3585 = vpack.c.bf16 %v3536, %v3531
      %v3586 = vpack.c.bf16 %v3538, %v3534
      %v3587 = vld [vmem:[%s5] sm:$0xf]
      %v3588 = vld [vmem:[%s5 + $0x4] sm:$0xf]
      %v3589 = vld [vmem:[%s5 + $0x8] sm:$0xf]
      %v3590 = vld [vmem:[%s5 + $0xc] sm:$0xf]
      %v3591 = vld [vmem:[%s5 + $0x10] sm:$0xf]
      %v3592 = vld [vmem:[%s5 + $0x14] sm:$0xf]
      %v3593 = vld [vmem:[%s5 + $0x18] sm:$0xf]
      %v3594 = vld [vmem:[%s5 + $0x1c] sm:$0xf]
      %v3595 = vld [vmem:[%s5 + $0x20] sm:$0xf]
      %v3596 = vld [vmem:[%s5 + $0x24] sm:$0xf]
      %v3597 = vld [vmem:[%s5 + $0x28] sm:$0xf]
      %v3598 = vld [vmem:[%s5 + $0x2c] sm:$0xf]
      %v3599 = vld [vmem:[%s5 + $0x30] sm:$0xf]
      %v3600 = vld [vmem:[%s5 + $0x34] sm:$0xf]
      %v3601 = vld [vmem:[%s5 + $0x38] sm:$0xf]
      %v3602 = vld [vmem:[%s5 + $0x3c] sm:$0xf]
      %v3603 = vld [vmem:[%s5 + $0x40] sm:$0xf]
      %v3604 = vld [vmem:[%s5 + $0x44] sm:$0xf]
      %v3605 = vld [vmem:[%s5 + $0x48] sm:$0xf]
      %v3606 = vld [vmem:[%s5 + $0x4c] sm:$0xf]
      %v3607 = vld [vmem:[%s5 + $0x50] sm:$0xf]
      %v3608 = vld [vmem:[%s5 + $0x54] sm:$0xf]
      %v3609 = vld [vmem:[%s5 + $0x58] sm:$0xf]
      %v3610 = vld [vmem:[%s5 + $0x5c] sm:$0xf]
      %s3611 = scalar_lea.vmem [#allocation3], 432
      %v3612 = vld [vmem:[%s3611] sm:$0xfc]
      %v3613 = vld [vmem:[%s3611 + $0x8] sm:$0xfc]
      %v3614 = vld [vmem:[%s3611 + $0x10] sm:$0xff]
      %v3615 = vld [vmem:[%s3611 + $0x18] sm:$0xff]
      %v3616 = vld [vmem:[%s3611 + $0x20] sm:$0x3]
      %v3617 = vld [vmem:[%s3611 + $0x28] sm:$0x3]
      %v3618 = vld [vmem:[%s3611 + $0x30] sm:$0xfc]
      %v3619 = vld [vmem:[%s3611 + $0x38] sm:$0xfc]
      %v3620 = vld [vmem:[%s3611 + $0x40] sm:$0xff]
      %v3621 = vld [vmem:[%s3611 + $0x48] sm:$0xff]
      %v3622 = vld [vmem:[%s3611 + $0x50] sm:$0x3]
      %v3623 = vld [vmem:[%s3611 + $0x58] sm:$0x3]
      %v3624 = vld [vmem:[%s3611 + $0x60] sm:$0xfc]
      %v3625 = vld [vmem:[%s3611 + $0x68] sm:$0xfc]
      %v3626 = vld [vmem:[%s3611 + $0x70] sm:$0xff]
      %v3627 = vld [vmem:[%s3611 + $0x78] sm:$0xff]
      %v3628 = vld [vmem:[%s3611 + $0x80] sm:$0x3]
      %v3629 = vld [vmem:[%s3611 + $0x88] sm:$0x3]
      %v3630 = vld [vmem:[%s3611 + $0x90] sm:$0xfc]
      %v3631 = vld [vmem:[%s3611 + $0x98] sm:$0xfc]
      %v3632 = vld [vmem:[%s3611 + $0xa0] sm:$0xff]
      %v3633 = vld [vmem:[%s3611 + $0xa8] sm:$0xff]
      %v3634 = vld [vmem:[%s3611 + $0xb0] sm:$0x3]
      %v3635 = vld [vmem:[%s3611 + $0xb8] sm:$0x3]
      %v3636 = vld [vmem:[%s3611 + $0xc0] sm:$0xfc]
      %v3637 = vld [vmem:[%s3611 + $0xc8] sm:$0xfc]
      %v3638 = vld [vmem:[%s3611 + $0xd0] sm:$0xff]
      %v3639 = vld [vmem:[%s3611 + $0xd8] sm:$0xff]
      %v3640 = vld [vmem:[%s3611 + $0xe0] sm:$0x3]
      %v3641 = vld [vmem:[%s3611 + $0xe8] sm:$0x3]
      %v3642 = vld [vmem:[%s3611 + $0xf0] sm:$0xfc]
      %v3643 = vld [vmem:[%s3611 + $0xf8] sm:$0xfc]
      %v3644 = vld [vmem:[%s3611 + $0x100] sm:$0xff]
      %v3645 = vld [vmem:[%s3611 + $0x108] sm:$0xff]
      %v3646 = vld [vmem:[%s3611 + $0x110] sm:$0x3]
      %v3647 = vld [vmem:[%s3611 + $0x118] sm:$0x3]
      %v3648 = vld [vmem:[%s3611 + $0x120] sm:$0xfc]
      %v3649 = vld [vmem:[%s3611 + $0x128] sm:$0xfc]
      %v3650 = vld [vmem:[%s3611 + $0x130] sm:$0xff]
      %v3651 = vld [vmem:[%s3611 + $0x138] sm:$0xff]
      %v3652 = vld [vmem:[%s3611 + $0x140] sm:$0x3]
      %v3653 = vld [vmem:[%s3611 + $0x148] sm:$0x3]
      %v3654 = vld [vmem:[%s3611 + $0x150] sm:$0xfc]
      %v3655 = vld [vmem:[%s3611 + $0x158] sm:$0xfc]
      %v3656 = vld [vmem:[%s3611 + $0x160] sm:$0xff]
      %v3657 = vld [vmem:[%s3611 + $0x168] sm:$0xff]
      %v3658 = vld [vmem:[%s3611 + $0x170] sm:$0x3]
      %v3659 = vld [vmem:[%s3611 + $0x178] sm:$0x3]
      %v3708 = vrot.slane %v3612, 2
      %v3709 = vrot.slane %v3614, 2
      %v3710 = vsel %vm2022, %v3708, %v3709
      %v3711 = vrot.slane %v3613, 2
      %v3712 = vrot.slane %v3615, 2
      %v3713 = vsel %vm2022, %v3711, %v3712
      %v3714 = vrot.slane %v3616, 2
      %v3715 = vsel %vm2022, %v3709, %v3714
      %v3716 = vrot.slane %v3617, 2
      %v3717 = vsel %vm2022, %v3712, %v3716
      %v3718 = vrot.slane %v3618, 2
      %v3719 = vrot.slane %v3620, 2
      %v3720 = vsel %vm2022, %v3718, %v3719
      %v3721 = vrot.slane %v3619, 2
      %v3722 = vrot.slane %v3621, 2
      %v3723 = vsel %vm2022, %v3721, %v3722
      %v3724 = vrot.slane %v3622, 2
      %v3725 = vsel %vm2022, %v3719, %v3724
      %v3726 = vrot.slane %v3623, 2
      %v3727 = vsel %vm2022, %v3722, %v3726
      %v3728 = vrot.slane %v3624, 2
      %v3729 = vrot.slane %v3626, 2
      %v3730 = vsel %vm2022, %v3728, %v3729
      %v3731 = vrot.slane %v3625, 2
      %v3732 = vrot.slane %v3627, 2
      %v3733 = vsel %vm2022, %v3731, %v3732
      %v3734 = vrot.slane %v3628, 2
      %v3735 = vsel %vm2022, %v3729, %v3734
      %v3736 = vrot.slane %v3629, 2
      %v3737 = vsel %vm2022, %v3732, %v3736
      %v3738 = vrot.slane %v3630, 2
      %v3739 = vrot.slane %v3632, 2
      %v3740 = vsel %vm2022, %v3738, %v3739
      %v3741 = vrot.slane %v3631, 2
      %v3742 = vrot.slane %v3633, 2
      %v3743 = vsel %vm2022, %v3741, %v3742
      %v3744 = vrot.slane %v3634, 2
      %v3745 = vsel %vm2022, %v3739, %v3744
      %v3746 = vrot.slane %v3635, 2
      %v3747 = vsel %vm2022, %v3742, %v3746
      %v3748 = vrot.slane %v3636, 2
      %v3749 = vrot.slane %v3638, 2
      %v3750 = vsel %vm2022, %v3748, %v3749
      %v3751 = vrot.slane %v3637, 2
      %v3752 = vrot.slane %v3639, 2
      %v3753 = vsel %vm2022, %v3751, %v3752
      %v3754 = vrot.slane %v3640, 2
      %v3755 = vsel %vm2022, %v3749, %v3754
      %v3756 = vrot.slane %v3641, 2
      %v3757 = vsel %vm2022, %v3752, %v3756
      %v3758 = vrot.slane %v3642, 2
      %v3759 = vrot.slane %v3644, 2
      %v3760 = vsel %vm2022, %v3758, %v3759
      %v3761 = vrot.slane %v3643, 2
      %v3762 = vrot.slane %v3645, 2
      %v3763 = vsel %vm2022, %v3761, %v3762
      %v3764 = vrot.slane %v3646, 2
      %v3765 = vsel %vm2022, %v3759, %v3764
      %v3766 = vrot.slane %v3647, 2
      %v3767 = vsel %vm2022, %v3762, %v3766
      %v3768 = vrot.slane %v3648, 2
      %v3769 = vrot.slane %v3650, 2
      %v3770 = vsel %vm2022, %v3768, %v3769
      %v3771 = vrot.slane %v3649, 2
      %v3772 = vrot.slane %v3651, 2
      %v3773 = vsel %vm2022, %v3771, %v3772
      %v3774 = vrot.slane %v3652, 2
      %v3775 = vsel %vm2022, %v3769, %v3774
      %v3776 = vrot.slane %v3653, 2
      %v3777 = vsel %vm2022, %v3772, %v3776
      %v3778 = vrot.slane %v3654, 2
      %v3779 = vrot.slane %v3656, 2
      %v3780 = vsel %vm2022, %v3778, %v3779
      %v3781 = vrot.slane %v3655, 2
      %v3782 = vrot.slane %v3657, 2
      %v3783 = vsel %vm2022, %v3781, %v3782
      %v3784 = vrot.slane %v3658, 2
      %v3785 = vsel %vm2022, %v3779, %v3784
      %v3786 = vrot.slane %v3659, 2
      %v3787 = vsel %vm2022, %v3782, %v3786
      %v3820 = vpack.c.bf16 %v3715, %v3710
      %v3821 = vpack.c.bf16 %v3717, %v3713
      %v3822 = vpack.c.bf16 %v3725, %v3720
      %v3823 = vpack.c.bf16 %v3727, %v3723
      %v3824 = vpack.c.bf16 %v3735, %v3730
      %v3825 = vpack.c.bf16 %v3737, %v3733
      %v3826 = vpack.c.bf16 %v3745, %v3740
      %v3827 = vpack.c.bf16 %v3747, %v3743
      %v3828 = vpack.c.bf16 %v3755, %v3750
      %v3829 = vpack.c.bf16 %v3757, %v3753
      %v3830 = vpack.c.bf16 %v3765, %v3760
      %v3831 = vpack.c.bf16 %v3767, %v3763
      %v3832 = vpack.c.bf16 %v3775, %v3770
      %v3833 = vpack.c.bf16 %v3777, %v3773
      %v3834 = vpack.c.bf16 %v3785, %v3780
      %v3835 = vpack.c.bf16 %v3787, %v3783
      %v3836 = vld [vmem:[%s2399] sm:$0xf]
      %v3837 = vld [vmem:[%s2399 + $0x4] sm:$0xf]
      %v3838 = vld [vmem:[%s2399 + $0x8] sm:$0xf]
      %v3839 = vld [vmem:[%s2399 + $0xc] sm:$0xf]
      %v3840 = vld [vmem:[%s2399 + $0x10] sm:$0xf]
      %v3841 = vld [vmem:[%s2399 + $0x14] sm:$0xf]
      %v3842 = vld [vmem:[%s2399 + $0x18] sm:$0xf]
      %v3843 = vld [vmem:[%s2399 + $0x1c] sm:$0xf]
      %v3844 = vld [vmem:[%s2399 + $0x20] sm:$0xf]
      %v3845 = vld [vmem:[%s2399 + $0x24] sm:$0xf]
      %v3846 = vld [vmem:[%s2399 + $0x28] sm:$0xf]
      %v3847 = vld [vmem:[%s2399 + $0x2c] sm:$0xf]
      %v3848 = vld [vmem:[%s2399 + $0x30] sm:$0xf]
      %v3849 = vld [vmem:[%s2399 + $0x34] sm:$0xf]
      %v3850 = vld [vmem:[%s2399 + $0x38] sm:$0xf]
      %v3851 = vld [vmem:[%s2399 + $0x3c] sm:$0xf]
      %v3852 = vld [vmem:[%s2399 + $0x40] sm:$0xf]
      %v3853 = vld [vmem:[%s2399 + $0x44] sm:$0xf]
      %v3854 = vld [vmem:[%s2399 + $0x48] sm:$0xf]
      %v3855 = vld [vmem:[%s2399 + $0x4c] sm:$0xf]
      %v3856 = vld [vmem:[%s2399 + $0x50] sm:$0xf]
      %v3857 = vld [vmem:[%s2399 + $0x54] sm:$0xf]
      %v3858 = vld [vmem:[%s2399 + $0x58] sm:$0xf]
      %v3859 = vld [vmem:[%s2399 + $0x5c] sm:$0xf]
      %v3884 = vunpack.c.l.b16 %v3836
      %v3885 = vunpack.c.l.b16 %v3837
      %v3886 = vunpack.c.l.b16 %v3838
      %v3887 = vunpack.c.l.b16 %v3839
      %v3888 = vunpack.c.l.b16 %v3840
      %v3889 = vunpack.c.l.b16 %v3841
      %v3890 = vunpack.c.l.b16 %v3842
      %v3891 = vunpack.c.l.b16 %v3843
      %v3892 = vunpack.c.l.b16 %v3844
      %v3893 = vunpack.c.l.b16 %v3845
      %v3894 = vunpack.c.l.b16 %v3846
      %v3895 = vunpack.c.l.b16 %v3847
      %v3896 = vunpack.c.l.b16 %v3848
      %v3897 = vunpack.c.l.b16 %v3849
      %v3898 = vunpack.c.l.b16 %v3850
      %v3899 = vunpack.c.l.b16 %v3851
      %v3900 = vunpack.c.l.b16 %v3852
      %v3901 = vunpack.c.l.b16 %v3853
      %v3902 = vunpack.c.l.b16 %v3854
      %v3903 = vunpack.c.l.b16 %v3855
      %v3904 = vunpack.c.l.b16 %v3856
      %v3905 = vunpack.c.l.b16 %v3857
      %v3906 = vunpack.c.l.b16 %v3858
      %v3907 = vunpack.c.l.b16 %v3859
      %v3908 = vpack.c.b16 %v3885, %v3884
      %v3909 = vpack.c.b16 %v3887, %v3886
      %v3910 = vpack.c.b16 %v3889, %v3888
      %v3911 = vpack.c.b16 %v3891, %v3890
      %v3912 = vpack.c.b16 %v3893, %v3892
      %v3913 = vpack.c.b16 %v3895, %v3894
      %v3914 = vpack.c.b16 %v3897, %v3896
      %v3915 = vpack.c.b16 %v3899, %v3898
      %v3916 = vpack.c.b16 %v3901, %v3900
      %v3917 = vpack.c.b16 %v3903, %v3902
      %v3918 = vpack.c.b16 %v3905, %v3904
      %v3919 = vpack.c.b16 %v3907, %v3906
      %v3933 = vsel %vm361, %v3821, 0
      %v3936 = vsel %vm361, %v3823, 0
      %v3939 = vsel %vm361, %v3825, 0
      %v3942 = vsel %vm361, %v3827, 0
      %v3945 = vsel %vm361, %v3829, 0
      %v3948 = vsel %vm361, %v3831, 0
      %v3951 = vsel %vm361, %v3833, 0
      %v3954 = vsel %vm361, %v3835, 0
      %3956 = vmatprep.subr.bf16.mxu0 0
      %3957 = vmatpush1.bf16.msra.mxu0 %v3908
      %3958 = vmatprep.subr.bf16.mxu0 0
      %3959 = vmatpush1.bf16.msra.mxu0 %v3909
      %3960 = vmatprep.subr.bf16.mxu0 0
      %3961 = vmatpush1.bf16.msra.mxu0 %v3910
      %3962 = vmatprep.subr.bf16.mxu0 0
      %3963 = vmatpush1.bf16.msra.mxu0 %v3911
      %3964 = vmatprep.subr.bf16.mxu0 0
      %3965 = vmatpush1.bf16.msra.mxu0 %v3912
      %3966 = vmatprep.subr.bf16.mxu0 0
      %3967 = vmatpush1.bf16.msra.mxu0 %v3913
      %3968 = vmatprep.subr.bf16.mxu0 0
      %3969 = vmatpush1.bf16.msra.mxu0 %v3914
      %3970 = vmatprep.subr.bf16.mxu0 0
      %3971 = vmatpush1.bf16.msra.mxu0 %v3915
      %3972 = vmatprep.subr.bf16.mxu0 0
      %3973 = vmatpush1.bf16.msra.mxu0 %v3916
      %3974 = vmatprep.subr.bf16.mxu0 0
      %3975 = vmatpush1.bf16.msra.mxu0 %v3917
      %3976 = vmatprep.subr.bf16.mxu0 0
      %3977 = vmatpush1.bf16.msra.mxu0 %v3918
      %3978 = vmatprep.subr.bf16.mxu0 0
      %3979 = vmatpush1.bf16.msra.mxu0 %v3919
      %3980 = vmatprep.subr.bf16.mxu0 0
      %3981 = vmatpush1.bf16.msra.mxu0 0
      %3982 = vmatprep.subr.bf16.mxu0 0
      %3983 = vmatpush1.bf16.msra.mxu0 0
      %3984 = vmatprep.subr.bf16.mxu0 0
      %3985 = vmatpush1.bf16.msra.mxu0 0
      %3986 = vmatprep.subr.bf16.mxu0 0
      %3987 = vmatpush1.bf16.msra.mxu0 0
      %3988 = vmatprep.mubr.bf16.mxu0 %v3933
      %3989 = vmatmul.mubr.bf16.gmra.mrb[0].mxu0 %v3820
      %v3990 = vpop.f32.mrb[0].mxu0
      %v3991 = vadd.f32 0.0, %v3990
      %v3992 = vpop.f32.mrb[0].mxu0
      %v3993 = vpop.f32.mrb[0].mxu0
      %v3994 = vadd.f32 0.0, %v3993
      %v3995 = vpop.f32.mrb[0].mxu0
      %3996 = vmatprep.mubr.bf16.mxu0 %v3936
      %3997 = vmatmul.mubr.bf16.gmra.mrb[0].mxu0 %v3822
      %v3998 = vpop.f32.mrb[0].mxu0
      %v3999 = vadd.f32 0.0, %v3998
      %v4000 = vpop.f32.mrb[0].mxu0
      %v4001 = vpop.f32.mrb[0].mxu0
      %v4002 = vadd.f32 0.0, %v4001
      %v4003 = vpop.f32.mrb[0].mxu0
      %4004 = vmatprep.mubr.bf16.mxu0 %v3939
      %4005 = vmatmul.mubr.bf16.gmra.mrb[0].mxu0 %v3824
      %v4006 = vpop.f32.mrb[0].mxu0
      %v4007 = vadd.f32 0.0, %v4006
      %v4008 = vpop.f32.mrb[0].mxu0
      %v4009 = vpop.f32.mrb[0].mxu0
      %v4010 = vadd.f32 0.0, %v4009
      %v4011 = vpop.f32.mrb[0].mxu0
      %4012 = vmatprep.mubr.bf16.mxu0 %v3942
      %4013 = vmatmul.mubr.bf16.gmra.mrb[0].mxu0 %v3826
      %v4014 = vpop.f32.mrb[0].mxu0
      %v4015 = vadd.f32 0.0, %v4014
      %v4016 = vpop.f32.mrb[0].mxu0
      %v4017 = vpop.f32.mrb[0].mxu0
      %v4018 = vadd.f32 0.0, %v4017
      %v4019 = vpop.f32.mrb[0].mxu0
      %4020 = vmatprep.mubr.bf16.mxu0 %v3945
      %4021 = vmatmul.mubr.bf16.gmra.mrb[0].mxu0 %v3828
      %v4022 = vpop.f32.mrb[0].mxu0
      %v4023 = vadd.f32 0.0, %v4022
      %v4024 = vpop.f32.mrb[0].mxu0
      %v4025 = vpop.f32.mrb[0].mxu0
      %v4026 = vadd.f32 0.0, %v4025
      %v4027 = vpop.f32.mrb[0].mxu0
      %4028 = vmatprep.mubr.bf16.mxu0 %v3948
      %4029 = vmatmul.mubr.bf16.gmra.mrb[0].mxu0 %v3830
      %v4030 = vpop.f32.mrb[0].mxu0
      %v4031 = vadd.f32 0.0, %v4030
      %v4032 = vpop.f32.mrb[0].mxu0
      %v4033 = vpop.f32.mrb[0].mxu0
      %v4034 = vadd.f32 0.0, %v4033
      %v4035 = vpop.f32.mrb[0].mxu0
      %4036 = vmatprep.mubr.bf16.mxu0 %v3951
      %4037 = vmatmul.mubr.bf16.gmra.mrb[0].mxu0 %v3832
      %v4038 = vpop.f32.mrb[0].mxu0
      %v4039 = vadd.f32 0.0, %v4038
      %v4040 = vpop.f32.mrb[0].mxu0
      %v4041 = vpop.f32.mrb[0].mxu0
      %v4042 = vadd.f32 0.0, %v4041
      %v4043 = vpop.f32.mrb[0].mxu0
      %4044 = vmatprep.mubr.bf16.mxu0 %v3954
      %4045 = vmatmul.mubr.bf16.gmra.mrb[0].mxu0 %v3834
      %v4046 = vpop.f32.mrb[0].mxu0
      %v4047 = vadd.f32 0.0, %v4046
      %v4048 = vpop.f32.mrb[0].mxu0
      %v4049 = vpop.f32.mrb[0].mxu0
      %v4050 = vadd.f32 0.0, %v4049
      %v4051 = vpop.f32.mrb[0].mxu0
      %4052 = vdwg.mxu0
      %v4077 = vunpack.c.l.b16 %v3587
      %v4078 = vunpack.c.l.b16 %v3588
      %v4079 = vunpack.c.l.b16 %v3589
      %v4080 = vunpack.c.l.b16 %v3590
      %v4081 = vunpack.c.l.b16 %v3591
      %v4082 = vunpack.c.l.b16 %v3592
      %v4083 = vunpack.c.l.b16 %v3593
      %v4084 = vunpack.c.l.b16 %v3594
      %v4085 = vunpack.c.l.b16 %v3595
      %v4086 = vunpack.c.l.b16 %v3596
      %v4087 = vunpack.c.l.b16 %v3597
      %v4088 = vunpack.c.l.b16 %v3598
      %v4089 = vunpack.c.l.b16 %v3599
      %v4090 = vunpack.c.l.b16 %v3600
      %v4091 = vunpack.c.l.b16 %v3601
      %v4092 = vunpack.c.l.b16 %v3602
      %v4093 = vunpack.c.l.b16 %v3603
      %v4094 = vunpack.c.l.b16 %v3604
      %v4095 = vunpack.c.l.b16 %v3605
      %v4096 = vunpack.c.l.b16 %v3606
      %v4097 = vunpack.c.l.b16 %v3607
      %v4098 = vunpack.c.l.b16 %v3608
      %v4099 = vunpack.c.l.b16 %v3609
      %v4100 = vunpack.c.l.b16 %v3610
      %v4101 = vpack.c.b16 %v4078, %v4077
      %v4102 = vpack.c.b16 %v4080, %v4079
      %v4103 = vpack.c.b16 %v4082, %v4081
      %v4104 = vpack.c.b16 %v4084, %v4083
      %v4105 = vpack.c.b16 %v4086, %v4085
      %v4106 = vpack.c.b16 %v4088, %v4087
      %v4107 = vpack.c.b16 %v4090, %v4089
      %v4108 = vpack.c.b16 %v4092, %v4091
      %v4109 = vpack.c.b16 %v4094, %v4093
      %v4110 = vpack.c.b16 %v4096, %v4095
      %v4111 = vpack.c.b16 %v4098, %v4097
      %v4112 = vpack.c.b16 %v4100, %v4099
      %v4126 = vsel %vm361, %v3572, 0
      %v4129 = vsel %vm361, %v3574, 0
      %v4132 = vsel %vm361, %v3576, 0
      %v4135 = vsel %vm361, %v3578, 0
      %v4138 = vsel %vm361, %v3580, 0
      %v4141 = vsel %vm361, %v3582, 0
      %v4144 = vsel %vm361, %v3584, 0
      %v4147 = vsel %vm361, %v3586, 0
      %4149 = vmatprep.subr.bf16.mxu0 0
      %4150 = vmatpush1.bf16.msra.mxu0 %v4101
      %4151 = vmatprep.subr.bf16.mxu0 0
      %4152 = vmatpush1.bf16.msra.mxu0 %v4102
      %4153 = vmatprep.subr.bf16.mxu0 0
      %4154 = vmatpush1.bf16.msra.mxu0 %v4103
      %4155 = vmatprep.subr.bf16.mxu0 0
      %4156 = vmatpush1.bf16.msra.mxu0 %v4104
      %4157 = vmatprep.subr.bf16.mxu0 0
      %4158 = vmatpush1.bf16.msra.mxu0 %v4105
      %4159 = vmatprep.subr.bf16.mxu0 0
      %4160 = vmatpush1.bf16.msra.mxu0 %v4106
      %4161 = vmatprep.subr.bf16.mxu0 0
      %4162 = vmatpush1.bf16.msra.mxu0 %v4107
      %4163 = vmatprep.subr.bf16.mxu0 0
      %4164 = vmatpush1.bf16.msra.mxu0 %v4108
      %4165 = vmatprep.subr.bf16.mxu0 0
      %4166 = vmatpush1.bf16.msra.mxu0 %v4109
      %4167 = vmatprep.subr.bf16.mxu0 0
      %4168 = vmatpush1.bf16.msra.mxu0 %v4110
      %4169 = vmatprep.subr.bf16.mxu0 0
      %4170 = vmatpush1.bf16.msra.mxu0 %v4111
      %4171 = vmatprep.subr.bf16.mxu0 0
      %4172 = vmatpush1.bf16.msra.mxu0 %v4112
      %4173 = vmatprep.subr.bf16.mxu0 0
      %4174 = vmatpush1.bf16.msra.mxu0 0
      %4175 = vmatprep.subr.bf16.mxu0 0
      %4176 = vmatpush1.bf16.msra.mxu0 0
      %4177 = vmatprep.subr.bf16.mxu0 0
      %4178 = vmatpush1.bf16.msra.mxu0 0
      %4179 = vmatprep.subr.bf16.mxu0 0
      %4180 = vmatpush1.bf16.msra.mxu0 0
      %4181 = vmatprep.mubr.bf16.mxu0 %v4126
      %4182 = vmatmul.mubr.bf16.gmra.mrb[0].mxu0 %v3571
      %v4183 = vpop.f32.mrb[0].mxu0
      %v4184 = vadd.f32 %v3991, %v4183
      %v4185 = vpop.f32.mrb[0].mxu0
      %v4186 = vpop.f32.mrb[0].mxu0
      %v4187 = vadd.f32 %v3994, %v4186
      %v4188 = vpop.f32.mrb[0].mxu0
      %4189 = vmatprep.mubr.bf16.mxu0 %v4129
      %4190 = vmatmul.mubr.bf16.gmra.mrb[0].mxu0 %v3573
      %v4191 = vpop.f32.mrb[0].mxu0
      %v4192 = vadd.f32 %v3999, %v4191
      %v4193 = vpop.f32.mrb[0].mxu0
      %v4194 = vpop.f32.mrb[0].mxu0
      %v4195 = vadd.f32 %v4002, %v4194
      %v4196 = vpop.f32.mrb[0].mxu0
      %4197 = vmatprep.mubr.bf16.mxu0 %v4132
      %4198 = vmatmul.mubr.bf16.gmra.mrb[0].mxu0 %v3575
      %v4199 = vpop.f32.mrb[0].mxu0
      %v4200 = vadd.f32 %v4007, %v4199
      %v4201 = vpop.f32.mrb[0].mxu0
      %v4202 = vpop.f32.mrb[0].mxu0
      %v4203 = vadd.f32 %v4010, %v4202
      %v4204 = vpop.f32.mrb[0].mxu0
      %4205 = vmatprep.mubr.bf16.mxu0 %v4135
      %4206 = vmatmul.mubr.bf16.gmra.mrb[0].mxu0 %v3577
      %v4207 = vpop.f32.mrb[0].mxu0
      %v4208 = vadd.f32 %v4015, %v4207
      %v4209 = vpop.f32.mrb[0].mxu0
      %v4210 = vpop.f32.mrb[0].mxu0
      %v4211 = vadd.f32 %v4018, %v4210
      %v4212 = vpop.f32.mrb[0].mxu0
      %4213 = vmatprep.mubr.bf16.mxu0 %v4138
      %4214 = vmatmul.mubr.bf16.gmra.mrb[0].mxu0 %v3579
      %v4215 = vpop.f32.mrb[0].mxu0
      %v4216 = vadd.f32 %v4023, %v4215
      %v4217 = vpop.f32.mrb[0].mxu0
      %v4218 = vpop.f32.mrb[0].mxu0
      %v4219 = vadd.f32 %v4026, %v4218
      %v4220 = vpop.f32.mrb[0].mxu0
      %4221 = vmatprep.mubr.bf16.mxu0 %v4141
      %4222 = vmatmul.mubr.bf16.gmra.mrb[0].mxu0 %v3581
      %v4223 = vpop.f32.mrb[0].mxu0
      %v4224 = vadd.f32 %v4031, %v4223
      %v4225 = vpop.f32.mrb[0].mxu0
      %v4226 = vpop.f32.mrb[0].mxu0
      %v4227 = vadd.f32 %v4034, %v4226
      %v4228 = vpop.f32.mrb[0].mxu0
      %4229 = vmatprep.mubr.bf16.mxu0 %v4144
      %4230 = vmatmul.mubr.bf16.gmra.mrb[0].mxu0 %v3583
      %v4231 = vpop.f32.mrb[0].mxu0
      %v4232 = vadd.f32 %v4039, %v4231
      %v4233 = vpop.f32.mrb[0].mxu0
      %v4234 = vpop.f32.mrb[0].mxu0
      %v4235 = vadd.f32 %v4042, %v4234
      %v4236 = vpop.f32.mrb[0].mxu0
      %4237 = vmatprep.mubr.bf16.mxu0 %v4147
      %4238 = vmatmul.mubr.bf16.gmra.mrb[0].mxu0 %v3585
      %v4239 = vpop.f32.mrb[0].mxu0
      %v4240 = vadd.f32 %v4047, %v4239
      %v4241 = vpop.f32.mrb[0].mxu0
      %v4242 = vpop.f32.mrb[0].mxu0
      %v4243 = vadd.f32 %v4050, %v4242
      %v4244 = vpop.f32.mrb[0].mxu0
      %4245 = vdwg.mxu0
      %s4246 = scalar_lea.vmem [#allocation3], 480
      %v4247 = vld [vmem:[%s4246] sm:$0xfc]
      %v4248 = vld [vmem:[%s4246 + $0x8] sm:$0xfc]
      %v4249 = vld [vmem:[%s4246 + $0x10] sm:$0xff]
      %v4250 = vld [vmem:[%s4246 + $0x18] sm:$0xff]
      %v4251 = vld [vmem:[%s4246 + $0x20] sm:$0x3]
      %v4252 = vld [vmem:[%s4246 + $0x28] sm:$0x3]
      %v4253 = vld [vmem:[%s4246 + $0x30] sm:$0xfc]
      %v4254 = vld [vmem:[%s4246 + $0x38] sm:$0xfc]
      %v4255 = vld [vmem:[%s4246 + $0x40] sm:$0xff]
      %v4256 = vld [vmem:[%s4246 + $0x48] sm:$0xff]
      %v4257 = vld [vmem:[%s4246 + $0x50] sm:$0x3]
      %v4258 = vld [vmem:[%s4246 + $0x58] sm:$0x3]
      %v4259 = vld [vmem:[%s4246 + $0x60] sm:$0xfc]
      %v4260 = vld [vmem:[%s4246 + $0x68] sm:$0xfc]
      %v4261 = vld [vmem:[%s4246 + $0x70] sm:$0xff]
      %v4262 = vld [vmem:[%s4246 + $0x78] sm:$0xff]
      %v4263 = vld [vmem:[%s4246 + $0x80] sm:$0x3]
      %v4264 = vld [vmem:[%s4246 + $0x88] sm:$0x3]
      %v4265 = vld [vmem:[%s4246 + $0x90] sm:$0xfc]
      %v4266 = vld [vmem:[%s4246 + $0x98] sm:$0xfc]
      %v4267 = vld [vmem:[%s4246 + $0xa0] sm:$0xff]
      %v4268 = vld [vmem:[%s4246 + $0xa8] sm:$0xff]
      %v4269 = vld [vmem:[%s4246 + $0xb0] sm:$0x3]
      %v4270 = vld [vmem:[%s4246 + $0xb8] sm:$0x3]
      %v4271 = vld [vmem:[%s4246 + $0xc0] sm:$0xfc]
      %v4272 = vld [vmem:[%s4246 + $0xc8] sm:$0xfc]
      %v4273 = vld [vmem:[%s4246 + $0xd0] sm:$0xff]
      %v4274 = vld [vmem:[%s4246 + $0xd8] sm:$0xff]
      %v4275 = vld [vmem:[%s4246 + $0xe0] sm:$0x3]
      %v4276 = vld [vmem:[%s4246 + $0xe8] sm:$0x3]
      %v4277 = vld [vmem:[%s4246 + $0xf0] sm:$0xfc]
      %v4278 = vld [vmem:[%s4246 + $0xf8] sm:$0xfc]
      %v4279 = vld [vmem:[%s4246 + $0x100] sm:$0xff]
      %v4280 = vld [vmem:[%s4246 + $0x108] sm:$0xff]
      %v4281 = vld [vmem:[%s4246 + $0x110] sm:$0x3]
      %v4282 = vld [vmem:[%s4246 + $0x118] sm:$0x3]
      %v4283 = vld [vmem:[%s4246 + $0x120] sm:$0xfc]
      %v4284 = vld [vmem:[%s4246 + $0x128] sm:$0xfc]
      %v4285 = vld [vmem:[%s4246 + $0x130] sm:$0xff]
      %v4286 = vld [vmem:[%s4246 + $0x138] sm:$0xff]
      %v4287 = vld [vmem:[%s4246 + $0x140] sm:$0x3]
      %v4288 = vld [vmem:[%s4246 + $0x148] sm:$0x3]
      %v4289 = vld [vmem:[%s4246 + $0x150] sm:$0xfc]
      %v4290 = vld [vmem:[%s4246 + $0x158] sm:$0xfc]
      %v4291 = vld [vmem:[%s4246 + $0x160] sm:$0xff]
      %v4292 = vld [vmem:[%s4246 + $0x168] sm:$0xff]
      %v4293 = vld [vmem:[%s4246 + $0x170] sm:$0x3]
      %v4294 = vld [vmem:[%s4246 + $0x178] sm:$0x3]
      %v4343 = vrot.slane %v4247, 2
      %v4344 = vrot.slane %v4249, 2
      %v4345 = vsel %vm2022, %v4343, %v4344
      %v4346 = vrot.slane %v4248, 2
      %v4347 = vrot.slane %v4250, 2
      %v4348 = vsel %vm2022, %v4346, %v4347
      %v4349 = vrot.slane %v4251, 2
      %v4350 = vsel %vm2022, %v4344, %v4349
      %v4351 = vrot.slane %v4252, 2
      %v4352 = vsel %vm2022, %v4347, %v4351
      %v4353 = vrot.slane %v4253, 2
      %v4354 = vrot.slane %v4255, 2
      %v4355 = vsel %vm2022, %v4353, %v4354
      %v4356 = vrot.slane %v4254, 2
      %v4357 = vrot.slane %v4256, 2
      %v4358 = vsel %vm2022, %v4356, %v4357
      %v4359 = vrot.slane %v4257, 2
      %v4360 = vsel %vm2022, %v4354, %v4359
      %v4361 = vrot.slane %v4258, 2
      %v4362 = vsel %vm2022, %v4357, %v4361
      %v4363 = vrot.slane %v4259, 2
      %v4364 = vrot.slane %v4261, 2
      %v4365 = vsel %vm2022, %v4363, %v4364
      %v4366 = vrot.slane %v4260, 2
      %v4367 = vrot.slane %v4262, 2
      %v4368 = vsel %vm2022, %v4366, %v4367
      %v4369 = vrot.slane %v4263, 2
      %v4370 = vsel %vm2022, %v4364, %v4369
      %v4371 = vrot.slane %v4264, 2
      %v4372 = vsel %vm2022, %v4367, %v4371
      %v4373 = vrot.slane %v4265, 2
      %v4374 = vrot.slane %v4267, 2
      %v4375 = vsel %vm2022, %v4373, %v4374
      %v4376 = vrot.slane %v4266, 2
      %v4377 = vrot.slane %v4268, 2
      %v4378 = vsel %vm2022, %v4376, %v4377
      %v4379 = vrot.slane %v4269, 2
      %v4380 = vsel %vm2022, %v4374, %v4379
      %v4381 = vrot.slane %v4270, 2
      %v4382 = vsel %vm2022, %v4377, %v4381
      %v4383 = vrot.slane %v4271, 2
      %v4384 = vrot.slane %v4273, 2
      %v4385 = vsel %vm2022, %v4383, %v4384
      %v4386 = vrot.slane %v4272, 2
      %v4387 = vrot.slane %v4274, 2
      %v4388 = vsel %vm2022, %v4386, %v4387
      %v4389 = vrot.slane %v4275, 2
      %v4390 = vsel %vm2022, %v4384, %v4389
      %v4391 = vrot.slane %v4276, 2
      %v4392 = vsel %vm2022, %v4387, %v4391
      %v4393 = vrot.slane %v4277, 2
      %v4394 = vrot.slane %v4279, 2
      %v4395 = vsel %vm2022, %v4393, %v4394
      %v4396 = vrot.slane %v4278, 2
      %v4397 = vrot.slane %v4280, 2
      %v4398 = vsel %vm2022, %v4396, %v4397
      %v4399 = vrot.slane %v4281, 2
      %v4400 = vsel %vm2022, %v4394, %v4399
      %v4401 = vrot.slane %v4282, 2
      %v4402 = vsel %vm2022, %v4397, %v4401
      %v4403 = vrot.slane %v4283, 2
      %v4404 = vrot.slane %v4285, 2
      %v4405 = vsel %vm2022, %v4403, %v4404
      %v4406 = vrot.slane %v4284, 2
      %v4407 = vrot.slane %v4286, 2
      %v4408 = vsel %vm2022, %v4406, %v4407
      %v4409 = vrot.slane %v4287, 2
      %v4410 = vsel %vm2022, %v4404, %v4409
      %v4411 = vrot.slane %v4288, 2
      %v4412 = vsel %vm2022, %v4407, %v4411
      %v4413 = vrot.slane %v4289, 2
      %v4414 = vrot.slane %v4291, 2
      %v4415 = vsel %vm2022, %v4413, %v4414
      %v4416 = vrot.slane %v4290, 2
      %v4417 = vrot.slane %v4292, 2
      %v4418 = vsel %vm2022, %v4416, %v4417
      %v4419 = vrot.slane %v4293, 2
      %v4420 = vsel %vm2022, %v4414, %v4419
      %v4421 = vrot.slane %v4294, 2
      %v4422 = vsel %vm2022, %v4417, %v4421
      %v4455 = vpack.c.bf16 %v4350, %v4345
      %v4456 = vpack.c.bf16 %v4352, %v4348
      %v4457 = vpack.c.bf16 %v4360, %v4355
      %v4458 = vpack.c.bf16 %v4362, %v4358
      %v4459 = vpack.c.bf16 %v4370, %v4365
      %v4460 = vpack.c.bf16 %v4372, %v4368
      %v4461 = vpack.c.bf16 %v4380, %v4375
      %v4462 = vpack.c.bf16 %v4382, %v4378
      %v4463 = vpack.c.bf16 %v4390, %v4385
      %v4464 = vpack.c.bf16 %v4392, %v4388
      %v4465 = vpack.c.bf16 %v4400, %v4395
      %v4466 = vpack.c.bf16 %v4402, %v4398
      %v4467 = vpack.c.bf16 %v4410, %v4405
      %v4468 = vpack.c.bf16 %v4412, %v4408
      %v4469 = vpack.c.bf16 %v4420, %v4415
      %v4470 = vpack.c.bf16 %v4422, %v4418
      %v4471 = vld [vmem:[%s3035] sm:$0xf]
      %v4472 = vld [vmem:[%s3035 + $0x4] sm:$0xf]
      %v4473 = vld [vmem:[%s3035 + $0x8] sm:$0xf]
      %v4474 = vld [vmem:[%s3035 + $0xc] sm:$0xf]
      %v4475 = vld [vmem:[%s3035 + $0x10] sm:$0xf]
      %v4476 = vld [vmem:[%s3035 + $0x14] sm:$0xf]
      %v4477 = vld [vmem:[%s3035 + $0x18] sm:$0xf]
      %v4478 = vld [vmem:[%s3035 + $0x1c] sm:$0xf]
      %v4479 = vld [vmem:[%s3035 + $0x20] sm:$0xf]
      %v4480 = vld [vmem:[%s3035 + $0x24] sm:$0xf]
      %v4481 = vld [vmem:[%s3035 + $0x28] sm:$0xf]
      %v4482 = vld [vmem:[%s3035 + $0x2c] sm:$0xf]
      %v4483 = vld [vmem:[%s3035 + $0x30] sm:$0xf]
      %v4484 = vld [vmem:[%s3035 + $0x34] sm:$0xf]
      %v4485 = vld [vmem:[%s3035 + $0x38] sm:$0xf]
      %v4486 = vld [vmem:[%s3035 + $0x3c] sm:$0xf]
      %v4487 = vld [vmem:[%s3035 + $0x40] sm:$0xf]
      %v4488 = vld [vmem:[%s3035 + $0x44] sm:$0xf]
      %v4489 = vld [vmem:[%s3035 + $0x48] sm:$0xf]
      %v4490 = vld [vmem:[%s3035 + $0x4c] sm:$0xf]
      %v4491 = vld [vmem:[%s3035 + $0x50] sm:$0xf]
      %v4492 = vld [vmem:[%s3035 + $0x54] sm:$0xf]
      %v4493 = vld [vmem:[%s3035 + $0x58] sm:$0xf]
      %v4494 = vld [vmem:[%s3035 + $0x5c] sm:$0xf]
      %v4519 = vunpack.c.l.b16 %v4471
      %v4520 = vunpack.c.l.b16 %v4472
      %v4521 = vunpack.c.l.b16 %v4473
      %v4522 = vunpack.c.l.b16 %v4474
      %v4523 = vunpack.c.l.b16 %v4475
      %v4524 = vunpack.c.l.b16 %v4476
      %v4525 = vunpack.c.l.b16 %v4477
      %v4526 = vunpack.c.l.b16 %v4478
      %v4527 = vunpack.c.l.b16 %v4479
      %v4528 = vunpack.c.l.b16 %v4480
      %v4529 = vunpack.c.l.b16 %v4481
      %v4530 = vunpack.c.l.b16 %v4482
      %v4531 = vunpack.c.l.b16 %v4483
      %v4532 = vunpack.c.l.b16 %v4484
      %v4533 = vunpack.c.l.b16 %v4485
      %v4534 = vunpack.c.l.b16 %v4486
      %v4535 = vunpack.c.l.b16 %v4487
      %v4536 = vunpack.c.l.b16 %v4488
      %v4537 = vunpack.c.l.b16 %v4489
      %v4538 = vunpack.c.l.b16 %v4490
      %v4539 = vunpack.c.l.b16 %v4491
      %v4540 = vunpack.c.l.b16 %v4492
      %v4541 = vunpack.c.l.b16 %v4493
      %v4542 = vunpack.c.l.b16 %v4494
      %v4543 = vpack.c.b16 %v4520, %v4519
      %v4544 = vpack.c.b16 %v4522, %v4521
      %v4545 = vpack.c.b16 %v4524, %v4523
      %v4546 = vpack.c.b16 %v4526, %v4525
      %v4547 = vpack.c.b16 %v4528, %v4527
      %v4548 = vpack.c.b16 %v4530, %v4529
      %v4549 = vpack.c.b16 %v4532, %v4531
      %v4550 = vpack.c.b16 %v4534, %v4533
      %v4551 = vpack.c.b16 %v4536, %v4535
      %v4552 = vpack.c.b16 %v4538, %v4537
      %v4553 = vpack.c.b16 %v4540, %v4539
      %v4554 = vpack.c.b16 %v4542, %v4541
      %v4568 = vsel %vm361, %v4456, 0
      %v4571 = vsel %vm361, %v4458, 0
      %v4574 = vsel %vm361, %v4460, 0
      %v4577 = vsel %vm361, %v4462, 0
      %v4580 = vsel %vm361, %v4464, 0
      %v4583 = vsel %vm361, %v4466, 0
      %v4586 = vsel %vm361, %v4468, 0
      %v4589 = vsel %vm361, %v4470, 0
      %4591 = vmatprep.subr.bf16.mxu0 0
      %4592 = vmatpush1.bf16.msra.mxu0 %v4543
      %4593 = vmatprep.subr.bf16.mxu0 0
      %4594 = vmatpush1.bf16.msra.mxu0 %v4544
      %4595 = vmatprep.subr.bf16.mxu0 0
      %4596 = vmatpush1.bf16.msra.mxu0 %v4545
      %4597 = vmatprep.subr.bf16.mxu0 0
      %4598 = vmatpush1.bf16.msra.mxu0 %v4546
      %4599 = vmatprep.subr.bf16.mxu0 0
      %4600 = vmatpush1.bf16.msra.mxu0 %v4547
      %4601 = vmatprep.subr.bf16.mxu0 0
      %4602 = vmatpush1.bf16.msra.mxu0 %v4548
      %4603 = vmatprep.subr.bf16.mxu0 0
      %4604 = vmatpush1.bf16.msra.mxu0 %v4549
      %4605 = vmatprep.subr.bf16.mxu0 0
      %4606 = vmatpush1.bf16.msra.mxu0 %v4550
      %4607 = vmatprep.subr.bf16.mxu0 0
      %4608 = vmatpush1.bf16.msra.mxu0 %v4551
      %4609 = vmatprep.subr.bf16.mxu0 0
      %4610 = vmatpush1.bf16.msra.mxu0 %v4552
      %4611 = vmatprep.subr.bf16.mxu0 0
      %4612 = vmatpush1.bf16.msra.mxu0 %v4553
      %4613 = vmatprep.subr.bf16.mxu0 0
      %4614 = vmatpush1.bf16.msra.mxu0 %v4554
      %4615 = vmatprep.subr.bf16.mxu0 0
      %4616 = vmatpush1.bf16.msra.mxu0 0
      %4617 = vmatprep.subr.bf16.mxu0 0
      %4618 = vmatpush1.bf16.msra.mxu0 0
      %4619 = vmatprep.subr.bf16.mxu0 0
      %4620 = vmatpush1.bf16.msra.mxu0 0
      %4621 = vmatprep.subr.bf16.mxu0 0
      %4622 = vmatpush1.bf16.msra.mxu0 0
      %4623 = vmatprep.mubr.bf16.mxu0 %v4568
      %4624 = vmatmul.mubr.bf16.gmra.mrb[0].mxu0 %v4455
      %v4625 = vpop.f32.mrb[0].mxu0
      %v4626 = vadd.f32 0.0, %v4625
      %v4627 = vpop.f32.mrb[0].mxu0
      %v4628 = vpop.f32.mrb[0].mxu0
      %v4629 = vadd.f32 0.0, %v4628
      %v4630 = vpop.f32.mrb[0].mxu0
      %4631 = vmatprep.mubr.bf16.mxu0 %v4571
      %4632 = vmatmul.mubr.bf16.gmra.mrb[0].mxu0 %v4457
      %v4633 = vpop.f32.mrb[0].mxu0
      %v4634 = vadd.f32 0.0, %v4633
      %v4635 = vpop.f32.mrb[0].mxu0
      %v4636 = vpop.f32.mrb[0].mxu0
      %v4637 = vadd.f32 0.0, %v4636
      %v4638 = vpop.f32.mrb[0].mxu0
      %4639 = vmatprep.mubr.bf16.mxu0 %v4574
      %4640 = vmatmul.mubr.bf16.gmra.mrb[0].mxu0 %v4459
      %v4641 = vpop.f32.mrb[0].mxu0
      %v4642 = vadd.f32 0.0, %v4641
      %v4643 = vpop.f32.mrb[0].mxu0
      %v4644 = vpop.f32.mrb[0].mxu0
      %v4645 = vadd.f32 0.0, %v4644
      %v4646 = vpop.f32.mrb[0].mxu0
      %4647 = vmatprep.mubr.bf16.mxu0 %v4577
      %4648 = vmatmul.mubr.bf16.gmra.mrb[0].mxu0 %v4461
      %v4649 = vpop.f32.mrb[0].mxu0
      %v4650 = vadd.f32 0.0, %v4649
      %v4651 = vpop.f32.mrb[0].mxu0
      %v4652 = vpop.f32.mrb[0].mxu0
      %v4653 = vadd.f32 0.0, %v4652
      %v4654 = vpop.f32.mrb[0].mxu0
      %4655 = vmatprep.mubr.bf16.mxu0 %v4580
      %4656 = vmatmul.mubr.bf16.gmra.mrb[0].mxu0 %v4463
      %v4657 = vpop.f32.mrb[0].mxu0
      %v4658 = vadd.f32 0.0, %v4657
      %v4659 = vpop.f32.mrb[0].mxu0
      %v4660 = vpop.f32.mrb[0].mxu0
      %v4661 = vadd.f32 0.0, %v4660
      %v4662 = vpop.f32.mrb[0].mxu0
      %4663 = vmatprep.mubr.bf16.mxu0 %v4583
      %4664 = vmatmul.mubr.bf16.gmra.mrb[0].mxu0 %v4465
      %v4665 = vpop.f32.mrb[0].mxu0
      %v4666 = vadd.f32 0.0, %v4665
      %v4667 = vpop.f32.mrb[0].mxu0
      %v4668 = vpop.f32.mrb[0].mxu0
      %v4669 = vadd.f32 0.0, %v4668
      %v4670 = vpop.f32.mrb[0].mxu0
      %4671 = vmatprep.mubr.bf16.mxu0 %v4586
      %4672 = vmatmul.mubr.bf16.gmra.mrb[0].mxu0 %v4467
      %v4673 = vpop.f32.mrb[0].mxu0
      %v4674 = vadd.f32 0.0, %v4673
      %v4675 = vpop.f32.mrb[0].mxu0
      %v4676 = vpop.f32.mrb[0].mxu0
      %v4677 = vadd.f32 0.0, %v4676
      %v4678 = vpop.f32.mrb[0].mxu0
      %4679 = vmatprep.mubr.bf16.mxu0 %v4589
      %4680 = vmatmul.mubr.bf16.gmra.mrb[0].mxu0 %v4469
      %v4681 = vpop.f32.mrb[0].mxu0
      %v4682 = vadd.f32 0.0, %v4681
      %v4683 = vpop.f32.mrb[0].mxu0
      %v4684 = vpop.f32.mrb[0].mxu0
      %v4685 = vadd.f32 0.0, %v4684
      %v4686 = vpop.f32.mrb[0].mxu0
      %4687 = vdwg.mxu0
      %v4688 = vadd.f32 %v4184, %v4626
      %v4689 = vadd.f32 %v4187, %v4629
      %v4690 = vadd.f32 %v4192, %v4634
      %v4691 = vadd.f32 %v4195, %v4637
      %v4692 = vadd.f32 %v4200, %v4642
      %v4693 = vadd.f32 %v4203, %v4645
      %v4694 = vadd.f32 %v4208, %v4650
      %v4695 = vadd.f32 %v4211, %v4653
      %v4696 = vadd.f32 %v4216, %v4658
      %v4697 = vadd.f32 %v4219, %v4661
      %v4698 = vadd.f32 %v4224, %v4666
      %v4699 = vadd.f32 %v4227, %v4669
      %v4700 = vadd.f32 %v4232, %v4674
      %v4701 = vadd.f32 %v4235, %v4677
      %v4702 = vadd.f32 %v4240, %v4682
      %v4703 = vadd.f32 %v4243, %v4685
      %v4704 = vadd.f32 %v4688, %v3273
      %v4705 = vadd.f32 %v4689, %v3273
      %v4706 = vadd.f32 %v4690, %v3273
      %v4707 = vadd.f32 %v4691, %v3273
      %v4708 = vadd.f32 %v4692, %v3273
      %v4709 = vadd.f32 %v4693, %v3273
      %v4710 = vadd.f32 %v4694, %v3273
      %v4711 = vadd.f32 %v4695, %v3273
      %v4712 = vadd.f32 %v4696, %v3273
      %v4713 = vadd.f32 %v4697, %v3273
      %v4714 = vadd.f32 %v4698, %v3273
      %v4715 = vadd.f32 %v4699, %v3273
      %v4716 = vadd.f32 %v4700, %v3273
      %v4717 = vadd.f32 %v4701, %v3273
      %v4718 = vadd.f32 %v4702, %v3273
      %v4719 = vadd.f32 %v4703, %v3273
      %v4720 = vmax.f32 %v4704, 0.0
      %v4721 = vmax.f32 %v4705, 0.0
      %v4722 = vmax.f32 %v4706, 0.0
      %v4723 = vmax.f32 %v4707, 0.0
      %v4724 = vmax.f32 %v4708, 0.0
      %v4725 = vmax.f32 %v4709, 0.0
      %v4726 = vmax.f32 %v4710, 0.0
      %v4727 = vmax.f32 %v4711, 0.0
      %v4728 = vmax.f32 %v4712, 0.0
      %v4729 = vmax.f32 %v4713, 0.0
      %v4730 = vmax.f32 %v4714, 0.0
      %v4731 = vmax.f32 %v4715, 0.0
      %v4732 = vmax.f32 %v4716, 0.0
      %v4733 = vmax.f32 %v4717, 0.0
      %v4734 = vmax.f32 %v4718, 0.0
      %v4735 = vmax.f32 %v4719, 0.0
      %v4736 = vmax.f32 %v4720, %v4722
      %v4737 = vmax.f32 %v4721, %v4723
      %v4738 = vmax.f32 %v4724, %v4726
      %v4739 = vmax.f32 %v4725, %v4727
      %v4740 = vmax.f32 %v4728, %v4730
      %v4741 = vmax.f32 %v4729, %v4731
      %v4742 = vmax.f32 %v4732, %v4734
      %v4743 = vmax.f32 %v4733, %v4735
      %4744 = vst [vmem:[#allocation5] sm:$0xff] %v4736
      %4745 = vst [vmem:[#allocation5 + $0x8] sm:$0xff] %v4737
      %4746 = vst [vmem:[#allocation5 + $0x10] sm:$0xff] %v4738
      %4747 = vst [vmem:[#allocation5 + $0x18] sm:$0xff] %v4739
      %4748 = vst [vmem:[#allocation5 + $0x20] sm:$0xff] %v4740
      %4749 = vst [vmem:[#allocation5 + $0x28] sm:$0xff] %v4741
      %4750 = vst [vmem:[#allocation5 + $0x30] sm:$0xff] %v4742
      %4751 = vst [vmem:[#allocation5 + $0x38] sm:$0xff] %v4743
      %v4752 = vld [vmem:[#allocation5] ss:$2 sm:$0xff]
      %v4753 = vld [vmem:[%s3324] ss:$2 sm:$0xff]
      %v4754 = vld [vmem:[%s3326] ss:$2 sm:$0xff]
      %v4755 = vld [vmem:[%s3328] ss:$2 sm:$0xff]
      %v4756 = vld [vmem:[%s3330] ss:$2 sm:$0xff]
      %v4757 = vld [vmem:[%s3332] ss:$2 sm:$0xff]
      %v4758 = vld [vmem:[%s3334] ss:$2 sm:$0xff]
      %v4759 = vld [vmem:[%s3336] ss:$2 sm:$0xff]
      %v4760 = vmax.f32 %v4752, %v4756
      %v4761 = vmax.f32 %v4753, %v4757
      %v4762 = vmax.f32 %v4754, %v4758
      %v4763 = vmax.f32 %v4755, %v4759
      %v4764 = vpack.c.bf16 %v4761, %v4760
      %v4765 = vpack.c.bf16 %v4763, %v4762
      %v4768 = vunpack.c.l.b16 %v4764
      %v4769 = vunpack.c.h.b16 %v4764
      %v4770 = vunpack.c.l.b16 %v4765
      %v4771 = vunpack.c.h.b16 %v4765
      %v4772 = vpack.c.b16 %v4768, %v4768
      %v4773 = vpack.c.b16 %v4769, %v4769
      %v4774 = vpack.c.b16 %v4770, %v4770
      %v4775 = vpack.c.b16 %v4771, %v4771
      %4780 = vst [vmem:[%s278 + $0x10] sm:$0xf] %v4772
      %4781 = vst [vmem:[%s278 + $0x14] sm:$0xf] %v4773
      %4782 = vst [vmem:[%s278 + $0x18] sm:$0xf] %v4774
      %4783 = vst [vmem:[%s278 + $0x1c] sm:$0xf] %v4775
      %p4784 = scmp.lt.s32.totalorder %s18, 1
      %s4785 = scalar_select %p4784, %s18, 1
      %s4786 = smul.addr %s4785, 8
      %s4787 = smul.addr %s4786, 4
      %s4788 = scalar_lea.vmem %s7, %s4787
      // Predicated region
      $region63: #{enhanced_cnn_forward.2} parent=47 // pred_check
        %p4789 = pneg %p188
      $region64: #{enhanced_cnn_forward.2} parent=47 // pred_check_branch
        %4791 = sbr.rel (%p4789) target = $region66
      $region65: #{enhanced_cnn_forward.2} parent=47 // pred_region
        _
      $region66: #{enhanced_cnn_forward.2} parent=47 // pred_fallthru
        _
    $region48: #{enhanced_cnn_forward.2} parent=5 // pred_fallthru
      _
    %p4792 = scmp.le.s32.totalorder 2, %s13
    // Predicated region
    $region67: #{enhanced_cnn_forward.2} parent=5 // pred_check
      %p4793 = pneg %p4792
    $region68: #{enhanced_cnn_forward.2} parent=5 // pred_check_branch
      %4795 = sbr.rel (%p4793) target = $region70
    $region69: #{enhanced_cnn_forward.2} parent=5 // pred_region
      %s4796 = ssub.s32 %s13, 2
      // Predicated region
      $region71: #{enhanced_cnn_forward.2} parent=69 // pred_check
        %p4797 = pneg %p194
      $region72: #{enhanced_cnn_forward.2} parent=69 // pred_check_branch
        %4799 = sbr.rel (%p4797) target = $region74
      $region73: #{enhanced_cnn_forward.2} parent=69 // pred_region
        %p4800 = scmp.lt.s32.totalorder %s19, 1
        %s4801 = scalar_select %p4800, %s19, 1
        %s4802 = smul.addr %s4801, 8
        %s4803 = smul.addr %s4802, 4
        %s4804 = scalar_lea.vmem %s7, %s4803
      $region74: #{enhanced_cnn_forward.2} parent=69 // pred_fallthru
        _
    $region70: #{enhanced_cnn_forward.2} parent=5 // pred_fallthru
      _
  $region6: #{enhanced_cnn_forward.2} parent=0 // loop_footer
    %s17 = sadd.s32 1, %s13
  $region7: #{enhanced_cnn_forward.2} parent=0 // loop_footer_branch
    %12 = sbr.rel target = $region3
  $region8: #{enhanced_cnn_forward.2} parent=0 // loop_exit
    _

// kernel: enhanced_cnn_forward.3
$region0: #{enhanced_cnn_forward.3}
  #allocation0 [shape = 'u32[]', space=smem, size = 0x4, offset = 0x4, fixed_abs, tag = 'smem constant byte address 0x4 - core index']
  #allocation1 [shape = 'u32[144,128]{1,0:T(1,128)}', space=vmem, size = 0x12000, scoped, tag = 'internal scratch']
  %s0 = inlined_call_operand.vmem [shape: bf16[2,8192], index: 0, kind: input, shape index: {}]
  %s1 = inlined_call_operand.vmem [shape: bf16[8192,128], index: 1, kind: input, shape index: {}]
  %s2 = inlined_call_operand.vmem [shape: f32[1,128], index: 2, kind: input, shape index: {}]
  %s3 = inlined_call_operand.vmem [shape: f32[128,2], index: 3, kind: input, shape index: {}]
  %s4 = inlined_call_operand.vmem [shape: f32[1,2], index: 4, kind: input, shape index: {}]
  %s5 = inlined_call_operand.hbm [shape: f32[2,2], index: 5, kind: output, shape index: {}]
  %s6 = sld [smem:[#allocation0]]
  $region30: #{enhanced_cnn_forward.3} parent=0
    _
  %s8 = ssub.s32 1, %s6
  %s9 = scalar_select 0, %s8, %s6
  $region1: #{enhanced_cnn_forward.3} parent=0
    #allocation2 [shape = 'u8[1024]{0}', space=vmem, size = 0x400, scoped, tag = 'output window, operand 0, single buffered']
    #allocation3 [shape = 's32[1]{0}', space=sflag, size = 0x4, scoped, tag = 'scoped memory for enhanced_cnn_forward.3']
    %10 = vsyncpa [#allocation3], 0
    // Predicated region
    $region2: #{enhanced_cnn_forward.3} parent=1 // pred_check
      _
    $region3: #{enhanced_cnn_forward.3} parent=1 // pred_check_branch
      %12 = sbr.rel (0) target = $region5
    $region4: #{enhanced_cnn_forward.3} parent=1 // pred_region
      _
    $region5: #{enhanced_cnn_forward.3} parent=1 // pred_fallthru
      _
    // Predicated region
    $region6: #{enhanced_cnn_forward.3} parent=1 // pred_check
      _
    $region7: #{enhanced_cnn_forward.3} parent=1 // pred_check_branch
      %14 = sbr.rel (0) target = $region9
    $region8: #{enhanced_cnn_forward.3} parent=1 // pred_region
      _
    $region9: #{enhanced_cnn_forward.3} parent=1 // pred_fallthru
      _
    // Predicated region
    $region10: #{enhanced_cnn_forward.3} parent=1 // pred_check
      _
    $region11: #{enhanced_cnn_forward.3} parent=1 // pred_check_branch
      %16 = sbr.rel (0) target = $region13
    $region12: #{enhanced_cnn_forward.3} parent=1 // pred_region
      _
    $region13: #{enhanced_cnn_forward.3} parent=1 // pred_fallthru
      _
    // Predicated region
    $region14: #{enhanced_cnn_forward.3} parent=1 // pred_check
      _
    $region15: #{enhanced_cnn_forward.3} parent=1 // pred_check_branch
      %18 = sbr.rel (0) target = $region17
    $region16: #{enhanced_cnn_forward.3} parent=1 // pred_region
      _
    $region17: #{enhanced_cnn_forward.3} parent=1 // pred_fallthru
      _
    // Predicated region
    $region18: #{enhanced_cnn_forward.3} parent=1 // pred_check
      _
    $region19: #{enhanced_cnn_forward.3} parent=1 // pred_check_branch
      %20 = sbr.rel (0) target = $region21
    $region20: #{enhanced_cnn_forward.3} parent=1 // pred_region
      _
    $region21: #{enhanced_cnn_forward.3} parent=1 // pred_fallthru
      _
    %v22 = vld [vmem:[%s0] sm:$0xff]
    %v23 = vld [vmem:[%s0 + $0x8] sm:$0xff]
    %v24 = vld [vmem:[%s0 + $0x10] sm:$0xff]
    %v25 = vld [vmem:[%s0 + $0x18] sm:$0xff]
    %v26 = vld [vmem:[%s0 + $0x20] sm:$0xff]
    %v27 = vld [vmem:[%s0 + $0x28] sm:$0xff]
    %v28 = vld [vmem:[%s0 + $0x30] sm:$0xff]
    %v29 = vld [vmem:[%s0 + $0x38] sm:$0xff]
    %v30 = vld [vmem:[%s1] sm:$0xf]
    %v31 = vld [vmem:[%s1 + $0x4] sm:$0xf]
    %v32 = vld [vmem:[%s1 + $0x8] sm:$0xf]
    %v33 = vld [vmem:[%s1 + $0xc] sm:$0xf]
    %v34 = vld [vmem:[%s1 + $0x10] sm:$0xf]
    %v35 = vld [vmem:[%s1 + $0x14] sm:$0xf]
    %v36 = vld [vmem:[%s1 + $0x18] sm:$0xf]
    %v37 = vld [vmem:[%s1 + $0x1c] sm:$0xf]
    %v38 = vld [vmem:[%s1 + $0x20] sm:$0xf]
    %v39 = vld [vmem:[%s1 + $0x24] sm:$0xf]
    %v40 = vld [vmem:[%s1 + $0x28] sm:$0xf]
    %v41 = vld [vmem:[%s1 + $0x2c] sm:$0xf]
    %v42 = vld [vmem:[%s1 + $0x30] sm:$0xf]
    %v43 = vld [vmem:[%s1 + $0x34] sm:$0xf]
    %v44 = vld [vmem:[%s1 + $0x38] sm:$0xf]
    %v45 = vld [vmem:[%s1 + $0x3c] sm:$0xf]
    %v46 = vld [vmem:[%s1 + $0x40] sm:$0xf]
    %v47 = vld [vmem:[%s1 + $0x44] sm:$0xf]
    %v48 = vld [vmem:[%s1 + $0x48] sm:$0xf]
    %v49 = vld [vmem:[%s1 + $0x4c] sm:$0xf]
    %v50 = vld [vmem:[%s1 + $0x50] sm:$0xf]
    %v51 = vld [vmem:[%s1 + $0x54] sm:$0xf]
    %v52 = vld [vmem:[%s1 + $0x58] sm:$0xf]
    %v53 = vld [vmem:[%s1 + $0x5c] sm:$0xf]
    %v54 = vld [vmem:[%s1 + $0x60] sm:$0xf]
    %v55 = vld [vmem:[%s1 + $0x64] sm:$0xf]
    %v56 = vld [vmem:[%s1 + $0x68] sm:$0xf]
    %v57 = vld [vmem:[%s1 + $0x6c] sm:$0xf]
    %v58 = vld [vmem:[%s1 + $0x70] sm:$0xf]
    %v59 = vld [vmem:[%s1 + $0x74] sm:$0xf]
    %v60 = vld [vmem:[%s1 + $0x78] sm:$0xf]
    %v61 = vld [vmem:[%s1 + $0x7c] sm:$0xf]
    %v62 = vld [vmem:[%s1 + $0x80] sm:$0xf]
    %v63 = vld [vmem:[%s1 + $0x84] sm:$0xf]
    %v64 = vld [vmem:[%s1 + $0x88] sm:$0xf]
    %v65 = vld [vmem:[%s1 + $0x8c] sm:$0xf]
    %v66 = vld [vmem:[%s1 + $0x90] sm:$0xf]
    %v67 = vld [vmem:[%s1 + $0x94] sm:$0xf]
    %v68 = vld [vmem:[%s1 + $0x98] sm:$0xf]
    %v69 = vld [vmem:[%s1 + $0x9c] sm:$0xf]
    %v70 = vld [vmem:[%s1 + $0xa0] sm:$0xf]
    %v71 = vld [vmem:[%s1 + $0xa4] sm:$0xf]
    %v72 = vld [vmem:[%s1 + $0xa8] sm:$0xf]
    %v73 = vld [vmem:[%s1 + $0xac] sm:$0xf]
    %v74 = vld [vmem:[%s1 + $0xb0] sm:$0xf]
    %v75 = vld [vmem:[%s1 + $0xb4] sm:$0xf]
    %v76 = vld [vmem:[%s1 + $0xb8] sm:$0xf]
    %v77 = vld [vmem:[%s1 + $0xbc] sm:$0xf]
    %v78 = vld [vmem:[%s1 + $0xc0] sm:$0xf]
    %v79 = vld [vmem:[%s1 + $0xc4] sm:$0xf]
    %v80 = vld [vmem:[%s1 + $0xc8] sm:$0xf]
    %v81 = vld [vmem:[%s1 + $0xcc] sm:$0xf]
    %v82 = vld [vmem:[%s1 + $0xd0] sm:$0xf]
    %v83 = vld [vmem:[%s1 + $0xd4] sm:$0xf]
    %v84 = vld [vmem:[%s1 + $0xd8] sm:$0xf]
    %v85 = vld [vmem:[%s1 + $0xdc] sm:$0xf]
    %v86 = vld [vmem:[%s1 + $0xe0] sm:$0xf]
    %v87 = vld [vmem:[%s1 + $0xe4] sm:$0xf]
    %v88 = vld [vmem:[%s1 + $0xe8] sm:$0xf]
    %v89 = vld [vmem:[%s1 + $0xec] sm:$0xf]
    %v90 = vld [vmem:[%s1 + $0xf0] sm:$0xf]
    %v91 = vld [vmem:[%s1 + $0xf4] sm:$0xf]
    %v92 = vld [vmem:[%s1 + $0xf8] sm:$0xf]
    %v93 = vld [vmem:[%s1 + $0xfc] sm:$0xf]
    %v94 = vld [vmem:[%s1 + $0x100] sm:$0xf]
    %v95 = vld [vmem:[%s1 + $0x104] sm:$0xf]
    %v96 = vld [vmem:[%s1 + $0x108] sm:$0xf]
    %v97 = vld [vmem:[%s1 + $0x10c] sm:$0xf]
    %v98 = vld [vmem:[%s1 + $0x110] sm:$0xf]
    %v99 = vld [vmem:[%s1 + $0x114] sm:$0xf]
    %v100 = vld [vmem:[%s1 + $0x118] sm:$0xf]
    %v101 = vld [vmem:[%s1 + $0x11c] sm:$0xf]
    %v102 = vld [vmem:[%s1 + $0x120] sm:$0xf]
    %v103 = vld [vmem:[%s1 + $0x124] sm:$0xf]
    %v104 = vld [vmem:[%s1 + $0x128] sm:$0xf]
    %v105 = vld [vmem:[%s1 + $0x12c] sm:$0xf]
    %v106 = vld [vmem:[%s1 + $0x130] sm:$0xf]
    %v107 = vld [vmem:[%s1 + $0x134] sm:$0xf]
    %v108 = vld [vmem:[%s1 + $0x138] sm:$0xf]
    %v109 = vld [vmem:[%s1 + $0x13c] sm:$0xf]
    %v110 = vld [vmem:[%s1 + $0x140] sm:$0xf]
    %v111 = vld [vmem:[%s1 + $0x144] sm:$0xf]
    %v112 = vld [vmem:[%s1 + $0x148] sm:$0xf]
    %v113 = vld [vmem:[%s1 + $0x14c] sm:$0xf]
    %v114 = vld [vmem:[%s1 + $0x150] sm:$0xf]
    %v115 = vld [vmem:[%s1 + $0x154] sm:$0xf]
    %v116 = vld [vmem:[%s1 + $0x158] sm:$0xf]
    %v117 = vld [vmem:[%s1 + $0x15c] sm:$0xf]
    %v118 = vld [vmem:[%s1 + $0x160] sm:$0xf]
    %v119 = vld [vmem:[%s1 + $0x164] sm:$0xf]
    %v120 = vld [vmem:[%s1 + $0x168] sm:$0xf]
    %v121 = vld [vmem:[%s1 + $0x16c] sm:$0xf]
    %v122 = vld [vmem:[%s1 + $0x170] sm:$0xf]
    %v123 = vld [vmem:[%s1 + $0x174] sm:$0xf]
    %v124 = vld [vmem:[%s1 + $0x178] sm:$0xf]
    %v125 = vld [vmem:[%s1 + $0x17c] sm:$0xf]
    %v126 = vld [vmem:[%s1 + $0x180] sm:$0xf]
    %v127 = vld [vmem:[%s1 + $0x184] sm:$0xf]
    %v128 = vld [vmem:[%s1 + $0x188] sm:$0xf]
    %v129 = vld [vmem:[%s1 + $0x18c] sm:$0xf]
    %v130 = vld [vmem:[%s1 + $0x190] sm:$0xf]
    %v131 = vld [vmem:[%s1 + $0x194] sm:$0xf]
    %v132 = vld [vmem:[%s1 + $0x198] sm:$0xf]
    %v133 = vld [vmem:[%s1 + $0x19c] sm:$0xf]
    %v134 = vld [vmem:[%s1 + $0x1a0] sm:$0xf]
    %v135 = vld [vmem:[%s1 + $0x1a4] sm:$0xf]
    %v136 = vld [vmem:[%s1 + $0x1a8] sm:$0xf]
    %v137 = vld [vmem:[%s1 + $0x1ac] sm:$0xf]
    %v138 = vld [vmem:[%s1 + $0x1b0] sm:$0xf]
    %v139 = vld [vmem:[%s1 + $0x1b4] sm:$0xf]
    %v140 = vld [vmem:[%s1 + $0x1b8] sm:$0xf]
    %v141 = vld [vmem:[%s1 + $0x1bc] sm:$0xf]
    %v142 = vld [vmem:[%s1 + $0x1c0] sm:$0xf]
    %v143 = vld [vmem:[%s1 + $0x1c4] sm:$0xf]
    %v144 = vld [vmem:[%s1 + $0x1c8] sm:$0xf]
    %v145 = vld [vmem:[%s1 + $0x1cc] sm:$0xf]
    %v146 = vld [vmem:[%s1 + $0x1d0] sm:$0xf]
    %v147 = vld [vmem:[%s1 + $0x1d4] sm:$0xf]
    %v148 = vld [vmem:[%s1 + $0x1d8] sm:$0xf]
    %v149 = vld [vmem:[%s1 + $0x1dc] sm:$0xf]
    %v150 = vld [vmem:[%s1 + $0x1e0] sm:$0xf]
    %v151 = vld [vmem:[%s1 + $0x1e4] sm:$0xf]
    %v152 = vld [vmem:[%s1 + $0x1e8] sm:$0xf]
    %v153 = vld [vmem:[%s1 + $0x1ec] sm:$0xf]
    %v154 = vld [vmem:[%s1 + $0x1f0] sm:$0xf]
    %v155 = vld [vmem:[%s1 + $0x1f4] sm:$0xf]
    %v156 = vld [vmem:[%s1 + $0x1f8] sm:$0xf]
    %v157 = vld [vmem:[%s1 + $0x1fc] sm:$0xf]
    %v158 = vld [vmem:[%s1 + $0x200] sm:$0xf]
    %v159 = vld [vmem:[%s1 + $0x204] sm:$0xf]
    %v160 = vld [vmem:[%s1 + $0x208] sm:$0xf]
    %v161 = vld [vmem:[%s1 + $0x20c] sm:$0xf]
    %v162 = vld [vmem:[%s1 + $0x210] sm:$0xf]
    %v163 = vld [vmem:[%s1 + $0x214] sm:$0xf]
    %v164 = vld [vmem:[%s1 + $0x218] sm:$0xf]
    %v165 = vld [vmem:[%s1 + $0x21c] sm:$0xf]
    %v166 = vld [vmem:[%s1 + $0x220] sm:$0xf]
    %v167 = vld [vmem:[%s1 + $0x224] sm:$0xf]
    %v168 = vld [vmem:[%s1 + $0x228] sm:$0xf]
    %v169 = vld [vmem:[%s1 + $0x22c] sm:$0xf]
    %v170 = vld [vmem:[%s1 + $0x230] sm:$0xf]
    %v171 = vld [vmem:[%s1 + $0x234] sm:$0xf]
    %v172 = vld [vmem:[%s1 + $0x238] sm:$0xf]
    %v173 = vld [vmem:[%s1 + $0x23c] sm:$0xf]
    %v174 = vld [vmem:[%s1 + $0x240] sm:$0xf]
    %v175 = vld [vmem:[%s1 + $0x244] sm:$0xf]
    %v176 = vld [vmem:[%s1 + $0x248] sm:$0xf]
    %v177 = vld [vmem:[%s1 + $0x24c] sm:$0xf]
    %v178 = vld [vmem:[%s1 + $0x250] sm:$0xf]
    %v179 = vld [vmem:[%s1 + $0x254] sm:$0xf]
    %v180 = vld [vmem:[%s1 + $0x258] sm:$0xf]
    %v181 = vld [vmem:[%s1 + $0x25c] sm:$0xf]
    %v182 = vld [vmem:[%s1 + $0x260] sm:$0xf]
    %v183 = vld [vmem:[%s1 + $0x264] sm:$0xf]
    %v184 = vld [vmem:[%s1 + $0x268] sm:$0xf]
    %v185 = vld [vmem:[%s1 + $0x26c] sm:$0xf]
    %v186 = vld [vmem:[%s1 + $0x270] sm:$0xf]
    %v187 = vld [vmem:[%s1 + $0x274] sm:$0xf]
    %v188 = vld [vmem:[%s1 + $0x278] sm:$0xf]
    %v189 = vld [vmem:[%s1 + $0x27c] sm:$0xf]
    %v190 = vld [vmem:[%s1 + $0x280] sm:$0xf]
    %v191 = vld [vmem:[%s1 + $0x284] sm:$0xf]
    %v192 = vld [vmem:[%s1 + $0x288] sm:$0xf]
    %v193 = vld [vmem:[%s1 + $0x28c] sm:$0xf]
    %v194 = vld [vmem:[%s1 + $0x290] sm:$0xf]
    %v195 = vld [vmem:[%s1 + $0x294] sm:$0xf]
    %v196 = vld [vmem:[%s1 + $0x298] sm:$0xf]
    %v197 = vld [vmem:[%s1 + $0x29c] sm:$0xf]
    %v198 = vld [vmem:[%s1 + $0x2a0] sm:$0xf]
    %v199 = vld [vmem:[%s1 + $0x2a4] sm:$0xf]
    %v200 = vld [vmem:[%s1 + $0x2a8] sm:$0xf]
    %v201 = vld [vmem:[%s1 + $0x2ac] sm:$0xf]
    %v202 = vld [vmem:[%s1 + $0x2b0] sm:$0xf]
    %v203 = vld [vmem:[%s1 + $0x2b4] sm:$0xf]
    %v204 = vld [vmem:[%s1 + $0x2b8] sm:$0xf]
    %v205 = vld [vmem:[%s1 + $0x2bc] sm:$0xf]
    %v206 = vld [vmem:[%s1 + $0x2c0] sm:$0xf]
    %v207 = vld [vmem:[%s1 + $0x2c4] sm:$0xf]
    %v208 = vld [vmem:[%s1 + $0x2c8] sm:$0xf]
    %v209 = vld [vmem:[%s1 + $0x2cc] sm:$0xf]
    %v210 = vld [vmem:[%s1 + $0x2d0] sm:$0xf]
    %v211 = vld [vmem:[%s1 + $0x2d4] sm:$0xf]
    %v212 = vld [vmem:[%s1 + $0x2d8] sm:$0xf]
    %v213 = vld [vmem:[%s1 + $0x2dc] sm:$0xf]
    %v214 = vld [vmem:[%s1 + $0x2e0] sm:$0xf]
    %v215 = vld [vmem:[%s1 + $0x2e4] sm:$0xf]
    %v216 = vld [vmem:[%s1 + $0x2e8] sm:$0xf]
    %v217 = vld [vmem:[%s1 + $0x2ec] sm:$0xf]
    %v218 = vld [vmem:[%s1 + $0x2f0] sm:$0xf]
    %v219 = vld [vmem:[%s1 + $0x2f4] sm:$0xf]
    %v220 = vld [vmem:[%s1 + $0x2f8] sm:$0xf]
    %v221 = vld [vmem:[%s1 + $0x2fc] sm:$0xf]
    %v222 = vld [vmem:[%s1 + $0x300] sm:$0xf]
    %v223 = vld [vmem:[%s1 + $0x304] sm:$0xf]
    %v224 = vld [vmem:[%s1 + $0x308] sm:$0xf]
    %v225 = vld [vmem:[%s1 + $0x30c] sm:$0xf]
    %v226 = vld [vmem:[%s1 + $0x310] sm:$0xf]
    %v227 = vld [vmem:[%s1 + $0x314] sm:$0xf]
    %v228 = vld [vmem:[%s1 + $0x318] sm:$0xf]
    %v229 = vld [vmem:[%s1 + $0x31c] sm:$0xf]
    %v230 = vld [vmem:[%s1 + $0x320] sm:$0xf]
    %v231 = vld [vmem:[%s1 + $0x324] sm:$0xf]
    %v232 = vld [vmem:[%s1 + $0x328] sm:$0xf]
    %v233 = vld [vmem:[%s1 + $0x32c] sm:$0xf]
    %v234 = vld [vmem:[%s1 + $0x330] sm:$0xf]
    %v235 = vld [vmem:[%s1 + $0x334] sm:$0xf]
    %v236 = vld [vmem:[%s1 + $0x338] sm:$0xf]
    %v237 = vld [vmem:[%s1 + $0x33c] sm:$0xf]
    %v238 = vld [vmem:[%s1 + $0x340] sm:$0xf]
    %v239 = vld [vmem:[%s1 + $0x344] sm:$0xf]
    %v240 = vld [vmem:[%s1 + $0x348] sm:$0xf]
    %v241 = vld [vmem:[%s1 + $0x34c] sm:$0xf]
    %v242 = vld [vmem:[%s1 + $0x350] sm:$0xf]
    %v243 = vld [vmem:[%s1 + $0x354] sm:$0xf]
    %v244 = vld [vmem:[%s1 + $0x358] sm:$0xf]
    %v245 = vld [vmem:[%s1 + $0x35c] sm:$0xf]
    %v246 = vld [vmem:[%s1 + $0x360] sm:$0xf]
    %v247 = vld [vmem:[%s1 + $0x364] sm:$0xf]
    %v248 = vld [vmem:[%s1 + $0x368] sm:$0xf]
    %v249 = vld [vmem:[%s1 + $0x36c] sm:$0xf]
    %v250 = vld [vmem:[%s1 + $0x370] sm:$0xf]
    %v251 = vld [vmem:[%s1 + $0x374] sm:$0xf]
    %v252 = vld [vmem:[%s1 + $0x378] sm:$0xf]
    %v253 = vld [vmem:[%s1 + $0x37c] sm:$0xf]
    %v254 = vld [vmem:[%s1 + $0x380] sm:$0xf]
    %v255 = vld [vmem:[%s1 + $0x384] sm:$0xf]
    %v256 = vld [vmem:[%s1 + $0x388] sm:$0xf]
    %v257 = vld [vmem:[%s1 + $0x38c] sm:$0xf]
    %v258 = vld [vmem:[%s1 + $0x390] sm:$0xf]
    %v259 = vld [vmem:[%s1 + $0x394] sm:$0xf]
    %v260 = vld [vmem:[%s1 + $0x398] sm:$0xf]
    %v261 = vld [vmem:[%s1 + $0x39c] sm:$0xf]
    %v262 = vld [vmem:[%s1 + $0x3a0] sm:$0xf]
    %v263 = vld [vmem:[%s1 + $0x3a4] sm:$0xf]
    %v264 = vld [vmem:[%s1 + $0x3a8] sm:$0xf]
    %v265 = vld [vmem:[%s1 + $0x3ac] sm:$0xf]
    %v266 = vld [vmem:[%s1 + $0x3b0] sm:$0xf]
    %v267 = vld [vmem:[%s1 + $0x3b4] sm:$0xf]
    %v268 = vld [vmem:[%s1 + $0x3b8] sm:$0xf]
    %v269 = vld [vmem:[%s1 + $0x3bc] sm:$0xf]
    %v270 = vld [vmem:[%s1 + $0x3c0] sm:$0xf]
    %v271 = vld [vmem:[%s1 + $0x3c4] sm:$0xf]
    %v272 = vld [vmem:[%s1 + $0x3c8] sm:$0xf]
    %v273 = vld [vmem:[%s1 + $0x3cc] sm:$0xf]
    %v274 = vld [vmem:[%s1 + $0x3d0] sm:$0xf]
    %v275 = vld [vmem:[%s1 + $0x3d4] sm:$0xf]
    %v276 = vld [vmem:[%s1 + $0x3d8] sm:$0xf]
    %v277 = vld [vmem:[%s1 + $0x3dc] sm:$0xf]
    %v278 = vld [vmem:[%s1 + $0x3e0] sm:$0xf]
    %v279 = vld [vmem:[%s1 + $0x3e4] sm:$0xf]
    %v280 = vld [vmem:[%s1 + $0x3e8] sm:$0xf]
    %v281 = vld [vmem:[%s1 + $0x3ec] sm:$0xf]
    %v282 = vld [vmem:[%s1 + $0x3f0] sm:$0xf]
    %v283 = vld [vmem:[%s1 + $0x3f4] sm:$0xf]
    %v284 = vld [vmem:[%s1 + $0x3f8] sm:$0xf]
    %v285 = vld [vmem:[%s1 + $0x3fc] sm:$0xf]
    %v286 = vld [vmem:[%s1 + $0x400] sm:$0xf]
    %v287 = vld [vmem:[%s1 + $0x404] sm:$0xf]
    %v288 = vld [vmem:[%s1 + $0x408] sm:$0xf]
    %v289 = vld [vmem:[%s1 + $0x40c] sm:$0xf]
    %v290 = vld [vmem:[%s1 + $0x410] sm:$0xf]
    %v291 = vld [vmem:[%s1 + $0x414] sm:$0xf]
    %v292 = vld [vmem:[%s1 + $0x418] sm:$0xf]
    %v293 = vld [vmem:[%s1 + $0x41c] sm:$0xf]
    %v294 = vld [vmem:[%s1 + $0x420] sm:$0xf]
    %v295 = vld [vmem:[%s1 + $0x424] sm:$0xf]
    %v296 = vld [vmem:[%s1 + $0x428] sm:$0xf]
    %v297 = vld [vmem:[%s1 + $0x42c] sm:$0xf]
    %v298 = vld [vmem:[%s1 + $0x430] sm:$0xf]
    %v299 = vld [vmem:[%s1 + $0x434] sm:$0xf]
    %v300 = vld [vmem:[%s1 + $0x438] sm:$0xf]
    %v301 = vld [vmem:[%s1 + $0x43c] sm:$0xf]
    %v302 = vld [vmem:[%s1 + $0x440] sm:$0xf]
    %v303 = vld [vmem:[%s1 + $0x444] sm:$0xf]
    %v304 = vld [vmem:[%s1 + $0x448] sm:$0xf]
    %v305 = vld [vmem:[%s1 + $0x44c] sm:$0xf]
    %v306 = vld [vmem:[%s1 + $0x450] sm:$0xf]
    %v307 = vld [vmem:[%s1 + $0x454] sm:$0xf]
    %v308 = vld [vmem:[%s1 + $0x458] sm:$0xf]
    %v309 = vld [vmem:[%s1 + $0x45c] sm:$0xf]
    %v310 = vld [vmem:[%s1 + $0x460] sm:$0xf]
    %v311 = vld [vmem:[%s1 + $0x464] sm:$0xf]
    %v312 = vld [vmem:[%s1 + $0x468] sm:$0xf]
    %v313 = vld [vmem:[%s1 + $0x46c] sm:$0xf]
    %v314 = vld [vmem:[%s1 + $0x470] sm:$0xf]
    %v315 = vld [vmem:[%s1 + $0x474] sm:$0xf]
    %v316 = vld [vmem:[%s1 + $0x478] sm:$0xf]
    %v317 = vld [vmem:[%s1 + $0x47c] sm:$0xf]
    %v318 = vld [vmem:[%s1 + $0x480] sm:$0xf]
    %v319 = vld [vmem:[%s1 + $0x484] sm:$0xf]
    %v320 = vld [vmem:[%s1 + $0x488] sm:$0xf]
    %v321 = vld [vmem:[%s1 + $0x48c] sm:$0xf]
    %v322 = vld [vmem:[%s1 + $0x490] sm:$0xf]
    %v323 = vld [vmem:[%s1 + $0x494] sm:$0xf]
    %v324 = vld [vmem:[%s1 + $0x498] sm:$0xf]
    %v325 = vld [vmem:[%s1 + $0x49c] sm:$0xf]
    %v326 = vld [vmem:[%s1 + $0x4a0] sm:$0xf]
    %v327 = vld [vmem:[%s1 + $0x4a4] sm:$0xf]
    %v328 = vld [vmem:[%s1 + $0x4a8] sm:$0xf]
    %v329 = vld [vmem:[%s1 + $0x4ac] sm:$0xf]
    %v330 = vld [vmem:[%s1 + $0x4b0] sm:$0xf]
    %v331 = vld [vmem:[%s1 + $0x4b4] sm:$0xf]
    %v332 = vld [vmem:[%s1 + $0x4b8] sm:$0xf]
    %v333 = vld [vmem:[%s1 + $0x4bc] sm:$0xf]
    %v334 = vld [vmem:[%s1 + $0x4c0] sm:$0xf]
    %v335 = vld [vmem:[%s1 + $0x4c4] sm:$0xf]
    %v336 = vld [vmem:[%s1 + $0x4c8] sm:$0xf]
    %v337 = vld [vmem:[%s1 + $0x4cc] sm:$0xf]
    %v338 = vld [vmem:[%s1 + $0x4d0] sm:$0xf]
    %v339 = vld [vmem:[%s1 + $0x4d4] sm:$0xf]
    %v340 = vld [vmem:[%s1 + $0x4d8] sm:$0xf]
    %v341 = vld [vmem:[%s1 + $0x4dc] sm:$0xf]
    %v342 = vld [vmem:[%s1 + $0x4e0] sm:$0xf]
    %v343 = vld [vmem:[%s1 + $0x4e4] sm:$0xf]
    %v344 = vld [vmem:[%s1 + $0x4e8] sm:$0xf]
    %v345 = vld [vmem:[%s1 + $0x4ec] sm:$0xf]
    %v346 = vld [vmem:[%s1 + $0x4f0] sm:$0xf]
    %v347 = vld [vmem:[%s1 + $0x4f4] sm:$0xf]
    %v348 = vld [vmem:[%s1 + $0x4f8] sm:$0xf]
    %v349 = vld [vmem:[%s1 + $0x4fc] sm:$0xf]
    %v350 = vld [vmem:[%s1 + $0x500] sm:$0xf]
    %v351 = vld [vmem:[%s1 + $0x504] sm:$0xf]
    %v352 = vld [vmem:[%s1 + $0x508] sm:$0xf]
    %v353 = vld [vmem:[%s1 + $0x50c] sm:$0xf]
    %v354 = vld [vmem:[%s1 + $0x510] sm:$0xf]
    %v355 = vld [vmem:[%s1 + $0x514] sm:$0xf]
    %v356 = vld [vmem:[%s1 + $0x518] sm:$0xf]
    %v357 = vld [vmem:[%s1 + $0x51c] sm:$0xf]
    %v358 = vld [vmem:[%s1 + $0x520] sm:$0xf]
    %v359 = vld [vmem:[%s1 + $0x524] sm:$0xf]
    %v360 = vld [vmem:[%s1 + $0x528] sm:$0xf]
    %v361 = vld [vmem:[%s1 + $0x52c] sm:$0xf]
    %v362 = vld [vmem:[%s1 + $0x530] sm:$0xf]
    %v363 = vld [vmem:[%s1 + $0x534] sm:$0xf]
    %v364 = vld [vmem:[%s1 + $0x538] sm:$0xf]
    %v365 = vld [vmem:[%s1 + $0x53c] sm:$0xf]
    %v366 = vld [vmem:[%s1 + $0x540] sm:$0xf]
    %v367 = vld [vmem:[%s1 + $0x544] sm:$0xf]
    %v368 = vld [vmem:[%s1 + $0x548] sm:$0xf]
    %v369 = vld [vmem:[%s1 + $0x54c] sm:$0xf]
    %v370 = vld [vmem:[%s1 + $0x550] sm:$0xf]
    %v371 = vld [vmem:[%s1 + $0x554] sm:$0xf]
    %v372 = vld [vmem:[%s1 + $0x558] sm:$0xf]
    %v373 = vld [vmem:[%s1 + $0x55c] sm:$0xf]
    %v374 = vld [vmem:[%s1 + $0x560] sm:$0xf]
    %v375 = vld [vmem:[%s1 + $0x564] sm:$0xf]
    %v376 = vld [vmem:[%s1 + $0x568] sm:$0xf]
    %v377 = vld [vmem:[%s1 + $0x56c] sm:$0xf]
    %v378 = vld [vmem:[%s1 + $0x570] sm:$0xf]
    %v379 = vld [vmem:[%s1 + $0x574] sm:$0xf]
    %v380 = vld [vmem:[%s1 + $0x578] sm:$0xf]
    %v381 = vld [vmem:[%s1 + $0x57c] sm:$0xf]
    %v382 = vld [vmem:[%s1 + $0x580] sm:$0xf]
    %v383 = vld [vmem:[%s1 + $0x584] sm:$0xf]
    %v384 = vld [vmem:[%s1 + $0x588] sm:$0xf]
    %v385 = vld [vmem:[%s1 + $0x58c] sm:$0xf]
    %v386 = vld [vmem:[%s1 + $0x590] sm:$0xf]
    %v387 = vld [vmem:[%s1 + $0x594] sm:$0xf]
    %v388 = vld [vmem:[%s1 + $0x598] sm:$0xf]
    %v389 = vld [vmem:[%s1 + $0x59c] sm:$0xf]
    %v390 = vld [vmem:[%s1 + $0x5a0] sm:$0xf]
    %v391 = vld [vmem:[%s1 + $0x5a4] sm:$0xf]
    %v392 = vld [vmem:[%s1 + $0x5a8] sm:$0xf]
    %v393 = vld [vmem:[%s1 + $0x5ac] sm:$0xf]
    %v394 = vld [vmem:[%s1 + $0x5b0] sm:$0xf]
    %v395 = vld [vmem:[%s1 + $0x5b4] sm:$0xf]
    %v396 = vld [vmem:[%s1 + $0x5b8] sm:$0xf]
    %v397 = vld [vmem:[%s1 + $0x5bc] sm:$0xf]
    %v398 = vld [vmem:[%s1 + $0x5c0] sm:$0xf]
    %v399 = vld [vmem:[%s1 + $0x5c4] sm:$0xf]
    %v400 = vld [vmem:[%s1 + $0x5c8] sm:$0xf]
    %v401 = vld [vmem:[%s1 + $0x5cc] sm:$0xf]
    %v402 = vld [vmem:[%s1 + $0x5d0] sm:$0xf]
    %v403 = vld [vmem:[%s1 + $0x5d4] sm:$0xf]
    %v404 = vld [vmem:[%s1 + $0x5d8] sm:$0xf]
    %v405 = vld [vmem:[%s1 + $0x5dc] sm:$0xf]
    %v406 = vld [vmem:[%s1 + $0x5e0] sm:$0xf]
    %v407 = vld [vmem:[%s1 + $0x5e4] sm:$0xf]
    %v408 = vld [vmem:[%s1 + $0x5e8] sm:$0xf]
    %v409 = vld [vmem:[%s1 + $0x5ec] sm:$0xf]
    %v410 = vld [vmem:[%s1 + $0x5f0] sm:$0xf]
    %v411 = vld [vmem:[%s1 + $0x5f4] sm:$0xf]
    %v412 = vld [vmem:[%s1 + $0x5f8] sm:$0xf]
    %v413 = vld [vmem:[%s1 + $0x5fc] sm:$0xf]
    %v414 = vld [vmem:[%s1 + $0x600] sm:$0xf]
    %v415 = vld [vmem:[%s1 + $0x604] sm:$0xf]
    %v416 = vld [vmem:[%s1 + $0x608] sm:$0xf]
    %v417 = vld [vmem:[%s1 + $0x60c] sm:$0xf]
    %v418 = vld [vmem:[%s1 + $0x610] sm:$0xf]
    %v419 = vld [vmem:[%s1 + $0x614] sm:$0xf]
    %v420 = vld [vmem:[%s1 + $0x618] sm:$0xf]
    %v421 = vld [vmem:[%s1 + $0x61c] sm:$0xf]
    %v422 = vld [vmem:[%s1 + $0x620] sm:$0xf]
    %v423 = vld [vmem:[%s1 + $0x624] sm:$0xf]
    %v424 = vld [vmem:[%s1 + $0x628] sm:$0xf]
    %v425 = vld [vmem:[%s1 + $0x62c] sm:$0xf]
    %v426 = vld [vmem:[%s1 + $0x630] sm:$0xf]
    %v427 = vld [vmem:[%s1 + $0x634] sm:$0xf]
    %v428 = vld [vmem:[%s1 + $0x638] sm:$0xf]
    %v429 = vld [vmem:[%s1 + $0x63c] sm:$0xf]
    %v430 = vld [vmem:[%s1 + $0x640] sm:$0xf]
    %v431 = vld [vmem:[%s1 + $0x644] sm:$0xf]
    %v432 = vld [vmem:[%s1 + $0x648] sm:$0xf]
    %v433 = vld [vmem:[%s1 + $0x64c] sm:$0xf]
    %v434 = vld [vmem:[%s1 + $0x650] sm:$0xf]
    %v435 = vld [vmem:[%s1 + $0x654] sm:$0xf]
    %v436 = vld [vmem:[%s1 + $0x658] sm:$0xf]
    %v437 = vld [vmem:[%s1 + $0x65c] sm:$0xf]
    %v438 = vld [vmem:[%s1 + $0x660] sm:$0xf]
    %v439 = vld [vmem:[%s1 + $0x664] sm:$0xf]
    %v440 = vld [vmem:[%s1 + $0x668] sm:$0xf]
    %v441 = vld [vmem:[%s1 + $0x66c] sm:$0xf]
    %v442 = vld [vmem:[%s1 + $0x670] sm:$0xf]
    %v443 = vld [vmem:[%s1 + $0x674] sm:$0xf]
    %v444 = vld [vmem:[%s1 + $0x678] sm:$0xf]
    %v445 = vld [vmem:[%s1 + $0x67c] sm:$0xf]
    %v446 = vld [vmem:[%s1 + $0x680] sm:$0xf]
    %v447 = vld [vmem:[%s1 + $0x684] sm:$0xf]
    %v448 = vld [vmem:[%s1 + $0x688] sm:$0xf]
    %v449 = vld [vmem:[%s1 + $0x68c] sm:$0xf]
    %v450 = vld [vmem:[%s1 + $0x690] sm:$0xf]
    %v451 = vld [vmem:[%s1 + $0x694] sm:$0xf]
    %v452 = vld [vmem:[%s1 + $0x698] sm:$0xf]
    %v453 = vld [vmem:[%s1 + $0x69c] sm:$0xf]
    %v454 = vld [vmem:[%s1 + $0x6a0] sm:$0xf]
    %v455 = vld [vmem:[%s1 + $0x6a4] sm:$0xf]
    %v456 = vld [vmem:[%s1 + $0x6a8] sm:$0xf]
    %v457 = vld [vmem:[%s1 + $0x6ac] sm:$0xf]
    %v458 = vld [vmem:[%s1 + $0x6b0] sm:$0xf]
    %v459 = vld [vmem:[%s1 + $0x6b4] sm:$0xf]
    %v460 = vld [vmem:[%s1 + $0x6b8] sm:$0xf]
    %v461 = vld [vmem:[%s1 + $0x6bc] sm:$0xf]
    %v462 = vld [vmem:[%s1 + $0x6c0] sm:$0xf]
    %v463 = vld [vmem:[%s1 + $0x6c4] sm:$0xf]
    %v464 = vld [vmem:[%s1 + $0x6c8] sm:$0xf]
    %v465 = vld [vmem:[%s1 + $0x6cc] sm:$0xf]
    %v466 = vld [vmem:[%s1 + $0x6d0] sm:$0xf]
    %v467 = vld [vmem:[%s1 + $0x6d4] sm:$0xf]
    %v468 = vld [vmem:[%s1 + $0x6d8] sm:$0xf]
    %v469 = vld [vmem:[%s1 + $0x6dc] sm:$0xf]
    %v470 = vld [vmem:[%s1 + $0x6e0] sm:$0xf]
    %v471 = vld [vmem:[%s1 + $0x6e4] sm:$0xf]
    %v472 = vld [vmem:[%s1 + $0x6e8] sm:$0xf]
    %v473 = vld [vmem:[%s1 + $0x6ec] sm:$0xf]
    %v474 = vld [vmem:[%s1 + $0x6f0] sm:$0xf]
    %v475 = vld [vmem:[%s1 + $0x6f4] sm:$0xf]
    %v476 = vld [vmem:[%s1 + $0x6f8] sm:$0xf]
    %v477 = vld [vmem:[%s1 + $0x6fc] sm:$0xf]
    %v478 = vld [vmem:[%s1 + $0x700] sm:$0xf]
    %v479 = vld [vmem:[%s1 + $0x704] sm:$0xf]
    %v480 = vld [vmem:[%s1 + $0x708] sm:$0xf]
    %v481 = vld [vmem:[%s1 + $0x70c] sm:$0xf]
    %v482 = vld [vmem:[%s1 + $0x710] sm:$0xf]
    %v483 = vld [vmem:[%s1 + $0x714] sm:$0xf]
    %v484 = vld [vmem:[%s1 + $0x718] sm:$0xf]
    %v485 = vld [vmem:[%s1 + $0x71c] sm:$0xf]
    %v486 = vld [vmem:[%s1 + $0x720] sm:$0xf]
    %v487 = vld [vmem:[%s1 + $0x724] sm:$0xf]
    %v488 = vld [vmem:[%s1 + $0x728] sm:$0xf]
    %v489 = vld [vmem:[%s1 + $0x72c] sm:$0xf]
    %v490 = vld [vmem:[%s1 + $0x730] sm:$0xf]
    %v491 = vld [vmem:[%s1 + $0x734] sm:$0xf]
    %v492 = vld [vmem:[%s1 + $0x738] sm:$0xf]
    %v493 = vld [vmem:[%s1 + $0x73c] sm:$0xf]
    %v494 = vld [vmem:[%s1 + $0x740] sm:$0xf]
    %v495 = vld [vmem:[%s1 + $0x744] sm:$0xf]
    %v496 = vld [vmem:[%s1 + $0x748] sm:$0xf]
    %v497 = vld [vmem:[%s1 + $0x74c] sm:$0xf]
    %v498 = vld [vmem:[%s1 + $0x750] sm:$0xf]
    %v499 = vld [vmem:[%s1 + $0x754] sm:$0xf]
    %v500 = vld [vmem:[%s1 + $0x758] sm:$0xf]
    %v501 = vld [vmem:[%s1 + $0x75c] sm:$0xf]
    %v502 = vld [vmem:[%s1 + $0x760] sm:$0xf]
    %v503 = vld [vmem:[%s1 + $0x764] sm:$0xf]
    %v504 = vld [vmem:[%s1 + $0x768] sm:$0xf]
    %v505 = vld [vmem:[%s1 + $0x76c] sm:$0xf]
    %v506 = vld [vmem:[%s1 + $0x770] sm:$0xf]
    %v507 = vld [vmem:[%s1 + $0x774] sm:$0xf]
    %v508 = vld [vmem:[%s1 + $0x778] sm:$0xf]
    %v509 = vld [vmem:[%s1 + $0x77c] sm:$0xf]
    %v510 = vld [vmem:[%s1 + $0x780] sm:$0xf]
    %v511 = vld [vmem:[%s1 + $0x784] sm:$0xf]
    %v512 = vld [vmem:[%s1 + $0x788] sm:$0xf]
    %v513 = vld [vmem:[%s1 + $0x78c] sm:$0xf]
    %v514 = vld [vmem:[%s1 + $0x790] sm:$0xf]
    %v515 = vld [vmem:[%s1 + $0x794] sm:$0xf]
    %v516 = vld [vmem:[%s1 + $0x798] sm:$0xf]
    %v517 = vld [vmem:[%s1 + $0x79c] sm:$0xf]
    %v518 = vld [vmem:[%s1 + $0x7a0] sm:$0xf]
    %v519 = vld [vmem:[%s1 + $0x7a4] sm:$0xf]
    %v520 = vld [vmem:[%s1 + $0x7a8] sm:$0xf]
    %v521 = vld [vmem:[%s1 + $0x7ac] sm:$0xf]
    %v522 = vld [vmem:[%s1 + $0x7b0] sm:$0xf]
    %v523 = vld [vmem:[%s1 + $0x7b4] sm:$0xf]
    %v524 = vld [vmem:[%s1 + $0x7b8] sm:$0xf]
    %v525 = vld [vmem:[%s1 + $0x7bc] sm:$0xf]
    %v526 = vld [vmem:[%s1 + $0x7c0] sm:$0xf]
    %v527 = vld [vmem:[%s1 + $0x7c4] sm:$0xf]
    %v528 = vld [vmem:[%s1 + $0x7c8] sm:$0xf]
    %v529 = vld [vmem:[%s1 + $0x7cc] sm:$0xf]
    %v530 = vld [vmem:[%s1 + $0x7d0] sm:$0xf]
    %v531 = vld [vmem:[%s1 + $0x7d4] sm:$0xf]
    %v532 = vld [vmem:[%s1 + $0x7d8] sm:$0xf]
    %v533 = vld [vmem:[%s1 + $0x7dc] sm:$0xf]
    %v534 = vld [vmem:[%s1 + $0x7e0] sm:$0xf]
    %v535 = vld [vmem:[%s1 + $0x7e4] sm:$0xf]
    %v536 = vld [vmem:[%s1 + $0x7e8] sm:$0xf]
    %v537 = vld [vmem:[%s1 + $0x7ec] sm:$0xf]
    %v538 = vld [vmem:[%s1 + $0x7f0] sm:$0xf]
    %v539 = vld [vmem:[%s1 + $0x7f4] sm:$0xf]
    %v540 = vld [vmem:[%s1 + $0x7f8] sm:$0xf]
    %v541 = vld [vmem:[%s1 + $0x7fc] sm:$0xf]
    %v542 = vld [vmem:[%s1 + $0x800] sm:$0xf]
    %v543 = vld [vmem:[%s1 + $0x804] sm:$0xf]
    %v544 = vld [vmem:[%s1 + $0x808] sm:$0xf]
    %v545 = vld [vmem:[%s1 + $0x80c] sm:$0xf]
    %v546 = vld [vmem:[%s1 + $0x810] sm:$0xf]
    %v547 = vld [vmem:[%s1 + $0x814] sm:$0xf]
    %v548 = vld [vmem:[%s1 + $0x818] sm:$0xf]
    %v549 = vld [vmem:[%s1 + $0x81c] sm:$0xf]
    %v550 = vld [vmem:[%s1 + $0x820] sm:$0xf]
    %v551 = vld [vmem:[%s1 + $0x824] sm:$0xf]
    %v552 = vld [vmem:[%s1 + $0x828] sm:$0xf]
    %v553 = vld [vmem:[%s1 + $0x82c] sm:$0xf]
    %v554 = vld [vmem:[%s1 + $0x830] sm:$0xf]
    %v555 = vld [vmem:[%s1 + $0x834] sm:$0xf]
    %v556 = vld [vmem:[%s1 + $0x838] sm:$0xf]
    %v557 = vld [vmem:[%s1 + $0x83c] sm:$0xf]
    %v558 = vld [vmem:[%s1 + $0x840] sm:$0xf]
    %v559 = vld [vmem:[%s1 + $0x844] sm:$0xf]
    %v560 = vld [vmem:[%s1 + $0x848] sm:$0xf]
    %v561 = vld [vmem:[%s1 + $0x84c] sm:$0xf]
    %v562 = vld [vmem:[%s1 + $0x850] sm:$0xf]
    %v563 = vld [vmem:[%s1 + $0x854] sm:$0xf]
    %v564 = vld [vmem:[%s1 + $0x858] sm:$0xf]
    %v565 = vld [vmem:[%s1 + $0x85c] sm:$0xf]
    %v566 = vld [vmem:[%s1 + $0x860] sm:$0xf]
    %v567 = vld [vmem:[%s1 + $0x864] sm:$0xf]
    %v568 = vld [vmem:[%s1 + $0x868] sm:$0xf]
    %v569 = vld [vmem:[%s1 + $0x86c] sm:$0xf]
    %v570 = vld [vmem:[%s1 + $0x870] sm:$0xf]
    %v571 = vld [vmem:[%s1 + $0x874] sm:$0xf]
    %v572 = vld [vmem:[%s1 + $0x878] sm:$0xf]
    %v573 = vld [vmem:[%s1 + $0x87c] sm:$0xf]
    %v574 = vld [vmem:[%s1 + $0x880] sm:$0xf]
    %v575 = vld [vmem:[%s1 + $0x884] sm:$0xf]
    %v576 = vld [vmem:[%s1 + $0x888] sm:$0xf]
    %v577 = vld [vmem:[%s1 + $0x88c] sm:$0xf]
    %v578 = vld [vmem:[%s1 + $0x890] sm:$0xf]
    %v579 = vld [vmem:[%s1 + $0x894] sm:$0xf]
    %v580 = vld [vmem:[%s1 + $0x898] sm:$0xf]
    %v581 = vld [vmem:[%s1 + $0x89c] sm:$0xf]
    %v582 = vld [vmem:[%s1 + $0x8a0] sm:$0xf]
    %v583 = vld [vmem:[%s1 + $0x8a4] sm:$0xf]
    %v584 = vld [vmem:[%s1 + $0x8a8] sm:$0xf]
    %v585 = vld [vmem:[%s1 + $0x8ac] sm:$0xf]
    %v586 = vld [vmem:[%s1 + $0x8b0] sm:$0xf]
    %v587 = vld [vmem:[%s1 + $0x8b4] sm:$0xf]
    %v588 = vld [vmem:[%s1 + $0x8b8] sm:$0xf]
    %v589 = vld [vmem:[%s1 + $0x8bc] sm:$0xf]
    %v590 = vld [vmem:[%s1 + $0x8c0] sm:$0xf]
    %v591 = vld [vmem:[%s1 + $0x8c4] sm:$0xf]
    %v592 = vld [vmem:[%s1 + $0x8c8] sm:$0xf]
    %v593 = vld [vmem:[%s1 + $0x8cc] sm:$0xf]
    %v594 = vld [vmem:[%s1 + $0x8d0] sm:$0xf]
    %v595 = vld [vmem:[%s1 + $0x8d4] sm:$0xf]
    %v596 = vld [vmem:[%s1 + $0x8d8] sm:$0xf]
    %v597 = vld [vmem:[%s1 + $0x8dc] sm:$0xf]
    %v598 = vld [vmem:[%s1 + $0x8e0] sm:$0xf]
    %v599 = vld [vmem:[%s1 + $0x8e4] sm:$0xf]
    %v600 = vld [vmem:[%s1 + $0x8e8] sm:$0xf]
    %v601 = vld [vmem:[%s1 + $0x8ec] sm:$0xf]
    %v602 = vld [vmem:[%s1 + $0x8f0] sm:$0xf]
    %v603 = vld [vmem:[%s1 + $0x8f4] sm:$0xf]
    %v604 = vld [vmem:[%s1 + $0x8f8] sm:$0xf]
    %v605 = vld [vmem:[%s1 + $0x8fc] sm:$0xf]
    %v606 = vld [vmem:[%s1 + $0x900] sm:$0xf]
    %v607 = vld [vmem:[%s1 + $0x904] sm:$0xf]
    %v608 = vld [vmem:[%s1 + $0x908] sm:$0xf]
    %v609 = vld [vmem:[%s1 + $0x90c] sm:$0xf]
    %v610 = vld [vmem:[%s1 + $0x910] sm:$0xf]
    %v611 = vld [vmem:[%s1 + $0x914] sm:$0xf]
    %v612 = vld [vmem:[%s1 + $0x918] sm:$0xf]
    %v613 = vld [vmem:[%s1 + $0x91c] sm:$0xf]
    %v614 = vld [vmem:[%s1 + $0x920] sm:$0xf]
    %v615 = vld [vmem:[%s1 + $0x924] sm:$0xf]
    %v616 = vld [vmem:[%s1 + $0x928] sm:$0xf]
    %v617 = vld [vmem:[%s1 + $0x92c] sm:$0xf]
    %v618 = vld [vmem:[%s1 + $0x930] sm:$0xf]
    %v619 = vld [vmem:[%s1 + $0x934] sm:$0xf]
    %v620 = vld [vmem:[%s1 + $0x938] sm:$0xf]
    %v621 = vld [vmem:[%s1 + $0x93c] sm:$0xf]
    %v622 = vld [vmem:[%s1 + $0x940] sm:$0xf]
    %v623 = vld [vmem:[%s1 + $0x944] sm:$0xf]
    %v624 = vld [vmem:[%s1 + $0x948] sm:$0xf]
    %v625 = vld [vmem:[%s1 + $0x94c] sm:$0xf]
    %v626 = vld [vmem:[%s1 + $0x950] sm:$0xf]
    %v627 = vld [vmem:[%s1 + $0x954] sm:$0xf]
    %v628 = vld [vmem:[%s1 + $0x958] sm:$0xf]
    %v629 = vld [vmem:[%s1 + $0x95c] sm:$0xf]
    %v630 = vld [vmem:[%s1 + $0x960] sm:$0xf]
    %v631 = vld [vmem:[%s1 + $0x964] sm:$0xf]
    %v632 = vld [vmem:[%s1 + $0x968] sm:$0xf]
    %v633 = vld [vmem:[%s1 + $0x96c] sm:$0xf]
    %v634 = vld [vmem:[%s1 + $0x970] sm:$0xf]
    %v635 = vld [vmem:[%s1 + $0x974] sm:$0xf]
    %v636 = vld [vmem:[%s1 + $0x978] sm:$0xf]
    %v637 = vld [vmem:[%s1 + $0x97c] sm:$0xf]
    %v638 = vld [vmem:[%s1 + $0x980] sm:$0xf]
    %v639 = vld [vmem:[%s1 + $0x984] sm:$0xf]
    %v640 = vld [vmem:[%s1 + $0x988] sm:$0xf]
    %v641 = vld [vmem:[%s1 + $0x98c] sm:$0xf]
    %v642 = vld [vmem:[%s1 + $0x990] sm:$0xf]
    %v643 = vld [vmem:[%s1 + $0x994] sm:$0xf]
    %v644 = vld [vmem:[%s1 + $0x998] sm:$0xf]
    %v645 = vld [vmem:[%s1 + $0x99c] sm:$0xf]
    %v646 = vld [vmem:[%s1 + $0x9a0] sm:$0xf]
    %v647 = vld [vmem:[%s1 + $0x9a4] sm:$0xf]
    %v648 = vld [vmem:[%s1 + $0x9a8] sm:$0xf]
    %v649 = vld [vmem:[%s1 + $0x9ac] sm:$0xf]
    %v650 = vld [vmem:[%s1 + $0x9b0] sm:$0xf]
    %v651 = vld [vmem:[%s1 + $0x9b4] sm:$0xf]
    %v652 = vld [vmem:[%s1 + $0x9b8] sm:$0xf]
    %v653 = vld [vmem:[%s1 + $0x9bc] sm:$0xf]
    %v654 = vld [vmem:[%s1 + $0x9c0] sm:$0xf]
    %v655 = vld [vmem:[%s1 + $0x9c4] sm:$0xf]
    %v656 = vld [vmem:[%s1 + $0x9c8] sm:$0xf]
    %v657 = vld [vmem:[%s1 + $0x9cc] sm:$0xf]
    %v658 = vld [vmem:[%s1 + $0x9d0] sm:$0xf]
    %v659 = vld [vmem:[%s1 + $0x9d4] sm:$0xf]
    %v660 = vld [vmem:[%s1 + $0x9d8] sm:$0xf]
    %v661 = vld [vmem:[%s1 + $0x9dc] sm:$0xf]
    %v662 = vld [vmem:[%s1 + $0x9e0] sm:$0xf]
    %v663 = vld [vmem:[%s1 + $0x9e4] sm:$0xf]
    %v664 = vld [vmem:[%s1 + $0x9e8] sm:$0xf]
    %v665 = vld [vmem:[%s1 + $0x9ec] sm:$0xf]
    %v666 = vld [vmem:[%s1 + $0x9f0] sm:$0xf]
    %v667 = vld [vmem:[%s1 + $0x9f4] sm:$0xf]
    %v668 = vld [vmem:[%s1 + $0x9f8] sm:$0xf]
    %v669 = vld [vmem:[%s1 + $0x9fc] sm:$0xf]
    %v670 = vld [vmem:[%s1 + $0xa00] sm:$0xf]
    %v671 = vld [vmem:[%s1 + $0xa04] sm:$0xf]
    %v672 = vld [vmem:[%s1 + $0xa08] sm:$0xf]
    %v673 = vld [vmem:[%s1 + $0xa0c] sm:$0xf]
    %v674 = vld [vmem:[%s1 + $0xa10] sm:$0xf]
    %v675 = vld [vmem:[%s1 + $0xa14] sm:$0xf]
    %v676 = vld [vmem:[%s1 + $0xa18] sm:$0xf]
    %v677 = vld [vmem:[%s1 + $0xa1c] sm:$0xf]
    %v678 = vld [vmem:[%s1 + $0xa20] sm:$0xf]
    %v679 = vld [vmem:[%s1 + $0xa24] sm:$0xf]
    %v680 = vld [vmem:[%s1 + $0xa28] sm:$0xf]
    %v681 = vld [vmem:[%s1 + $0xa2c] sm:$0xf]
    %v682 = vld [vmem:[%s1 + $0xa30] sm:$0xf]
    %v683 = vld [vmem:[%s1 + $0xa34] sm:$0xf]
    %v684 = vld [vmem:[%s1 + $0xa38] sm:$0xf]
    %v685 = vld [vmem:[%s1 + $0xa3c] sm:$0xf]
    %v686 = vld [vmem:[%s1 + $0xa40] sm:$0xf]
    %v687 = vld [vmem:[%s1 + $0xa44] sm:$0xf]
    %v688 = vld [vmem:[%s1 + $0xa48] sm:$0xf]
    %v689 = vld [vmem:[%s1 + $0xa4c] sm:$0xf]
    %v690 = vld [vmem:[%s1 + $0xa50] sm:$0xf]
    %v691 = vld [vmem:[%s1 + $0xa54] sm:$0xf]
    %v692 = vld [vmem:[%s1 + $0xa58] sm:$0xf]
    %v693 = vld [vmem:[%s1 + $0xa5c] sm:$0xf]
    %v694 = vld [vmem:[%s1 + $0xa60] sm:$0xf]
    %v695 = vld [vmem:[%s1 + $0xa64] sm:$0xf]
    %v696 = vld [vmem:[%s1 + $0xa68] sm:$0xf]
    %v697 = vld [vmem:[%s1 + $0xa6c] sm:$0xf]
    %v698 = vld [vmem:[%s1 + $0xa70] sm:$0xf]
    %v699 = vld [vmem:[%s1 + $0xa74] sm:$0xf]
    %v700 = vld [vmem:[%s1 + $0xa78] sm:$0xf]
    %v701 = vld [vmem:[%s1 + $0xa7c] sm:$0xf]
    %v702 = vld [vmem:[%s1 + $0xa80] sm:$0xf]
    %v703 = vld [vmem:[%s1 + $0xa84] sm:$0xf]
    %v704 = vld [vmem:[%s1 + $0xa88] sm:$0xf]
    %v705 = vld [vmem:[%s1 + $0xa8c] sm:$0xf]
    %v706 = vld [vmem:[%s1 + $0xa90] sm:$0xf]
    %v707 = vld [vmem:[%s1 + $0xa94] sm:$0xf]
    %v708 = vld [vmem:[%s1 + $0xa98] sm:$0xf]
    %v709 = vld [vmem:[%s1 + $0xa9c] sm:$0xf]
    %v710 = vld [vmem:[%s1 + $0xaa0] sm:$0xf]
    %v711 = vld [vmem:[%s1 + $0xaa4] sm:$0xf]
    %v712 = vld [vmem:[%s1 + $0xaa8] sm:$0xf]
    %v713 = vld [vmem:[%s1 + $0xaac] sm:$0xf]
    %v714 = vld [vmem:[%s1 + $0xab0] sm:$0xf]
    %v715 = vld [vmem:[%s1 + $0xab4] sm:$0xf]
    %v716 = vld [vmem:[%s1 + $0xab8] sm:$0xf]
    %v717 = vld [vmem:[%s1 + $0xabc] sm:$0xf]
    %v718 = vld [vmem:[%s1 + $0xac0] sm:$0xf]
    %v719 = vld [vmem:[%s1 + $0xac4] sm:$0xf]
    %v720 = vld [vmem:[%s1 + $0xac8] sm:$0xf]
    %v721 = vld [vmem:[%s1 + $0xacc] sm:$0xf]
    %v722 = vld [vmem:[%s1 + $0xad0] sm:$0xf]
    %v723 = vld [vmem:[%s1 + $0xad4] sm:$0xf]
    %v724 = vld [vmem:[%s1 + $0xad8] sm:$0xf]
    %v725 = vld [vmem:[%s1 + $0xadc] sm:$0xf]
    %v726 = vld [vmem:[%s1 + $0xae0] sm:$0xf]
    %v727 = vld [vmem:[%s1 + $0xae4] sm:$0xf]
    %v728 = vld [vmem:[%s1 + $0xae8] sm:$0xf]
    %v729 = vld [vmem:[%s1 + $0xaec] sm:$0xf]
    %v730 = vld [vmem:[%s1 + $0xaf0] sm:$0xf]
    %v731 = vld [vmem:[%s1 + $0xaf4] sm:$0xf]
    %v732 = vld [vmem:[%s1 + $0xaf8] sm:$0xf]
    %v733 = vld [vmem:[%s1 + $0xafc] sm:$0xf]
    %v734 = vld [vmem:[%s1 + $0xb00] sm:$0xf]
    %v735 = vld [vmem:[%s1 + $0xb04] sm:$0xf]
    %v736 = vld [vmem:[%s1 + $0xb08] sm:$0xf]
    %v737 = vld [vmem:[%s1 + $0xb0c] sm:$0xf]
    %v738 = vld [vmem:[%s1 + $0xb10] sm:$0xf]
    %v739 = vld [vmem:[%s1 + $0xb14] sm:$0xf]
    %v740 = vld [vmem:[%s1 + $0xb18] sm:$0xf]
    %v741 = vld [vmem:[%s1 + $0xb1c] sm:$0xf]
    %v742 = vld [vmem:[%s1 + $0xb20] sm:$0xf]
    %v743 = vld [vmem:[%s1 + $0xb24] sm:$0xf]
    %v744 = vld [vmem:[%s1 + $0xb28] sm:$0xf]
    %v745 = vld [vmem:[%s1 + $0xb2c] sm:$0xf]
    %v746 = vld [vmem:[%s1 + $0xb30] sm:$0xf]
    %v747 = vld [vmem:[%s1 + $0xb34] sm:$0xf]
    %v748 = vld [vmem:[%s1 + $0xb38] sm:$0xf]
    %v749 = vld [vmem:[%s1 + $0xb3c] sm:$0xf]
    %v750 = vld [vmem:[%s1 + $0xb40] sm:$0xf]
    %v751 = vld [vmem:[%s1 + $0xb44] sm:$0xf]
    %v752 = vld [vmem:[%s1 + $0xb48] sm:$0xf]
    %v753 = vld [vmem:[%s1 + $0xb4c] sm:$0xf]
    %v754 = vld [vmem:[%s1 + $0xb50] sm:$0xf]
    %v755 = vld [vmem:[%s1 + $0xb54] sm:$0xf]
    %v756 = vld [vmem:[%s1 + $0xb58] sm:$0xf]
    %v757 = vld [vmem:[%s1 + $0xb5c] sm:$0xf]
    %v758 = vld [vmem:[%s1 + $0xb60] sm:$0xf]
    %v759 = vld [vmem:[%s1 + $0xb64] sm:$0xf]
    %v760 = vld [vmem:[%s1 + $0xb68] sm:$0xf]
    %v761 = vld [vmem:[%s1 + $0xb6c] sm:$0xf]
    %v762 = vld [vmem:[%s1 + $0xb70] sm:$0xf]
    %v763 = vld [vmem:[%s1 + $0xb74] sm:$0xf]
    %v764 = vld [vmem:[%s1 + $0xb78] sm:$0xf]
    %v765 = vld [vmem:[%s1 + $0xb7c] sm:$0xf]
    %v766 = vld [vmem:[%s1 + $0xb80] sm:$0xf]
    %v767 = vld [vmem:[%s1 + $0xb84] sm:$0xf]
    %v768 = vld [vmem:[%s1 + $0xb88] sm:$0xf]
    %v769 = vld [vmem:[%s1 + $0xb8c] sm:$0xf]
    %v770 = vld [vmem:[%s1 + $0xb90] sm:$0xf]
    %v771 = vld [vmem:[%s1 + $0xb94] sm:$0xf]
    %v772 = vld [vmem:[%s1 + $0xb98] sm:$0xf]
    %v773 = vld [vmem:[%s1 + $0xb9c] sm:$0xf]
    %v774 = vld [vmem:[%s1 + $0xba0] sm:$0xf]
    %v775 = vld [vmem:[%s1 + $0xba4] sm:$0xf]
    %v776 = vld [vmem:[%s1 + $0xba8] sm:$0xf]
    %v777 = vld [vmem:[%s1 + $0xbac] sm:$0xf]
    %v778 = vld [vmem:[%s1 + $0xbb0] sm:$0xf]
    %v779 = vld [vmem:[%s1 + $0xbb4] sm:$0xf]
    %v780 = vld [vmem:[%s1 + $0xbb8] sm:$0xf]
    %v781 = vld [vmem:[%s1 + $0xbbc] sm:$0xf]
    %v782 = vld [vmem:[%s1 + $0xbc0] sm:$0xf]
    %v783 = vld [vmem:[%s1 + $0xbc4] sm:$0xf]
    %v784 = vld [vmem:[%s1 + $0xbc8] sm:$0xf]
    %v785 = vld [vmem:[%s1 + $0xbcc] sm:$0xf]
    %v786 = vld [vmem:[%s1 + $0xbd0] sm:$0xf]
    %v787 = vld [vmem:[%s1 + $0xbd4] sm:$0xf]
    %v788 = vld [vmem:[%s1 + $0xbd8] sm:$0xf]
    %v789 = vld [vmem:[%s1 + $0xbdc] sm:$0xf]
    %v790 = vld [vmem:[%s1 + $0xbe0] sm:$0xf]
    %v791 = vld [vmem:[%s1 + $0xbe4] sm:$0xf]
    %v792 = vld [vmem:[%s1 + $0xbe8] sm:$0xf]
    %v793 = vld [vmem:[%s1 + $0xbec] sm:$0xf]
    %v794 = vld [vmem:[%s1 + $0xbf0] sm:$0xf]
    %v795 = vld [vmem:[%s1 + $0xbf4] sm:$0xf]
    %v796 = vld [vmem:[%s1 + $0xbf8] sm:$0xf]
    %v797 = vld [vmem:[%s1 + $0xbfc] sm:$0xf]
    %v798 = vld [vmem:[%s1 + $0xc00] sm:$0xf]
    %v799 = vld [vmem:[%s1 + $0xc04] sm:$0xf]
    %v800 = vld [vmem:[%s1 + $0xc08] sm:$0xf]
    %v801 = vld [vmem:[%s1 + $0xc0c] sm:$0xf]
    %v802 = vld [vmem:[%s1 + $0xc10] sm:$0xf]
    %v803 = vld [vmem:[%s1 + $0xc14] sm:$0xf]
    %v804 = vld [vmem:[%s1 + $0xc18] sm:$0xf]
    %v805 = vld [vmem:[%s1 + $0xc1c] sm:$0xf]
    %v806 = vld [vmem:[%s1 + $0xc20] sm:$0xf]
    %v807 = vld [vmem:[%s1 + $0xc24] sm:$0xf]
    %v808 = vld [vmem:[%s1 + $0xc28] sm:$0xf]
    %v809 = vld [vmem:[%s1 + $0xc2c] sm:$0xf]
    %v810 = vld [vmem:[%s1 + $0xc30] sm:$0xf]
    %v811 = vld [vmem:[%s1 + $0xc34] sm:$0xf]
    %v812 = vld [vmem:[%s1 + $0xc38] sm:$0xf]
    %v813 = vld [vmem:[%s1 + $0xc3c] sm:$0xf]
    %v814 = vld [vmem:[%s1 + $0xc40] sm:$0xf]
    %v815 = vld [vmem:[%s1 + $0xc44] sm:$0xf]
    %v816 = vld [vmem:[%s1 + $0xc48] sm:$0xf]
    %v817 = vld [vmem:[%s1 + $0xc4c] sm:$0xf]
    %v818 = vld [vmem:[%s1 + $0xc50] sm:$0xf]
    %v819 = vld [vmem:[%s1 + $0xc54] sm:$0xf]
    %v820 = vld [vmem:[%s1 + $0xc58] sm:$0xf]
    %v821 = vld [vmem:[%s1 + $0xc5c] sm:$0xf]
    %v822 = vld [vmem:[%s1 + $0xc60] sm:$0xf]
    %v823 = vld [vmem:[%s1 + $0xc64] sm:$0xf]
    %v824 = vld [vmem:[%s1 + $0xc68] sm:$0xf]
    %v825 = vld [vmem:[%s1 + $0xc6c] sm:$0xf]
    %v826 = vld [vmem:[%s1 + $0xc70] sm:$0xf]
    %v827 = vld [vmem:[%s1 + $0xc74] sm:$0xf]
    %v828 = vld [vmem:[%s1 + $0xc78] sm:$0xf]
    %v829 = vld [vmem:[%s1 + $0xc7c] sm:$0xf]
    %v830 = vld [vmem:[%s1 + $0xc80] sm:$0xf]
    %v831 = vld [vmem:[%s1 + $0xc84] sm:$0xf]
    %v832 = vld [vmem:[%s1 + $0xc88] sm:$0xf]
    %v833 = vld [vmem:[%s1 + $0xc8c] sm:$0xf]
    %v834 = vld [vmem:[%s1 + $0xc90] sm:$0xf]
    %v835 = vld [vmem:[%s1 + $0xc94] sm:$0xf]
    %v836 = vld [vmem:[%s1 + $0xc98] sm:$0xf]
    %v837 = vld [vmem:[%s1 + $0xc9c] sm:$0xf]
    %v838 = vld [vmem:[%s1 + $0xca0] sm:$0xf]
    %v839 = vld [vmem:[%s1 + $0xca4] sm:$0xf]
    %v840 = vld [vmem:[%s1 + $0xca8] sm:$0xf]
    %v841 = vld [vmem:[%s1 + $0xcac] sm:$0xf]
    %v842 = vld [vmem:[%s1 + $0xcb0] sm:$0xf]
    %v843 = vld [vmem:[%s1 + $0xcb4] sm:$0xf]
    %v844 = vld [vmem:[%s1 + $0xcb8] sm:$0xf]
    %v845 = vld [vmem:[%s1 + $0xcbc] sm:$0xf]
    %v846 = vld [vmem:[%s1 + $0xcc0] sm:$0xf]
    %v847 = vld [vmem:[%s1 + $0xcc4] sm:$0xf]
    %v848 = vld [vmem:[%s1 + $0xcc8] sm:$0xf]
    %v849 = vld [vmem:[%s1 + $0xccc] sm:$0xf]
    %v850 = vld [vmem:[%s1 + $0xcd0] sm:$0xf]
    %v851 = vld [vmem:[%s1 + $0xcd4] sm:$0xf]
    %v852 = vld [vmem:[%s1 + $0xcd8] sm:$0xf]
    %v853 = vld [vmem:[%s1 + $0xcdc] sm:$0xf]
    %v854 = vld [vmem:[%s1 + $0xce0] sm:$0xf]
    %v855 = vld [vmem:[%s1 + $0xce4] sm:$0xf]
    %v856 = vld [vmem:[%s1 + $0xce8] sm:$0xf]
    %v857 = vld [vmem:[%s1 + $0xcec] sm:$0xf]
    %v858 = vld [vmem:[%s1 + $0xcf0] sm:$0xf]
    %v859 = vld [vmem:[%s1 + $0xcf4] sm:$0xf]
    %v860 = vld [vmem:[%s1 + $0xcf8] sm:$0xf]
    %v861 = vld [vmem:[%s1 + $0xcfc] sm:$0xf]
    %v862 = vld [vmem:[%s1 + $0xd00] sm:$0xf]
    %v863 = vld [vmem:[%s1 + $0xd04] sm:$0xf]
    %v864 = vld [vmem:[%s1 + $0xd08] sm:$0xf]
    %v865 = vld [vmem:[%s1 + $0xd0c] sm:$0xf]
    %v866 = vld [vmem:[%s1 + $0xd10] sm:$0xf]
    %v867 = vld [vmem:[%s1 + $0xd14] sm:$0xf]
    %v868 = vld [vmem:[%s1 + $0xd18] sm:$0xf]
    %v869 = vld [vmem:[%s1 + $0xd1c] sm:$0xf]
    %v870 = vld [vmem:[%s1 + $0xd20] sm:$0xf]
    %v871 = vld [vmem:[%s1 + $0xd24] sm:$0xf]
    %v872 = vld [vmem:[%s1 + $0xd28] sm:$0xf]
    %v873 = vld [vmem:[%s1 + $0xd2c] sm:$0xf]
    %v874 = vld [vmem:[%s1 + $0xd30] sm:$0xf]
    %v875 = vld [vmem:[%s1 + $0xd34] sm:$0xf]
    %v876 = vld [vmem:[%s1 + $0xd38] sm:$0xf]
    %v877 = vld [vmem:[%s1 + $0xd3c] sm:$0xf]
    %v878 = vld [vmem:[%s1 + $0xd40] sm:$0xf]
    %v879 = vld [vmem:[%s1 + $0xd44] sm:$0xf]
    %v880 = vld [vmem:[%s1 + $0xd48] sm:$0xf]
    %v881 = vld [vmem:[%s1 + $0xd4c] sm:$0xf]
    %v882 = vld [vmem:[%s1 + $0xd50] sm:$0xf]
    %v883 = vld [vmem:[%s1 + $0xd54] sm:$0xf]
    %v884 = vld [vmem:[%s1 + $0xd58] sm:$0xf]
    %v885 = vld [vmem:[%s1 + $0xd5c] sm:$0xf]
    %v886 = vld [vmem:[%s1 + $0xd60] sm:$0xf]
    %v887 = vld [vmem:[%s1 + $0xd64] sm:$0xf]
    %v888 = vld [vmem:[%s1 + $0xd68] sm:$0xf]
    %v889 = vld [vmem:[%s1 + $0xd6c] sm:$0xf]
    %v890 = vld [vmem:[%s1 + $0xd70] sm:$0xf]
    %v891 = vld [vmem:[%s1 + $0xd74] sm:$0xf]
    %v892 = vld [vmem:[%s1 + $0xd78] sm:$0xf]
    %v893 = vld [vmem:[%s1 + $0xd7c] sm:$0xf]
    %v894 = vld [vmem:[%s1 + $0xd80] sm:$0xf]
    %v895 = vld [vmem:[%s1 + $0xd84] sm:$0xf]
    %v896 = vld [vmem:[%s1 + $0xd88] sm:$0xf]
    %v897 = vld [vmem:[%s1 + $0xd8c] sm:$0xf]
    %v898 = vld [vmem:[%s1 + $0xd90] sm:$0xf]
    %v899 = vld [vmem:[%s1 + $0xd94] sm:$0xf]
    %v900 = vld [vmem:[%s1 + $0xd98] sm:$0xf]
    %v901 = vld [vmem:[%s1 + $0xd9c] sm:$0xf]
    %v902 = vld [vmem:[%s1 + $0xda0] sm:$0xf]
    %v903 = vld [vmem:[%s1 + $0xda4] sm:$0xf]
    %v904 = vld [vmem:[%s1 + $0xda8] sm:$0xf]
    %v905 = vld [vmem:[%s1 + $0xdac] sm:$0xf]
    %v906 = vld [vmem:[%s1 + $0xdb0] sm:$0xf]
    %v907 = vld [vmem:[%s1 + $0xdb4] sm:$0xf]
    %v908 = vld [vmem:[%s1 + $0xdb8] sm:$0xf]
    %v909 = vld [vmem:[%s1 + $0xdbc] sm:$0xf]
    %v910 = vld [vmem:[%s1 + $0xdc0] sm:$0xf]
    %v911 = vld [vmem:[%s1 + $0xdc4] sm:$0xf]
    %v912 = vld [vmem:[%s1 + $0xdc8] sm:$0xf]
    %v913 = vld [vmem:[%s1 + $0xdcc] sm:$0xf]
    %v914 = vld [vmem:[%s1 + $0xdd0] sm:$0xf]
    %v915 = vld [vmem:[%s1 + $0xdd4] sm:$0xf]
    %v916 = vld [vmem:[%s1 + $0xdd8] sm:$0xf]
    %v917 = vld [vmem:[%s1 + $0xddc] sm:$0xf]
    %v918 = vld [vmem:[%s1 + $0xde0] sm:$0xf]
    %v919 = vld [vmem:[%s1 + $0xde4] sm:$0xf]
    %v920 = vld [vmem:[%s1 + $0xde8] sm:$0xf]
    %v921 = vld [vmem:[%s1 + $0xdec] sm:$0xf]
    %v922 = vld [vmem:[%s1 + $0xdf0] sm:$0xf]
    %v923 = vld [vmem:[%s1 + $0xdf4] sm:$0xf]
    %v924 = vld [vmem:[%s1 + $0xdf8] sm:$0xf]
    %v925 = vld [vmem:[%s1 + $0xdfc] sm:$0xf]
    %v926 = vld [vmem:[%s1 + $0xe00] sm:$0xf]
    %v927 = vld [vmem:[%s1 + $0xe04] sm:$0xf]
    %v928 = vld [vmem:[%s1 + $0xe08] sm:$0xf]
    %v929 = vld [vmem:[%s1 + $0xe0c] sm:$0xf]
    %v930 = vld [vmem:[%s1 + $0xe10] sm:$0xf]
    %v931 = vld [vmem:[%s1 + $0xe14] sm:$0xf]
    %v932 = vld [vmem:[%s1 + $0xe18] sm:$0xf]
    %v933 = vld [vmem:[%s1 + $0xe1c] sm:$0xf]
    %v934 = vld [vmem:[%s1 + $0xe20] sm:$0xf]
    %v935 = vld [vmem:[%s1 + $0xe24] sm:$0xf]
    %v936 = vld [vmem:[%s1 + $0xe28] sm:$0xf]
    %v937 = vld [vmem:[%s1 + $0xe2c] sm:$0xf]
    %v938 = vld [vmem:[%s1 + $0xe30] sm:$0xf]
    %v939 = vld [vmem:[%s1 + $0xe34] sm:$0xf]
    %v940 = vld [vmem:[%s1 + $0xe38] sm:$0xf]
    %v941 = vld [vmem:[%s1 + $0xe3c] sm:$0xf]
    %v942 = vld [vmem:[%s1 + $0xe40] sm:$0xf]
    %v943 = vld [vmem:[%s1 + $0xe44] sm:$0xf]
    %v944 = vld [vmem:[%s1 + $0xe48] sm:$0xf]
    %v945 = vld [vmem:[%s1 + $0xe4c] sm:$0xf]
    %v946 = vld [vmem:[%s1 + $0xe50] sm:$0xf]
    %v947 = vld [vmem:[%s1 + $0xe54] sm:$0xf]
    %v948 = vld [vmem:[%s1 + $0xe58] sm:$0xf]
    %v949 = vld [vmem:[%s1 + $0xe5c] sm:$0xf]
    %v950 = vld [vmem:[%s1 + $0xe60] sm:$0xf]
    %v951 = vld [vmem:[%s1 + $0xe64] sm:$0xf]
    %v952 = vld [vmem:[%s1 + $0xe68] sm:$0xf]
    %v953 = vld [vmem:[%s1 + $0xe6c] sm:$0xf]
    %v954 = vld [vmem:[%s1 + $0xe70] sm:$0xf]
    %v955 = vld [vmem:[%s1 + $0xe74] sm:$0xf]
    %v956 = vld [vmem:[%s1 + $0xe78] sm:$0xf]
    %v957 = vld [vmem:[%s1 + $0xe7c] sm:$0xf]
    %v958 = vld [vmem:[%s1 + $0xe80] sm:$0xf]
    %v959 = vld [vmem:[%s1 + $0xe84] sm:$0xf]
    %v960 = vld [vmem:[%s1 + $0xe88] sm:$0xf]
    %v961 = vld [vmem:[%s1 + $0xe8c] sm:$0xf]
    %v962 = vld [vmem:[%s1 + $0xe90] sm:$0xf]
    %v963 = vld [vmem:[%s1 + $0xe94] sm:$0xf]
    %v964 = vld [vmem:[%s1 + $0xe98] sm:$0xf]
    %v965 = vld [vmem:[%s1 + $0xe9c] sm:$0xf]
    %v966 = vld [vmem:[%s1 + $0xea0] sm:$0xf]
    %v967 = vld [vmem:[%s1 + $0xea4] sm:$0xf]
    %v968 = vld [vmem:[%s1 + $0xea8] sm:$0xf]
    %v969 = vld [vmem:[%s1 + $0xeac] sm:$0xf]
    %v970 = vld [vmem:[%s1 + $0xeb0] sm:$0xf]
    %v971 = vld [vmem:[%s1 + $0xeb4] sm:$0xf]
    %v972 = vld [vmem:[%s1 + $0xeb8] sm:$0xf]
    %v973 = vld [vmem:[%s1 + $0xebc] sm:$0xf]
    %v974 = vld [vmem:[%s1 + $0xec0] sm:$0xf]
    %v975 = vld [vmem:[%s1 + $0xec4] sm:$0xf]
    %v976 = vld [vmem:[%s1 + $0xec8] sm:$0xf]
    %v977 = vld [vmem:[%s1 + $0xecc] sm:$0xf]
    %v978 = vld [vmem:[%s1 + $0xed0] sm:$0xf]
    %v979 = vld [vmem:[%s1 + $0xed4] sm:$0xf]
    %v980 = vld [vmem:[%s1 + $0xed8] sm:$0xf]
    %v981 = vld [vmem:[%s1 + $0xedc] sm:$0xf]
    %v982 = vld [vmem:[%s1 + $0xee0] sm:$0xf]
    %v983 = vld [vmem:[%s1 + $0xee4] sm:$0xf]
    %v984 = vld [vmem:[%s1 + $0xee8] sm:$0xf]
    %v985 = vld [vmem:[%s1 + $0xeec] sm:$0xf]
    %v986 = vld [vmem:[%s1 + $0xef0] sm:$0xf]
    %v987 = vld [vmem:[%s1 + $0xef4] sm:$0xf]
    %v988 = vld [vmem:[%s1 + $0xef8] sm:$0xf]
    %v989 = vld [vmem:[%s1 + $0xefc] sm:$0xf]
    %v990 = vld [vmem:[%s1 + $0xf00] sm:$0xf]
    %v991 = vld [vmem:[%s1 + $0xf04] sm:$0xf]
    %v992 = vld [vmem:[%s1 + $0xf08] sm:$0xf]
    %v993 = vld [vmem:[%s1 + $0xf0c] sm:$0xf]
    %v994 = vld [vmem:[%s1 + $0xf10] sm:$0xf]
    %v995 = vld [vmem:[%s1 + $0xf14] sm:$0xf]
    %v996 = vld [vmem:[%s1 + $0xf18] sm:$0xf]
    %v997 = vld [vmem:[%s1 + $0xf1c] sm:$0xf]
    %v998 = vld [vmem:[%s1 + $0xf20] sm:$0xf]
    %v999 = vld [vmem:[%s1 + $0xf24] sm:$0xf]
    %v1000 = vld [vmem:[%s1 + $0xf28] sm:$0xf]
    %v1001 = vld [vmem:[%s1 + $0xf2c] sm:$0xf]
    %v1002 = vld [vmem:[%s1 + $0xf30] sm:$0xf]
    %v1003 = vld [vmem:[%s1 + $0xf34] sm:$0xf]
    %v1004 = vld [vmem:[%s1 + $0xf38] sm:$0xf]
    %v1005 = vld [vmem:[%s1 + $0xf3c] sm:$0xf]
    %v1006 = vld [vmem:[%s1 + $0xf40] sm:$0xf]
    %v1007 = vld [vmem:[%s1 + $0xf44] sm:$0xf]
    %v1008 = vld [vmem:[%s1 + $0xf48] sm:$0xf]
    %v1009 = vld [vmem:[%s1 + $0xf4c] sm:$0xf]
    %v1010 = vld [vmem:[%s1 + $0xf50] sm:$0xf]
    %v1011 = vld [vmem:[%s1 + $0xf54] sm:$0xf]
    %v1012 = vld [vmem:[%s1 + $0xf58] sm:$0xf]
    %v1013 = vld [vmem:[%s1 + $0xf5c] sm:$0xf]
    %v1014 = vld [vmem:[%s1 + $0xf60] sm:$0xf]
    %v1015 = vld [vmem:[%s1 + $0xf64] sm:$0xf]
    %v1016 = vld [vmem:[%s1 + $0xf68] sm:$0xf]
    %v1017 = vld [vmem:[%s1 + $0xf6c] sm:$0xf]
    %v1018 = vld [vmem:[%s1 + $0xf70] sm:$0xf]
    %v1019 = vld [vmem:[%s1 + $0xf74] sm:$0xf]
    %v1020 = vld [vmem:[%s1 + $0xf78] sm:$0xf]
    %v1021 = vld [vmem:[%s1 + $0xf7c] sm:$0xf]
    %v1022 = vld [vmem:[%s1 + $0xf80] sm:$0xf]
    %v1023 = vld [vmem:[%s1 + $0xf84] sm:$0xf]
    %v1024 = vld [vmem:[%s1 + $0xf88] sm:$0xf]
    %v1025 = vld [vmem:[%s1 + $0xf8c] sm:$0xf]
    %v1026 = vld [vmem:[%s1 + $0xf90] sm:$0xf]
    %v1027 = vld [vmem:[%s1 + $0xf94] sm:$0xf]
    %v1028 = vld [vmem:[%s1 + $0xf98] sm:$0xf]
    %v1029 = vld [vmem:[%s1 + $0xf9c] sm:$0xf]
    %v1030 = vld [vmem:[%s1 + $0xfa0] sm:$0xf]
    %v1031 = vld [vmem:[%s1 + $0xfa4] sm:$0xf]
    %v1032 = vld [vmem:[%s1 + $0xfa8] sm:$0xf]
    %v1033 = vld [vmem:[%s1 + $0xfac] sm:$0xf]
    %v1034 = vld [vmem:[%s1 + $0xfb0] sm:$0xf]
    %v1035 = vld [vmem:[%s1 + $0xfb4] sm:$0xf]
    %v1036 = vld [vmem:[%s1 + $0xfb8] sm:$0xf]
    %v1037 = vld [vmem:[%s1 + $0xfbc] sm:$0xf]
    %v1038 = vld [vmem:[%s1 + $0xfc0] sm:$0xf]
    %v1039 = vld [vmem:[%s1 + $0xfc4] sm:$0xf]
    %v1040 = vld [vmem:[%s1 + $0xfc8] sm:$0xf]
    %v1041 = vld [vmem:[%s1 + $0xfcc] sm:$0xf]
    %v1042 = vld [vmem:[%s1 + $0xfd0] sm:$0xf]
    %v1043 = vld [vmem:[%s1 + $0xfd4] sm:$0xf]
    %v1044 = vld [vmem:[%s1 + $0xfd8] sm:$0xf]
    %v1045 = vld [vmem:[%s1 + $0xfdc] sm:$0xf]
    %v1046 = vld [vmem:[%s1 + $0xfe0] sm:$0xf]
    %v1047 = vld [vmem:[%s1 + $0xfe4] sm:$0xf]
    %v1048 = vld [vmem:[%s1 + $0xfe8] sm:$0xf]
    %v1049 = vld [vmem:[%s1 + $0xfec] sm:$0xf]
    %v1050 = vld [vmem:[%s1 + $0xff0] sm:$0xf]
    %v1051 = vld [vmem:[%s1 + $0xff4] sm:$0xf]
    %v1052 = vld [vmem:[%s1 + $0xff8] sm:$0xf]
    %v1053 = vld [vmem:[%s1 + $0xffc] sm:$0xf]
    %v1054 = vld [vmem:[%s2] sm:$0x1]
    %v1056 = vlaneseq
    %v1057 = vshrl.u32 %v1056, 7
    %v1058 = vsub.s32 0, %v1057
    %v1059 = vrot.slane %v1054, %v1058
    %v1069 = vcombine.high %v22, %v22
    %v1071 = vunpack.c.l.s4 1966171168
    %v1072 = vunpack.c.0.s8 %v1071
    %v1073 = vlaneseq
    %v1074 = vshrl.u32 %v1073, 7
    %v1075 = vsub.s32 %v1072, %v1074
    %v1076 = vrot.slane %v22, %v1075
    %v1078 = vunpack.c.l.s4 1966171168
    %v1079 = vunpack.c.0.s8 %v1078
    %v1080 = vlaneseq
    %v1081 = vshrl.u32 %v1080, 7
    %v1082 = vsub.s32 %v1079, %v1081
    %v1083 = vrot.slane %v1069, %v1082
    %v1084 = vcombine.high %v1076, %v1076
    %v1085 = vcombine.high %v1083, %v1083
    %v1087 = vunpack.c.l.s4 1966171168
    %v1088 = vunpack.c.0.s8 %v1087
    %v1089 = vlaneseq
    %v1090 = vshrl.u32 %v1089, 7
    %v1091 = vsub.s32 %v1088, %v1090
    %v1092 = vrot.slane %v1076, %v1091
    %v1094 = vunpack.c.l.s4 1966171168
    %v1095 = vunpack.c.0.s8 %v1094
    %v1096 = vlaneseq
    %v1097 = vshrl.u32 %v1096, 7
    %v1098 = vsub.s32 %v1095, %v1097
    %v1099 = vrot.slane %v1083, %v1098
    %v1101 = vunpack.c.l.s4 1966171168
    %v1102 = vunpack.c.0.s8 %v1101
    %v1103 = vlaneseq
    %v1104 = vshrl.u32 %v1103, 7
    %v1105 = vsub.s32 %v1102, %v1104
    %v1106 = vrot.slane %v1084, %v1105
    %v1108 = vunpack.c.l.s4 1966171168
    %v1109 = vunpack.c.0.s8 %v1108
    %v1110 = vlaneseq
    %v1111 = vshrl.u32 %v1110, 7
    %v1112 = vsub.s32 %v1109, %v1111
    %v1113 = vrot.slane %v1085, %v1112
    %v1114 = vcombine.high %v1092, %v1092
    %v1115 = vcombine.high %v1099, %v1099
    %v1116 = vcombine.high %v1106, %v1106
    %v1117 = vcombine.high %v1113, %v1113
    %v1118 = vcombine.high %v23, %v23
    %v1120 = vunpack.c.l.s4 1966171168
    %v1121 = vunpack.c.0.s8 %v1120
    %v1122 = vlaneseq
    %v1123 = vshrl.u32 %v1122, 7
    %v1124 = vsub.s32 %v1121, %v1123
    %v1125 = vrot.slane %v23, %v1124
    %v1127 = vunpack.c.l.s4 1966171168
    %v1128 = vunpack.c.0.s8 %v1127
    %v1129 = vlaneseq
    %v1130 = vshrl.u32 %v1129, 7
    %v1131 = vsub.s32 %v1128, %v1130
    %v1132 = vrot.slane %v1118, %v1131
    %v1133 = vcombine.high %v1125, %v1125
    %v1134 = vcombine.high %v1132, %v1132
    %v1136 = vunpack.c.l.s4 1966171168
    %v1137 = vunpack.c.0.s8 %v1136
    %v1138 = vlaneseq
    %v1139 = vshrl.u32 %v1138, 7
    %v1140 = vsub.s32 %v1137, %v1139
    %v1141 = vrot.slane %v1125, %v1140
    %v1143 = vunpack.c.l.s4 1966171168
    %v1144 = vunpack.c.0.s8 %v1143
    %v1145 = vlaneseq
    %v1146 = vshrl.u32 %v1145, 7
    %v1147 = vsub.s32 %v1144, %v1146
    %v1148 = vrot.slane %v1132, %v1147
    %v1150 = vunpack.c.l.s4 1966171168
    %v1151 = vunpack.c.0.s8 %v1150
    %v1152 = vlaneseq
    %v1153 = vshrl.u32 %v1152, 7
    %v1154 = vsub.s32 %v1151, %v1153
    %v1155 = vrot.slane %v1133, %v1154
    %v1157 = vunpack.c.l.s4 1966171168
    %v1158 = vunpack.c.0.s8 %v1157
    %v1159 = vlaneseq
    %v1160 = vshrl.u32 %v1159, 7
    %v1161 = vsub.s32 %v1158, %v1160
    %v1162 = vrot.slane %v1134, %v1161
    %v1163 = vcombine.high %v1141, %v1141
    %v1164 = vcombine.high %v1148, %v1148
    %v1165 = vcombine.high %v1155, %v1155
    %v1166 = vcombine.high %v1162, %v1162
    %v1167 = vcombine.high %v24, %v24
    %v1169 = vunpack.c.l.s4 1966171168
    %v1170 = vunpack.c.0.s8 %v1169
    %v1171 = vlaneseq
    %v1172 = vshrl.u32 %v1171, 7
    %v1173 = vsub.s32 %v1170, %v1172
    %v1174 = vrot.slane %v24, %v1173
    %v1176 = vunpack.c.l.s4 1966171168
    %v1177 = vunpack.c.0.s8 %v1176
    %v1178 = vlaneseq
    %v1179 = vshrl.u32 %v1178, 7
    %v1180 = vsub.s32 %v1177, %v1179
    %v1181 = vrot.slane %v1167, %v1180
    %v1182 = vcombine.high %v1174, %v1174
    %v1183 = vcombine.high %v1181, %v1181
    %v1185 = vunpack.c.l.s4 1966171168
    %v1186 = vunpack.c.0.s8 %v1185
    %v1187 = vlaneseq
    %v1188 = vshrl.u32 %v1187, 7
    %v1189 = vsub.s32 %v1186, %v1188
    %v1190 = vrot.slane %v1174, %v1189
    %v1192 = vunpack.c.l.s4 1966171168
    %v1193 = vunpack.c.0.s8 %v1192
    %v1194 = vlaneseq
    %v1195 = vshrl.u32 %v1194, 7
    %v1196 = vsub.s32 %v1193, %v1195
    %v1197 = vrot.slane %v1181, %v1196
    %v1199 = vunpack.c.l.s4 1966171168
    %v1200 = vunpack.c.0.s8 %v1199
    %v1201 = vlaneseq
    %v1202 = vshrl.u32 %v1201, 7
    %v1203 = vsub.s32 %v1200, %v1202
    %v1204 = vrot.slane %v1182, %v1203
    %v1206 = vunpack.c.l.s4 1966171168
    %v1207 = vunpack.c.0.s8 %v1206
    %v1208 = vlaneseq
    %v1209 = vshrl.u32 %v1208, 7
    %v1210 = vsub.s32 %v1207, %v1209
    %v1211 = vrot.slane %v1183, %v1210
    %v1212 = vcombine.high %v1190, %v1190
    %v1213 = vcombine.high %v1197, %v1197
    %v1214 = vcombine.high %v1204, %v1204
    %v1215 = vcombine.high %v1211, %v1211
    %v1216 = vcombine.high %v25, %v25
    %v1218 = vunpack.c.l.s4 1966171168
    %v1219 = vunpack.c.0.s8 %v1218
    %v1220 = vlaneseq
    %v1221 = vshrl.u32 %v1220, 7
    %v1222 = vsub.s32 %v1219, %v1221
    %v1223 = vrot.slane %v25, %v1222
    %v1225 = vunpack.c.l.s4 1966171168
    %v1226 = vunpack.c.0.s8 %v1225
    %v1227 = vlaneseq
    %v1228 = vshrl.u32 %v1227, 7
    %v1229 = vsub.s32 %v1226, %v1228
    %v1230 = vrot.slane %v1216, %v1229
    %v1231 = vcombine.high %v1223, %v1223
    %v1232 = vcombine.high %v1230, %v1230
    %v1234 = vunpack.c.l.s4 1966171168
    %v1235 = vunpack.c.0.s8 %v1234
    %v1236 = vlaneseq
    %v1237 = vshrl.u32 %v1236, 7
    %v1238 = vsub.s32 %v1235, %v1237
    %v1239 = vrot.slane %v1223, %v1238
    %v1241 = vunpack.c.l.s4 1966171168
    %v1242 = vunpack.c.0.s8 %v1241
    %v1243 = vlaneseq
    %v1244 = vshrl.u32 %v1243, 7
    %v1245 = vsub.s32 %v1242, %v1244
    %v1246 = vrot.slane %v1230, %v1245
    %v1248 = vunpack.c.l.s4 1966171168
    %v1249 = vunpack.c.0.s8 %v1248
    %v1250 = vlaneseq
    %v1251 = vshrl.u32 %v1250, 7
    %v1252 = vsub.s32 %v1249, %v1251
    %v1253 = vrot.slane %v1231, %v1252
    %v1255 = vunpack.c.l.s4 1966171168
    %v1256 = vunpack.c.0.s8 %v1255
    %v1257 = vlaneseq
    %v1258 = vshrl.u32 %v1257, 7
    %v1259 = vsub.s32 %v1256, %v1258
    %v1260 = vrot.slane %v1232, %v1259
    %v1261 = vcombine.high %v1239, %v1239
    %v1262 = vcombine.high %v1246, %v1246
    %v1263 = vcombine.high %v1253, %v1253
    %v1264 = vcombine.high %v1260, %v1260
    %v1265 = vcombine.high %v26, %v26
    %v1267 = vunpack.c.l.s4 1966171168
    %v1268 = vunpack.c.0.s8 %v1267
    %v1269 = vlaneseq
    %v1270 = vshrl.u32 %v1269, 7
    %v1271 = vsub.s32 %v1268, %v1270
    %v1272 = vrot.slane %v26, %v1271
    %v1274 = vunpack.c.l.s4 1966171168
    %v1275 = vunpack.c.0.s8 %v1274
    %v1276 = vlaneseq
    %v1277 = vshrl.u32 %v1276, 7
    %v1278 = vsub.s32 %v1275, %v1277
    %v1279 = vrot.slane %v1265, %v1278
    %v1280 = vcombine.high %v1272, %v1272
    %v1281 = vcombine.high %v1279, %v1279
    %v1283 = vunpack.c.l.s4 1966171168
    %v1284 = vunpack.c.0.s8 %v1283
    %v1285 = vlaneseq
    %v1286 = vshrl.u32 %v1285, 7
    %v1287 = vsub.s32 %v1284, %v1286
    %v1288 = vrot.slane %v1272, %v1287
    %v1290 = vunpack.c.l.s4 1966171168
    %v1291 = vunpack.c.0.s8 %v1290
    %v1292 = vlaneseq
    %v1293 = vshrl.u32 %v1292, 7
    %v1294 = vsub.s32 %v1291, %v1293
    %v1295 = vrot.slane %v1279, %v1294
    %v1297 = vunpack.c.l.s4 1966171168
    %v1298 = vunpack.c.0.s8 %v1297
    %v1299 = vlaneseq
    %v1300 = vshrl.u32 %v1299, 7
    %v1301 = vsub.s32 %v1298, %v1300
    %v1302 = vrot.slane %v1280, %v1301
    %v1304 = vunpack.c.l.s4 1966171168
    %v1305 = vunpack.c.0.s8 %v1304
    %v1306 = vlaneseq
    %v1307 = vshrl.u32 %v1306, 7
    %v1308 = vsub.s32 %v1305, %v1307
    %v1309 = vrot.slane %v1281, %v1308
    %v1310 = vcombine.high %v1288, %v1288
    %v1311 = vcombine.high %v1295, %v1295
    %v1312 = vcombine.high %v1302, %v1302
    %v1313 = vcombine.high %v1309, %v1309
    %v1314 = vcombine.high %v27, %v27
    %v1316 = vunpack.c.l.s4 1966171168
    %v1317 = vunpack.c.0.s8 %v1316
    %v1318 = vlaneseq
    %v1319 = vshrl.u32 %v1318, 7
    %v1320 = vsub.s32 %v1317, %v1319
    %v1321 = vrot.slane %v27, %v1320
    %v1323 = vunpack.c.l.s4 1966171168
    %v1324 = vunpack.c.0.s8 %v1323
    %v1325 = vlaneseq
    %v1326 = vshrl.u32 %v1325, 7
    %v1327 = vsub.s32 %v1324, %v1326
    %v1328 = vrot.slane %v1314, %v1327
    %v1329 = vcombine.high %v1321, %v1321
    %v1330 = vcombine.high %v1328, %v1328
    %v1332 = vunpack.c.l.s4 1966171168
    %v1333 = vunpack.c.0.s8 %v1332
    %v1334 = vlaneseq
    %v1335 = vshrl.u32 %v1334, 7
    %v1336 = vsub.s32 %v1333, %v1335
    %v1337 = vrot.slane %v1321, %v1336
    %v1339 = vunpack.c.l.s4 1966171168
    %v1340 = vunpack.c.0.s8 %v1339
    %v1341 = vlaneseq
    %v1342 = vshrl.u32 %v1341, 7
    %v1343 = vsub.s32 %v1340, %v1342
    %v1344 = vrot.slane %v1328, %v1343
    %v1346 = vunpack.c.l.s4 1966171168
    %v1347 = vunpack.c.0.s8 %v1346
    %v1348 = vlaneseq
    %v1349 = vshrl.u32 %v1348, 7
    %v1350 = vsub.s32 %v1347, %v1349
    %v1351 = vrot.slane %v1329, %v1350
    %v1353 = vunpack.c.l.s4 1966171168
    %v1354 = vunpack.c.0.s8 %v1353
    %v1355 = vlaneseq
    %v1356 = vshrl.u32 %v1355, 7
    %v1357 = vsub.s32 %v1354, %v1356
    %v1358 = vrot.slane %v1330, %v1357
    %v1359 = vcombine.high %v1337, %v1337
    %v1360 = vcombine.high %v1344, %v1344
    %v1361 = vcombine.high %v1351, %v1351
    %v1362 = vcombine.high %v1358, %v1358
    %v1363 = vcombine.high %v28, %v28
    %v1365 = vunpack.c.l.s4 1966171168
    %v1366 = vunpack.c.0.s8 %v1365
    %v1367 = vlaneseq
    %v1368 = vshrl.u32 %v1367, 7
    %v1369 = vsub.s32 %v1366, %v1368
    %v1370 = vrot.slane %v28, %v1369
    %v1372 = vunpack.c.l.s4 1966171168
    %v1373 = vunpack.c.0.s8 %v1372
    %v1374 = vlaneseq
    %v1375 = vshrl.u32 %v1374, 7
    %v1376 = vsub.s32 %v1373, %v1375
    %v1377 = vrot.slane %v1363, %v1376
    %v1378 = vcombine.high %v1370, %v1370
    %v1379 = vcombine.high %v1377, %v1377
    %v1381 = vunpack.c.l.s4 1966171168
    %v1382 = vunpack.c.0.s8 %v1381
    %v1383 = vlaneseq
    %v1384 = vshrl.u32 %v1383, 7
    %v1385 = vsub.s32 %v1382, %v1384
    %v1386 = vrot.slane %v1370, %v1385
    %v1388 = vunpack.c.l.s4 1966171168
    %v1389 = vunpack.c.0.s8 %v1388
    %v1390 = vlaneseq
    %v1391 = vshrl.u32 %v1390, 7
    %v1392 = vsub.s32 %v1389, %v1391
    %v1393 = vrot.slane %v1377, %v1392
    %v1395 = vunpack.c.l.s4 1966171168
    %v1396 = vunpack.c.0.s8 %v1395
    %v1397 = vlaneseq
    %v1398 = vshrl.u32 %v1397, 7
    %v1399 = vsub.s32 %v1396, %v1398
    %v1400 = vrot.slane %v1378, %v1399
    %v1402 = vunpack.c.l.s4 1966171168
    %v1403 = vunpack.c.0.s8 %v1402
    %v1404 = vlaneseq
    %v1405 = vshrl.u32 %v1404, 7
    %v1406 = vsub.s32 %v1403, %v1405
    %v1407 = vrot.slane %v1379, %v1406
    %v1408 = vcombine.high %v1386, %v1386
    %v1409 = vcombine.high %v1393, %v1393
    %v1410 = vcombine.high %v1400, %v1400
    %v1411 = vcombine.high %v1407, %v1407
    %v1412 = vcombine.high %v29, %v29
    %v1414 = vunpack.c.l.s4 1966171168
    %v1415 = vunpack.c.0.s8 %v1414
    %v1416 = vlaneseq
    %v1417 = vshrl.u32 %v1416, 7
    %v1418 = vsub.s32 %v1415, %v1417
    %v1419 = vrot.slane %v29, %v1418
    %v1421 = vunpack.c.l.s4 1966171168
    %v1422 = vunpack.c.0.s8 %v1421
    %v1423 = vlaneseq
    %v1424 = vshrl.u32 %v1423, 7
    %v1425 = vsub.s32 %v1422, %v1424
    %v1426 = vrot.slane %v1412, %v1425
    %v1427 = vcombine.high %v1419, %v1419
    %v1428 = vcombine.high %v1426, %v1426
    %v1430 = vunpack.c.l.s4 1966171168
    %v1431 = vunpack.c.0.s8 %v1430
    %v1432 = vlaneseq
    %v1433 = vshrl.u32 %v1432, 7
    %v1434 = vsub.s32 %v1431, %v1433
    %v1435 = vrot.slane %v1419, %v1434
    %v1437 = vunpack.c.l.s4 1966171168
    %v1438 = vunpack.c.0.s8 %v1437
    %v1439 = vlaneseq
    %v1440 = vshrl.u32 %v1439, 7
    %v1441 = vsub.s32 %v1438, %v1440
    %v1442 = vrot.slane %v1426, %v1441
    %v1444 = vunpack.c.l.s4 1966171168
    %v1445 = vunpack.c.0.s8 %v1444
    %v1446 = vlaneseq
    %v1447 = vshrl.u32 %v1446, 7
    %v1448 = vsub.s32 %v1445, %v1447
    %v1449 = vrot.slane %v1427, %v1448
    %v1451 = vunpack.c.l.s4 1966171168
    %v1452 = vunpack.c.0.s8 %v1451
    %v1453 = vlaneseq
    %v1454 = vshrl.u32 %v1453, 7
    %v1455 = vsub.s32 %v1452, %v1454
    %v1456 = vrot.slane %v1428, %v1455
    %v1457 = vcombine.high %v1435, %v1435
    %v1458 = vcombine.high %v1442, %v1442
    %v1459 = vcombine.high %v1449, %v1449
    %v1460 = vcombine.high %v1456, %v1456
    %v2549 = vunpack.c.l.b16 %v30
    %v2550 = vunpack.c.l.b16 %v31
    %v2551 = vunpack.c.l.b16 %v32
    %v2552 = vunpack.c.l.b16 %v33
    %v2553 = vunpack.c.l.b16 %v34
    %v2554 = vunpack.c.l.b16 %v35
    %v2555 = vunpack.c.l.b16 %v36
    %v2556 = vunpack.c.l.b16 %v37
    %v2557 = vunpack.c.l.b16 %v38
    %v2558 = vunpack.c.l.b16 %v39
    %v2559 = vunpack.c.l.b16 %v40
    %v2560 = vunpack.c.l.b16 %v41
    %v2561 = vunpack.c.l.b16 %v42
    %v2562 = vunpack.c.l.b16 %v43
    %v2563 = vunpack.c.l.b16 %v44
    %v2564 = vunpack.c.l.b16 %v45
    %v2565 = vunpack.c.l.b16 %v46
    %v2566 = vunpack.c.l.b16 %v47
    %v2567 = vunpack.c.l.b16 %v48
    %v2568 = vunpack.c.l.b16 %v49
    %v2569 = vunpack.c.l.b16 %v50
    %v2570 = vunpack.c.l.b16 %v51
    %v2571 = vunpack.c.l.b16 %v52
    %v2572 = vunpack.c.l.b16 %v53
    %v2573 = vunpack.c.l.b16 %v54
    %v2574 = vunpack.c.l.b16 %v55
    %v2575 = vunpack.c.l.b16 %v56
    %v2576 = vunpack.c.l.b16 %v57
    %v2577 = vunpack.c.l.b16 %v58
    %v2578 = vunpack.c.l.b16 %v59
    %v2579 = vunpack.c.l.b16 %v60
    %v2580 = vunpack.c.l.b16 %v61
    %v2581 = vunpack.c.l.b16 %v62
    %v2582 = vunpack.c.l.b16 %v63
    %v2583 = vunpack.c.l.b16 %v64
    %v2584 = vunpack.c.l.b16 %v65
    %v2585 = vunpack.c.l.b16 %v66
    %v2586 = vunpack.c.l.b16 %v67
    %v2587 = vunpack.c.l.b16 %v68
    %v2588 = vunpack.c.l.b16 %v69
    %v2589 = vunpack.c.l.b16 %v70
    %v2590 = vunpack.c.l.b16 %v71
    %v2591 = vunpack.c.l.b16 %v72
    %v2592 = vunpack.c.l.b16 %v73
    %v2593 = vunpack.c.l.b16 %v74
    %v2594 = vunpack.c.l.b16 %v75
    %v2595 = vunpack.c.l.b16 %v76
    %v2596 = vunpack.c.l.b16 %v77
    %v2597 = vunpack.c.l.b16 %v78
    %v2598 = vunpack.c.l.b16 %v79
    %v2599 = vunpack.c.l.b16 %v80
    %v2600 = vunpack.c.l.b16 %v81
    %v2601 = vunpack.c.l.b16 %v82
    %v2602 = vunpack.c.l.b16 %v83
    %v2603 = vunpack.c.l.b16 %v84
    %v2604 = vunpack.c.l.b16 %v85
    %v2605 = vunpack.c.l.b16 %v86
    %v2606 = vunpack.c.l.b16 %v87
    %v2607 = vunpack.c.l.b16 %v88
    %v2608 = vunpack.c.l.b16 %v89
    %v2609 = vunpack.c.l.b16 %v90
    %v2610 = vunpack.c.l.b16 %v91
    %v2611 = vunpack.c.l.b16 %v92
    %v2612 = vunpack.c.l.b16 %v93
    %v2613 = vunpack.c.l.b16 %v94
    %v2614 = vunpack.c.l.b16 %v95
    %v2615 = vunpack.c.l.b16 %v96
    %v2616 = vunpack.c.l.b16 %v97
    %v2617 = vunpack.c.l.b16 %v98
    %v2618 = vunpack.c.l.b16 %v99
    %v2619 = vunpack.c.l.b16 %v100
    %v2620 = vunpack.c.l.b16 %v101
    %v2621 = vunpack.c.l.b16 %v102
    %v2622 = vunpack.c.l.b16 %v103
    %v2623 = vunpack.c.l.b16 %v104
    %v2624 = vunpack.c.l.b16 %v105
    %v2625 = vunpack.c.l.b16 %v106
    %v2626 = vunpack.c.l.b16 %v107
    %v2627 = vunpack.c.l.b16 %v108
    %v2628 = vunpack.c.l.b16 %v109
    %v2629 = vunpack.c.l.b16 %v110
    %v2630 = vunpack.c.l.b16 %v111
    %v2631 = vunpack.c.l.b16 %v112
    %v2632 = vunpack.c.l.b16 %v113
    %v2633 = vunpack.c.l.b16 %v114
    %v2634 = vunpack.c.l.b16 %v115
    %v2635 = vunpack.c.l.b16 %v116
    %v2636 = vunpack.c.l.b16 %v117
    %v2637 = vunpack.c.l.b16 %v118
    %v2638 = vunpack.c.l.b16 %v119
    %v2639 = vunpack.c.l.b16 %v120
    %v2640 = vunpack.c.l.b16 %v121
    %v2641 = vunpack.c.l.b16 %v122
    %v2642 = vunpack.c.l.b16 %v123
    %v2643 = vunpack.c.l.b16 %v124
    %v2644 = vunpack.c.l.b16 %v125
    %v2645 = vunpack.c.l.b16 %v126
    %v2646 = vunpack.c.l.b16 %v127
    %v2647 = vunpack.c.l.b16 %v128
    %v2648 = vunpack.c.l.b16 %v129
    %v2649 = vunpack.c.l.b16 %v130
    %v2650 = vunpack.c.l.b16 %v131
    %v2651 = vunpack.c.l.b16 %v132
    %v2652 = vunpack.c.l.b16 %v133
    %v2653 = vunpack.c.l.b16 %v134
    %v2654 = vunpack.c.l.b16 %v135
    %v2655 = vunpack.c.l.b16 %v136
    %v2656 = vunpack.c.l.b16 %v137
    %v2657 = vunpack.c.l.b16 %v138
    %v2658 = vunpack.c.l.b16 %v139
    %v2659 = vunpack.c.l.b16 %v140
    %v2660 = vunpack.c.l.b16 %v141
    %v2661 = vunpack.c.l.b16 %v142
    %v2662 = vunpack.c.l.b16 %v143
    %v2663 = vunpack.c.l.b16 %v144
    %v2664 = vunpack.c.l.b16 %v145
    %v2665 = vunpack.c.l.b16 %v146
    %v2666 = vunpack.c.l.b16 %v147
    %v2667 = vunpack.c.l.b16 %v148
    %v2668 = vunpack.c.l.b16 %v149
    %v2669 = vunpack.c.l.b16 %v150
    %v2670 = vunpack.c.l.b16 %v151
    %v2671 = vunpack.c.l.b16 %v152
    %v2672 = vunpack.c.l.b16 %v153
    %v2673 = vunpack.c.l.b16 %v154
    %v2674 = vunpack.c.l.b16 %v155
    %v2675 = vunpack.c.l.b16 %v156
    %v2676 = vunpack.c.l.b16 %v157
    %v2677 = vunpack.c.l.b16 %v158
    %v2678 = vunpack.c.l.b16 %v159
    %v2679 = vunpack.c.l.b16 %v160
    %v2680 = vunpack.c.l.b16 %v161
    %v2681 = vunpack.c.l.b16 %v162
    %v2682 = vunpack.c.l.b16 %v163
    %v2683 = vunpack.c.l.b16 %v164
    %v2684 = vunpack.c.l.b16 %v165
    %v2685 = vunpack.c.l.b16 %v166
    %v2686 = vunpack.c.l.b16 %v167
    %v2687 = vunpack.c.l.b16 %v168
    %v2688 = vunpack.c.l.b16 %v169
    %v2689 = vunpack.c.l.b16 %v170
    %v2690 = vunpack.c.l.b16 %v171
    %v2691 = vunpack.c.l.b16 %v172
    %v2692 = vunpack.c.l.b16 %v173
    %v2693 = vunpack.c.l.b16 %v174
    %v2694 = vunpack.c.l.b16 %v175
    %v2695 = vunpack.c.l.b16 %v176
    %v2696 = vunpack.c.l.b16 %v177
    %v2697 = vunpack.c.l.b16 %v178
    %v2698 = vunpack.c.l.b16 %v179
    %v2699 = vunpack.c.l.b16 %v180
    %v2700 = vunpack.c.l.b16 %v181
    %v2701 = vunpack.c.l.b16 %v182
    %v2702 = vunpack.c.l.b16 %v183
    %v2703 = vunpack.c.l.b16 %v184
    %v2704 = vunpack.c.l.b16 %v185
    %v2705 = vunpack.c.l.b16 %v186
    %v2706 = vunpack.c.l.b16 %v187
    %v2707 = vunpack.c.l.b16 %v188
    %v2708 = vunpack.c.l.b16 %v189
    %v2709 = vunpack.c.l.b16 %v190
    %v2710 = vunpack.c.l.b16 %v191
    %v2711 = vunpack.c.l.b16 %v192
    %v2712 = vunpack.c.l.b16 %v193
    %v2713 = vunpack.c.l.b16 %v194
    %v2714 = vunpack.c.l.b16 %v195
    %v2715 = vunpack.c.l.b16 %v196
    %v2716 = vunpack.c.l.b16 %v197
    %v2717 = vunpack.c.l.b16 %v198
    %v2718 = vunpack.c.l.b16 %v199
    %v2719 = vunpack.c.l.b16 %v200
    %v2720 = vunpack.c.l.b16 %v201
    %v2721 = vunpack.c.l.b16 %v202
    %v2722 = vunpack.c.l.b16 %v203
    %v2723 = vunpack.c.l.b16 %v204
    %v2724 = vunpack.c.l.b16 %v205
    %v2725 = vunpack.c.l.b16 %v206
    %v2726 = vunpack.c.l.b16 %v207
    %v2727 = vunpack.c.l.b16 %v208
    %v2728 = vunpack.c.l.b16 %v209
    %v2729 = vunpack.c.l.b16 %v210
    %v2730 = vunpack.c.l.b16 %v211
    %v2731 = vunpack.c.l.b16 %v212
    %v2732 = vunpack.c.l.b16 %v213
    %v2733 = vunpack.c.l.b16 %v214
    %v2734 = vunpack.c.l.b16 %v215
    %v2735 = vunpack.c.l.b16 %v216
    %v2736 = vunpack.c.l.b16 %v217
    %v2737 = vunpack.c.l.b16 %v218
    %v2738 = vunpack.c.l.b16 %v219
    %v2739 = vunpack.c.l.b16 %v220
    %v2740 = vunpack.c.l.b16 %v221
    %v2741 = vunpack.c.l.b16 %v222
    %v2742 = vunpack.c.l.b16 %v223
    %v2743 = vunpack.c.l.b16 %v224
    %v2744 = vunpack.c.l.b16 %v225
    %v2745 = vunpack.c.l.b16 %v226
    %v2746 = vunpack.c.l.b16 %v227
    %v2747 = vunpack.c.l.b16 %v228
    %v2748 = vunpack.c.l.b16 %v229
    %v2749 = vunpack.c.l.b16 %v230
    %v2750 = vunpack.c.l.b16 %v231
    %v2751 = vunpack.c.l.b16 %v232
    %v2752 = vunpack.c.l.b16 %v233
    %v2753 = vunpack.c.l.b16 %v234
    %v2754 = vunpack.c.l.b16 %v235
    %v2755 = vunpack.c.l.b16 %v236
    %v2756 = vunpack.c.l.b16 %v237
    %v2757 = vunpack.c.l.b16 %v238
    %v2758 = vunpack.c.l.b16 %v239
    %v2759 = vunpack.c.l.b16 %v240
    %v2760 = vunpack.c.l.b16 %v241
    %v2761 = vunpack.c.l.b16 %v242
    %v2762 = vunpack.c.l.b16 %v243
    %v2763 = vunpack.c.l.b16 %v244
    %v2764 = vunpack.c.l.b16 %v245
    %v2765 = vunpack.c.l.b16 %v246
    %v2766 = vunpack.c.l.b16 %v247
    %v2767 = vunpack.c.l.b16 %v248
    %v2768 = vunpack.c.l.b16 %v249
    %v2769 = vunpack.c.l.b16 %v250
    %v2770 = vunpack.c.l.b16 %v251
    %v2771 = vunpack.c.l.b16 %v252
    %v2772 = vunpack.c.l.b16 %v253
    %v2773 = vunpack.c.l.b16 %v254
    %v2774 = vunpack.c.l.b16 %v255
    %v2775 = vunpack.c.l.b16 %v256
    %v2776 = vunpack.c.l.b16 %v257
    %v2777 = vunpack.c.l.b16 %v258
    %v2778 = vunpack.c.l.b16 %v259
    %v2779 = vunpack.c.l.b16 %v260
    %v2780 = vunpack.c.l.b16 %v261
    %v2781 = vunpack.c.l.b16 %v262
    %v2782 = vunpack.c.l.b16 %v263
    %v2783 = vunpack.c.l.b16 %v264
    %v2784 = vunpack.c.l.b16 %v265
    %v2785 = vunpack.c.l.b16 %v266
    %v2786 = vunpack.c.l.b16 %v267
    %v2787 = vunpack.c.l.b16 %v268
    %v2788 = vunpack.c.l.b16 %v269
    %v2789 = vunpack.c.l.b16 %v270
    %v2790 = vunpack.c.l.b16 %v271
    %v2791 = vunpack.c.l.b16 %v272
    %v2792 = vunpack.c.l.b16 %v273
    %v2793 = vunpack.c.l.b16 %v274
    %v2794 = vunpack.c.l.b16 %v275
    %v2795 = vunpack.c.l.b16 %v276
    %v2796 = vunpack.c.l.b16 %v277
    %v2797 = vunpack.c.l.b16 %v278
    %v2798 = vunpack.c.l.b16 %v279
    %v2799 = vunpack.c.l.b16 %v280
    %v2800 = vunpack.c.l.b16 %v281
    %v2801 = vunpack.c.l.b16 %v282
    %v2802 = vunpack.c.l.b16 %v283
    %v2803 = vunpack.c.l.b16 %v284
    %v2804 = vunpack.c.l.b16 %v285
    %v2805 = vunpack.c.l.b16 %v286
    %v2806 = vunpack.c.l.b16 %v287
    %v2807 = vunpack.c.l.b16 %v288
    %v2808 = vunpack.c.l.b16 %v289
    %v2809 = vunpack.c.l.b16 %v290
    %v2810 = vunpack.c.l.b16 %v291
    %v2811 = vunpack.c.l.b16 %v292
    %v2812 = vunpack.c.l.b16 %v293
    %v2813 = vunpack.c.l.b16 %v294
    %v2814 = vunpack.c.l.b16 %v295
    %v2815 = vunpack.c.l.b16 %v296
    %v2816 = vunpack.c.l.b16 %v297
    %v2817 = vunpack.c.l.b16 %v298
    %v2818 = vunpack.c.l.b16 %v299
    %v2819 = vunpack.c.l.b16 %v300
    %v2820 = vunpack.c.l.b16 %v301
    %v2821 = vunpack.c.l.b16 %v302
    %v2822 = vunpack.c.l.b16 %v303
    %v2823 = vunpack.c.l.b16 %v304
    %v2824 = vunpack.c.l.b16 %v305
    %v2825 = vunpack.c.l.b16 %v306
    %v2826 = vunpack.c.l.b16 %v307
    %v2827 = vunpack.c.l.b16 %v308
    %v2828 = vunpack.c.l.b16 %v309
    %v2829 = vunpack.c.l.b16 %v310
    %v2830 = vunpack.c.l.b16 %v311
    %v2831 = vunpack.c.l.b16 %v312
    %v2832 = vunpack.c.l.b16 %v313
    %v2833 = vunpack.c.l.b16 %v314
    %v2834 = vunpack.c.l.b16 %v315
    %v2835 = vunpack.c.l.b16 %v316
    %v2836 = vunpack.c.l.b16 %v317
    %v2837 = vunpack.c.l.b16 %v318
    %v2838 = vunpack.c.l.b16 %v319
    %v2839 = vunpack.c.l.b16 %v320
    %v2840 = vunpack.c.l.b16 %v321
    %v2841 = vunpack.c.l.b16 %v322
    %v2842 = vunpack.c.l.b16 %v323
    %v2843 = vunpack.c.l.b16 %v324
    %v2844 = vunpack.c.l.b16 %v325
    %v2845 = vunpack.c.l.b16 %v326
    %v2846 = vunpack.c.l.b16 %v327
    %v2847 = vunpack.c.l.b16 %v328
    %v2848 = vunpack.c.l.b16 %v329
    %v2849 = vunpack.c.l.b16 %v330
    %v2850 = vunpack.c.l.b16 %v331
    %v2851 = vunpack.c.l.b16 %v332
    %v2852 = vunpack.c.l.b16 %v333
    %v2853 = vunpack.c.l.b16 %v334
    %v2854 = vunpack.c.l.b16 %v335
    %v2855 = vunpack.c.l.b16 %v336
    %v2856 = vunpack.c.l.b16 %v337
    %v2857 = vunpack.c.l.b16 %v338
    %v2858 = vunpack.c.l.b16 %v339
    %v2859 = vunpack.c.l.b16 %v340
    %v2860 = vunpack.c.l.b16 %v341
    %v2861 = vunpack.c.l.b16 %v342
    %v2862 = vunpack.c.l.b16 %v343
    %v2863 = vunpack.c.l.b16 %v344
    %v2864 = vunpack.c.l.b16 %v345
    %v2865 = vunpack.c.l.b16 %v346
    %v2866 = vunpack.c.l.b16 %v347
    %v2867 = vunpack.c.l.b16 %v348
    %v2868 = vunpack.c.l.b16 %v349
    %v2869 = vunpack.c.l.b16 %v350
    %v2870 = vunpack.c.l.b16 %v351
    %v2871 = vunpack.c.l.b16 %v352
    %v2872 = vunpack.c.l.b16 %v353
    %v2873 = vunpack.c.l.b16 %v354
    %v2874 = vunpack.c.l.b16 %v355
    %v2875 = vunpack.c.l.b16 %v356
    %v2876 = vunpack.c.l.b16 %v357
    %v2877 = vunpack.c.l.b16 %v358
    %v2878 = vunpack.c.l.b16 %v359
    %v2879 = vunpack.c.l.b16 %v360
    %v2880 = vunpack.c.l.b16 %v361
    %v2881 = vunpack.c.l.b16 %v362
    %v2882 = vunpack.c.l.b16 %v363
    %v2883 = vunpack.c.l.b16 %v364
    %v2884 = vunpack.c.l.b16 %v365
    %v2885 = vunpack.c.l.b16 %v366
    %v2886 = vunpack.c.l.b16 %v367
    %v2887 = vunpack.c.l.b16 %v368
    %v2888 = vunpack.c.l.b16 %v369
    %v2889 = vunpack.c.l.b16 %v370
    %v2890 = vunpack.c.l.b16 %v371
    %v2891 = vunpack.c.l.b16 %v372
    %v2892 = vunpack.c.l.b16 %v373
    %v2893 = vunpack.c.l.b16 %v374
    %v2894 = vunpack.c.l.b16 %v375
    %v2895 = vunpack.c.l.b16 %v376
    %v2896 = vunpack.c.l.b16 %v377
    %v2897 = vunpack.c.l.b16 %v378
    %v2898 = vunpack.c.l.b16 %v379
    %v2899 = vunpack.c.l.b16 %v380
    %v2900 = vunpack.c.l.b16 %v381
    %v2901 = vunpack.c.l.b16 %v382
    %v2902 = vunpack.c.l.b16 %v383
    %v2903 = vunpack.c.l.b16 %v384
    %v2904 = vunpack.c.l.b16 %v385
    %v2905 = vunpack.c.l.b16 %v386
    %v2906 = vunpack.c.l.b16 %v387
    %v2907 = vunpack.c.l.b16 %v388
    %v2908 = vunpack.c.l.b16 %v389
    %v2909 = vunpack.c.l.b16 %v390
    %v2910 = vunpack.c.l.b16 %v391
    %v2911 = vunpack.c.l.b16 %v392
    %v2912 = vunpack.c.l.b16 %v393
    %v2913 = vunpack.c.l.b16 %v394
    %v2914 = vunpack.c.l.b16 %v395
    %v2915 = vunpack.c.l.b16 %v396
    %v2916 = vunpack.c.l.b16 %v397
    %v2917 = vunpack.c.l.b16 %v398
    %v2918 = vunpack.c.l.b16 %v399
    %v2919 = vunpack.c.l.b16 %v400
    %v2920 = vunpack.c.l.b16 %v401
    %v2921 = vunpack.c.l.b16 %v402
    %v2922 = vunpack.c.l.b16 %v403
    %v2923 = vunpack.c.l.b16 %v404
    %v2924 = vunpack.c.l.b16 %v405
    %v2925 = vunpack.c.l.b16 %v406
    %v2926 = vunpack.c.l.b16 %v407
    %v2927 = vunpack.c.l.b16 %v408
    %v2928 = vunpack.c.l.b16 %v409
    %v2929 = vunpack.c.l.b16 %v410
    %v2930 = vunpack.c.l.b16 %v411
    %v2931 = vunpack.c.l.b16 %v412
    %v2932 = vunpack.c.l.b16 %v413
    %v2933 = vunpack.c.l.b16 %v414
    %v2934 = vunpack.c.l.b16 %v415
    %v2935 = vunpack.c.l.b16 %v416
    %v2936 = vunpack.c.l.b16 %v417
    %v2937 = vunpack.c.l.b16 %v418
    %v2938 = vunpack.c.l.b16 %v419
    %v2939 = vunpack.c.l.b16 %v420
    %v2940 = vunpack.c.l.b16 %v421
    %v2941 = vunpack.c.l.b16 %v422
    %v2942 = vunpack.c.l.b16 %v423
    %v2943 = vunpack.c.l.b16 %v424
    %v2944 = vunpack.c.l.b16 %v425
    %v2945 = vunpack.c.l.b16 %v426
    %v2946 = vunpack.c.l.b16 %v427
    %v2947 = vunpack.c.l.b16 %v428
    %v2948 = vunpack.c.l.b16 %v429
    %v2949 = vunpack.c.l.b16 %v430
    %v2950 = vunpack.c.l.b16 %v431
    %v2951 = vunpack.c.l.b16 %v432
    %v2952 = vunpack.c.l.b16 %v433
    %v2953 = vunpack.c.l.b16 %v434
    %v2954 = vunpack.c.l.b16 %v435
    %v2955 = vunpack.c.l.b16 %v436
    %v2956 = vunpack.c.l.b16 %v437
    %v2957 = vunpack.c.l.b16 %v438
    %v2958 = vunpack.c.l.b16 %v439
    %v2959 = vunpack.c.l.b16 %v440
    %v2960 = vunpack.c.l.b16 %v441
    %v2961 = vunpack.c.l.b16 %v442
    %v2962 = vunpack.c.l.b16 %v443
    %v2963 = vunpack.c.l.b16 %v444
    %v2964 = vunpack.c.l.b16 %v445
    %v2965 = vunpack.c.l.b16 %v446
    %v2966 = vunpack.c.l.b16 %v447
    %v2967 = vunpack.c.l.b16 %v448
    %v2968 = vunpack.c.l.b16 %v449
    %v2969 = vunpack.c.l.b16 %v450
    %v2970 = vunpack.c.l.b16 %v451
    %v2971 = vunpack.c.l.b16 %v452
    %v2972 = vunpack.c.l.b16 %v453
    %v2973 = vunpack.c.l.b16 %v454
    %v2974 = vunpack.c.l.b16 %v455
    %v2975 = vunpack.c.l.b16 %v456
    %v2976 = vunpack.c.l.b16 %v457
    %v2977 = vunpack.c.l.b16 %v458
    %v2978 = vunpack.c.l.b16 %v459
    %v2979 = vunpack.c.l.b16 %v460
    %v2980 = vunpack.c.l.b16 %v461
    %v2981 = vunpack.c.l.b16 %v462
    %v2982 = vunpack.c.l.b16 %v463
    %v2983 = vunpack.c.l.b16 %v464
    %v2984 = vunpack.c.l.b16 %v465
    %v2985 = vunpack.c.l.b16 %v466
    %v2986 = vunpack.c.l.b16 %v467
    %v2987 = vunpack.c.l.b16 %v468
    %v2988 = vunpack.c.l.b16 %v469
    %v2989 = vunpack.c.l.b16 %v470
    %v2990 = vunpack.c.l.b16 %v471
    %v2991 = vunpack.c.l.b16 %v472
    %v2992 = vunpack.c.l.b16 %v473
    %v2993 = vunpack.c.l.b16 %v474
    %v2994 = vunpack.c.l.b16 %v475
    %v2995 = vunpack.c.l.b16 %v476
    %v2996 = vunpack.c.l.b16 %v477
    %v2997 = vunpack.c.l.b16 %v478
    %v2998 = vunpack.c.l.b16 %v479
    %v2999 = vunpack.c.l.b16 %v480
    %v3000 = vunpack.c.l.b16 %v481
    %v3001 = vunpack.c.l.b16 %v482
    %v3002 = vunpack.c.l.b16 %v483
    %v3003 = vunpack.c.l.b16 %v484
    %v3004 = vunpack.c.l.b16 %v485
    %v3005 = vunpack.c.l.b16 %v486
    %v3006 = vunpack.c.l.b16 %v487
    %v3007 = vunpack.c.l.b16 %v488
    %v3008 = vunpack.c.l.b16 %v489
    %v3009 = vunpack.c.l.b16 %v490
    %v3010 = vunpack.c.l.b16 %v491
    %v3011 = vunpack.c.l.b16 %v492
    %v3012 = vunpack.c.l.b16 %v493
    %v3013 = vunpack.c.l.b16 %v494
    %v3014 = vunpack.c.l.b16 %v495
    %v3015 = vunpack.c.l.b16 %v496
    %v3016 = vunpack.c.l.b16 %v497
    %v3017 = vunpack.c.l.b16 %v498
    %v3018 = vunpack.c.l.b16 %v499
    %v3019 = vunpack.c.l.b16 %v500
    %v3020 = vunpack.c.l.b16 %v501
    %v3021 = vunpack.c.l.b16 %v502
    %v3022 = vunpack.c.l.b16 %v503
    %v3023 = vunpack.c.l.b16 %v504
    %v3024 = vunpack.c.l.b16 %v505
    %v3025 = vunpack.c.l.b16 %v506
    %v3026 = vunpack.c.l.b16 %v507
    %v3027 = vunpack.c.l.b16 %v508
    %v3028 = vunpack.c.l.b16 %v509
    %v3029 = vunpack.c.l.b16 %v510
    %v3030 = vunpack.c.l.b16 %v511
    %v3031 = vunpack.c.l.b16 %v512
    %v3032 = vunpack.c.l.b16 %v513
    %v3033 = vunpack.c.l.b16 %v514
    %v3034 = vunpack.c.l.b16 %v515
    %v3035 = vunpack.c.l.b16 %v516
    %v3036 = vunpack.c.l.b16 %v517
    %v3037 = vunpack.c.l.b16 %v518
    %v3038 = vunpack.c.l.b16 %v519
    %v3039 = vunpack.c.l.b16 %v520
    %v3040 = vunpack.c.l.b16 %v521
    %v3041 = vunpack.c.l.b16 %v522
    %v3042 = vunpack.c.l.b16 %v523
    %v3043 = vunpack.c.l.b16 %v524
    %v3044 = vunpack.c.l.b16 %v525
    %v3045 = vunpack.c.l.b16 %v526
    %v3046 = vunpack.c.l.b16 %v527
    %v3047 = vunpack.c.l.b16 %v528
    %v3048 = vunpack.c.l.b16 %v529
    %v3049 = vunpack.c.l.b16 %v530
    %v3050 = vunpack.c.l.b16 %v531
    %v3051 = vunpack.c.l.b16 %v532
    %v3052 = vunpack.c.l.b16 %v533
    %v3053 = vunpack.c.l.b16 %v534
    %v3054 = vunpack.c.l.b16 %v535
    %v3055 = vunpack.c.l.b16 %v536
    %v3056 = vunpack.c.l.b16 %v537
    %v3057 = vunpack.c.l.b16 %v538
    %v3058 = vunpack.c.l.b16 %v539
    %v3059 = vunpack.c.l.b16 %v540
    %v3060 = vunpack.c.l.b16 %v541
    %v3061 = vunpack.c.l.b16 %v542
    %v3062 = vunpack.c.l.b16 %v543
    %v3063 = vunpack.c.l.b16 %v544
    %v3064 = vunpack.c.l.b16 %v545
    %v3065 = vunpack.c.l.b16 %v546
    %v3066 = vunpack.c.l.b16 %v547
    %v3067 = vunpack.c.l.b16 %v548
    %v3068 = vunpack.c.l.b16 %v549
    %v3069 = vunpack.c.l.b16 %v550
    %v3070 = vunpack.c.l.b16 %v551
    %v3071 = vunpack.c.l.b16 %v552
    %v3072 = vunpack.c.l.b16 %v553
    %v3073 = vunpack.c.l.b16 %v554
    %v3074 = vunpack.c.l.b16 %v555
    %v3075 = vunpack.c.l.b16 %v556
    %v3076 = vunpack.c.l.b16 %v557
    %v3077 = vunpack.c.l.b16 %v558
    %v3078 = vunpack.c.l.b16 %v559
    %v3079 = vunpack.c.l.b16 %v560
    %v3080 = vunpack.c.l.b16 %v561
    %v3081 = vunpack.c.l.b16 %v562
    %v3082 = vunpack.c.l.b16 %v563
    %v3083 = vunpack.c.l.b16 %v564
    %v3084 = vunpack.c.l.b16 %v565
    %v3085 = vunpack.c.l.b16 %v566
    %v3086 = vunpack.c.l.b16 %v567
    %v3087 = vunpack.c.l.b16 %v568
    %v3088 = vunpack.c.l.b16 %v569
    %v3089 = vunpack.c.l.b16 %v570
    %v3090 = vunpack.c.l.b16 %v571
    %v3091 = vunpack.c.l.b16 %v572
    %v3092 = vunpack.c.l.b16 %v573
    %v3093 = vunpack.c.l.b16 %v574
    %v3094 = vunpack.c.l.b16 %v575
    %v3095 = vunpack.c.l.b16 %v576
    %v3096 = vunpack.c.l.b16 %v577
    %v3097 = vunpack.c.l.b16 %v578
    %v3098 = vunpack.c.l.b16 %v579
    %v3099 = vunpack.c.l.b16 %v580
    %v3100 = vunpack.c.l.b16 %v581
    %v3101 = vunpack.c.l.b16 %v582
    %v3102 = vunpack.c.l.b16 %v583
    %v3103 = vunpack.c.l.b16 %v584
    %v3104 = vunpack.c.l.b16 %v585
    %v3105 = vunpack.c.l.b16 %v586
    %v3106 = vunpack.c.l.b16 %v587
    %v3107 = vunpack.c.l.b16 %v588
    %v3108 = vunpack.c.l.b16 %v589
    %v3109 = vunpack.c.l.b16 %v590
    %v3110 = vunpack.c.l.b16 %v591
    %v3111 = vunpack.c.l.b16 %v592
    %v3112 = vunpack.c.l.b16 %v593
    %v3113 = vunpack.c.l.b16 %v594
    %v3114 = vunpack.c.l.b16 %v595
    %v3115 = vunpack.c.l.b16 %v596
    %v3116 = vunpack.c.l.b16 %v597
    %v3117 = vunpack.c.l.b16 %v598
    %v3118 = vunpack.c.l.b16 %v599
    %v3119 = vunpack.c.l.b16 %v600
    %v3120 = vunpack.c.l.b16 %v601
    %v3121 = vunpack.c.l.b16 %v602
    %v3122 = vunpack.c.l.b16 %v603
    %v3123 = vunpack.c.l.b16 %v604
    %v3124 = vunpack.c.l.b16 %v605
    %v3125 = vunpack.c.l.b16 %v606
    %v3126 = vunpack.c.l.b16 %v607
    %v3127 = vunpack.c.l.b16 %v608
    %v3128 = vunpack.c.l.b16 %v609
    %v3129 = vunpack.c.l.b16 %v610
    %v3130 = vunpack.c.l.b16 %v611
    %v3131 = vunpack.c.l.b16 %v612
    %v3132 = vunpack.c.l.b16 %v613
    %v3133 = vunpack.c.l.b16 %v614
    %v3134 = vunpack.c.l.b16 %v615
    %v3135 = vunpack.c.l.b16 %v616
    %v3136 = vunpack.c.l.b16 %v617
    %v3137 = vunpack.c.l.b16 %v618
    %v3138 = vunpack.c.l.b16 %v619
    %v3139 = vunpack.c.l.b16 %v620
    %v3140 = vunpack.c.l.b16 %v621
    %v3141 = vunpack.c.l.b16 %v622
    %v3142 = vunpack.c.l.b16 %v623
    %v3143 = vunpack.c.l.b16 %v624
    %v3144 = vunpack.c.l.b16 %v625
    %v3145 = vunpack.c.l.b16 %v626
    %v3146 = vunpack.c.l.b16 %v627
    %v3147 = vunpack.c.l.b16 %v628
    %v3148 = vunpack.c.l.b16 %v629
    %v3149 = vunpack.c.l.b16 %v630
    %v3150 = vunpack.c.l.b16 %v631
    %v3151 = vunpack.c.l.b16 %v632
    %v3152 = vunpack.c.l.b16 %v633
    %v3153 = vunpack.c.l.b16 %v634
    %v3154 = vunpack.c.l.b16 %v635
    %v3155 = vunpack.c.l.b16 %v636
    %v3156 = vunpack.c.l.b16 %v637
    %v3157 = vunpack.c.l.b16 %v638
    %v3158 = vunpack.c.l.b16 %v639
    %v3159 = vunpack.c.l.b16 %v640
    %v3160 = vunpack.c.l.b16 %v641
    %v3161 = vunpack.c.l.b16 %v642
    %v3162 = vunpack.c.l.b16 %v643
    %v3163 = vunpack.c.l.b16 %v644
    %v3164 = vunpack.c.l.b16 %v645
    %v3165 = vunpack.c.l.b16 %v646
    %v3166 = vunpack.c.l.b16 %v647
    %v3167 = vunpack.c.l.b16 %v648
    %v3168 = vunpack.c.l.b16 %v649
    %v3169 = vunpack.c.l.b16 %v650
    %v3170 = vunpack.c.l.b16 %v651
    %v3171 = vunpack.c.l.b16 %v652
    %v3172 = vunpack.c.l.b16 %v653
    %v3173 = vunpack.c.l.b16 %v654
    %v3174 = vunpack.c.l.b16 %v655
    %v3175 = vunpack.c.l.b16 %v656
    %v3176 = vunpack.c.l.b16 %v657
    %v3177 = vunpack.c.l.b16 %v658
    %v3178 = vunpack.c.l.b16 %v659
    %v3179 = vunpack.c.l.b16 %v660
    %v3180 = vunpack.c.l.b16 %v661
    %v3181 = vunpack.c.l.b16 %v662
    %v3182 = vunpack.c.l.b16 %v663
    %v3183 = vunpack.c.l.b16 %v664
    %v3184 = vunpack.c.l.b16 %v665
    %v3185 = vunpack.c.l.b16 %v666
    %v3186 = vunpack.c.l.b16 %v667
    %v3187 = vunpack.c.l.b16 %v668
    %v3188 = vunpack.c.l.b16 %v669
    %v3189 = vunpack.c.l.b16 %v670
    %v3190 = vunpack.c.l.b16 %v671
    %v3191 = vunpack.c.l.b16 %v672
    %v3192 = vunpack.c.l.b16 %v673
    %v3193 = vunpack.c.l.b16 %v674
    %v3194 = vunpack.c.l.b16 %v675
    %v3195 = vunpack.c.l.b16 %v676
    %v3196 = vunpack.c.l.b16 %v677
    %v3197 = vunpack.c.l.b16 %v678
    %v3198 = vunpack.c.l.b16 %v679
    %v3199 = vunpack.c.l.b16 %v680
    %v3200 = vunpack.c.l.b16 %v681
    %v3201 = vunpack.c.l.b16 %v682
    %v3202 = vunpack.c.l.b16 %v683
    %v3203 = vunpack.c.l.b16 %v684
    %v3204 = vunpack.c.l.b16 %v685
    %v3205 = vunpack.c.l.b16 %v686
    %v3206 = vunpack.c.l.b16 %v687
    %v3207 = vunpack.c.l.b16 %v688
    %v3208 = vunpack.c.l.b16 %v689
    %v3209 = vunpack.c.l.b16 %v690
    %v3210 = vunpack.c.l.b16 %v691
    %v3211 = vunpack.c.l.b16 %v692
    %v3212 = vunpack.c.l.b16 %v693
    %v3213 = vunpack.c.l.b16 %v694
    %v3214 = vunpack.c.l.b16 %v695
    %v3215 = vunpack.c.l.b16 %v696
    %v3216 = vunpack.c.l.b16 %v697
    %v3217 = vunpack.c.l.b16 %v698
    %v3218 = vunpack.c.l.b16 %v699
    %v3219 = vunpack.c.l.b16 %v700
    %v3220 = vunpack.c.l.b16 %v701
    %v3221 = vunpack.c.l.b16 %v702
    %v3222 = vunpack.c.l.b16 %v703
    %v3223 = vunpack.c.l.b16 %v704
    %v3224 = vunpack.c.l.b16 %v705
    %v3225 = vunpack.c.l.b16 %v706
    %v3226 = vunpack.c.l.b16 %v707
    %v3227 = vunpack.c.l.b16 %v708
    %v3228 = vunpack.c.l.b16 %v709
    %v3229 = vunpack.c.l.b16 %v710
    %v3230 = vunpack.c.l.b16 %v711
    %v3231 = vunpack.c.l.b16 %v712
    %v3232 = vunpack.c.l.b16 %v713
    %v3233 = vunpack.c.l.b16 %v714
    %v3234 = vunpack.c.l.b16 %v715
    %v3235 = vunpack.c.l.b16 %v716
    %v3236 = vunpack.c.l.b16 %v717
    %v3237 = vunpack.c.l.b16 %v718
    %v3238 = vunpack.c.l.b16 %v719
    %v3239 = vunpack.c.l.b16 %v720
    %v3240 = vunpack.c.l.b16 %v721
    %v3241 = vunpack.c.l.b16 %v722
    %v3242 = vunpack.c.l.b16 %v723
    %v3243 = vunpack.c.l.b16 %v724
    %v3244 = vunpack.c.l.b16 %v725
    %v3245 = vunpack.c.l.b16 %v726
    %v3246 = vunpack.c.l.b16 %v727
    %v3247 = vunpack.c.l.b16 %v728
    %v3248 = vunpack.c.l.b16 %v729
    %v3249 = vunpack.c.l.b16 %v730
    %v3250 = vunpack.c.l.b16 %v731
    %v3251 = vunpack.c.l.b16 %v732
    %v3252 = vunpack.c.l.b16 %v733
    %v3253 = vunpack.c.l.b16 %v734
    %v3254 = vunpack.c.l.b16 %v735
    %v3255 = vunpack.c.l.b16 %v736
    %v3256 = vunpack.c.l.b16 %v737
    %v3257 = vunpack.c.l.b16 %v738
    %v3258 = vunpack.c.l.b16 %v739
    %v3259 = vunpack.c.l.b16 %v740
    %v3260 = vunpack.c.l.b16 %v741
    %v3261 = vunpack.c.l.b16 %v742
    %v3262 = vunpack.c.l.b16 %v743
    %v3263 = vunpack.c.l.b16 %v744
    %v3264 = vunpack.c.l.b16 %v745
    %v3265 = vunpack.c.l.b16 %v746
    %v3266 = vunpack.c.l.b16 %v747
    %v3267 = vunpack.c.l.b16 %v748
    %v3268 = vunpack.c.l.b16 %v749
    %v3269 = vunpack.c.l.b16 %v750
    %v3270 = vunpack.c.l.b16 %v751
    %v3271 = vunpack.c.l.b16 %v752
    %v3272 = vunpack.c.l.b16 %v753
    %v3273 = vunpack.c.l.b16 %v754
    %v3274 = vunpack.c.l.b16 %v755
    %v3275 = vunpack.c.l.b16 %v756
    %v3276 = vunpack.c.l.b16 %v757
    %v3277 = vunpack.c.l.b16 %v758
    %v3278 = vunpack.c.l.b16 %v759
    %v3279 = vunpack.c.l.b16 %v760
    %v3280 = vunpack.c.l.b16 %v761
    %v3281 = vunpack.c.l.b16 %v762
    %v3282 = vunpack.c.l.b16 %v763
    %v3283 = vunpack.c.l.b16 %v764
    %v3284 = vunpack.c.l.b16 %v765
    %v3285 = vunpack.c.l.b16 %v766
    %v3286 = vunpack.c.l.b16 %v767
    %v3287 = vunpack.c.l.b16 %v768
    %v3288 = vunpack.c.l.b16 %v769
    %v3289 = vunpack.c.l.b16 %v770
    %v3290 = vunpack.c.l.b16 %v771
    %v3291 = vunpack.c.l.b16 %v772
    %v3292 = vunpack.c.l.b16 %v773
    %v3293 = vunpack.c.l.b16 %v774
    %v3294 = vunpack.c.l.b16 %v775
    %v3295 = vunpack.c.l.b16 %v776
    %v3296 = vunpack.c.l.b16 %v777
    %v3297 = vunpack.c.l.b16 %v778
    %v3298 = vunpack.c.l.b16 %v779
    %v3299 = vunpack.c.l.b16 %v780
    %v3300 = vunpack.c.l.b16 %v781
    %v3301 = vunpack.c.l.b16 %v782
    %v3302 = vunpack.c.l.b16 %v783
    %v3303 = vunpack.c.l.b16 %v784
    %v3304 = vunpack.c.l.b16 %v785
    %v3305 = vunpack.c.l.b16 %v786
    %v3306 = vunpack.c.l.b16 %v787
    %v3307 = vunpack.c.l.b16 %v788
    %v3308 = vunpack.c.l.b16 %v789
    %v3309 = vunpack.c.l.b16 %v790
    %v3310 = vunpack.c.l.b16 %v791
    %v3311 = vunpack.c.l.b16 %v792
    %v3312 = vunpack.c.l.b16 %v793
    %v3313 = vunpack.c.l.b16 %v794
    %v3314 = vunpack.c.l.b16 %v795
    %v3315 = vunpack.c.l.b16 %v796
    %v3316 = vunpack.c.l.b16 %v797
    %v3317 = vunpack.c.l.b16 %v798
    %v3318 = vunpack.c.l.b16 %v799
    %v3319 = vunpack.c.l.b16 %v800
    %v3320 = vunpack.c.l.b16 %v801
    %v3321 = vunpack.c.l.b16 %v802
    %v3322 = vunpack.c.l.b16 %v803
    %v3323 = vunpack.c.l.b16 %v804
    %v3324 = vunpack.c.l.b16 %v805
    %v3325 = vunpack.c.l.b16 %v806
    %v3326 = vunpack.c.l.b16 %v807
    %v3327 = vunpack.c.l.b16 %v808
    %v3328 = vunpack.c.l.b16 %v809
    %v3329 = vunpack.c.l.b16 %v810
    %v3330 = vunpack.c.l.b16 %v811
    %v3331 = vunpack.c.l.b16 %v812
    %v3332 = vunpack.c.l.b16 %v813
    %v3333 = vunpack.c.l.b16 %v814
    %v3334 = vunpack.c.l.b16 %v815
    %v3335 = vunpack.c.l.b16 %v816
    %v3336 = vunpack.c.l.b16 %v817
    %v3337 = vunpack.c.l.b16 %v818
    %v3338 = vunpack.c.l.b16 %v819
    %v3339 = vunpack.c.l.b16 %v820
    %v3340 = vunpack.c.l.b16 %v821
    %v3341 = vunpack.c.l.b16 %v822
    %v3342 = vunpack.c.l.b16 %v823
    %v3343 = vunpack.c.l.b16 %v824
    %v3344 = vunpack.c.l.b16 %v825
    %v3345 = vunpack.c.l.b16 %v826
    %v3346 = vunpack.c.l.b16 %v827
    %v3347 = vunpack.c.l.b16 %v828
    %v3348 = vunpack.c.l.b16 %v829
    %v3349 = vunpack.c.l.b16 %v830
    %v3350 = vunpack.c.l.b16 %v831
    %v3351 = vunpack.c.l.b16 %v832
    %v3352 = vunpack.c.l.b16 %v833
    %v3353 = vunpack.c.l.b16 %v834
    %v3354 = vunpack.c.l.b16 %v835
    %v3355 = vunpack.c.l.b16 %v836
    %v3356 = vunpack.c.l.b16 %v837
    %v3357 = vunpack.c.l.b16 %v838
    %v3358 = vunpack.c.l.b16 %v839
    %v3359 = vunpack.c.l.b16 %v840
    %v3360 = vunpack.c.l.b16 %v841
    %v3361 = vunpack.c.l.b16 %v842
    %v3362 = vunpack.c.l.b16 %v843
    %v3363 = vunpack.c.l.b16 %v844
    %v3364 = vunpack.c.l.b16 %v845
    %v3365 = vunpack.c.l.b16 %v846
    %v3366 = vunpack.c.l.b16 %v847
    %v3367 = vunpack.c.l.b16 %v848
    %v3368 = vunpack.c.l.b16 %v849
    %v3369 = vunpack.c.l.b16 %v850
    %v3370 = vunpack.c.l.b16 %v851
    %v3371 = vunpack.c.l.b16 %v852
    %v3372 = vunpack.c.l.b16 %v853
    %v3373 = vunpack.c.l.b16 %v854
    %v3374 = vunpack.c.l.b16 %v855
    %v3375 = vunpack.c.l.b16 %v856
    %v3376 = vunpack.c.l.b16 %v857
    %v3377 = vunpack.c.l.b16 %v858
    %v3378 = vunpack.c.l.b16 %v859
    %v3379 = vunpack.c.l.b16 %v860
    %v3380 = vunpack.c.l.b16 %v861
    %v3381 = vunpack.c.l.b16 %v862
    %v3382 = vunpack.c.l.b16 %v863
    %v3383 = vunpack.c.l.b16 %v864
    %v3384 = vunpack.c.l.b16 %v865
    %v3385 = vunpack.c.l.b16 %v866
    %v3386 = vunpack.c.l.b16 %v867
    %v3387 = vunpack.c.l.b16 %v868
    %v3388 = vunpack.c.l.b16 %v869
    %v3389 = vunpack.c.l.b16 %v870
    %v3390 = vunpack.c.l.b16 %v871
    %v3391 = vunpack.c.l.b16 %v872
    %v3392 = vunpack.c.l.b16 %v873
    %v3393 = vunpack.c.l.b16 %v874
    %v3394 = vunpack.c.l.b16 %v875
    %v3395 = vunpack.c.l.b16 %v876
    %v3396 = vunpack.c.l.b16 %v877
    %v3397 = vunpack.c.l.b16 %v878
    %v3398 = vunpack.c.l.b16 %v879
    %v3399 = vunpack.c.l.b16 %v880
    %v3400 = vunpack.c.l.b16 %v881
    %v3401 = vunpack.c.l.b16 %v882
    %v3402 = vunpack.c.l.b16 %v883
    %v3403 = vunpack.c.l.b16 %v884
    %v3404 = vunpack.c.l.b16 %v885
    %v3405 = vunpack.c.l.b16 %v886
    %v3406 = vunpack.c.l.b16 %v887
    %v3407 = vunpack.c.l.b16 %v888
    %v3408 = vunpack.c.l.b16 %v889
    %v3409 = vunpack.c.l.b16 %v890
    %v3410 = vunpack.c.l.b16 %v891
    %v3411 = vunpack.c.l.b16 %v892
    %v3412 = vunpack.c.l.b16 %v893
    %v3413 = vunpack.c.l.b16 %v894
    %v3414 = vunpack.c.l.b16 %v895
    %v3415 = vunpack.c.l.b16 %v896
    %v3416 = vunpack.c.l.b16 %v897
    %v3417 = vunpack.c.l.b16 %v898
    %v3418 = vunpack.c.l.b16 %v899
    %v3419 = vunpack.c.l.b16 %v900
    %v3420 = vunpack.c.l.b16 %v901
    %v3421 = vunpack.c.l.b16 %v902
    %v3422 = vunpack.c.l.b16 %v903
    %v3423 = vunpack.c.l.b16 %v904
    %v3424 = vunpack.c.l.b16 %v905
    %v3425 = vunpack.c.l.b16 %v906
    %v3426 = vunpack.c.l.b16 %v907
    %v3427 = vunpack.c.l.b16 %v908
    %v3428 = vunpack.c.l.b16 %v909
    %v3429 = vunpack.c.l.b16 %v910
    %v3430 = vunpack.c.l.b16 %v911
    %v3431 = vunpack.c.l.b16 %v912
    %v3432 = vunpack.c.l.b16 %v913
    %v3433 = vunpack.c.l.b16 %v914
    %v3434 = vunpack.c.l.b16 %v915
    %v3435 = vunpack.c.l.b16 %v916
    %v3436 = vunpack.c.l.b16 %v917
    %v3437 = vunpack.c.l.b16 %v918
    %v3438 = vunpack.c.l.b16 %v919
    %v3439 = vunpack.c.l.b16 %v920
    %v3440 = vunpack.c.l.b16 %v921
    %v3441 = vunpack.c.l.b16 %v922
    %v3442 = vunpack.c.l.b16 %v923
    %v3443 = vunpack.c.l.b16 %v924
    %v3444 = vunpack.c.l.b16 %v925
    %v3445 = vunpack.c.l.b16 %v926
    %v3446 = vunpack.c.l.b16 %v927
    %v3447 = vunpack.c.l.b16 %v928
    %v3448 = vunpack.c.l.b16 %v929
    %v3449 = vunpack.c.l.b16 %v930
    %v3450 = vunpack.c.l.b16 %v931
    %v3451 = vunpack.c.l.b16 %v932
    %v3452 = vunpack.c.l.b16 %v933
    %v3453 = vunpack.c.l.b16 %v934
    %v3454 = vunpack.c.l.b16 %v935
    %v3455 = vunpack.c.l.b16 %v936
    %v3456 = vunpack.c.l.b16 %v937
    %v3457 = vunpack.c.l.b16 %v938
    %v3458 = vunpack.c.l.b16 %v939
    %v3459 = vunpack.c.l.b16 %v940
    %v3460 = vunpack.c.l.b16 %v941
    %v3461 = vunpack.c.l.b16 %v942
    %v3462 = vunpack.c.l.b16 %v943
    %v3463 = vunpack.c.l.b16 %v944
    %v3464 = vunpack.c.l.b16 %v945
    %v3465 = vunpack.c.l.b16 %v946
    %v3466 = vunpack.c.l.b16 %v947
    %v3467 = vunpack.c.l.b16 %v948
    %v3468 = vunpack.c.l.b16 %v949
    %v3469 = vunpack.c.l.b16 %v950
    %v3470 = vunpack.c.l.b16 %v951
    %v3471 = vunpack.c.l.b16 %v952
    %v3472 = vunpack.c.l.b16 %v953
    %v3473 = vunpack.c.l.b16 %v954
    %v3474 = vunpack.c.l.b16 %v955
    %v3475 = vunpack.c.l.b16 %v956
    %v3476 = vunpack.c.l.b16 %v957
    %v3477 = vunpack.c.l.b16 %v958
    %v3478 = vunpack.c.l.b16 %v959
    %v3479 = vunpack.c.l.b16 %v960
    %v3480 = vunpack.c.l.b16 %v961
    %v3481 = vunpack.c.l.b16 %v962
    %v3482 = vunpack.c.l.b16 %v963
    %v3483 = vunpack.c.l.b16 %v964
    %v3484 = vunpack.c.l.b16 %v965
    %v3485 = vunpack.c.l.b16 %v966
    %v3486 = vunpack.c.l.b16 %v967
    %v3487 = vunpack.c.l.b16 %v968
    %v3488 = vunpack.c.l.b16 %v969
    %v3489 = vunpack.c.l.b16 %v970
    %v3490 = vunpack.c.l.b16 %v971
    %v3491 = vunpack.c.l.b16 %v972
    %v3492 = vunpack.c.l.b16 %v973
    %v3493 = vunpack.c.l.b16 %v974
    %v3494 = vunpack.c.l.b16 %v975
    %v3495 = vunpack.c.l.b16 %v976
    %v3496 = vunpack.c.l.b16 %v977
    %v3497 = vunpack.c.l.b16 %v978
    %v3498 = vunpack.c.l.b16 %v979
    %v3499 = vunpack.c.l.b16 %v980
    %v3500 = vunpack.c.l.b16 %v981
    %v3501 = vunpack.c.l.b16 %v982
    %v3502 = vunpack.c.l.b16 %v983
    %v3503 = vunpack.c.l.b16 %v984
    %v3504 = vunpack.c.l.b16 %v985
    %v3505 = vunpack.c.l.b16 %v986
    %v3506 = vunpack.c.l.b16 %v987
    %v3507 = vunpack.c.l.b16 %v988
    %v3508 = vunpack.c.l.b16 %v989
    %v3509 = vunpack.c.l.b16 %v990
    %v3510 = vunpack.c.l.b16 %v991
    %v3511 = vunpack.c.l.b16 %v992
    %v3512 = vunpack.c.l.b16 %v993
    %v3513 = vunpack.c.l.b16 %v994
    %v3514 = vunpack.c.l.b16 %v995
    %v3515 = vunpack.c.l.b16 %v996
    %v3516 = vunpack.c.l.b16 %v997
    %v3517 = vunpack.c.l.b16 %v998
    %v3518 = vunpack.c.l.b16 %v999
    %v3519 = vunpack.c.l.b16 %v1000
    %v3520 = vunpack.c.l.b16 %v1001
    %v3521 = vunpack.c.l.b16 %v1002
    %v3522 = vunpack.c.l.b16 %v1003
    %v3523 = vunpack.c.l.b16 %v1004
    %v3524 = vunpack.c.l.b16 %v1005
    %v3525 = vunpack.c.l.b16 %v1006
    %v3526 = vunpack.c.l.b16 %v1007
    %v3527 = vunpack.c.l.b16 %v1008
    %v3528 = vunpack.c.l.b16 %v1009
    %v3529 = vunpack.c.l.b16 %v1010
    %v3530 = vunpack.c.l.b16 %v1011
    %v3531 = vunpack.c.l.b16 %v1012
    %v3532 = vunpack.c.l.b16 %v1013
    %v3533 = vunpack.c.l.b16 %v1014
    %v3534 = vunpack.c.l.b16 %v1015
    %v3535 = vunpack.c.l.b16 %v1016
    %v3536 = vunpack.c.l.b16 %v1017
    %v3537 = vunpack.c.l.b16 %v1018
    %v3538 = vunpack.c.l.b16 %v1019
    %v3539 = vunpack.c.l.b16 %v1020
    %v3540 = vunpack.c.l.b16 %v1021
    %v3541 = vunpack.c.l.b16 %v1022
    %v3542 = vunpack.c.l.b16 %v1023
    %v3543 = vunpack.c.l.b16 %v1024
    %v3544 = vunpack.c.l.b16 %v1025
    %v3545 = vunpack.c.l.b16 %v1026
    %v3546 = vunpack.c.l.b16 %v1027
    %v3547 = vunpack.c.l.b16 %v1028
    %v3548 = vunpack.c.l.b16 %v1029
    %v3549 = vunpack.c.l.b16 %v1030
    %v3550 = vunpack.c.l.b16 %v1031
    %v3551 = vunpack.c.l.b16 %v1032
    %v3552 = vunpack.c.l.b16 %v1033
    %v3553 = vunpack.c.l.b16 %v1034
    %v3554 = vunpack.c.l.b16 %v1035
    %v3555 = vunpack.c.l.b16 %v1036
    %v3556 = vunpack.c.l.b16 %v1037
    %v3557 = vunpack.c.l.b16 %v1038
    %v3558 = vunpack.c.l.b16 %v1039
    %v3559 = vunpack.c.l.b16 %v1040
    %v3560 = vunpack.c.l.b16 %v1041
    %v3561 = vunpack.c.l.b16 %v1042
    %v3562 = vunpack.c.l.b16 %v1043
    %v3563 = vunpack.c.l.b16 %v1044
    %v3564 = vunpack.c.l.b16 %v1045
    %v3565 = vunpack.c.l.b16 %v1046
    %v3566 = vunpack.c.l.b16 %v1047
    %v3567 = vunpack.c.l.b16 %v1048
    %v3568 = vunpack.c.l.b16 %v1049
    %v3569 = vunpack.c.l.b16 %v1050
    %v3570 = vunpack.c.l.b16 %v1051
    %v3571 = vunpack.c.l.b16 %v1052
    %v3572 = vunpack.c.l.b16 %v1053
    %v3573 = vpack.c.b16 %v2550, %v2549
    %v3574 = vpack.c.b16 %v2552, %v2551
    %v3575 = vpack.c.b16 %v2554, %v2553
    %v3576 = vpack.c.b16 %v2556, %v2555
    %v3577 = vpack.c.b16 %v2558, %v2557
    %v3578 = vpack.c.b16 %v2560, %v2559
    %v3579 = vpack.c.b16 %v2562, %v2561
    %v3580 = vpack.c.b16 %v2564, %v2563
    %v3581 = vpack.c.b16 %v2566, %v2565
    %v3582 = vpack.c.b16 %v2568, %v2567
    %v3583 = vpack.c.b16 %v2570, %v2569
    %v3584 = vpack.c.b16 %v2572, %v2571
    %v3585 = vpack.c.b16 %v2574, %v2573
    %v3586 = vpack.c.b16 %v2576, %v2575
    %v3587 = vpack.c.b16 %v2578, %v2577
    %v3588 = vpack.c.b16 %v2580, %v2579
    %v3589 = vpack.c.b16 %v2582, %v2581
    %v3590 = vpack.c.b16 %v2584, %v2583
    %v3591 = vpack.c.b16 %v2586, %v2585
    %v3592 = vpack.c.b16 %v2588, %v2587
    %v3593 = vpack.c.b16 %v2590, %v2589
    %v3594 = vpack.c.b16 %v2592, %v2591
    %v3595 = vpack.c.b16 %v2594, %v2593
    %v3596 = vpack.c.b16 %v2596, %v2595
    %v3597 = vpack.c.b16 %v2598, %v2597
    %v3598 = vpack.c.b16 %v2600, %v2599
    %v3599 = vpack.c.b16 %v2602, %v2601
    %v3600 = vpack.c.b16 %v2604, %v2603
    %v3601 = vpack.c.b16 %v2606, %v2605
    %v3602 = vpack.c.b16 %v2608, %v2607
    %v3603 = vpack.c.b16 %v2610, %v2609
    %v3604 = vpack.c.b16 %v2612, %v2611
    %v3605 = vpack.c.b16 %v2614, %v2613
    %v3606 = vpack.c.b16 %v2616, %v2615
    %v3607 = vpack.c.b16 %v2618, %v2617
    %v3608 = vpack.c.b16 %v2620, %v2619
    %v3609 = vpack.c.b16 %v2622, %v2621
    %v3610 = vpack.c.b16 %v2624, %v2623
    %v3611 = vpack.c.b16 %v2626, %v2625
    %v3612 = vpack.c.b16 %v2628, %v2627
    %v3613 = vpack.c.b16 %v2630, %v2629
    %v3614 = vpack.c.b16 %v2632, %v2631
    %v3615 = vpack.c.b16 %v2634, %v2633
    %v3616 = vpack.c.b16 %v2636, %v2635
    %v3617 = vpack.c.b16 %v2638, %v2637
    %v3618 = vpack.c.b16 %v2640, %v2639
    %v3619 = vpack.c.b16 %v2642, %v2641
    %v3620 = vpack.c.b16 %v2644, %v2643
    %v3621 = vpack.c.b16 %v2646, %v2645
    %v3622 = vpack.c.b16 %v2648, %v2647
    %v3623 = vpack.c.b16 %v2650, %v2649
    %v3624 = vpack.c.b16 %v2652, %v2651
    %v3625 = vpack.c.b16 %v2654, %v2653
    %v3626 = vpack.c.b16 %v2656, %v2655
    %v3627 = vpack.c.b16 %v2658, %v2657
    %v3628 = vpack.c.b16 %v2660, %v2659
    %v3629 = vpack.c.b16 %v2662, %v2661
    %v3630 = vpack.c.b16 %v2664, %v2663
    %v3631 = vpack.c.b16 %v2666, %v2665
    %v3632 = vpack.c.b16 %v2668, %v2667
    %v3633 = vpack.c.b16 %v2670, %v2669
    %v3634 = vpack.c.b16 %v2672, %v2671
    %v3635 = vpack.c.b16 %v2674, %v2673
    %v3636 = vpack.c.b16 %v2676, %v2675
    %v3637 = vpack.c.b16 %v2678, %v2677
    %v3638 = vpack.c.b16 %v2680, %v2679
    %v3639 = vpack.c.b16 %v2682, %v2681
    %v3640 = vpack.c.b16 %v2684, %v2683
    %v3641 = vpack.c.b16 %v2686, %v2685
    %v3642 = vpack.c.b16 %v2688, %v2687
    %v3643 = vpack.c.b16 %v2690, %v2689
    %v3644 = vpack.c.b16 %v2692, %v2691
    %v3645 = vpack.c.b16 %v2694, %v2693
    %v3646 = vpack.c.b16 %v2696, %v2695
    %v3647 = vpack.c.b16 %v2698, %v2697
    %v3648 = vpack.c.b16 %v2700, %v2699
    %v3649 = vpack.c.b16 %v2702, %v2701
    %v3650 = vpack.c.b16 %v2704, %v2703
    %v3651 = vpack.c.b16 %v2706, %v2705
    %v3652 = vpack.c.b16 %v2708, %v2707
    %v3653 = vpack.c.b16 %v2710, %v2709
    %v3654 = vpack.c.b16 %v2712, %v2711
    %v3655 = vpack.c.b16 %v2714, %v2713
    %v3656 = vpack.c.b16 %v2716, %v2715
    %v3657 = vpack.c.b16 %v2718, %v2717
    %v3658 = vpack.c.b16 %v2720, %v2719
    %v3659 = vpack.c.b16 %v2722, %v2721
    %v3660 = vpack.c.b16 %v2724, %v2723
    %v3661 = vpack.c.b16 %v2726, %v2725
    %v3662 = vpack.c.b16 %v2728, %v2727
    %v3663 = vpack.c.b16 %v2730, %v2729
    %v3664 = vpack.c.b16 %v2732, %v2731
    %v3665 = vpack.c.b16 %v2734, %v2733
    %v3666 = vpack.c.b16 %v2736, %v2735
    %v3667 = vpack.c.b16 %v2738, %v2737
    %v3668 = vpack.c.b16 %v2740, %v2739
    %v3669 = vpack.c.b16 %v2742, %v2741
    %v3670 = vpack.c.b16 %v2744, %v2743
    %v3671 = vpack.c.b16 %v2746, %v2745
    %v3672 = vpack.c.b16 %v2748, %v2747
    %v3673 = vpack.c.b16 %v2750, %v2749
    %v3674 = vpack.c.b16 %v2752, %v2751
    %v3675 = vpack.c.b16 %v2754, %v2753
    %v3676 = vpack.c.b16 %v2756, %v2755
    %v3677 = vpack.c.b16 %v2758, %v2757
    %v3678 = vpack.c.b16 %v2760, %v2759
    %v3679 = vpack.c.b16 %v2762, %v2761
    %v3680 = vpack.c.b16 %v2764, %v2763
    %v3681 = vpack.c.b16 %v2766, %v2765
    %v3682 = vpack.c.b16 %v2768, %v2767
    %v3683 = vpack.c.b16 %v2770, %v2769
    %v3684 = vpack.c.b16 %v2772, %v2771
    %v3685 = vpack.c.b16 %v2774, %v2773
    %v3686 = vpack.c.b16 %v2776, %v2775
    %v3687 = vpack.c.b16 %v2778, %v2777
    %v3688 = vpack.c.b16 %v2780, %v2779
    %v3689 = vpack.c.b16 %v2782, %v2781
    %v3690 = vpack.c.b16 %v2784, %v2783
    %v3691 = vpack.c.b16 %v2786, %v2785
    %v3692 = vpack.c.b16 %v2788, %v2787
    %v3693 = vpack.c.b16 %v2790, %v2789
    %v3694 = vpack.c.b16 %v2792, %v2791
    %v3695 = vpack.c.b16 %v2794, %v2793
    %v3696 = vpack.c.b16 %v2796, %v2795
    %v3697 = vpack.c.b16 %v2798, %v2797
    %v3698 = vpack.c.b16 %v2800, %v2799
    %v3699 = vpack.c.b16 %v2802, %v2801
    %v3700 = vpack.c.b16 %v2804, %v2803
    %v3701 = vpack.c.b16 %v2806, %v2805
    %v3702 = vpack.c.b16 %v2808, %v2807
    %v3703 = vpack.c.b16 %v2810, %v2809
    %v3704 = vpack.c.b16 %v2812, %v2811
    %v3705 = vpack.c.b16 %v2814, %v2813
    %v3706 = vpack.c.b16 %v2816, %v2815
    %v3707 = vpack.c.b16 %v2818, %v2817
    %v3708 = vpack.c.b16 %v2820, %v2819
    %v3709 = vpack.c.b16 %v2822, %v2821
    %v3710 = vpack.c.b16 %v2824, %v2823
    %v3711 = vpack.c.b16 %v2826, %v2825
    %v3712 = vpack.c.b16 %v2828, %v2827
    %v3713 = vpack.c.b16 %v2830, %v2829
    %v3714 = vpack.c.b16 %v2832, %v2831
    %v3715 = vpack.c.b16 %v2834, %v2833
    %v3716 = vpack.c.b16 %v2836, %v2835
    %v3717 = vpack.c.b16 %v2838, %v2837
    %v3718 = vpack.c.b16 %v2840, %v2839
    %v3719 = vpack.c.b16 %v2842, %v2841
    %v3720 = vpack.c.b16 %v2844, %v2843
    %v3721 = vpack.c.b16 %v2846, %v2845
    %v3722 = vpack.c.b16 %v2848, %v2847
    %v3723 = vpack.c.b16 %v2850, %v2849
    %v3724 = vpack.c.b16 %v2852, %v2851
    %v3725 = vpack.c.b16 %v2854, %v2853
    %v3726 = vpack.c.b16 %v2856, %v2855
    %v3727 = vpack.c.b16 %v2858, %v2857
    %v3728 = vpack.c.b16 %v2860, %v2859
    %v3729 = vpack.c.b16 %v2862, %v2861
    %v3730 = vpack.c.b16 %v2864, %v2863
    %v3731 = vpack.c.b16 %v2866, %v2865
    %v3732 = vpack.c.b16 %v2868, %v2867
    %v3733 = vpack.c.b16 %v2870, %v2869
    %v3734 = vpack.c.b16 %v2872, %v2871
    %v3735 = vpack.c.b16 %v2874, %v2873
    %v3736 = vpack.c.b16 %v2876, %v2875
    %v3737 = vpack.c.b16 %v2878, %v2877
    %v3738 = vpack.c.b16 %v2880, %v2879
    %v3739 = vpack.c.b16 %v2882, %v2881
    %v3740 = vpack.c.b16 %v2884, %v2883
    %v3741 = vpack.c.b16 %v2886, %v2885
    %v3742 = vpack.c.b16 %v2888, %v2887
    %v3743 = vpack.c.b16 %v2890, %v2889
    %v3744 = vpack.c.b16 %v2892, %v2891
    %v3745 = vpack.c.b16 %v2894, %v2893
    %v3746 = vpack.c.b16 %v2896, %v2895
    %v3747 = vpack.c.b16 %v2898, %v2897
    %v3748 = vpack.c.b16 %v2900, %v2899
    %v3749 = vpack.c.b16 %v2902, %v2901
    %v3750 = vpack.c.b16 %v2904, %v2903
    %v3751 = vpack.c.b16 %v2906, %v2905
    %v3752 = vpack.c.b16 %v2908, %v2907
    %v3753 = vpack.c.b16 %v2910, %v2909
    %v3754 = vpack.c.b16 %v2912, %v2911
    %v3755 = vpack.c.b16 %v2914, %v2913
    %v3756 = vpack.c.b16 %v2916, %v2915
    %v3757 = vpack.c.b16 %v2918, %v2917
    %v3758 = vpack.c.b16 %v2920, %v2919
    %v3759 = vpack.c.b16 %v2922, %v2921
    %v3760 = vpack.c.b16 %v2924, %v2923
    %v3761 = vpack.c.b16 %v2926, %v2925
    %v3762 = vpack.c.b16 %v2928, %v2927
    %v3763 = vpack.c.b16 %v2930, %v2929
    %v3764 = vpack.c.b16 %v2932, %v2931
    %v3765 = vpack.c.b16 %v2934, %v2933
    %v3766 = vpack.c.b16 %v2936, %v2935
    %v3767 = vpack.c.b16 %v2938, %v2937
    %v3768 = vpack.c.b16 %v2940, %v2939
    %v3769 = vpack.c.b16 %v2942, %v2941
    %v3770 = vpack.c.b16 %v2944, %v2943
    %v3771 = vpack.c.b16 %v2946, %v2945
    %v3772 = vpack.c.b16 %v2948, %v2947
    %v3773 = vpack.c.b16 %v2950, %v2949
    %v3774 = vpack.c.b16 %v2952, %v2951
    %v3775 = vpack.c.b16 %v2954, %v2953
    %v3776 = vpack.c.b16 %v2956, %v2955
    %v3777 = vpack.c.b16 %v2958, %v2957
    %v3778 = vpack.c.b16 %v2960, %v2959
    %v3779 = vpack.c.b16 %v2962, %v2961
    %v3780 = vpack.c.b16 %v2964, %v2963
    %v3781 = vpack.c.b16 %v2966, %v2965
    %v3782 = vpack.c.b16 %v2968, %v2967
    %v3783 = vpack.c.b16 %v2970, %v2969
    %v3784 = vpack.c.b16 %v2972, %v2971
    %v3785 = vpack.c.b16 %v2974, %v2973
    %v3786 = vpack.c.b16 %v2976, %v2975
    %v3787 = vpack.c.b16 %v2978, %v2977
    %v3788 = vpack.c.b16 %v2980, %v2979
    %v3789 = vpack.c.b16 %v2982, %v2981
    %v3790 = vpack.c.b16 %v2984, %v2983
    %v3791 = vpack.c.b16 %v2986, %v2985
    %v3792 = vpack.c.b16 %v2988, %v2987
    %v3793 = vpack.c.b16 %v2990, %v2989
    %v3794 = vpack.c.b16 %v2992, %v2991
    %v3795 = vpack.c.b16 %v2994, %v2993
    %v3796 = vpack.c.b16 %v2996, %v2995
    %v3797 = vpack.c.b16 %v2998, %v2997
    %v3798 = vpack.c.b16 %v3000, %v2999
    %v3799 = vpack.c.b16 %v3002, %v3001
    %v3800 = vpack.c.b16 %v3004, %v3003
    %v3801 = vpack.c.b16 %v3006, %v3005
    %v3802 = vpack.c.b16 %v3008, %v3007
    %v3803 = vpack.c.b16 %v3010, %v3009
    %v3804 = vpack.c.b16 %v3012, %v3011
    %v3805 = vpack.c.b16 %v3014, %v3013
    %v3806 = vpack.c.b16 %v3016, %v3015
    %v3807 = vpack.c.b16 %v3018, %v3017
    %v3808 = vpack.c.b16 %v3020, %v3019
    %v3809 = vpack.c.b16 %v3022, %v3021
    %v3810 = vpack.c.b16 %v3024, %v3023
    %v3811 = vpack.c.b16 %v3026, %v3025
    %v3812 = vpack.c.b16 %v3028, %v3027
    %v3813 = vpack.c.b16 %v3030, %v3029
    %v3814 = vpack.c.b16 %v3032, %v3031
    %v3815 = vpack.c.b16 %v3034, %v3033
    %v3816 = vpack.c.b16 %v3036, %v3035
    %v3817 = vpack.c.b16 %v3038, %v3037
    %v3818 = vpack.c.b16 %v3040, %v3039
    %v3819 = vpack.c.b16 %v3042, %v3041
    %v3820 = vpack.c.b16 %v3044, %v3043
    %v3821 = vpack.c.b16 %v3046, %v3045
    %v3822 = vpack.c.b16 %v3048, %v3047
    %v3823 = vpack.c.b16 %v3050, %v3049
    %v3824 = vpack.c.b16 %v3052, %v3051
    %v3825 = vpack.c.b16 %v3054, %v3053
    %v3826 = vpack.c.b16 %v3056, %v3055
    %v3827 = vpack.c.b16 %v3058, %v3057
    %v3828 = vpack.c.b16 %v3060, %v3059
    %v3829 = vpack.c.b16 %v3062, %v3061
    %v3830 = vpack.c.b16 %v3064, %v3063
    %v3831 = vpack.c.b16 %v3066, %v3065
    %v3832 = vpack.c.b16 %v3068, %v3067
    %v3833 = vpack.c.b16 %v3070, %v3069
    %v3834 = vpack.c.b16 %v3072, %v3071
    %v3835 = vpack.c.b16 %v3074, %v3073
    %v3836 = vpack.c.b16 %v3076, %v3075
    %v3837 = vpack.c.b16 %v3078, %v3077
    %v3838 = vpack.c.b16 %v3080, %v3079
    %v3839 = vpack.c.b16 %v3082, %v3081
    %v3840 = vpack.c.b16 %v3084, %v3083
    %v3841 = vpack.c.b16 %v3086, %v3085
    %v3842 = vpack.c.b16 %v3088, %v3087
    %v3843 = vpack.c.b16 %v3090, %v3089
    %v3844 = vpack.c.b16 %v3092, %v3091
    %v3845 = vpack.c.b16 %v3094, %v3093
    %v3846 = vpack.c.b16 %v3096, %v3095
    %v3847 = vpack.c.b16 %v3098, %v3097
    %v3848 = vpack.c.b16 %v3100, %v3099
    %v3849 = vpack.c.b16 %v3102, %v3101
    %v3850 = vpack.c.b16 %v3104, %v3103
    %v3851 = vpack.c.b16 %v3106, %v3105
    %v3852 = vpack.c.b16 %v3108, %v3107
    %v3853 = vpack.c.b16 %v3110, %v3109
    %v3854 = vpack.c.b16 %v3112, %v3111
    %v3855 = vpack.c.b16 %v3114, %v3113
    %v3856 = vpack.c.b16 %v3116, %v3115
    %v3857 = vpack.c.b16 %v3118, %v3117
    %v3858 = vpack.c.b16 %v3120, %v3119
    %v3859 = vpack.c.b16 %v3122, %v3121
    %v3860 = vpack.c.b16 %v3124, %v3123
    %v3861 = vpack.c.b16 %v3126, %v3125
    %v3862 = vpack.c.b16 %v3128, %v3127
    %v3863 = vpack.c.b16 %v3130, %v3129
    %v3864 = vpack.c.b16 %v3132, %v3131
    %v3865 = vpack.c.b16 %v3134, %v3133
    %v3866 = vpack.c.b16 %v3136, %v3135
    %v3867 = vpack.c.b16 %v3138, %v3137
    %v3868 = vpack.c.b16 %v3140, %v3139
    %v3869 = vpack.c.b16 %v3142, %v3141
    %v3870 = vpack.c.b16 %v3144, %v3143
    %v3871 = vpack.c.b16 %v3146, %v3145
    %v3872 = vpack.c.b16 %v3148, %v3147
    %v3873 = vpack.c.b16 %v3150, %v3149
    %v3874 = vpack.c.b16 %v3152, %v3151
    %v3875 = vpack.c.b16 %v3154, %v3153
    %v3876 = vpack.c.b16 %v3156, %v3155
    %v3877 = vpack.c.b16 %v3158, %v3157
    %v3878 = vpack.c.b16 %v3160, %v3159
    %v3879 = vpack.c.b16 %v3162, %v3161
    %v3880 = vpack.c.b16 %v3164, %v3163
    %v3881 = vpack.c.b16 %v3166, %v3165
    %v3882 = vpack.c.b16 %v3168, %v3167
    %v3883 = vpack.c.b16 %v3170, %v3169
    %v3884 = vpack.c.b16 %v3172, %v3171
    %v3885 = vpack.c.b16 %v3174, %v3173
    %v3886 = vpack.c.b16 %v3176, %v3175
    %v3887 = vpack.c.b16 %v3178, %v3177
    %v3888 = vpack.c.b16 %v3180, %v3179
    %v3889 = vpack.c.b16 %v3182, %v3181
    %v3890 = vpack.c.b16 %v3184, %v3183
    %v3891 = vpack.c.b16 %v3186, %v3185
    %v3892 = vpack.c.b16 %v3188, %v3187
    %v3893 = vpack.c.b16 %v3190, %v3189
    %v3894 = vpack.c.b16 %v3192, %v3191
    %v3895 = vpack.c.b16 %v3194, %v3193
    %v3896 = vpack.c.b16 %v3196, %v3195
    %v3897 = vpack.c.b16 %v3198, %v3197
    %v3898 = vpack.c.b16 %v3200, %v3199
    %v3899 = vpack.c.b16 %v3202, %v3201
    %v3900 = vpack.c.b16 %v3204, %v3203
    %v3901 = vpack.c.b16 %v3206, %v3205
    %v3902 = vpack.c.b16 %v3208, %v3207
    %v3903 = vpack.c.b16 %v3210, %v3209
    %v3904 = vpack.c.b16 %v3212, %v3211
    %v3905 = vpack.c.b16 %v3214, %v3213
    %v3906 = vpack.c.b16 %v3216, %v3215
    %v3907 = vpack.c.b16 %v3218, %v3217
    %v3908 = vpack.c.b16 %v3220, %v3219
    %v3909 = vpack.c.b16 %v3222, %v3221
    %v3910 = vpack.c.b16 %v3224, %v3223
    %v3911 = vpack.c.b16 %v3226, %v3225
    %v3912 = vpack.c.b16 %v3228, %v3227
    %v3913 = vpack.c.b16 %v3230, %v3229
    %v3914 = vpack.c.b16 %v3232, %v3231
    %v3915 = vpack.c.b16 %v3234, %v3233
    %v3916 = vpack.c.b16 %v3236, %v3235
    %v3917 = vpack.c.b16 %v3238, %v3237
    %v3918 = vpack.c.b16 %v3240, %v3239
    %v3919 = vpack.c.b16 %v3242, %v3241
    %v3920 = vpack.c.b16 %v3244, %v3243
    %v3921 = vpack.c.b16 %v3246, %v3245
    %v3922 = vpack.c.b16 %v3248, %v3247
    %v3923 = vpack.c.b16 %v3250, %v3249
    %v3924 = vpack.c.b16 %v3252, %v3251
    %v3925 = vpack.c.b16 %v3254, %v3253
    %v3926 = vpack.c.b16 %v3256, %v3255
    %v3927 = vpack.c.b16 %v3258, %v3257
    %v3928 = vpack.c.b16 %v3260, %v3259
    %v3929 = vpack.c.b16 %v3262, %v3261
    %v3930 = vpack.c.b16 %v3264, %v3263
    %v3931 = vpack.c.b16 %v3266, %v3265
    %v3932 = vpack.c.b16 %v3268, %v3267
    %v3933 = vpack.c.b16 %v3270, %v3269
    %v3934 = vpack.c.b16 %v3272, %v3271
    %v3935 = vpack.c.b16 %v3274, %v3273
    %v3936 = vpack.c.b16 %v3276, %v3275
    %v3937 = vpack.c.b16 %v3278, %v3277
    %v3938 = vpack.c.b16 %v3280, %v3279
    %v3939 = vpack.c.b16 %v3282, %v3281
    %v3940 = vpack.c.b16 %v3284, %v3283
    %v3941 = vpack.c.b16 %v3286, %v3285
    %v3942 = vpack.c.b16 %v3288, %v3287
    %v3943 = vpack.c.b16 %v3290, %v3289
    %v3944 = vpack.c.b16 %v3292, %v3291
    %v3945 = vpack.c.b16 %v3294, %v3293
    %v3946 = vpack.c.b16 %v3296, %v3295
    %v3947 = vpack.c.b16 %v3298, %v3297
    %v3948 = vpack.c.b16 %v3300, %v3299
    %v3949 = vpack.c.b16 %v3302, %v3301
    %v3950 = vpack.c.b16 %v3304, %v3303
    %v3951 = vpack.c.b16 %v3306, %v3305
    %v3952 = vpack.c.b16 %v3308, %v3307
    %v3953 = vpack.c.b16 %v3310, %v3309
    %v3954 = vpack.c.b16 %v3312, %v3311
    %v3955 = vpack.c.b16 %v3314, %v3313
    %v3956 = vpack.c.b16 %v3316, %v3315
    %v3957 = vpack.c.b16 %v3318, %v3317
    %v3958 = vpack.c.b16 %v3320, %v3319
    %v3959 = vpack.c.b16 %v3322, %v3321
    %v3960 = vpack.c.b16 %v3324, %v3323
    %v3961 = vpack.c.b16 %v3326, %v3325
    %v3962 = vpack.c.b16 %v3328, %v3327
    %v3963 = vpack.c.b16 %v3330, %v3329
    %v3964 = vpack.c.b16 %v3332, %v3331
    %v3965 = vpack.c.b16 %v3334, %v3333
    %v3966 = vpack.c.b16 %v3336, %v3335
    %v3967 = vpack.c.b16 %v3338, %v3337
    %v3968 = vpack.c.b16 %v3340, %v3339
    %v3969 = vpack.c.b16 %v3342, %v3341
    %v3970 = vpack.c.b16 %v3344, %v3343
    %v3971 = vpack.c.b16 %v3346, %v3345
    %v3972 = vpack.c.b16 %v3348, %v3347
    %v3973 = vpack.c.b16 %v3350, %v3349
    %v3974 = vpack.c.b16 %v3352, %v3351
    %v3975 = vpack.c.b16 %v3354, %v3353
    %v3976 = vpack.c.b16 %v3356, %v3355
    %v3977 = vpack.c.b16 %v3358, %v3357
    %v3978 = vpack.c.b16 %v3360, %v3359
    %v3979 = vpack.c.b16 %v3362, %v3361
    %v3980 = vpack.c.b16 %v3364, %v3363
    %v3981 = vpack.c.b16 %v3366, %v3365
    %v3982 = vpack.c.b16 %v3368, %v3367
    %v3983 = vpack.c.b16 %v3370, %v3369
    %v3984 = vpack.c.b16 %v3372, %v3371
    %v3985 = vpack.c.b16 %v3374, %v3373
    %v3986 = vpack.c.b16 %v3376, %v3375
    %v3987 = vpack.c.b16 %v3378, %v3377
    %v3988 = vpack.c.b16 %v3380, %v3379
    %v3989 = vpack.c.b16 %v3382, %v3381
    %v3990 = vpack.c.b16 %v3384, %v3383
    %v3991 = vpack.c.b16 %v3386, %v3385
    %v3992 = vpack.c.b16 %v3388, %v3387
    %v3993 = vpack.c.b16 %v3390, %v3389
    %v3994 = vpack.c.b16 %v3392, %v3391
    %v3995 = vpack.c.b16 %v3394, %v3393
    %v3996 = vpack.c.b16 %v3396, %v3395
    %v3997 = vpack.c.b16 %v3398, %v3397
    %v3998 = vpack.c.b16 %v3400, %v3399
    %v3999 = vpack.c.b16 %v3402, %v3401
    %v4000 = vpack.c.b16 %v3404, %v3403
    %v4001 = vpack.c.b16 %v3406, %v3405
    %v4002 = vpack.c.b16 %v3408, %v3407
    %v4003 = vpack.c.b16 %v3410, %v3409
    %v4004 = vpack.c.b16 %v3412, %v3411
    %v4005 = vpack.c.b16 %v3414, %v3413
    %v4006 = vpack.c.b16 %v3416, %v3415
    %v4007 = vpack.c.b16 %v3418, %v3417
    %v4008 = vpack.c.b16 %v3420, %v3419
    %v4009 = vpack.c.b16 %v3422, %v3421
    %v4010 = vpack.c.b16 %v3424, %v3423
    %v4011 = vpack.c.b16 %v3426, %v3425
    %v4012 = vpack.c.b16 %v3428, %v3427
    %v4013 = vpack.c.b16 %v3430, %v3429
    %v4014 = vpack.c.b16 %v3432, %v3431
    %v4015 = vpack.c.b16 %v3434, %v3433
    %v4016 = vpack.c.b16 %v3436, %v3435
    %v4017 = vpack.c.b16 %v3438, %v3437
    %v4018 = vpack.c.b16 %v3440, %v3439
    %v4019 = vpack.c.b16 %v3442, %v3441
    %v4020 = vpack.c.b16 %v3444, %v3443
    %v4021 = vpack.c.b16 %v3446, %v3445
    %v4022 = vpack.c.b16 %v3448, %v3447
    %v4023 = vpack.c.b16 %v3450, %v3449
    %v4024 = vpack.c.b16 %v3452, %v3451
    %v4025 = vpack.c.b16 %v3454, %v3453
    %v4026 = vpack.c.b16 %v3456, %v3455
    %v4027 = vpack.c.b16 %v3458, %v3457
    %v4028 = vpack.c.b16 %v3460, %v3459
    %v4029 = vpack.c.b16 %v3462, %v3461
    %v4030 = vpack.c.b16 %v3464, %v3463
    %v4031 = vpack.c.b16 %v3466, %v3465
    %v4032 = vpack.c.b16 %v3468, %v3467
    %v4033 = vpack.c.b16 %v3470, %v3469
    %v4034 = vpack.c.b16 %v3472, %v3471
    %v4035 = vpack.c.b16 %v3474, %v3473
    %v4036 = vpack.c.b16 %v3476, %v3475
    %v4037 = vpack.c.b16 %v3478, %v3477
    %v4038 = vpack.c.b16 %v3480, %v3479
    %v4039 = vpack.c.b16 %v3482, %v3481
    %v4040 = vpack.c.b16 %v3484, %v3483
    %v4041 = vpack.c.b16 %v3486, %v3485
    %v4042 = vpack.c.b16 %v3488, %v3487
    %v4043 = vpack.c.b16 %v3490, %v3489
    %v4044 = vpack.c.b16 %v3492, %v3491
    %v4045 = vpack.c.b16 %v3494, %v3493
    %v4046 = vpack.c.b16 %v3496, %v3495
    %v4047 = vpack.c.b16 %v3498, %v3497
    %v4048 = vpack.c.b16 %v3500, %v3499
    %v4049 = vpack.c.b16 %v3502, %v3501
    %v4050 = vpack.c.b16 %v3504, %v3503
    %v4051 = vpack.c.b16 %v3506, %v3505
    %v4052 = vpack.c.b16 %v3508, %v3507
    %v4053 = vpack.c.b16 %v3510, %v3509
    %v4054 = vpack.c.b16 %v3512, %v3511
    %v4055 = vpack.c.b16 %v3514, %v3513
    %v4056 = vpack.c.b16 %v3516, %v3515
    %v4057 = vpack.c.b16 %v3518, %v3517
    %v4058 = vpack.c.b16 %v3520, %v3519
    %v4059 = vpack.c.b16 %v3522, %v3521
    %v4060 = vpack.c.b16 %v3524, %v3523
    %v4061 = vpack.c.b16 %v3526, %v3525
    %v4062 = vpack.c.b16 %v3528, %v3527
    %v4063 = vpack.c.b16 %v3530, %v3529
    %v4064 = vpack.c.b16 %v3532, %v3531
    %v4065 = vpack.c.b16 %v3534, %v3533
    %v4066 = vpack.c.b16 %v3536, %v3535
    %v4067 = vpack.c.b16 %v3538, %v3537
    %v4068 = vpack.c.b16 %v3540, %v3539
    %v4069 = vpack.c.b16 %v3542, %v3541
    %v4070 = vpack.c.b16 %v3544, %v3543
    %v4071 = vpack.c.b16 %v3546, %v3545
    %v4072 = vpack.c.b16 %v3548, %v3547
    %v4073 = vpack.c.b16 %v3550, %v3549
    %v4074 = vpack.c.b16 %v3552, %v3551
    %v4075 = vpack.c.b16 %v3554, %v3553
    %v4076 = vpack.c.b16 %v3556, %v3555
    %v4077 = vpack.c.b16 %v3558, %v3557
    %v4078 = vpack.c.b16 %v3560, %v3559
    %v4079 = vpack.c.b16 %v3562, %v3561
    %v4080 = vpack.c.b16 %v3564, %v3563
    %v4081 = vpack.c.b16 %v3566, %v3565
    %v4082 = vpack.c.b16 %v3568, %v3567
    %v4083 = vpack.c.b16 %v3570, %v3569
    %v4084 = vpack.c.b16 %v3572, %v3571
    %4597 = vmatprep.subr.bf16.mxu0 0
    %4598 = vmatpush1.bf16.msra.mxu0 %v3573
    %4599 = vmatprep.subr.bf16.mxu0 0
    %4600 = vmatpush1.bf16.msra.mxu0 %v3574
    %4601 = vmatprep.subr.bf16.mxu0 0
    %4602 = vmatpush1.bf16.msra.mxu0 %v3575
    %4603 = vmatprep.subr.bf16.mxu0 0
    %4604 = vmatpush1.bf16.msra.mxu0 %v3576
    %4605 = vmatprep.subr.bf16.mxu0 0
    %4606 = vmatpush1.bf16.msra.mxu0 %v3577
    %4607 = vmatprep.subr.bf16.mxu0 0
    %4608 = vmatpush1.bf16.msra.mxu0 %v3578
    %4609 = vmatprep.subr.bf16.mxu0 0
    %4610 = vmatpush1.bf16.msra.mxu0 %v3579
    %4611 = vmatprep.subr.bf16.mxu0 0
    %4612 = vmatpush1.bf16.msra.mxu0 %v3580
    %4613 = vmatprep.subr.bf16.mxu0 0
    %4614 = vmatpush1.bf16.msra.mxu0 %v3581
    %4615 = vmatprep.subr.bf16.mxu0 0
    %4616 = vmatpush1.bf16.msra.mxu0 %v3582
    %4617 = vmatprep.subr.bf16.mxu0 0
    %4618 = vmatpush1.bf16.msra.mxu0 %v3583
    %4619 = vmatprep.subr.bf16.mxu0 0
    %4620 = vmatpush1.bf16.msra.mxu0 %v3584
    %4621 = vmatprep.subr.bf16.mxu0 0
    %4622 = vmatpush1.bf16.msra.mxu0 %v3585
    %4623 = vmatprep.subr.bf16.mxu0 0
    %4624 = vmatpush1.bf16.msra.mxu0 %v3586
    %4625 = vmatprep.subr.bf16.mxu0 0
    %4626 = vmatpush1.bf16.msra.mxu0 %v3587
    %4627 = vmatprep.subr.bf16.mxu0 0
    %4628 = vmatpush1.bf16.msra.mxu0 %v3588
    %4629 = vmatprep.mubr.bf16.mxu0 %v1106
    %4630 = vmatmul.mubr.bf16.gmra.mrb[0].mxu0 %v1092
    %v4631 = vpop.f32.mrb[0].mxu0
    %v4632 = vadd.f32 %v1059, %v4631
    %v4633 = vpop.f32.mrb[0].mxu0
    %v4634 = vpop.f32.mrb[0].mxu0
    %v4635 = vpop.f32.mrb[0].mxu0
    %4636 = vdwg.mxu0
    %4637 = vmatprep.subr.bf16.mxu0 0
    %4638 = vmatpush1.bf16.msra.mxu0 %v3589
    %4639 = vmatprep.subr.bf16.mxu0 0
    %4640 = vmatpush1.bf16.msra.mxu0 %v3590
    %4641 = vmatprep.subr.bf16.mxu0 0
    %4642 = vmatpush1.bf16.msra.mxu0 %v3591
    %4643 = vmatprep.subr.bf16.mxu0 0
    %4644 = vmatpush1.bf16.msra.mxu0 %v3592
    %4645 = vmatprep.subr.bf16.mxu0 0
    %4646 = vmatpush1.bf16.msra.mxu0 %v3593
    %4647 = vmatprep.subr.bf16.mxu0 0
    %4648 = vmatpush1.bf16.msra.mxu0 %v3594
    %4649 = vmatprep.subr.bf16.mxu0 0
    %4650 = vmatpush1.bf16.msra.mxu0 %v3595
    %4651 = vmatprep.subr.bf16.mxu0 0
    %4652 = vmatpush1.bf16.msra.mxu0 %v3596
    %4653 = vmatprep.subr.bf16.mxu0 0
    %4654 = vmatpush1.bf16.msra.mxu0 %v3597
    %4655 = vmatprep.subr.bf16.mxu0 0
    %4656 = vmatpush1.bf16.msra.mxu0 %v3598
    %4657 = vmatprep.subr.bf16.mxu0 0
    %4658 = vmatpush1.bf16.msra.mxu0 %v3599
    %4659 = vmatprep.subr.bf16.mxu0 0
    %4660 = vmatpush1.bf16.msra.mxu0 %v3600
    %4661 = vmatprep.subr.bf16.mxu0 0
    %4662 = vmatpush1.bf16.msra.mxu0 %v3601
    %4663 = vmatprep.subr.bf16.mxu0 0
    %4664 = vmatpush1.bf16.msra.mxu0 %v3602
    %4665 = vmatprep.subr.bf16.mxu0 0
    %4666 = vmatpush1.bf16.msra.mxu0 %v3603
    %4667 = vmatprep.subr.bf16.mxu0 0
    %4668 = vmatpush1.bf16.msra.mxu0 %v3604
    %4669 = vmatprep.mubr.bf16.mxu0 %v1116
    %4670 = vmatmul.mubr.bf16.gmra.mrb[0].mxu0 %v1114
    %v4671 = vpop.f32.mrb[0].mxu0
    %v4672 = vadd.f32 %v4632, %v4671
    %v4673 = vpop.f32.mrb[0].mxu0
    %v4674 = vpop.f32.mrb[0].mxu0
    %v4675 = vpop.f32.mrb[0].mxu0
    %4676 = vdwg.mxu0
    %4677 = vmatprep.subr.bf16.mxu0 0
    %4678 = vmatpush1.bf16.msra.mxu0 %v3605
    %4679 = vmatprep.subr.bf16.mxu0 0
    %4680 = vmatpush1.bf16.msra.mxu0 %v3606
    %4681 = vmatprep.subr.bf16.mxu0 0
    %4682 = vmatpush1.bf16.msra.mxu0 %v3607
    %4683 = vmatprep.subr.bf16.mxu0 0
    %4684 = vmatpush1.bf16.msra.mxu0 %v3608
    %4685 = vmatprep.subr.bf16.mxu0 0
    %4686 = vmatpush1.bf16.msra.mxu0 %v3609
    %4687 = vmatprep.subr.bf16.mxu0 0
    %4688 = vmatpush1.bf16.msra.mxu0 %v3610
    %4689 = vmatprep.subr.bf16.mxu0 0
    %4690 = vmatpush1.bf16.msra.mxu0 %v3611
    %4691 = vmatprep.subr.bf16.mxu0 0
    %4692 = vmatpush1.bf16.msra.mxu0 %v3612
    %4693 = vmatprep.subr.bf16.mxu0 0
    %4694 = vmatpush1.bf16.msra.mxu0 %v3613
    %4695 = vmatprep.subr.bf16.mxu0 0
    %4696 = vmatpush1.bf16.msra.mxu0 %v3614
    %4697 = vmatprep.subr.bf16.mxu0 0
    %4698 = vmatpush1.bf16.msra.mxu0 %v3615
    %4699 = vmatprep.subr.bf16.mxu0 0
    %4700 = vmatpush1.bf16.msra.mxu0 %v3616
    %4701 = vmatprep.subr.bf16.mxu0 0
    %4702 = vmatpush1.bf16.msra.mxu0 %v3617
    %4703 = vmatprep.subr.bf16.mxu0 0
    %4704 = vmatpush1.bf16.msra.mxu0 %v3618
    %4705 = vmatprep.subr.bf16.mxu0 0
    %4706 = vmatpush1.bf16.msra.mxu0 %v3619
    %4707 = vmatprep.subr.bf16.mxu0 0
    %4708 = vmatpush1.bf16.msra.mxu0 %v3620
    %4709 = vmatprep.mubr.bf16.mxu0 %v1113
    %4710 = vmatmul.mubr.bf16.gmra.mrb[0].mxu0 %v1099
    %v4711 = vpop.f32.mrb[0].mxu0
    %v4712 = vadd.f32 %v4672, %v4711
    %v4713 = vpop.f32.mrb[0].mxu0
    %v4714 = vpop.f32.mrb[0].mxu0
    %v4715 = vpop.f32.mrb[0].mxu0
    %4716 = vdwg.mxu0
    %4717 = vmatprep.subr.bf16.mxu0 0
    %4718 = vmatpush1.bf16.msra.mxu0 %v3621
    %4719 = vmatprep.subr.bf16.mxu0 0
    %4720 = vmatpush1.bf16.msra.mxu0 %v3622
    %4721 = vmatprep.subr.bf16.mxu0 0
    %4722 = vmatpush1.bf16.msra.mxu0 %v3623
    %4723 = vmatprep.subr.bf16.mxu0 0
    %4724 = vmatpush1.bf16.msra.mxu0 %v3624
    %4725 = vmatprep.subr.bf16.mxu0 0
    %4726 = vmatpush1.bf16.msra.mxu0 %v3625
    %4727 = vmatprep.subr.bf16.mxu0 0
    %4728 = vmatpush1.bf16.msra.mxu0 %v3626
    %4729 = vmatprep.subr.bf16.mxu0 0
    %4730 = vmatpush1.bf16.msra.mxu0 %v3627
    %4731 = vmatprep.subr.bf16.mxu0 0
    %4732 = vmatpush1.bf16.msra.mxu0 %v3628
    %4733 = vmatprep.subr.bf16.mxu0 0
    %4734 = vmatpush1.bf16.msra.mxu0 %v3629
    %4735 = vmatprep.subr.bf16.mxu0 0
    %4736 = vmatpush1.bf16.msra.mxu0 %v3630
    %4737 = vmatprep.subr.bf16.mxu0 0
    %4738 = vmatpush1.bf16.msra.mxu0 %v3631
    %4739 = vmatprep.subr.bf16.mxu0 0
    %4740 = vmatpush1.bf16.msra.mxu0 %v3632
    %4741 = vmatprep.subr.bf16.mxu0 0
    %4742 = vmatpush1.bf16.msra.mxu0 %v3633
    %4743 = vmatprep.subr.bf16.mxu0 0
    %4744 = vmatpush1.bf16.msra.mxu0 %v3634
    %4745 = vmatprep.subr.bf16.mxu0 0
    %4746 = vmatpush1.bf16.msra.mxu0 %v3635
    %4747 = vmatprep.subr.bf16.mxu0 0
    %4748 = vmatpush1.bf16.msra.mxu0 %v3636
    %4749 = vmatprep.mubr.bf16.mxu0 %v1117
    %4750 = vmatmul.mubr.bf16.gmra.mrb[0].mxu0 %v1115
    %v4751 = vpop.f32.mrb[0].mxu0
    %v4752 = vadd.f32 %v4712, %v4751
    %v4753 = vpop.f32.mrb[0].mxu0
    %v4754 = vpop.f32.mrb[0].mxu0
    %v4755 = vpop.f32.mrb[0].mxu0
    %4756 = vdwg.mxu0
    %4757 = vmatprep.subr.bf16.mxu0 0
    %4758 = vmatpush1.bf16.msra.mxu0 %v3637
    %4759 = vmatprep.subr.bf16.mxu0 0
    %4760 = vmatpush1.bf16.msra.mxu0 %v3638
    %4761 = vmatprep.subr.bf16.mxu0 0
    %4762 = vmatpush1.bf16.msra.mxu0 %v3639
    %4763 = vmatprep.subr.bf16.mxu0 0
    %4764 = vmatpush1.bf16.msra.mxu0 %v3640
    %4765 = vmatprep.subr.bf16.mxu0 0
    %4766 = vmatpush1.bf16.msra.mxu0 %v3641
    %4767 = vmatprep.subr.bf16.mxu0 0
    %4768 = vmatpush1.bf16.msra.mxu0 %v3642
    %4769 = vmatprep.subr.bf16.mxu0 0
    %4770 = vmatpush1.bf16.msra.mxu0 %v3643
    %4771 = vmatprep.subr.bf16.mxu0 0
    %4772 = vmatpush1.bf16.msra.mxu0 %v3644
    %4773 = vmatprep.subr.bf16.mxu0 0
    %4774 = vmatpush1.bf16.msra.mxu0 %v3645
    %4775 = vmatprep.subr.bf16.mxu0 0
    %4776 = vmatpush1.bf16.msra.mxu0 %v3646
    %4777 = vmatprep.subr.bf16.mxu0 0
    %4778 = vmatpush1.bf16.msra.mxu0 %v3647
    %4779 = vmatprep.subr.bf16.mxu0 0
    %4780 = vmatpush1.bf16.msra.mxu0 %v3648
    %4781 = vmatprep.subr.bf16.mxu0 0
    %4782 = vmatpush1.bf16.msra.mxu0 %v3649
    %4783 = vmatprep.subr.bf16.mxu0 0
    %4784 = vmatpush1.bf16.msra.mxu0 %v3650
    %4785 = vmatprep.subr.bf16.mxu0 0
    %4786 = vmatpush1.bf16.msra.mxu0 %v3651
    %4787 = vmatprep.subr.bf16.mxu0 0
    %4788 = vmatpush1.bf16.msra.mxu0 %v3652
    %4789 = vmatprep.mubr.bf16.mxu0 %v1155
    %4790 = vmatmul.mubr.bf16.gmra.mrb[0].mxu0 %v1141
    %v4791 = vpop.f32.mrb[0].mxu0
    %v4792 = vadd.f32 %v4752, %v4791
    %v4793 = vpop.f32.mrb[0].mxu0
    %v4794 = vpop.f32.mrb[0].mxu0
    %v4795 = vpop.f32.mrb[0].mxu0
    %4796 = vdwg.mxu0
    %4797 = vmatprep.subr.bf16.mxu0 0
    %4798 = vmatpush1.bf16.msra.mxu0 %v3653
    %4799 = vmatprep.subr.bf16.mxu0 0
    %4800 = vmatpush1.bf16.msra.mxu0 %v3654
    %4801 = vmatprep.subr.bf16.mxu0 0
    %4802 = vmatpush1.bf16.msra.mxu0 %v3655
    %4803 = vmatprep.subr.bf16.mxu0 0
    %4804 = vmatpush1.bf16.msra.mxu0 %v3656
    %4805 = vmatprep.subr.bf16.mxu0 0
    %4806 = vmatpush1.bf16.msra.mxu0 %v3657
    %4807 = vmatprep.subr.bf16.mxu0 0
    %4808 = vmatpush1.bf16.msra.mxu0 %v3658
    %4809 = vmatprep.subr.bf16.mxu0 0
    %4810 = vmatpush1.bf16.msra.mxu0 %v3659
    %4811 = vmatprep.subr.bf16.mxu0 0
    %4812 = vmatpush1.bf16.msra.mxu0 %v3660
    %4813 = vmatprep.subr.bf16.mxu0 0
    %4814 = vmatpush1.bf16.msra.mxu0 %v3661
    %4815 = vmatprep.subr.bf16.mxu0 0
    %4816 = vmatpush1.bf16.msra.mxu0 %v3662
    %4817 = vmatprep.subr.bf16.mxu0 0
    %4818 = vmatpush1.bf16.msra.mxu0 %v3663
    %4819 = vmatprep.subr.bf16.mxu0 0
    %4820 = vmatpush1.bf16.msra.mxu0 %v3664
    %4821 = vmatprep.subr.bf16.mxu0 0
    %4822 = vmatpush1.bf16.msra.mxu0 %v3665
    %4823 = vmatprep.subr.bf16.mxu0 0
    %4824 = vmatpush1.bf16.msra.mxu0 %v3666
    %4825 = vmatprep.subr.bf16.mxu0 0
    %4826 = vmatpush1.bf16.msra.mxu0 %v3667
    %4827 = vmatprep.subr.bf16.mxu0 0
    %4828 = vmatpush1.bf16.msra.mxu0 %v3668
    %4829 = vmatprep.mubr.bf16.mxu0 %v1165
    %4830 = vmatmul.mubr.bf16.gmra.mrb[0].mxu0 %v1163
    %v4831 = vpop.f32.mrb[0].mxu0
    %v4832 = vadd.f32 %v4792, %v4831
    %v4833 = vpop.f32.mrb[0].mxu0
    %v4834 = vpop.f32.mrb[0].mxu0
    %v4835 = vpop.f32.mrb[0].mxu0
    %4836 = vdwg.mxu0
    %4837 = vmatprep.subr.bf16.mxu0 0
    %4838 = vmatpush1.bf16.msra.mxu0 %v3669
    %4839 = vmatprep.subr.bf16.mxu0 0
    %4840 = vmatpush1.bf16.msra.mxu0 %v3670
    %4841 = vmatprep.subr.bf16.mxu0 0
    %4842 = vmatpush1.bf16.msra.mxu0 %v3671
    %4843 = vmatprep.subr.bf16.mxu0 0
    %4844 = vmatpush1.bf16.msra.mxu0 %v3672
    %4845 = vmatprep.subr.bf16.mxu0 0
    %4846 = vmatpush1.bf16.msra.mxu0 %v3673
    %4847 = vmatprep.subr.bf16.mxu0 0
    %4848 = vmatpush1.bf16.msra.mxu0 %v3674
    %4849 = vmatprep.subr.bf16.mxu0 0
    %4850 = vmatpush1.bf16.msra.mxu0 %v3675
    %4851 = vmatprep.subr.bf16.mxu0 0
    %4852 = vmatpush1.bf16.msra.mxu0 %v3676
    %4853 = vmatprep.subr.bf16.mxu0 0
    %4854 = vmatpush1.bf16.msra.mxu0 %v3677
    %4855 = vmatprep.subr.bf16.mxu0 0
    %4856 = vmatpush1.bf16.msra.mxu0 %v3678
    %4857 = vmatprep.subr.bf16.mxu0 0
    %4858 = vmatpush1.bf16.msra.mxu0 %v3679
    %4859 = vmatprep.subr.bf16.mxu0 0
    %4860 = vmatpush1.bf16.msra.mxu0 %v3680
    %4861 = vmatprep.subr.bf16.mxu0 0
    %4862 = vmatpush1.bf16.msra.mxu0 %v3681
    %4863 = vmatprep.subr.bf16.mxu0 0
    %4864 = vmatpush1.bf16.msra.mxu0 %v3682
    %4865 = vmatprep.subr.bf16.mxu0 0
    %4866 = vmatpush1.bf16.msra.mxu0 %v3683
    %4867 = vmatprep.subr.bf16.mxu0 0
    %4868 = vmatpush1.bf16.msra.mxu0 %v3684
    %4869 = vmatprep.mubr.bf16.mxu0 %v1162
    %4870 = vmatmul.mubr.bf16.gmra.mrb[0].mxu0 %v1148
    %v4871 = vpop.f32.mrb[0].mxu0
    %v4872 = vadd.f32 %v4832, %v4871
    %v4873 = vpop.f32.mrb[0].mxu0
    %v4874 = vpop.f32.mrb[0].mxu0
    %v4875 = vpop.f32.mrb[0].mxu0
    %4876 = vdwg.mxu0
    %4877 = vmatprep.subr.bf16.mxu0 0
    %4878 = vmatpush1.bf16.msra.mxu0 %v3685
    %4879 = vmatprep.subr.bf16.mxu0 0
    %4880 = vmatpush1.bf16.msra.mxu0 %v3686
    %4881 = vmatprep.subr.bf16.mxu0 0
    %4882 = vmatpush1.bf16.msra.mxu0 %v3687
    %4883 = vmatprep.subr.bf16.mxu0 0
    %4884 = vmatpush1.bf16.msra.mxu0 %v3688
    %4885 = vmatprep.subr.bf16.mxu0 0
    %4886 = vmatpush1.bf16.msra.mxu0 %v3689
    %4887 = vmatprep.subr.bf16.mxu0 0
    %4888 = vmatpush1.bf16.msra.mxu0 %v3690
    %4889 = vmatprep.subr.bf16.mxu0 0
    %4890 = vmatpush1.bf16.msra.mxu0 %v3691
    %4891 = vmatprep.subr.bf16.mxu0 0
    %4892 = vmatpush1.bf16.msra.mxu0 %v3692
    %4893 = vmatprep.subr.bf16.mxu0 0
    %4894 = vmatpush1.bf16.msra.mxu0 %v3693
    %4895 = vmatprep.subr.bf16.mxu0 0
    %4896 = vmatpush1.bf16.msra.mxu0 %v3694
    %4897 = vmatprep.subr.bf16.mxu0 0
    %4898 = vmatpush1.bf16.msra.mxu0 %v3695
    %4899 = vmatprep.subr.bf16.mxu0 0
    %4900 = vmatpush1.bf16.msra.mxu0 %v3696
    %4901 = vmatprep.subr.bf16.mxu0 0
    %4902 = vmatpush1.bf16.msra.mxu0 %v3697
    %4903 = vmatprep.subr.bf16.mxu0 0
    %4904 = vmatpush1.bf16.msra.mxu0 %v3698
    %4905 = vmatprep.subr.bf16.mxu0 0
    %4906 = vmatpush1.bf16.msra.mxu0 %v3699
    %4907 = vmatprep.subr.bf16.mxu0 0
    %4908 = vmatpush1.bf16.msra.mxu0 %v3700
    %4909 = vmatprep.mubr.bf16.mxu0 %v1166
    %4910 = vmatmul.mubr.bf16.gmra.mrb[0].mxu0 %v1164
    %v4911 = vpop.f32.mrb[0].mxu0
    %v4912 = vadd.f32 %v4872, %v4911
    %v4913 = vpop.f32.mrb[0].mxu0
    %v4914 = vpop.f32.mrb[0].mxu0
    %v4915 = vpop.f32.mrb[0].mxu0
    %4916 = vdwg.mxu0
    %4917 = vmatprep.subr.bf16.mxu0 0
    %4918 = vmatpush1.bf16.msra.mxu0 %v3701
    %4919 = vmatprep.subr.bf16.mxu0 0
    %4920 = vmatpush1.bf16.msra.mxu0 %v3702
    %4921 = vmatprep.subr.bf16.mxu0 0
    %4922 = vmatpush1.bf16.msra.mxu0 %v3703
    %4923 = vmatprep.subr.bf16.mxu0 0
    %4924 = vmatpush1.bf16.msra.mxu0 %v3704
    %4925 = vmatprep.subr.bf16.mxu0 0
    %4926 = vmatpush1.bf16.msra.mxu0 %v3705
    %4927 = vmatprep.subr.bf16.mxu0 0
    %4928 = vmatpush1.bf16.msra.mxu0 %v3706
    %4929 = vmatprep.subr.bf16.mxu0 0
    %4930 = vmatpush1.bf16.msra.mxu0 %v3707
    %4931 = vmatprep.subr.bf16.mxu0 0
    %4932 = vmatpush1.bf16.msra.mxu0 %v3708
    %4933 = vmatprep.subr.bf16.mxu0 0
    %4934 = vmatpush1.bf16.msra.mxu0 %v3709
    %4935 = vmatprep.subr.bf16.mxu0 0
    %4936 = vmatpush1.bf16.msra.mxu0 %v3710
    %4937 = vmatprep.subr.bf16.mxu0 0
    %4938 = vmatpush1.bf16.msra.mxu0 %v3711
    %4939 = vmatprep.subr.bf16.mxu0 0
    %4940 = vmatpush1.bf16.msra.mxu0 %v3712
    %4941 = vmatprep.subr.bf16.mxu0 0
    %4942 = vmatpush1.bf16.msra.mxu0 %v3713
    %4943 = vmatprep.subr.bf16.mxu0 0
    %4944 = vmatpush1.bf16.msra.mxu0 %v3714
    %4945 = vmatprep.subr.bf16.mxu0 0
    %4946 = vmatpush1.bf16.msra.mxu0 %v3715
    %4947 = vmatprep.subr.bf16.mxu0 0
    %4948 = vmatpush1.bf16.msra.mxu0 %v3716
    %4949 = vmatprep.mubr.bf16.mxu0 %v1204
    %4950 = vmatmul.mubr.bf16.gmra.mrb[0].mxu0 %v1190
    %v4951 = vpop.f32.mrb[0].mxu0
    %v4952 = vadd.f32 %v4912, %v4951
    %v4953 = vpop.f32.mrb[0].mxu0
    %v4954 = vpop.f32.mrb[0].mxu0
    %v4955 = vpop.f32.mrb[0].mxu0
    %4956 = vdwg.mxu0
    %4957 = vmatprep.subr.bf16.mxu0 0
    %4958 = vmatpush1.bf16.msra.mxu0 %v3717
    %4959 = vmatprep.subr.bf16.mxu0 0
    %4960 = vmatpush1.bf16.msra.mxu0 %v3718
    %4961 = vmatprep.subr.bf16.mxu0 0
    %4962 = vmatpush1.bf16.msra.mxu0 %v3719
    %4963 = vmatprep.subr.bf16.mxu0 0
    %4964 = vmatpush1.bf16.msra.mxu0 %v3720
    %4965 = vmatprep.subr.bf16.mxu0 0
    %4966 = vmatpush1.bf16.msra.mxu0 %v3721
    %4967 = vmatprep.subr.bf16.mxu0 0
    %4968 = vmatpush1.bf16.msra.mxu0 %v3722
    %4969 = vmatprep.subr.bf16.mxu0 0
    %4970 = vmatpush1.bf16.msra.mxu0 %v3723
    %4971 = vmatprep.subr.bf16.mxu0 0
    %4972 = vmatpush1.bf16.msra.mxu0 %v3724
    %4973 = vmatprep.subr.bf16.mxu0 0
    %4974 = vmatpush1.bf16.msra.mxu0 %v3725
    %4975 = vmatprep.subr.bf16.mxu0 0
    %4976 = vmatpush1.bf16.msra.mxu0 %v3726
    %4977 = vmatprep.subr.bf16.mxu0 0
    %4978 = vmatpush1.bf16.msra.mxu0 %v3727
    %4979 = vmatprep.subr.bf16.mxu0 0
    %4980 = vmatpush1.bf16.msra.mxu0 %v3728
    %4981 = vmatprep.subr.bf16.mxu0 0
    %4982 = vmatpush1.bf16.msra.mxu0 %v3729
    %4983 = vmatprep.subr.bf16.mxu0 0
    %4984 = vmatpush1.bf16.msra.mxu0 %v3730
    %4985 = vmatprep.subr.bf16.mxu0 0
    %4986 = vmatpush1.bf16.msra.mxu0 %v3731
    %4987 = vmatprep.subr.bf16.mxu0 0
    %4988 = vmatpush1.bf16.msra.mxu0 %v3732
    %4989 = vmatprep.mubr.bf16.mxu0 %v1214
    %4990 = vmatmul.mubr.bf16.gmra.mrb[0].mxu0 %v1212
    %v4991 = vpop.f32.mrb[0].mxu0
    %v4992 = vadd.f32 %v4952, %v4991
    %v4993 = vpop.f32.mrb[0].mxu0
    %v4994 = vpop.f32.mrb[0].mxu0
    %v4995 = vpop.f32.mrb[0].mxu0
    %4996 = vdwg.mxu0
    %4997 = vmatprep.subr.bf16.mxu0 0
    %4998 = vmatpush1.bf16.msra.mxu0 %v3733
    %4999 = vmatprep.subr.bf16.mxu0 0
    %5000 = vmatpush1.bf16.msra.mxu0 %v3734
    %5001 = vmatprep.subr.bf16.mxu0 0
    %5002 = vmatpush1.bf16.msra.mxu0 %v3735
    %5003 = vmatprep.subr.bf16.mxu0 0
    %5004 = vmatpush1.bf16.msra.mxu0 %v3736
    %5005 = vmatprep.subr.bf16.mxu0 0
    %5006 = vmatpush1.bf16.msra.mxu0 %v3737
    %5007 = vmatprep.subr.bf16.mxu0 0
    %5008 = vmatpush1.bf16.msra.mxu0 %v3738
    %5009 = vmatprep.subr.bf16.mxu0 0
    %5010 = vmatpush1.bf16.msra.mxu0 %v3739
    %5011 = vmatprep.subr.bf16.mxu0 0
    %5012 = vmatpush1.bf16.msra.mxu0 %v3740
    %5013 = vmatprep.subr.bf16.mxu0 0
    %5014 = vmatpush1.bf16.msra.mxu0 %v3741
    %5015 = vmatprep.subr.bf16.mxu0 0
    %5016 = vmatpush1.bf16.msra.mxu0 %v3742
    %5017 = vmatprep.subr.bf16.mxu0 0
    %5018 = vmatpush1.bf16.msra.mxu0 %v3743
    %5019 = vmatprep.subr.bf16.mxu0 0
    %5020 = vmatpush1.bf16.msra.mxu0 %v3744
    %5021 = vmatprep.subr.bf16.mxu0 0
    %5022 = vmatpush1.bf16.msra.mxu0 %v3745
    %5023 = vmatprep.subr.bf16.mxu0 0
    %5024 = vmatpush1.bf16.msra.mxu0 %v3746
    %5025 = vmatprep.subr.bf16.mxu0 0
    %5026 = vmatpush1.bf16.msra.mxu0 %v3747
    %5027 = vmatprep.subr.bf16.mxu0 0
    %5028 = vmatpush1.bf16.msra.mxu0 %v3748
    %5029 = vmatprep.mubr.bf16.mxu0 %v1211
    %5030 = vmatmul.mubr.bf16.gmra.mrb[0].mxu0 %v1197
    %v5031 = vpop.f32.mrb[0].mxu0
    %v5032 = vadd.f32 %v4992, %v5031
    %v5033 = vpop.f32.mrb[0].mxu0
    %v5034 = vpop.f32.mrb[0].mxu0
    %v5035 = vpop.f32.mrb[0].mxu0
    %5036 = vdwg.mxu0
    %5037 = vmatprep.subr.bf16.mxu0 0
    %5038 = vmatpush1.bf16.msra.mxu0 %v3749
    %5039 = vmatprep.subr.bf16.mxu0 0
    %5040 = vmatpush1.bf16.msra.mxu0 %v3750
    %5041 = vmatprep.subr.bf16.mxu0 0
    %5042 = vmatpush1.bf16.msra.mxu0 %v3751
    %5043 = vmatprep.subr.bf16.mxu0 0
    %5044 = vmatpush1.bf16.msra.mxu0 %v3752
    %5045 = vmatprep.subr.bf16.mxu0 0
    %5046 = vmatpush1.bf16.msra.mxu0 %v3753
    %5047 = vmatprep.subr.bf16.mxu0 0
    %5048 = vmatpush1.bf16.msra.mxu0 %v3754
    %5049 = vmatprep.subr.bf16.mxu0 0
    %5050 = vmatpush1.bf16.msra.mxu0 %v3755
    %5051 = vmatprep.subr.bf16.mxu0 0
    %5052 = vmatpush1.bf16.msra.mxu0 %v3756
    %5053 = vmatprep.subr.bf16.mxu0 0
    %5054 = vmatpush1.bf16.msra.mxu0 %v3757
    %5055 = vmatprep.subr.bf16.mxu0 0
    %5056 = vmatpush1.bf16.msra.mxu0 %v3758
    %5057 = vmatprep.subr.bf16.mxu0 0
    %5058 = vmatpush1.bf16.msra.mxu0 %v3759
    %5059 = vmatprep.subr.bf16.mxu0 0
    %5060 = vmatpush1.bf16.msra.mxu0 %v3760
    %5061 = vmatprep.subr.bf16.mxu0 0
    %5062 = vmatpush1.bf16.msra.mxu0 %v3761
    %5063 = vmatprep.subr.bf16.mxu0 0
    %5064 = vmatpush1.bf16.msra.mxu0 %v3762
    %5065 = vmatprep.subr.bf16.mxu0 0
    %5066 = vmatpush1.bf16.msra.mxu0 %v3763
    %5067 = vmatprep.subr.bf16.mxu0 0
    %5068 = vmatpush1.bf16.msra.mxu0 %v3764
    %5069 = vmatprep.mubr.bf16.mxu0 %v1215
    %5070 = vmatmul.mubr.bf16.gmra.mrb[0].mxu0 %v1213
    %v5071 = vpop.f32.mrb[0].mxu0
    %v5072 = vadd.f32 %v5032, %v5071
    %v5073 = vpop.f32.mrb[0].mxu0
    %v5074 = vpop.f32.mrb[0].mxu0
    %v5075 = vpop.f32.mrb[0].mxu0
    %5076 = vdwg.mxu0
    %5077 = vmatprep.subr.bf16.mxu0 0
    %5078 = vmatpush1.bf16.msra.mxu0 %v3765
    %5079 = vmatprep.subr.bf16.mxu0 0
    %5080 = vmatpush1.bf16.msra.mxu0 %v3766
    %5081 = vmatprep.subr.bf16.mxu0 0
    %5082 = vmatpush1.bf16.msra.mxu0 %v3767
    %5083 = vmatprep.subr.bf16.mxu0 0
    %5084 = vmatpush1.bf16.msra.mxu0 %v3768
    %5085 = vmatprep.subr.bf16.mxu0 0
    %5086 = vmatpush1.bf16.msra.mxu0 %v3769
    %5087 = vmatprep.subr.bf16.mxu0 0
    %5088 = vmatpush1.bf16.msra.mxu0 %v3770
    %5089 = vmatprep.subr.bf16.mxu0 0
    %5090 = vmatpush1.bf16.msra.mxu0 %v3771
    %5091 = vmatprep.subr.bf16.mxu0 0
    %5092 = vmatpush1.bf16.msra.mxu0 %v3772
    %5093 = vmatprep.subr.bf16.mxu0 0
    %5094 = vmatpush1.bf16.msra.mxu0 %v3773
    %5095 = vmatprep.subr.bf16.mxu0 0
    %5096 = vmatpush1.bf16.msra.mxu0 %v3774
    %5097 = vmatprep.subr.bf16.mxu0 0
    %5098 = vmatpush1.bf16.msra.mxu0 %v3775
    %5099 = vmatprep.subr.bf16.mxu0 0
    %5100 = vmatpush1.bf16.msra.mxu0 %v3776
    %5101 = vmatprep.subr.bf16.mxu0 0
    %5102 = vmatpush1.bf16.msra.mxu0 %v3777
    %5103 = vmatprep.subr.bf16.mxu0 0
    %5104 = vmatpush1.bf16.msra.mxu0 %v3778
    %5105 = vmatprep.subr.bf16.mxu0 0
    %5106 = vmatpush1.bf16.msra.mxu0 %v3779
    %5107 = vmatprep.subr.bf16.mxu0 0
    %5108 = vmatpush1.bf16.msra.mxu0 %v3780
    %5109 = vmatprep.mubr.bf16.mxu0 %v1253
    %5110 = vmatmul.mubr.bf16.gmra.mrb[0].mxu0 %v1239
    %v5111 = vpop.f32.mrb[0].mxu0
    %v5112 = vadd.f32 %v5072, %v5111
    %v5113 = vpop.f32.mrb[0].mxu0
    %v5114 = vpop.f32.mrb[0].mxu0
    %v5115 = vpop.f32.mrb[0].mxu0
    %5116 = vdwg.mxu0
    %5117 = vmatprep.subr.bf16.mxu0 0
    %5118 = vmatpush1.bf16.msra.mxu0 %v3781
    %5119 = vmatprep.subr.bf16.mxu0 0
    %5120 = vmatpush1.bf16.msra.mxu0 %v3782
    %5121 = vmatprep.subr.bf16.mxu0 0
    %5122 = vmatpush1.bf16.msra.mxu0 %v3783
    %5123 = vmatprep.subr.bf16.mxu0 0
    %5124 = vmatpush1.bf16.msra.mxu0 %v3784
    %5125 = vmatprep.subr.bf16.mxu0 0
    %5126 = vmatpush1.bf16.msra.mxu0 %v3785
    %5127 = vmatprep.subr.bf16.mxu0 0
    %5128 = vmatpush1.bf16.msra.mxu0 %v3786
    %5129 = vmatprep.subr.bf16.mxu0 0
    %5130 = vmatpush1.bf16.msra.mxu0 %v3787
    %5131 = vmatprep.subr.bf16.mxu0 0
    %5132 = vmatpush1.bf16.msra.mxu0 %v3788
    %5133 = vmatprep.subr.bf16.mxu0 0
    %5134 = vmatpush1.bf16.msra.mxu0 %v3789
    %5135 = vmatprep.subr.bf16.mxu0 0
    %5136 = vmatpush1.bf16.msra.mxu0 %v3790
    %5137 = vmatprep.subr.bf16.mxu0 0
    %5138 = vmatpush1.bf16.msra.mxu0 %v3791
    %5139 = vmatprep.subr.bf16.mxu0 0
    %5140 = vmatpush1.bf16.msra.mxu0 %v3792
    %5141 = vmatprep.subr.bf16.mxu0 0
    %5142 = vmatpush1.bf16.msra.mxu0 %v3793
    %5143 = vmatprep.subr.bf16.mxu0 0
    %5144 = vmatpush1.bf16.msra.mxu0 %v3794
    %5145 = vmatprep.subr.bf16.mxu0 0
    %5146 = vmatpush1.bf16.msra.mxu0 %v3795
    %5147 = vmatprep.subr.bf16.mxu0 0
    %5148 = vmatpush1.bf16.msra.mxu0 %v3796
    %5149 = vmatprep.mubr.bf16.mxu0 %v1263
    %5150 = vmatmul.mubr.bf16.gmra.mrb[0].mxu0 %v1261
    %v5151 = vpop.f32.mrb[0].mxu0
    %v5152 = vadd.f32 %v5112, %v5151
    %v5153 = vpop.f32.mrb[0].mxu0
    %v5154 = vpop.f32.mrb[0].mxu0
    %v5155 = vpop.f32.mrb[0].mxu0
    %5156 = vdwg.mxu0
    %5157 = vmatprep.subr.bf16.mxu0 0
    %5158 = vmatpush1.bf16.msra.mxu0 %v3797
    %5159 = vmatprep.subr.bf16.mxu0 0
    %5160 = vmatpush1.bf16.msra.mxu0 %v3798
    %5161 = vmatprep.subr.bf16.mxu0 0
    %5162 = vmatpush1.bf16.msra.mxu0 %v3799
    %5163 = vmatprep.subr.bf16.mxu0 0
    %5164 = vmatpush1.bf16.msra.mxu0 %v3800
    %5165 = vmatprep.subr.bf16.mxu0 0
    %5166 = vmatpush1.bf16.msra.mxu0 %v3801
    %5167 = vmatprep.subr.bf16.mxu0 0
    %5168 = vmatpush1.bf16.msra.mxu0 %v3802
    %5169 = vmatprep.subr.bf16.mxu0 0
    %5170 = vmatpush1.bf16.msra.mxu0 %v3803
    %5171 = vmatprep.subr.bf16.mxu0 0
    %5172 = vmatpush1.bf16.msra.mxu0 %v3804
    %5173 = vmatprep.subr.bf16.mxu0 0
    %5174 = vmatpush1.bf16.msra.mxu0 %v3805
    %5175 = vmatprep.subr.bf16.mxu0 0
    %5176 = vmatpush1.bf16.msra.mxu0 %v3806
    %5177 = vmatprep.subr.bf16.mxu0 0
    %5178 = vmatpush1.bf16.msra.mxu0 %v3807
    %5179 = vmatprep.subr.bf16.mxu0 0
    %5180 = vmatpush1.bf16.msra.mxu0 %v3808
    %5181 = vmatprep.subr.bf16.mxu0 0
    %5182 = vmatpush1.bf16.msra.mxu0 %v3809
    %5183 = vmatprep.subr.bf16.mxu0 0
    %5184 = vmatpush1.bf16.msra.mxu0 %v3810
    %5185 = vmatprep.subr.bf16.mxu0 0
    %5186 = vmatpush1.bf16.msra.mxu0 %v3811
    %5187 = vmatprep.subr.bf16.mxu0 0
    %5188 = vmatpush1.bf16.msra.mxu0 %v3812
    %5189 = vmatprep.mubr.bf16.mxu0 %v1260
    %5190 = vmatmul.mubr.bf16.gmra.mrb[0].mxu0 %v1246
    %v5191 = vpop.f32.mrb[0].mxu0
    %v5192 = vadd.f32 %v5152, %v5191
    %v5193 = vpop.f32.mrb[0].mxu0
    %v5194 = vpop.f32.mrb[0].mxu0
    %v5195 = vpop.f32.mrb[0].mxu0
    %5196 = vdwg.mxu0
    %5197 = vmatprep.subr.bf16.mxu0 0
    %5198 = vmatpush1.bf16.msra.mxu0 %v3813
    %5199 = vmatprep.subr.bf16.mxu0 0
    %5200 = vmatpush1.bf16.msra.mxu0 %v3814
    %5201 = vmatprep.subr.bf16.mxu0 0
    %5202 = vmatpush1.bf16.msra.mxu0 %v3815
    %5203 = vmatprep.subr.bf16.mxu0 0
    %5204 = vmatpush1.bf16.msra.mxu0 %v3816
    %5205 = vmatprep.subr.bf16.mxu0 0
    %5206 = vmatpush1.bf16.msra.mxu0 %v3817
    %5207 = vmatprep.subr.bf16.mxu0 0
    %5208 = vmatpush1.bf16.msra.mxu0 %v3818
    %5209 = vmatprep.subr.bf16.mxu0 0
    %5210 = vmatpush1.bf16.msra.mxu0 %v3819
    %5211 = vmatprep.subr.bf16.mxu0 0
    %5212 = vmatpush1.bf16.msra.mxu0 %v3820
    %5213 = vmatprep.subr.bf16.mxu0 0
    %5214 = vmatpush1.bf16.msra.mxu0 %v3821
    %5215 = vmatprep.subr.bf16.mxu0 0
    %5216 = vmatpush1.bf16.msra.mxu0 %v3822
    %5217 = vmatprep.subr.bf16.mxu0 0
    %5218 = vmatpush1.bf16.msra.mxu0 %v3823
    %5219 = vmatprep.subr.bf16.mxu0 0
    %5220 = vmatpush1.bf16.msra.mxu0 %v3824
    %5221 = vmatprep.subr.bf16.mxu0 0
    %5222 = vmatpush1.bf16.msra.mxu0 %v3825
    %5223 = vmatprep.subr.bf16.mxu0 0
    %5224 = vmatpush1.bf16.msra.mxu0 %v3826
    %5225 = vmatprep.subr.bf16.mxu0 0
    %5226 = vmatpush1.bf16.msra.mxu0 %v3827
    %5227 = vmatprep.subr.bf16.mxu0 0
    %5228 = vmatpush1.bf16.msra.mxu0 %v3828
    %5229 = vmatprep.mubr.bf16.mxu0 %v1264
    %5230 = vmatmul.mubr.bf16.gmra.mrb[0].mxu0 %v1262
    %v5231 = vpop.f32.mrb[0].mxu0
    %v5232 = vadd.f32 %v5192, %v5231
    %v5233 = vpop.f32.mrb[0].mxu0
    %v5234 = vpop.f32.mrb[0].mxu0
    %v5235 = vpop.f32.mrb[0].mxu0
    %5236 = vdwg.mxu0
    %5237 = vmatprep.subr.bf16.mxu0 0
    %5238 = vmatpush1.bf16.msra.mxu0 %v3829
    %5239 = vmatprep.subr.bf16.mxu0 0
    %5240 = vmatpush1.bf16.msra.mxu0 %v3830
    %5241 = vmatprep.subr.bf16.mxu0 0
    %5242 = vmatpush1.bf16.msra.mxu0 %v3831
    %5243 = vmatprep.subr.bf16.mxu0 0
    %5244 = vmatpush1.bf16.msra.mxu0 %v3832
    %5245 = vmatprep.subr.bf16.mxu0 0
    %5246 = vmatpush1.bf16.msra.mxu0 %v3833
    %5247 = vmatprep.subr.bf16.mxu0 0
    %5248 = vmatpush1.bf16.msra.mxu0 %v3834
    %5249 = vmatprep.subr.bf16.mxu0 0
    %5250 = vmatpush1.bf16.msra.mxu0 %v3835
    %5251 = vmatprep.subr.bf16.mxu0 0
    %5252 = vmatpush1.bf16.msra.mxu0 %v3836
    %5253 = vmatprep.subr.bf16.mxu0 0
    %5254 = vmatpush1.bf16.msra.mxu0 %v3837
    %5255 = vmatprep.subr.bf16.mxu0 0
    %5256 = vmatpush1.bf16.msra.mxu0 %v3838
    %5257 = vmatprep.subr.bf16.mxu0 0
    %5258 = vmatpush1.bf16.msra.mxu0 %v3839
    %5259 = vmatprep.subr.bf16.mxu0 0
    %5260 = vmatpush1.bf16.msra.mxu0 %v3840
    %5261 = vmatprep.subr.bf16.mxu0 0
    %5262 = vmatpush1.bf16.msra.mxu0 %v3841
    %5263 = vmatprep.subr.bf16.mxu0 0
    %5264 = vmatpush1.bf16.msra.mxu0 %v3842
    %5265 = vmatprep.subr.bf16.mxu0 0
    %5266 = vmatpush1.bf16.msra.mxu0 %v3843
    %5267 = vmatprep.subr.bf16.mxu0 0
    %5268 = vmatpush1.bf16.msra.mxu0 %v3844
    %5269 = vmatprep.mubr.bf16.mxu0 %v1302
    %5270 = vmatmul.mubr.bf16.gmra.mrb[0].mxu0 %v1288
    %v5271 = vpop.f32.mrb[0].mxu0
    %v5272 = vadd.f32 %v5232, %v5271
    %v5273 = vpop.f32.mrb[0].mxu0
    %v5274 = vpop.f32.mrb[0].mxu0
    %v5275 = vpop.f32.mrb[0].mxu0
    %5276 = vdwg.mxu0
    %5277 = vmatprep.subr.bf16.mxu0 0
    %5278 = vmatpush1.bf16.msra.mxu0 %v3845
    %5279 = vmatprep.subr.bf16.mxu0 0
    %5280 = vmatpush1.bf16.msra.mxu0 %v3846
    %5281 = vmatprep.subr.bf16.mxu0 0
    %5282 = vmatpush1.bf16.msra.mxu0 %v3847
    %5283 = vmatprep.subr.bf16.mxu0 0
    %5284 = vmatpush1.bf16.msra.mxu0 %v3848
    %5285 = vmatprep.subr.bf16.mxu0 0
    %5286 = vmatpush1.bf16.msra.mxu0 %v3849
    %5287 = vmatprep.subr.bf16.mxu0 0
    %5288 = vmatpush1.bf16.msra.mxu0 %v3850
    %5289 = vmatprep.subr.bf16.mxu0 0
    %5290 = vmatpush1.bf16.msra.mxu0 %v3851
    %5291 = vmatprep.subr.bf16.mxu0 0
    %5292 = vmatpush1.bf16.msra.mxu0 %v3852
    %5293 = vmatprep.subr.bf16.mxu0 0
    %5294 = vmatpush1.bf16.msra.mxu0 %v3853
    %5295 = vmatprep.subr.bf16.mxu0 0
    %5296 = vmatpush1.bf16.msra.mxu0 %v3854
    %5297 = vmatprep.subr.bf16.mxu0 0
    %5298 = vmatpush1.bf16.msra.mxu0 %v3855
    %5299 = vmatprep.subr.bf16.mxu0 0
    %5300 = vmatpush1.bf16.msra.mxu0 %v3856
    %5301 = vmatprep.subr.bf16.mxu0 0
    %5302 = vmatpush1.bf16.msra.mxu0 %v3857
    %5303 = vmatprep.subr.bf16.mxu0 0
    %5304 = vmatpush1.bf16.msra.mxu0 %v3858
    %5305 = vmatprep.subr.bf16.mxu0 0
    %5306 = vmatpush1.bf16.msra.mxu0 %v3859
    %5307 = vmatprep.subr.bf16.mxu0 0
    %5308 = vmatpush1.bf16.msra.mxu0 %v3860
    %5309 = vmatprep.mubr.bf16.mxu0 %v1312
    %5310 = vmatmul.mubr.bf16.gmra.mrb[0].mxu0 %v1310
    %v5311 = vpop.f32.mrb[0].mxu0
    %v5312 = vadd.f32 %v5272, %v5311
    %v5313 = vpop.f32.mrb[0].mxu0
    %v5314 = vpop.f32.mrb[0].mxu0
    %v5315 = vpop.f32.mrb[0].mxu0
    %5316 = vdwg.mxu0
    %5317 = vmatprep.subr.bf16.mxu0 0
    %5318 = vmatpush1.bf16.msra.mxu0 %v3861
    %5319 = vmatprep.subr.bf16.mxu0 0
    %5320 = vmatpush1.bf16.msra.mxu0 %v3862
    %5321 = vmatprep.subr.bf16.mxu0 0
    %5322 = vmatpush1.bf16.msra.mxu0 %v3863
    %5323 = vmatprep.subr.bf16.mxu0 0
    %5324 = vmatpush1.bf16.msra.mxu0 %v3864
    %5325 = vmatprep.subr.bf16.mxu0 0
    %5326 = vmatpush1.bf16.msra.mxu0 %v3865
    %5327 = vmatprep.subr.bf16.mxu0 0
    %5328 = vmatpush1.bf16.msra.mxu0 %v3866
    %5329 = vmatprep.subr.bf16.mxu0 0
    %5330 = vmatpush1.bf16.msra.mxu0 %v3867
    %5331 = vmatprep.subr.bf16.mxu0 0
    %5332 = vmatpush1.bf16.msra.mxu0 %v3868
    %5333 = vmatprep.subr.bf16.mxu0 0
    %5334 = vmatpush1.bf16.msra.mxu0 %v3869
    %5335 = vmatprep.subr.bf16.mxu0 0
    %5336 = vmatpush1.bf16.msra.mxu0 %v3870
    %5337 = vmatprep.subr.bf16.mxu0 0
    %5338 = vmatpush1.bf16.msra.mxu0 %v3871
    %5339 = vmatprep.subr.bf16.mxu0 0
    %5340 = vmatpush1.bf16.msra.mxu0 %v3872
    %5341 = vmatprep.subr.bf16.mxu0 0
    %5342 = vmatpush1.bf16.msra.mxu0 %v3873
    %5343 = vmatprep.subr.bf16.mxu0 0
    %5344 = vmatpush1.bf16.msra.mxu0 %v3874
    %5345 = vmatprep.subr.bf16.mxu0 0
    %5346 = vmatpush1.bf16.msra.mxu0 %v3875
    %5347 = vmatprep.subr.bf16.mxu0 0
    %5348 = vmatpush1.bf16.msra.mxu0 %v3876
    %5349 = vmatprep.mubr.bf16.mxu0 %v1309
    %5350 = vmatmul.mubr.bf16.gmra.mrb[0].mxu0 %v1295
    %v5351 = vpop.f32.mrb[0].mxu0
    %v5352 = vadd.f32 %v5312, %v5351
    %v5353 = vpop.f32.mrb[0].mxu0
    %v5354 = vpop.f32.mrb[0].mxu0
    %v5355 = vpop.f32.mrb[0].mxu0
    %5356 = vdwg.mxu0
    %5357 = vmatprep.subr.bf16.mxu0 0
    %5358 = vmatpush1.bf16.msra.mxu0 %v3877
    %5359 = vmatprep.subr.bf16.mxu0 0
    %5360 = vmatpush1.bf16.msra.mxu0 %v3878
    %5361 = vmatprep.subr.bf16.mxu0 0
    %5362 = vmatpush1.bf16.msra.mxu0 %v3879
    %5363 = vmatprep.subr.bf16.mxu0 0
    %5364 = vmatpush1.bf16.msra.mxu0 %v3880
    %5365 = vmatprep.subr.bf16.mxu0 0
    %5366 = vmatpush1.bf16.msra.mxu0 %v3881
    %5367 = vmatprep.subr.bf16.mxu0 0
    %5368 = vmatpush1.bf16.msra.mxu0 %v3882
    %5369 = vmatprep.subr.bf16.mxu0 0
    %5370 = vmatpush1.bf16.msra.mxu0 %v3883
    %5371 = vmatprep.subr.bf16.mxu0 0
    %5372 = vmatpush1.bf16.msra.mxu0 %v3884
    %5373 = vmatprep.subr.bf16.mxu0 0
    %5374 = vmatpush1.bf16.msra.mxu0 %v3885
    %5375 = vmatprep.subr.bf16.mxu0 0
    %5376 = vmatpush1.bf16.msra.mxu0 %v3886
    %5377 = vmatprep.subr.bf16.mxu0 0
    %5378 = vmatpush1.bf16.msra.mxu0 %v3887
    %5379 = vmatprep.subr.bf16.mxu0 0
    %5380 = vmatpush1.bf16.msra.mxu0 %v3888
    %5381 = vmatprep.subr.bf16.mxu0 0
    %5382 = vmatpush1.bf16.msra.mxu0 %v3889
    %5383 = vmatprep.subr.bf16.mxu0 0
    %5384 = vmatpush1.bf16.msra.mxu0 %v3890
    %5385 = vmatprep.subr.bf16.mxu0 0
    %5386 = vmatpush1.bf16.msra.mxu0 %v3891
    %5387 = vmatprep.subr.bf16.mxu0 0
    %5388 = vmatpush1.bf16.msra.mxu0 %v3892
    %5389 = vmatprep.mubr.bf16.mxu0 %v1313
    %5390 = vmatmul.mubr.bf16.gmra.mrb[0].mxu0 %v1311
    %v5391 = vpop.f32.mrb[0].mxu0
    %v5392 = vadd.f32 %v5352, %v5391
    %v5393 = vpop.f32.mrb[0].mxu0
    %v5394 = vpop.f32.mrb[0].mxu0
    %v5395 = vpop.f32.mrb[0].mxu0
    %5396 = vdwg.mxu0
    %5397 = vmatprep.subr.bf16.mxu0 0
    %5398 = vmatpush1.bf16.msra.mxu0 %v3893
    %5399 = vmatprep.subr.bf16.mxu0 0
    %5400 = vmatpush1.bf16.msra.mxu0 %v3894
    %5401 = vmatprep.subr.bf16.mxu0 0
    %5402 = vmatpush1.bf16.msra.mxu0 %v3895
    %5403 = vmatprep.subr.bf16.mxu0 0
    %5404 = vmatpush1.bf16.msra.mxu0 %v3896
    %5405 = vmatprep.subr.bf16.mxu0 0
    %5406 = vmatpush1.bf16.msra.mxu0 %v3897
    %5407 = vmatprep.subr.bf16.mxu0 0
    %5408 = vmatpush1.bf16.msra.mxu0 %v3898
    %5409 = vmatprep.subr.bf16.mxu0 0
    %5410 = vmatpush1.bf16.msra.mxu0 %v3899
    %5411 = vmatprep.subr.bf16.mxu0 0
    %5412 = vmatpush1.bf16.msra.mxu0 %v3900
    %5413 = vmatprep.subr.bf16.mxu0 0
    %5414 = vmatpush1.bf16.msra.mxu0 %v3901
    %5415 = vmatprep.subr.bf16.mxu0 0
    %5416 = vmatpush1.bf16.msra.mxu0 %v3902
    %5417 = vmatprep.subr.bf16.mxu0 0
    %5418 = vmatpush1.bf16.msra.mxu0 %v3903
    %5419 = vmatprep.subr.bf16.mxu0 0
    %5420 = vmatpush1.bf16.msra.mxu0 %v3904
    %5421 = vmatprep.subr.bf16.mxu0 0
    %5422 = vmatpush1.bf16.msra.mxu0 %v3905
    %5423 = vmatprep.subr.bf16.mxu0 0
    %5424 = vmatpush1.bf16.msra.mxu0 %v3906
    %5425 = vmatprep.subr.bf16.mxu0 0
    %5426 = vmatpush1.bf16.msra.mxu0 %v3907
    %5427 = vmatprep.subr.bf16.mxu0 0
    %5428 = vmatpush1.bf16.msra.mxu0 %v3908
    %5429 = vmatprep.mubr.bf16.mxu0 %v1351
    %5430 = vmatmul.mubr.bf16.gmra.mrb[0].mxu0 %v1337
    %v5431 = vpop.f32.mrb[0].mxu0
    %v5432 = vadd.f32 %v5392, %v5431
    %v5433 = vpop.f32.mrb[0].mxu0
    %v5434 = vpop.f32.mrb[0].mxu0
    %v5435 = vpop.f32.mrb[0].mxu0
    %5436 = vdwg.mxu0
    %5437 = vmatprep.subr.bf16.mxu0 0
    %5438 = vmatpush1.bf16.msra.mxu0 %v3909
    %5439 = vmatprep.subr.bf16.mxu0 0
    %5440 = vmatpush1.bf16.msra.mxu0 %v3910
    %5441 = vmatprep.subr.bf16.mxu0 0
    %5442 = vmatpush1.bf16.msra.mxu0 %v3911
    %5443 = vmatprep.subr.bf16.mxu0 0
    %5444 = vmatpush1.bf16.msra.mxu0 %v3912
    %5445 = vmatprep.subr.bf16.mxu0 0
    %5446 = vmatpush1.bf16.msra.mxu0 %v3913
    %5447 = vmatprep.subr.bf16.mxu0 0
    %5448 = vmatpush1.bf16.msra.mxu0 %v3914
    %5449 = vmatprep.subr.bf16.mxu0 0
    %5450 = vmatpush1.bf16.msra.mxu0 %v3915
    %5451 = vmatprep.subr.bf16.mxu0 0
    %5452 = vmatpush1.bf16.msra.mxu0 %v3916
    %5453 = vmatprep.subr.bf16.mxu0 0
    %5454 = vmatpush1.bf16.msra.mxu0 %v3917
    %5455 = vmatprep.subr.bf16.mxu0 0
    %5456 = vmatpush1.bf16.msra.mxu0 %v3918
    %5457 = vmatprep.subr.bf16.mxu0 0
    %5458 = vmatpush1.bf16.msra.mxu0 %v3919
    %5459 = vmatprep.subr.bf16.mxu0 0
    %5460 = vmatpush1.bf16.msra.mxu0 %v3920
    %5461 = vmatprep.subr.bf16.mxu0 0
    %5462 = vmatpush1.bf16.msra.mxu0 %v3921
    %5463 = vmatprep.subr.bf16.mxu0 0
    %5464 = vmatpush1.bf16.msra.mxu0 %v3922
    %5465 = vmatprep.subr.bf16.mxu0 0
    %5466 = vmatpush1.bf16.msra.mxu0 %v3923
    %5467 = vmatprep.subr.bf16.mxu0 0
    %5468 = vmatpush1.bf16.msra.mxu0 %v3924
    %5469 = vmatprep.mubr.bf16.mxu0 %v1361
    %5470 = vmatmul.mubr.bf16.gmra.mrb[0].mxu0 %v1359
    %v5471 = vpop.f32.mrb[0].mxu0
    %v5472 = vadd.f32 %v5432, %v5471
    %v5473 = vpop.f32.mrb[0].mxu0
    %v5474 = vpop.f32.mrb[0].mxu0
    %v5475 = vpop.f32.mrb[0].mxu0
    %5476 = vdwg.mxu0
    %5477 = vmatprep.subr.bf16.mxu0 0
    %5478 = vmatpush1.bf16.msra.mxu0 %v3925
    %5479 = vmatprep.subr.bf16.mxu0 0
    %5480 = vmatpush1.bf16.msra.mxu0 %v3926
    %5481 = vmatprep.subr.bf16.mxu0 0
    %5482 = vmatpush1.bf16.msra.mxu0 %v3927
    %5483 = vmatprep.subr.bf16.mxu0 0
    %5484 = vmatpush1.bf16.msra.mxu0 %v3928
    %5485 = vmatprep.subr.bf16.mxu0 0
    %5486 = vmatpush1.bf16.msra.mxu0 %v3929
    %5487 = vmatprep.subr.bf16.mxu0 0
    %5488 = vmatpush1.bf16.msra.mxu0 %v3930
    %5489 = vmatprep.subr.bf16.mxu0 0
    %5490 = vmatpush1.bf16.msra.mxu0 %v3931
    %5491 = vmatprep.subr.bf16.mxu0 0
    %5492 = vmatpush1.bf16.msra.mxu0 %v3932
    %5493 = vmatprep.subr.bf16.mxu0 0
    %5494 = vmatpush1.bf16.msra.mxu0 %v3933
    %5495 = vmatprep.subr.bf16.mxu0 0
    %5496 = vmatpush1.bf16.msra.mxu0 %v3934
    %5497 = vmatprep.subr.bf16.mxu0 0
    %5498 = vmatpush1.bf16.msra.mxu0 %v3935
    %5499 = vmatprep.subr.bf16.mxu0 0
    %5500 = vmatpush1.bf16.msra.mxu0 %v3936
    %5501 = vmatprep.subr.bf16.mxu0 0
    %5502 = vmatpush1.bf16.msra.mxu0 %v3937
    %5503 = vmatprep.subr.bf16.mxu0 0
    %5504 = vmatpush1.bf16.msra.mxu0 %v3938
    %5505 = vmatprep.subr.bf16.mxu0 0
    %5506 = vmatpush1.bf16.msra.mxu0 %v3939
    %5507 = vmatprep.subr.bf16.mxu0 0
    %5508 = vmatpush1.bf16.msra.mxu0 %v3940
    %5509 = vmatprep.mubr.bf16.mxu0 %v1358
    %5510 = vmatmul.mubr.bf16.gmra.mrb[0].mxu0 %v1344
    %v5511 = vpop.f32.mrb[0].mxu0
    %v5512 = vadd.f32 %v5472, %v5511
    %v5513 = vpop.f32.mrb[0].mxu0
    %v5514 = vpop.f32.mrb[0].mxu0
    %v5515 = vpop.f32.mrb[0].mxu0
    %5516 = vdwg.mxu0
    %5517 = vmatprep.subr.bf16.mxu0 0
    %5518 = vmatpush1.bf16.msra.mxu0 %v3941
    %5519 = vmatprep.subr.bf16.mxu0 0
    %5520 = vmatpush1.bf16.msra.mxu0 %v3942
    %5521 = vmatprep.subr.bf16.mxu0 0
    %5522 = vmatpush1.bf16.msra.mxu0 %v3943
    %5523 = vmatprep.subr.bf16.mxu0 0
    %5524 = vmatpush1.bf16.msra.mxu0 %v3944
    %5525 = vmatprep.subr.bf16.mxu0 0
    %5526 = vmatpush1.bf16.msra.mxu0 %v3945
    %5527 = vmatprep.subr.bf16.mxu0 0
    %5528 = vmatpush1.bf16.msra.mxu0 %v3946
    %5529 = vmatprep.subr.bf16.mxu0 0
    %5530 = vmatpush1.bf16.msra.mxu0 %v3947
    %5531 = vmatprep.subr.bf16.mxu0 0
    %5532 = vmatpush1.bf16.msra.mxu0 %v3948
    %5533 = vmatprep.subr.bf16.mxu0 0
    %5534 = vmatpush1.bf16.msra.mxu0 %v3949
    %5535 = vmatprep.subr.bf16.mxu0 0
    %5536 = vmatpush1.bf16.msra.mxu0 %v3950
    %5537 = vmatprep.subr.bf16.mxu0 0
    %5538 = vmatpush1.bf16.msra.mxu0 %v3951
    %5539 = vmatprep.subr.bf16.mxu0 0
    %5540 = vmatpush1.bf16.msra.mxu0 %v3952
    %5541 = vmatprep.subr.bf16.mxu0 0
    %5542 = vmatpush1.bf16.msra.mxu0 %v3953
    %5543 = vmatprep.subr.bf16.mxu0 0
    %5544 = vmatpush1.bf16.msra.mxu0 %v3954
    %5545 = vmatprep.subr.bf16.mxu0 0
    %5546 = vmatpush1.bf16.msra.mxu0 %v3955
    %5547 = vmatprep.subr.bf16.mxu0 0
    %5548 = vmatpush1.bf16.msra.mxu0 %v3956
    %5549 = vmatprep.mubr.bf16.mxu0 %v1362
    %5550 = vmatmul.mubr.bf16.gmra.mrb[0].mxu0 %v1360
    %v5551 = vpop.f32.mrb[0].mxu0
    %v5552 = vadd.f32 %v5512, %v5551
    %v5553 = vpop.f32.mrb[0].mxu0
    %v5554 = vpop.f32.mrb[0].mxu0
    %v5555 = vpop.f32.mrb[0].mxu0
    %5556 = vdwg.mxu0
    %5557 = vmatprep.subr.bf16.mxu0 0
    %5558 = vmatpush1.bf16.msra.mxu0 %v3957
    %5559 = vmatprep.subr.bf16.mxu0 0
    %5560 = vmatpush1.bf16.msra.mxu0 %v3958
    %5561 = vmatprep.subr.bf16.mxu0 0
    %5562 = vmatpush1.bf16.msra.mxu0 %v3959
    %5563 = vmatprep.subr.bf16.mxu0 0
    %5564 = vmatpush1.bf16.msra.mxu0 %v3960
    %5565 = vmatprep.subr.bf16.mxu0 0
    %5566 = vmatpush1.bf16.msra.mxu0 %v3961
    %5567 = vmatprep.subr.bf16.mxu0 0
    %5568 = vmatpush1.bf16.msra.mxu0 %v3962
    %5569 = vmatprep.subr.bf16.mxu0 0
    %5570 = vmatpush1.bf16.msra.mxu0 %v3963
    %5571 = vmatprep.subr.bf16.mxu0 0
    %5572 = vmatpush1.bf16.msra.mxu0 %v3964
    %5573 = vmatprep.subr.bf16.mxu0 0
    %5574 = vmatpush1.bf16.msra.mxu0 %v3965
    %5575 = vmatprep.subr.bf16.mxu0 0
    %5576 = vmatpush1.bf16.msra.mxu0 %v3966
    %5577 = vmatprep.subr.bf16.mxu0 0
    %5578 = vmatpush1.bf16.msra.mxu0 %v3967
    %5579 = vmatprep.subr.bf16.mxu0 0
    %5580 = vmatpush1.bf16.msra.mxu0 %v3968
    %5581 = vmatprep.subr.bf16.mxu0 0
    %5582 = vmatpush1.bf16.msra.mxu0 %v3969
    %5583 = vmatprep.subr.bf16.mxu0 0
    %5584 = vmatpush1.bf16.msra.mxu0 %v3970
    %5585 = vmatprep.subr.bf16.mxu0 0
    %5586 = vmatpush1.bf16.msra.mxu0 %v3971
    %5587 = vmatprep.subr.bf16.mxu0 0
    %5588 = vmatpush1.bf16.msra.mxu0 %v3972
    %5589 = vmatprep.mubr.bf16.mxu0 %v1400
    %5590 = vmatmul.mubr.bf16.gmra.mrb[0].mxu0 %v1386
    %v5591 = vpop.f32.mrb[0].mxu0
    %v5592 = vadd.f32 %v5552, %v5591
    %v5593 = vpop.f32.mrb[0].mxu0
    %v5594 = vpop.f32.mrb[0].mxu0
    %v5595 = vpop.f32.mrb[0].mxu0
    %5596 = vdwg.mxu0
    %5597 = vmatprep.subr.bf16.mxu0 0
    %5598 = vmatpush1.bf16.msra.mxu0 %v3973
    %5599 = vmatprep.subr.bf16.mxu0 0
    %5600 = vmatpush1.bf16.msra.mxu0 %v3974
    %5601 = vmatprep.subr.bf16.mxu0 0
    %5602 = vmatpush1.bf16.msra.mxu0 %v3975
    %5603 = vmatprep.subr.bf16.mxu0 0
    %5604 = vmatpush1.bf16.msra.mxu0 %v3976
    %5605 = vmatprep.subr.bf16.mxu0 0
    %5606 = vmatpush1.bf16.msra.mxu0 %v3977
    %5607 = vmatprep.subr.bf16.mxu0 0
    %5608 = vmatpush1.bf16.msra.mxu0 %v3978
    %5609 = vmatprep.subr.bf16.mxu0 0
    %5610 = vmatpush1.bf16.msra.mxu0 %v3979
    %5611 = vmatprep.subr.bf16.mxu0 0
    %5612 = vmatpush1.bf16.msra.mxu0 %v3980
    %5613 = vmatprep.subr.bf16.mxu0 0
    %5614 = vmatpush1.bf16.msra.mxu0 %v3981
    %5615 = vmatprep.subr.bf16.mxu0 0
    %5616 = vmatpush1.bf16.msra.mxu0 %v3982
    %5617 = vmatprep.subr.bf16.mxu0 0
    %5618 = vmatpush1.bf16.msra.mxu0 %v3983
    %5619 = vmatprep.subr.bf16.mxu0 0
    %5620 = vmatpush1.bf16.msra.mxu0 %v3984
    %5621 = vmatprep.subr.bf16.mxu0 0
    %5622 = vmatpush1.bf16.msra.mxu0 %v3985
    %5623 = vmatprep.subr.bf16.mxu0 0
    %5624 = vmatpush1.bf16.msra.mxu0 %v3986
    %5625 = vmatprep.subr.bf16.mxu0 0
    %5626 = vmatpush1.bf16.msra.mxu0 %v3987
    %5627 = vmatprep.subr.bf16.mxu0 0
    %5628 = vmatpush1.bf16.msra.mxu0 %v3988
    %5629 = vmatprep.mubr.bf16.mxu0 %v1410
    %5630 = vmatmul.mubr.bf16.gmra.mrb[0].mxu0 %v1408
    %v5631 = vpop.f32.mrb[0].mxu0
    %v5632 = vadd.f32 %v5592, %v5631
    %v5633 = vpop.f32.mrb[0].mxu0
    %v5634 = vpop.f32.mrb[0].mxu0
    %v5635 = vpop.f32.mrb[0].mxu0
    %5636 = vdwg.mxu0
    %5637 = vmatprep.subr.bf16.mxu0 0
    %5638 = vmatpush1.bf16.msra.mxu0 %v3989
    %5639 = vmatprep.subr.bf16.mxu0 0
    %5640 = vmatpush1.bf16.msra.mxu0 %v3990
    %5641 = vmatprep.subr.bf16.mxu0 0
    %5642 = vmatpush1.bf16.msra.mxu0 %v3991
    %5643 = vmatprep.subr.bf16.mxu0 0
    %5644 = vmatpush1.bf16.msra.mxu0 %v3992
    %5645 = vmatprep.subr.bf16.mxu0 0
    %5646 = vmatpush1.bf16.msra.mxu0 %v3993
    %5647 = vmatprep.subr.bf16.mxu0 0
    %5648 = vmatpush1.bf16.msra.mxu0 %v3994
    %5649 = vmatprep.subr.bf16.mxu0 0
    %5650 = vmatpush1.bf16.msra.mxu0 %v3995
    %5651 = vmatprep.subr.bf16.mxu0 0
    %5652 = vmatpush1.bf16.msra.mxu0 %v3996
    %5653 = vmatprep.subr.bf16.mxu0 0
    %5654 = vmatpush1.bf16.msra.mxu0 %v3997
    %5655 = vmatprep.subr.bf16.mxu0 0
    %5656 = vmatpush1.bf16.msra.mxu0 %v3998
    %5657 = vmatprep.subr.bf16.mxu0 0
    %5658 = vmatpush1.bf16.msra.mxu0 %v3999
    %5659 = vmatprep.subr.bf16.mxu0 0
    %5660 = vmatpush1.bf16.msra.mxu0 %v4000
    %5661 = vmatprep.subr.bf16.mxu0 0
    %5662 = vmatpush1.bf16.msra.mxu0 %v4001
    %5663 = vmatprep.subr.bf16.mxu0 0
    %5664 = vmatpush1.bf16.msra.mxu0 %v4002
    %5665 = vmatprep.subr.bf16.mxu0 0
    %5666 = vmatpush1.bf16.msra.mxu0 %v4003
    %5667 = vmatprep.subr.bf16.mxu0 0
    %5668 = vmatpush1.bf16.msra.mxu0 %v4004
    %5669 = vmatprep.mubr.bf16.mxu0 %v1407
    %5670 = vmatmul.mubr.bf16.gmra.mrb[0].mxu0 %v1393
    %v5671 = vpop.f32.mrb[0].mxu0
    %v5672 = vadd.f32 %v5632, %v5671
    %v5673 = vpop.f32.mrb[0].mxu0
    %v5674 = vpop.f32.mrb[0].mxu0
    %v5675 = vpop.f32.mrb[0].mxu0
    %5676 = vdwg.mxu0
    %5677 = vmatprep.subr.bf16.mxu0 0
    %5678 = vmatpush1.bf16.msra.mxu0 %v4005
    %5679 = vmatprep.subr.bf16.mxu0 0
    %5680 = vmatpush1.bf16.msra.mxu0 %v4006
    %5681 = vmatprep.subr.bf16.mxu0 0
    %5682 = vmatpush1.bf16.msra.mxu0 %v4007
    %5683 = vmatprep.subr.bf16.mxu0 0
    %5684 = vmatpush1.bf16.msra.mxu0 %v4008
    %5685 = vmatprep.subr.bf16.mxu0 0
    %5686 = vmatpush1.bf16.msra.mxu0 %v4009
    %5687 = vmatprep.subr.bf16.mxu0 0
    %5688 = vmatpush1.bf16.msra.mxu0 %v4010
    %5689 = vmatprep.subr.bf16.mxu0 0
    %5690 = vmatpush1.bf16.msra.mxu0 %v4011
    %5691 = vmatprep.subr.bf16.mxu0 0
    %5692 = vmatpush1.bf16.msra.mxu0 %v4012
    %5693 = vmatprep.subr.bf16.mxu0 0
    %5694 = vmatpush1.bf16.msra.mxu0 %v4013
    %5695 = vmatprep.subr.bf16.mxu0 0
    %5696 = vmatpush1.bf16.msra.mxu0 %v4014
    %5697 = vmatprep.subr.bf16.mxu0 0
    %5698 = vmatpush1.bf16.msra.mxu0 %v4015
    %5699 = vmatprep.subr.bf16.mxu0 0
    %5700 = vmatpush1.bf16.msra.mxu0 %v4016
    %5701 = vmatprep.subr.bf16.mxu0 0
    %5702 = vmatpush1.bf16.msra.mxu0 %v4017
    %5703 = vmatprep.subr.bf16.mxu0 0
    %5704 = vmatpush1.bf16.msra.mxu0 %v4018
    %5705 = vmatprep.subr.bf16.mxu0 0
    %5706 = vmatpush1.bf16.msra.mxu0 %v4019
    %5707 = vmatprep.subr.bf16.mxu0 0
    %5708 = vmatpush1.bf16.msra.mxu0 %v4020
    %5709 = vmatprep.mubr.bf16.mxu0 %v1411
    %5710 = vmatmul.mubr.bf16.gmra.mrb[0].mxu0 %v1409
    %v5711 = vpop.f32.mrb[0].mxu0
    %v5712 = vadd.f32 %v5672, %v5711
    %v5713 = vpop.f32.mrb[0].mxu0
    %v5714 = vpop.f32.mrb[0].mxu0
    %v5715 = vpop.f32.mrb[0].mxu0
    %5716 = vdwg.mxu0
    %5717 = vmatprep.subr.bf16.mxu0 0
    %5718 = vmatpush1.bf16.msra.mxu0 %v4021
    %5719 = vmatprep.subr.bf16.mxu0 0
    %5720 = vmatpush1.bf16.msra.mxu0 %v4022
    %5721 = vmatprep.subr.bf16.mxu0 0
    %5722 = vmatpush1.bf16.msra.mxu0 %v4023
    %5723 = vmatprep.subr.bf16.mxu0 0
    %5724 = vmatpush1.bf16.msra.mxu0 %v4024
    %5725 = vmatprep.subr.bf16.mxu0 0
    %5726 = vmatpush1.bf16.msra.mxu0 %v4025
    %5727 = vmatprep.subr.bf16.mxu0 0
    %5728 = vmatpush1.bf16.msra.mxu0 %v4026
    %5729 = vmatprep.subr.bf16.mxu0 0
    %5730 = vmatpush1.bf16.msra.mxu0 %v4027
    %5731 = vmatprep.subr.bf16.mxu0 0
    %5732 = vmatpush1.bf16.msra.mxu0 %v4028
    %5733 = vmatprep.subr.bf16.mxu0 0
    %5734 = vmatpush1.bf16.msra.mxu0 %v4029
    %5735 = vmatprep.subr.bf16.mxu0 0
    %5736 = vmatpush1.bf16.msra.mxu0 %v4030
    %5737 = vmatprep.subr.bf16.mxu0 0
    %5738 = vmatpush1.bf16.msra.mxu0 %v4031
    %5739 = vmatprep.subr.bf16.mxu0 0
    %5740 = vmatpush1.bf16.msra.mxu0 %v4032
    %5741 = vmatprep.subr.bf16.mxu0 0
    %5742 = vmatpush1.bf16.msra.mxu0 %v4033
    %5743 = vmatprep.subr.bf16.mxu0 0
    %5744 = vmatpush1.bf16.msra.mxu0 %v4034
    %5745 = vmatprep.subr.bf16.mxu0 0
    %5746 = vmatpush1.bf16.msra.mxu0 %v4035
    %5747 = vmatprep.subr.bf16.mxu0 0
    %5748 = vmatpush1.bf16.msra.mxu0 %v4036
    %5749 = vmatprep.mubr.bf16.mxu0 %v1449
    %5750 = vmatmul.mubr.bf16.gmra.mrb[0].mxu0 %v1435
    %v5751 = vpop.f32.mrb[0].mxu0
    %v5752 = vadd.f32 %v5712, %v5751
    %v5753 = vpop.f32.mrb[0].mxu0
    %v5754 = vpop.f32.mrb[0].mxu0
    %v5755 = vpop.f32.mrb[0].mxu0
    %5756 = vdwg.mxu0
    %5757 = vmatprep.subr.bf16.mxu0 0
    %5758 = vmatpush1.bf16.msra.mxu0 %v4037
    %5759 = vmatprep.subr.bf16.mxu0 0
    %5760 = vmatpush1.bf16.msra.mxu0 %v4038
    %5761 = vmatprep.subr.bf16.mxu0 0
    %5762 = vmatpush1.bf16.msra.mxu0 %v4039
    %5763 = vmatprep.subr.bf16.mxu0 0
    %5764 = vmatpush1.bf16.msra.mxu0 %v4040
    %5765 = vmatprep.subr.bf16.mxu0 0
    %5766 = vmatpush1.bf16.msra.mxu0 %v4041
    %5767 = vmatprep.subr.bf16.mxu0 0
    %5768 = vmatpush1.bf16.msra.mxu0 %v4042
    %5769 = vmatprep.subr.bf16.mxu0 0
    %5770 = vmatpush1.bf16.msra.mxu0 %v4043
    %5771 = vmatprep.subr.bf16.mxu0 0
    %5772 = vmatpush1.bf16.msra.mxu0 %v4044
    %5773 = vmatprep.subr.bf16.mxu0 0
    %5774 = vmatpush1.bf16.msra.mxu0 %v4045
    %5775 = vmatprep.subr.bf16.mxu0 0
    %5776 = vmatpush1.bf16.msra.mxu0 %v4046
    %5777 = vmatprep.subr.bf16.mxu0 0
    %5778 = vmatpush1.bf16.msra.mxu0 %v4047
    %5779 = vmatprep.subr.bf16.mxu0 0
    %5780 = vmatpush1.bf16.msra.mxu0 %v4048
    %5781 = vmatprep.subr.bf16.mxu0 0
    %5782 = vmatpush1.bf16.msra.mxu0 %v4049
    %5783 = vmatprep.subr.bf16.mxu0 0
    %5784 = vmatpush1.bf16.msra.mxu0 %v4050
    %5785 = vmatprep.subr.bf16.mxu0 0
    %5786 = vmatpush1.bf16.msra.mxu0 %v4051
    %5787 = vmatprep.subr.bf16.mxu0 0
    %5788 = vmatpush1.bf16.msra.mxu0 %v4052
    %5789 = vmatprep.mubr.bf16.mxu0 %v1459
    %5790 = vmatmul.mubr.bf16.gmra.mrb[0].mxu0 %v1457
    %v5791 = vpop.f32.mrb[0].mxu0
    %v5792 = vadd.f32 %v5752, %v5791
    %v5793 = vpop.f32.mrb[0].mxu0
    %v5794 = vpop.f32.mrb[0].mxu0
    %v5795 = vpop.f32.mrb[0].mxu0
    %5796 = vdwg.mxu0
    %5797 = vmatprep.subr.bf16.mxu0 0
    %5798 = vmatpush1.bf16.msra.mxu0 %v4053
    %5799 = vmatprep.subr.bf16.mxu0 0
    %5800 = vmatpush1.bf16.msra.mxu0 %v4054
    %5801 = vmatprep.subr.bf16.mxu0 0
    %5802 = vmatpush1.bf16.msra.mxu0 %v4055
    %5803 = vmatprep.subr.bf16.mxu0 0
    %5804 = vmatpush1.bf16.msra.mxu0 %v4056
    %5805 = vmatprep.subr.bf16.mxu0 0
    %5806 = vmatpush1.bf16.msra.mxu0 %v4057
    %5807 = vmatprep.subr.bf16.mxu0 0
    %5808 = vmatpush1.bf16.msra.mxu0 %v4058
    %5809 = vmatprep.subr.bf16.mxu0 0
    %5810 = vmatpush1.bf16.msra.mxu0 %v4059
    %5811 = vmatprep.subr.bf16.mxu0 0
    %5812 = vmatpush1.bf16.msra.mxu0 %v4060
    %5813 = vmatprep.subr.bf16.mxu0 0
    %5814 = vmatpush1.bf16.msra.mxu0 %v4061
    %5815 = vmatprep.subr.bf16.mxu0 0
    %5816 = vmatpush1.bf16.msra.mxu0 %v4062
    %5817 = vmatprep.subr.bf16.mxu0 0
    %5818 = vmatpush1.bf16.msra.mxu0 %v4063
    %5819 = vmatprep.subr.bf16.mxu0 0
    %5820 = vmatpush1.bf16.msra.mxu0 %v4064
    %5821 = vmatprep.subr.bf16.mxu0 0
    %5822 = vmatpush1.bf16.msra.mxu0 %v4065
    %5823 = vmatprep.subr.bf16.mxu0 0
    %5824 = vmatpush1.bf16.msra.mxu0 %v4066
    %5825 = vmatprep.subr.bf16.mxu0 0
    %5826 = vmatpush1.bf16.msra.mxu0 %v4067
    %5827 = vmatprep.subr.bf16.mxu0 0
    %5828 = vmatpush1.bf16.msra.mxu0 %v4068
    %5829 = vmatprep.mubr.bf16.mxu0 %v1456
    %5830 = vmatmul.mubr.bf16.gmra.mrb[0].mxu0 %v1442
    %v5831 = vpop.f32.mrb[0].mxu0
    %v5832 = vadd.f32 %v5792, %v5831
    %v5833 = vpop.f32.mrb[0].mxu0
    %v5834 = vpop.f32.mrb[0].mxu0
    %v5835 = vpop.f32.mrb[0].mxu0
    %5836 = vdwg.mxu0
    %5837 = vmatprep.subr.bf16.mxu0 0
    %5838 = vmatpush1.bf16.msra.mxu0 %v4069
    %5839 = vmatprep.subr.bf16.mxu0 0
    %5840 = vmatpush1.bf16.msra.mxu0 %v4070
    %5841 = vmatprep.subr.bf16.mxu0 0
    %5842 = vmatpush1.bf16.msra.mxu0 %v4071
    %5843 = vmatprep.subr.bf16.mxu0 0
    %5844 = vmatpush1.bf16.msra.mxu0 %v4072
    %5845 = vmatprep.subr.bf16.mxu0 0
    %5846 = vmatpush1.bf16.msra.mxu0 %v4073
    %5847 = vmatprep.subr.bf16.mxu0 0
    %5848 = vmatpush1.bf16.msra.mxu0 %v4074
    %5849 = vmatprep.subr.bf16.mxu0 0
    %5850 = vmatpush1.bf16.msra.mxu0 %v4075
    %5851 = vmatprep.subr.bf16.mxu0 0
    %5852 = vmatpush1.bf16.msra.mxu0 %v4076
    %5853 = vmatprep.subr.bf16.mxu0 0
    %5854 = vmatpush1.bf16.msra.mxu0 %v4077
    %5855 = vmatprep.subr.bf16.mxu0 0
    %5856 = vmatpush1.bf16.msra.mxu0 %v4078
    %5857 = vmatprep.subr.bf16.mxu0 0
    %5858 = vmatpush1.bf16.msra.mxu0 %v4079
    %5859 = vmatprep.subr.bf16.mxu0 0
    %5860 = vmatpush1.bf16.msra.mxu0 %v4080
    %5861 = vmatprep.subr.bf16.mxu0 0
    %5862 = vmatpush1.bf16.msra.mxu0 %v4081
    %5863 = vmatprep.subr.bf16.mxu0 0
    %5864 = vmatpush1.bf16.msra.mxu0 %v4082
    %5865 = vmatprep.subr.bf16.mxu0 0
    %5866 = vmatpush1.bf16.msra.mxu0 %v4083
    %5867 = vmatprep.subr.bf16.mxu0 0
    %5868 = vmatpush1.bf16.msra.mxu0 %v4084
    %5869 = vmatprep.mubr.bf16.mxu0 %v1460
    %5870 = vmatmul.mubr.bf16.gmra.mrb[0].mxu0 %v1458
    %v5871 = vpop.f32.mrb[0].mxu0
    %v5872 = vadd.f32 %v5832, %v5871
    %v5873 = vpop.f32.mrb[0].mxu0
    %v5874 = vpop.f32.mrb[0].mxu0
    %v5875 = vpop.f32.mrb[0].mxu0
    %5876 = vdwg.mxu0
    %v5877 = vmax.f32 %v5872, 0.0
    %v5878 = vld [vmem:[%s3] sm:$0xff]
    %v5879 = vld [vmem:[%s3 + $0x8] sm:$0xff]
    %v5880 = vld [vmem:[%s3 + $0x10] sm:$0xff]
    %v5881 = vld [vmem:[%s3 + $0x18] sm:$0xff]
    %v5882 = vld [vmem:[%s3 + $0x20] sm:$0xff]
    %v5883 = vld [vmem:[%s3 + $0x28] sm:$0xff]
    %v5884 = vld [vmem:[%s3 + $0x30] sm:$0xff]
    %v5885 = vld [vmem:[%s3 + $0x38] sm:$0xff]
    %v5886 = vld [vmem:[%s3 + $0x40] sm:$0xff]
    %v5887 = vld [vmem:[%s3 + $0x48] sm:$0xff]
    %v5888 = vld [vmem:[%s3 + $0x50] sm:$0xff]
    %v5889 = vld [vmem:[%s3 + $0x58] sm:$0xff]
    %v5890 = vld [vmem:[%s3 + $0x60] sm:$0xff]
    %v5891 = vld [vmem:[%s3 + $0x68] sm:$0xff]
    %v5892 = vld [vmem:[%s3 + $0x70] sm:$0xff]
    %v5893 = vld [vmem:[%s3 + $0x78] sm:$0xff]
    %v5894 = vld [vmem:[%s4] sm:$0x1]
    %v5896 = vlaneseq
    %v5897 = vshrl.u32 %v5896, 7
    %v5898 = vsub.s32 0, %v5897
    %v5899 = vrot.slane %v5894, %v5898
    %5901 = vmatprep.subr.mxu0 0.0
    %5902 = vmatpush1.msra.mxu0 %v5878
    %5903 = vmatprep.subr.mxu0 0.0
    %5904 = vmatpush1.msra.mxu0 %v5879
    %5905 = vmatprep.subr.mxu0 0.0
    %5906 = vmatpush1.msra.mxu0 %v5880
    %5907 = vmatprep.subr.mxu0 0.0
    %5908 = vmatpush1.msra.mxu0 %v5881
    %5909 = vmatprep.subr.mxu0 0.0
    %5910 = vmatpush1.msra.mxu0 %v5882
    %5911 = vmatprep.subr.mxu0 0.0
    %5912 = vmatpush1.msra.mxu0 %v5883
    %5913 = vmatprep.subr.mxu0 0.0
    %5914 = vmatpush1.msra.mxu0 %v5884
    %5915 = vmatprep.subr.mxu0 0.0
    %5916 = vmatpush1.msra.mxu0 %v5885
    %5917 = vmatprep.subr.mxu0 0.0
    %5918 = vmatpush1.msra.mxu0 %v5886
    %5919 = vmatprep.subr.mxu0 0.0
    %5920 = vmatpush1.msra.mxu0 %v5887
    %5921 = vmatprep.subr.mxu0 0.0
    %5922 = vmatpush1.msra.mxu0 %v5888
    %5923 = vmatprep.subr.mxu0 0.0
    %5924 = vmatpush1.msra.mxu0 %v5889
    %5925 = vmatprep.subr.mxu0 0.0
    %5926 = vmatpush1.msra.mxu0 %v5890
    %5927 = vmatprep.subr.mxu0 0.0
    %5928 = vmatpush1.msra.mxu0 %v5891
    %5929 = vmatprep.subr.mxu0 0.0
    %5930 = vmatpush1.msra.mxu0 %v5892
    %5931 = vmatprep.subr.mxu0 0.0
    %5932 = vmatpush1.msra.mxu0 %v5893
    %5933 = vmatprep.subr.mxu0 0.0
    %5934 = vmatpush1.msra.mxu0 0.0
    %5935 = vmatprep.subr.mxu0 0.0
    %5936 = vmatpush1.msra.mxu0 0.0
    %5937 = vmatprep.subr.mxu0 0.0
    %5938 = vmatpush1.msra.mxu0 0.0
    %5939 = vmatprep.subr.mxu0 0.0
    %5940 = vmatpush1.msra.mxu0 0.0
    %5941 = vmatprep.subr.mxu0 0.0
    %5942 = vmatpush1.msra.mxu0 0.0
    %5943 = vmatprep.subr.mxu0 0.0
    %5944 = vmatpush1.msra.mxu0 0.0
    %5945 = vmatprep.subr.mxu0 0.0
    %5946 = vmatpush1.msra.mxu0 0.0
    %5947 = vmatprep.subr.mxu0 0.0
    %5948 = vmatpush1.msra.mxu0 0.0
    %5949 = vmatprep.subr.mxu0 0.0
    %5950 = vmatpush1.msra.mxu0 0.0
    %5951 = vmatprep.subr.mxu0 0.0
    %5952 = vmatpush1.msra.mxu0 0.0
    %5953 = vmatprep.subr.mxu0 0.0
    %5954 = vmatpush1.msra.mxu0 0.0
    %5955 = vmatprep.subr.mxu0 0.0
    %5956 = vmatpush1.msra.mxu0 0.0
    %5957 = vmatprep.subr.mxu0 0.0
    %5958 = vmatpush1.msra.mxu0 0.0
    %5959 = vmatprep.subr.mxu0 0.0
    %5960 = vmatpush1.msra.mxu0 0.0
    %5961 = vmatprep.subr.mxu0 0.0
    %5962 = vmatpush1.msra.mxu0 0.0
    %5963 = vmatprep.subr.mxu0 0.0
    %5964 = vmatpush1.msra.mxu0 0.0
    %5965 = vmatprep.mubr.f32.mxu0 0.0
    %5966 = vmatmul.mubr.f32.gmra.mrb[0].mxu0 %v5877
    %v5967 = vpop.f32.mrb[0].mxu0
    %v5968 = vadd.f32 %v5899, %v5967
    %v5969 = vpop.f32.mrb[0].mxu0
    %5970 = vdwg.mxu0
    %vm5971 = vcmask 9216
    %5972 = vst.msk [vmem:[#allocation2] sm:$0x3] %vm5971, %v5968
    // Predicated region
    $region22: #{enhanced_cnn_forward.3} parent=1 // pred_check
      _
    $region23: #{enhanced_cnn_forward.3} parent=1 // pred_check_branch
      %5974 = sbr.rel (0) target = $region25
    $region24: #{enhanced_cnn_forward.3} parent=1 // pred_region
      %s5976 = ssub.s32 32, 32
      %5977 = vsyncadd [#allocation3], %s5976
      %s5979 = sshll.u32 [#allocation2], 4
      %s5980 = int_to_ptr.vmem [resolvable:$true] %s5979
      %5982 = dma.vmem_to_hbm [thread:$0]  %s5980, 32, %s5, [#allocation3]
    $region25: #{enhanced_cnn_forward.3} parent=1 // pred_fallthru
      _
    // Predicated region
    $region26: #{enhanced_cnn_forward.3} parent=1 // pred_check
      _
    $region27: #{enhanced_cnn_forward.3} parent=1 // pred_check_branch
      %5984 = sbr.rel (0) target = $region29
    $region28: #{enhanced_cnn_forward.3} parent=1 // pred_region
      %5985 = dma.done [#allocation3], 32
    $region29: #{enhanced_cnn_forward.3} parent=1 // pred_fallthru
      _
    %5986 = vsyncpa [#allocation3], 1

</llo_original>
